<compile_context>
chip_gen: v5e
topology: v5e:2x2
jax: 0.10.0
libtpu: 0.0.40
codegen_flags: <defaults>
</compile_context>

<pallas_src>
import functools

import numpy as np
import jax
import jax.numpy as jnp
from jax import lax
from jax.experimental import pallas as pl
from jax.experimental.pallas import tpu as pltpu


# (Cin, Cout, has_maxpool_after) for each conv layer, matching the nn.Sequential.
LAYER_CFG = [
    (3, 64, False),
    (64, 64, True),
    (64, 128, True),
    (128, 256, True),
    (256, 512, True),
    (512, 256, True),
]

# bf16 matmul operands with f32 accumulation: native MXU path on v5e/v6e/v7x.
# Use jnp.float32 here for bit-tight parity with the f32 PyTorch reference.
MATMUL_DTYPE = jnp.bfloat16


def _fused_backbone_kernel(*refs, matmul_dtype):
    """One grid step pushes a block of Bt samples through all 6 fused layers.

    refs = (x_ref, w0_cat, b0, [wp, wc, wn, b] * 5, o_ref)
      x_ref  : (Bt, L0, 8)       channels-last input block (Cin zero-padded)
      w0_cat : (24, 64)          layer-0 im2col weight (taps stacked on rows)
      wp/wc/wn : (Cin_l, Cout_l) per-tap weights for layers 1..5 (resident)
      b_l    : (1, Cout_l)       f32 bias
      o_ref  : (Bt, Lf, 256)     Lf = L0 // 32
    """
    x_ref, o_ref = refs[0], refs[-1]
    p = refs[1:-1]
    Bt, L, _ = x_ref.shape

    # Fold the batch block into the matmul M dimension with a layout-preserving
    # leading-dim reshape (C stays on lanes, Bt*L on sublanes): no copy.
    h = x_ref[...].reshape(Bt * L, x_ref.shape[2])

    M = Bt * L
    idx = 0
    for layer, (_, cout, pool) in enumerate(LAYER_CFG):
        # "same"-conv halo: +/-1 row shift.  Built with an XLU sublane rotate
        # (free slot) for normal tiles; tiny tail tiles (< 8 rows) fall back to
        # a static concat.  Per-sample boundary rows (which also cover the
        # rotate wrap rows) are the conv zero padding and get masked out.
        if M >= 8:
            prev = pltpu.roll(h, 1, axis=0)        # prev[m] = h[m-1]
            nxt = pltpu.roll(h, M - 1, axis=0)     # nxt[m]  = h[m+1]
        else:
            zrow = jnp.zeros((1, h.shape[1]), jnp.float32)
            prev = jnp.concatenate([zrow, h[:-1, :]], axis=0)
            nxt = jnp.concatenate([h[1:, :], zrow], axis=0)
        row = lax.broadcasted_iota(jnp.int32, (M, 1), 0)
        prev = jnp.where(row % L == 0, 0.0, prev)
        nxt = jnp.where(row % L == (L - 1), 0.0, nxt)

        hp = prev.astype(matmul_dtype)
        hc = h.astype(matmul_dtype)
        hn = nxt.astype(matmul_dtype)

        if layer == 0:
            # K = 3*8 = 24: one small dot beats three K=8 MXU passes.
            xcat = jnp.concatenate([hp, hc, hn], axis=-1)        # (M, 24)
            y = jnp.dot(xcat, p[idx][...], preferred_element_type=jnp.float32)
            bias = p[idx + 1][...]
            idx += 2
        else:
            # Three accumulating dots against per-tap resident weights: same
            # total K, no lane-dim concat, no 3x-wide activation materialized.
            y = jnp.dot(hc, p[idx + 1][...], preferred_element_type=jnp.float32)
            y = y + jnp.dot(hp, p[idx][...], preferred_element_type=jnp.float32)
            y = y + jnp.dot(hn, p[idx + 2][...], preferred_element_type=jnp.float32)
            bias = p[idx + 3][...]
            idx += 4

        y = jnp.maximum(y + bias, 0.0)             # bias + ReLU (f32)
        if pool:                                   # MaxPool1d(2, 2)
            y = jnp.max(y.reshape(M // 2, 2, cout), axis=1)
            M //= 2
            L //= 2
        h = y

    # (Bt*Lf, 256) -> (Bt, Lf, 256): leading-dim split, layout preserving.
    o_ref[...] = h.reshape(Bt, L, LAYER_CFG[-1][1])


def _peak_act_bytes_per_sample(L, matmul_dtype):
    """Peak live in-kernel activation bytes per sample across the 6 layers."""
    item = np.dtype(matmul_dtype).itemsize
    peak, Ls = 0, L
    for cin, cout, pool in LAYER_CFG:
        cin_e = max(cin, 8)
        peak = max(peak, Ls * (cin_e * 4            # h (f32)
                               + 3 * cin_e * item   # prev/h/nxt matmul operands
                               + cout * 4))         # f32 accumulator
        if pool:
            Ls //= 2
    return peak


def _choose_bt(B, L, matmul_dtype):
    """Samples folded into one matmul-M block, sized from VMEM + MXU fill."""
    if B <= 1:
        return 1
    per_sample = _peak_act_bytes_per_sample(L, matmul_dtype)
    bt = max(1, (16 * 1024 * 1024) // max(per_sample, 1))   # activation budget
    bt = min(bt, max(1, -(-(256 * 32) // L)))               # M >= 256 at layer 5
    bt = min(bt, max(1, (B + 1) // 2))                      # keep nblk >= 2 (v7x)
    return int(bt)


def backbone_forward(x_ncl, params, *, matmul_dtype=MATMUL_DTYPE):
    """x_ncl: (B, 3, L) NCL like PyTorch. Returns (B, 256 * (L // 32))."""
    B, C0, L0 = x_ncl.shape
    assert L0 % 32 == 0, "length must survive the 5 MaxPool1d(2,2) stages"
    Lf = L0 // 32
    cout_last = LAYER_CFG[-1][1]

    Bt = _choose_bt(B, L0, matmul_dtype)
    nblk = pl.cdiv(B, Bt)
    Bpad = nblk * Bt

    # Channels-last + Cin pad (3 -> 8) + batch pad: one tiny fused XLA copy of
    # the *network input* only; everything else stays inside the kernel.
    cin0p = max(C0, 8)
    h0 = jnp.transpose(x_ncl, (0, 2, 1))                          # (B, L0, C0)
    h0 = jnp.pad(h0, ((0, Bpad - B), (0, 0), (0, cin0p - C0)))    # (Bpad,L0,8)

    inputs = [h0]
    in_specs = [pl.BlockSpec((Bt, L0, cin0p), lambda i: (i, 0, 0))]

    for layer, ((w, b), (cin, cout, _)) in enumerate(zip(params, LAYER_CFG)):
        if layer == 0:
            wpad = jnp.pad(w, ((0, 0), (0, cin0p - cin), (0, 0)))  # (3, 8, 64)
            w_cat = wpad.reshape(3 * cin0p, cout).astype(matmul_dtype)
            inputs += [w_cat, b.reshape(1, cout)]
            in_specs += [pl.BlockSpec(w_cat.shape, lambda i: (0, 0)),
                         pl.BlockSpec((1, cout), lambda i: (0, 0))]
        else:
            wp, wc, wn = (w[k].astype(matmul_dtype) for k in range(3))
            inputs += [wp, wc, wn, b.reshape(1, cout)]
            in_specs += ([pl.BlockSpec((cin, cout), lambda i: (0, 0))] * 3
                         + [pl.BlockSpec((1, cout), lambda i: (0, 0))])

    # VMEM budget: resident params (double-buffered by the pipeline) + in/out
    # blocks (double-buffered) + in-kernel activation working set + headroom.
    param_bytes = sum(int(a.size) * np.dtype(a.dtype).itemsize for a in inputs[1:])
    io_bytes = (Bt * L0 * cin0p + Bt * Lf * cout_last) * 4
    act_bytes = Bt * _peak_act_bytes_per_sample(L0, matmul_dtype)
    vmem_limit = int(2 * param_bytes + 2 * io_bytes + act_bytes + (4 << 20))
    vmem_limit = min(max(vmem_limit, 16 << 20), 48 << 20)   # fits v7x's 64 MiB

    out3 = pl.pallas_call(
        functools.partial(_fused_backbone_kernel, matmul_dtype=matmul_dtype),
        out_shape=jax.ShapeDtypeStruct((Bpad, Lf, cout_last), jnp.float32),
        grid=(nblk,),
        in_specs=in_specs,
        out_specs=pl.BlockSpec((Bt, Lf, cout_last), lambda i: (i, 0, 0)),
        compiler_params=pltpu.CompilerParams(
            dimension_semantics=("parallel",),
            vmem_limit_bytes=vmem_limit),
    )(*inputs)

    out3 = out3[:B]                                    # drop batch padding
    # Final (B, Lf, 256) -> torch.flatten((B, 256, Lf), 1) order; tiny XLA copy.
    return jnp.transpose(out3, (0, 2, 1)).reshape(B, -1)


def init_params(key):
    """Deterministic PyTorch-style uniform(-1/sqrt(fan_in), 1/sqrt(fan_in)) init."""
    params = []
    for cin, cout, _ in LAYER_CFG:
        kw, kb, key = jax.random.split(key, 3)
        scale = 1.0 / jnp.sqrt(cin * 3.0)
        w = jax.random.uniform(kw, (3, cin, cout), jnp.float32, -scale, scale)
        b = jax.random.uniform(kb, (cout,), jnp.float32, -scale, scale)
        params.append((w, b))
    return params


def backbone_reference(x_ncl, params):
    """Pure-JAX f32 reference (lax.conv / reduce_window) for numerical checking."""
    h = x_ncl
    for (w, b), (_, _, pool) in zip(params, LAYER_CFG):
        w_oih = jnp.transpose(w, (2, 1, 0))      # (Cout, Cin, 3)
        h = lax.conv_general_dilated(
            h, w_oih, window_strides=(1,), padding=((1, 1),),
            dimension_numbers=("NCH", "OIH", "NCH"))
        h = jnp.maximum(h + b[None, :, None], 0.0)
        if pool:
            h = lax.reduce_window(h, -jnp.inf, lax.max,
                                  (1, 1, 2), (1, 1, 2), "VALID")
    return h.reshape(h.shape[0], -1)


if __name__ == "__main__":
    key = jax.random.PRNGKey(0)
    kx, kp = jax.random.split(key)

    B, C, L = 4, 3, 64                 # L must be divisible by 32 (5 maxpools)
    x = jax.random.normal(kx, (B, C, L), dtype=jnp.float32)
    params = init_params(kp)

    out = jax.jit(backbone_forward)(x, params)
    out = jax.block_until_ready(out)

    ref = backbone_reference(x, params)
    assert out.shape == (B, 256 * (L // 32)), out.shape
    if MATMUL_DTYPE == jnp.float32:
        rtol = atol = 1e-4             # exact f32 path
    else:
        rtol, atol = 5e-2, 1e-2        # bf16 matmul operands, f32 accumulation
    assert jnp.allclose(out, ref, rtol=rtol, atol=atol), \
        float(jnp.max(jnp.abs(out - ref)))

    print("KERNEL_OK")
</pallas_src>

<mosaic_0001>
module attributes {stable_mosaic.version = 11 : i64} {
  func.func @_fused_backbone_kernel(%arg0: i32, %arg1: memref<2x64x8xf32, #tpu.memory_space<vmem>>, %arg2: memref<24x64xbf16, #tpu.memory_space<vmem>>, %arg3: memref<1x64xf32, #tpu.memory_space<vmem>>, %arg4: memref<64x64xbf16, #tpu.memory_space<vmem>>, %arg5: memref<64x64xbf16, #tpu.memory_space<vmem>>, %arg6: memref<64x64xbf16, #tpu.memory_space<vmem>>, %arg7: memref<1x64xf32, #tpu.memory_space<vmem>>, %arg8: memref<64x128xbf16, #tpu.memory_space<vmem>>, %arg9: memref<64x128xbf16, #tpu.memory_space<vmem>>, %arg10: memref<64x128xbf16, #tpu.memory_space<vmem>>, %arg11: memref<1x128xf32, #tpu.memory_space<vmem>>, %arg12: memref<128x256xbf16, #tpu.memory_space<vmem>>, %arg13: memref<128x256xbf16, #tpu.memory_space<vmem>>, %arg14: memref<128x256xbf16, #tpu.memory_space<vmem>>, %arg15: memref<1x256xf32, #tpu.memory_space<vmem>>, %arg16: memref<256x512xbf16, #tpu.memory_space<vmem>>, %arg17: memref<256x512xbf16, #tpu.memory_space<vmem>>, %arg18: memref<256x512xbf16, #tpu.memory_space<vmem>>, %arg19: memref<1x512xf32, #tpu.memory_space<vmem>>, %arg20: memref<512x256xbf16, #tpu.memory_space<vmem>>, %arg21: memref<512x256xbf16, #tpu.memory_space<vmem>>, %arg22: memref<512x256xbf16, #tpu.memory_space<vmem>>, %arg23: memref<1x256xf32, #tpu.memory_space<vmem>>, %arg24: memref<2x2x256xf32, #tpu.memory_space<vmem>>) attributes {dimension_semantics = [#tpu.dimension_semantics<parallel>], iteration_bounds = array<i64: 2>, scalar_prefetch = 0 : i64, scratch_operands = 0 : i64, tpu.core_type = #tpu.core_type<tc>, window_params = [{transform_indices = @transform_0, window_bounds = array<i64: 2, 64, 8>}, {pipeline_mode = #tpu.pipeline_mode<synchronous>, transform_indices = @transform_1, window_bounds = array<i64: 24, 64>}, {pipeline_mode = #tpu.pipeline_mode<synchronous>, transform_indices = @transform_2, window_bounds = array<i64: 1, 64>}, {pipeline_mode = #tpu.pipeline_mode<synchronous>, transform_indices = @transform_3, window_bounds = array<i64: 64, 64>}, {pipeline_mode = #tpu.pipeline_mode<synchronous>, transform_indices = @transform_4, window_bounds = array<i64: 64, 64>}, {pipeline_mode = #tpu.pipeline_mode<synchronous>, transform_indices = @transform_5, window_bounds = array<i64: 64, 64>}, {pipeline_mode = #tpu.pipeline_mode<synchronous>, transform_indices = @transform_6, window_bounds = array<i64: 1, 64>}, {pipeline_mode = #tpu.pipeline_mode<synchronous>, transform_indices = @transform_7, window_bounds = array<i64: 64, 128>}, {pipeline_mode = #tpu.pipeline_mode<synchronous>, transform_indices = @transform_8, window_bounds = array<i64: 64, 128>}, {pipeline_mode = #tpu.pipeline_mode<synchronous>, transform_indices = @transform_9, window_bounds = array<i64: 64, 128>}, {pipeline_mode = #tpu.pipeline_mode<synchronous>, transform_indices = @transform_10, window_bounds = array<i64: 1, 128>}, {pipeline_mode = #tpu.pipeline_mode<synchronous>, transform_indices = @transform_11, window_bounds = array<i64: 128, 256>}, {pipeline_mode = #tpu.pipeline_mode<synchronous>, transform_indices = @transform_12, window_bounds = array<i64: 128, 256>}, {pipeline_mode = #tpu.pipeline_mode<synchronous>, transform_indices = @transform_13, window_bounds = array<i64: 128, 256>}, {pipeline_mode = #tpu.pipeline_mode<synchronous>, transform_indices = @transform_14, window_bounds = array<i64: 1, 256>}, {pipeline_mode = #tpu.pipeline_mode<synchronous>, transform_indices = @transform_15, window_bounds = array<i64: 256, 512>}, {pipeline_mode = #tpu.pipeline_mode<synchronous>, transform_indices = @transform_16, window_bounds = array<i64: 256, 512>}, {pipeline_mode = #tpu.pipeline_mode<synchronous>, transform_indices = @transform_17, window_bounds = array<i64: 256, 512>}, {pipeline_mode = #tpu.pipeline_mode<synchronous>, transform_indices = @transform_18, window_bounds = array<i64: 1, 512>}, {pipeline_mode = #tpu.pipeline_mode<synchronous>, transform_indices = @transform_19, window_bounds = array<i64: 512, 256>}, {pipeline_mode = #tpu.pipeline_mode<synchronous>, transform_indices = @transform_20, window_bounds = array<i64: 512, 256>}, {pipeline_mode = #tpu.pipeline_mode<synchronous>, transform_indices = @transform_21, window_bounds = array<i64: 512, 256>}, {pipeline_mode = #tpu.pipeline_mode<synchronous>, transform_indices = @transform_22, window_bounds = array<i64: 1, 256>}, {transform_indices = @transform_23, window_bounds = array<i64: 2, 2, 256>}]} {
    %c0 = arith.constant 0 : index
    %c0_0 = arith.constant 0 : index
    %c0_1 = arith.constant 0 : index
    %0 = vector.load %arg1[%c0, %c0_0, %c0_1] : memref<2x64x8xf32, #tpu.memory_space<vmem>>, vector<2x64x8xf32>
    %1 = vector.shape_cast %0 : vector<2x64x8xf32> to vector<128x8xf32>
    %c1_i32 = arith.constant 1 : i32
    %2 = tpu.dynamic_rotate %1 by %c1_i32 dim 0 : vector<128x8xf32>, i32 -> vector<128x8xf32>
    %c127_i32 = arith.constant 127 : i32
    %3 = tpu.dynamic_rotate %1 by %c127_i32 dim 0 : vector<128x8xf32>, i32 -> vector<128x8xf32>
    %4 = tpu.iota {dimensions = array<i32: 0>} : vector<128x1xi32>
    %c64_i32 = arith.constant 64 : i32
    %c0_i32 = arith.constant 0 : i32
    %5 = arith.cmpi eq, %c64_i32, %c0_i32 : i32
    %c1_i32_2 = arith.constant 1 : i32
    %6 = arith.select %5, %c1_i32_2, %c64_i32 : i32
    %7 = vector.broadcast %6 : i32 to vector<128x1xi32>
    %8 = arith.remsi %4, %7 : vector<128x1xi32>
    %c0_i32_3 = arith.constant 0 : i32
    %9 = vector.broadcast %c0_i32_3 : i32 to vector<128x1xi32>
    %10 = arith.cmpi ne, %8, %9 : vector<128x1xi32>
    %c0_i32_4 = arith.constant 0 : i32
    %11 = vector.broadcast %c0_i32_4 : i32 to vector<128x1xi32>
    %12 = arith.cmpi slt, %8, %11 : vector<128x1xi32>
    %c0_i32_5 = arith.constant 0 : i32
    %13 = arith.cmpi slt, %6, %c0_i32_5 : i32
    %14 = vector.broadcast %13 : i1 to vector<128x1xi1>
    %15 = vector.broadcast %14 : vector<128x1xi1> to vector<128x1xi1>
    %16 = arith.xori %12, %15 : vector<128x1xi1>
    %17 = arith.andi %16, %10 : vector<128x1xi1>
    %18 = vector.broadcast %6 : i32 to vector<128x1xi32>
    %19 = arith.addi %8, %18 : vector<128x1xi32>
    %20 = arith.select %17, %19, %8 : vector<128x1xi1>, vector<128x1xi32>
    %c0_i32_6 = arith.constant 0 : i32
    %21 = vector.broadcast %c0_i32_6 : i32 to vector<128x1xi32>
    %22 = arith.cmpi eq, %20, %21 : vector<128x1xi32>
    %cst = arith.constant 0.000000e+00 : f32
    %23 = vector.shape_cast %22 : vector<128x1xi1> to vector<128x1xi1>
    %24 = vector.broadcast %23 : vector<128x1xi1> to vector<128x8xi1>
    %25 = vector.broadcast %cst : f32 to vector<128x8xf32>
    %26 = arith.select %24, %25, %2 : vector<128x8xi1>, vector<128x8xf32>
    %c64_i32_7 = arith.constant 64 : i32
    %c0_i32_8 = arith.constant 0 : i32
    %27 = arith.cmpi eq, %c64_i32_7, %c0_i32_8 : i32
    %c1_i32_9 = arith.constant 1 : i32
    %28 = arith.select %27, %c1_i32_9, %c64_i32_7 : i32
    %29 = vector.broadcast %28 : i32 to vector<128x1xi32>
    %30 = arith.remsi %4, %29 : vector<128x1xi32>
    %c0_i32_10 = arith.constant 0 : i32
    %31 = vector.broadcast %c0_i32_10 : i32 to vector<128x1xi32>
    %32 = arith.cmpi ne, %30, %31 : vector<128x1xi32>
    %c0_i32_11 = arith.constant 0 : i32
    %33 = vector.broadcast %c0_i32_11 : i32 to vector<128x1xi32>
    %34 = arith.cmpi slt, %30, %33 : vector<128x1xi32>
    %c0_i32_12 = arith.constant 0 : i32
    %35 = arith.cmpi slt, %28, %c0_i32_12 : i32
    %36 = vector.broadcast %35 : i1 to vector<128x1xi1>
    %37 = vector.broadcast %36 : vector<128x1xi1> to vector<128x1xi1>
    %38 = arith.xori %34, %37 : vector<128x1xi1>
    %39 = arith.andi %38, %32 : vector<128x1xi1>
    %40 = vector.broadcast %28 : i32 to vector<128x1xi32>
    %41 = arith.addi %30, %40 : vector<128x1xi32>
    %42 = arith.select %39, %41, %30 : vector<128x1xi1>, vector<128x1xi32>
    %c63_i32 = arith.constant 63 : i32
    %43 = vector.broadcast %c63_i32 : i32 to vector<128x1xi32>
    %44 = arith.cmpi eq, %42, %43 : vector<128x1xi32>
    %cst_13 = arith.constant 0.000000e+00 : f32
    %45 = vector.shape_cast %44 : vector<128x1xi1> to vector<128x1xi1>
    %46 = vector.broadcast %45 : vector<128x1xi1> to vector<128x8xi1>
    %47 = vector.broadcast %cst_13 : f32 to vector<128x8xf32>
    %48 = arith.select %46, %47, %3 : vector<128x8xi1>, vector<128x8xf32>
    %49 = arith.truncf %26 : vector<128x8xf32> to vector<128x8xbf16>
    %50 = arith.truncf %1 : vector<128x8xf32> to vector<128x8xbf16>
    %51 = arith.truncf %48 : vector<128x8xf32> to vector<128x8xbf16>
    %52 = tpu.concatenate %49, %50, %51 in 1 : vector<128x8xbf16>, vector<128x8xbf16>, vector<128x8xbf16> -> vector<128x24xbf16>
    %c0_14 = arith.constant 0 : index
    %c0_15 = arith.constant 0 : index
    %53 = vector.load %arg2[%c0_14, %c0_15] : memref<24x64xbf16, #tpu.memory_space<vmem>>, vector<24x64xbf16>
    %cst_16 = arith.constant dense<0.000000e+00> : vector<128x64xf32>
    %54 = tpu.matmul %52, %53, %cst_16 {dimension_numbers = #tpu.dot_dimension_numbers<[1], [0], [0], [1], [0, 0, 1, 1], [], []>} : vector<128x24xbf16>, vector<24x64xbf16>, vector<128x64xf32> -> vector<128x64xf32>
    %c0_17 = arith.constant 0 : index
    %c0_18 = arith.constant 0 : index
    %55 = vector.load %arg3[%c0_17, %c0_18] : memref<1x64xf32, #tpu.memory_space<vmem>>, vector<1x64xf32>
    %56 = vector.broadcast %55 : vector<1x64xf32> to vector<128x64xf32>
    %57 = arith.addf %54, %56 : vector<128x64xf32>
    %cst_19 = arith.constant 0.000000e+00 : f32
    %58 = vector.broadcast %cst_19 : f32 to vector<128x64xf32>
    %59 = arith.maximumf %57, %58 : vector<128x64xf32>
    %c1_i32_20 = arith.constant 1 : i32
    %60 = tpu.dynamic_rotate %59 by %c1_i32_20 dim 0 : vector<128x64xf32>, i32 -> vector<128x64xf32>
    %c127_i32_21 = arith.constant 127 : i32
    %61 = tpu.dynamic_rotate %59 by %c127_i32_21 dim 0 : vector<128x64xf32>, i32 -> vector<128x64xf32>
    %62 = tpu.iota {dimensions = array<i32: 0>} : vector<128x1xi32>
    %c64_i32_22 = arith.constant 64 : i32
    %c0_i32_23 = arith.constant 0 : i32
    %63 = arith.cmpi eq, %c64_i32_22, %c0_i32_23 : i32
    %c1_i32_24 = arith.constant 1 : i32
    %64 = arith.select %63, %c1_i32_24, %c64_i32_22 : i32
    %65 = vector.broadcast %64 : i32 to vector<128x1xi32>
    %66 = arith.remsi %62, %65 : vector<128x1xi32>
    %c0_i32_25 = arith.constant 0 : i32
    %67 = vector.broadcast %c0_i32_25 : i32 to vector<128x1xi32>
    %68 = arith.cmpi ne, %66, %67 : vector<128x1xi32>
    %c0_i32_26 = arith.constant 0 : i32
    %69 = vector.broadcast %c0_i32_26 : i32 to vector<128x1xi32>
    %70 = arith.cmpi slt, %66, %69 : vector<128x1xi32>
    %c0_i32_27 = arith.constant 0 : i32
    %71 = arith.cmpi slt, %64, %c0_i32_27 : i32
    %72 = vector.broadcast %71 : i1 to vector<128x1xi1>
    %73 = vector.broadcast %72 : vector<128x1xi1> to vector<128x1xi1>
    %74 = arith.xori %70, %73 : vector<128x1xi1>
    %75 = arith.andi %74, %68 : vector<128x1xi1>
    %76 = vector.broadcast %64 : i32 to vector<128x1xi32>
    %77 = arith.addi %66, %76 : vector<128x1xi32>
    %78 = arith.select %75, %77, %66 : vector<128x1xi1>, vector<128x1xi32>
    %c0_i32_28 = arith.constant 0 : i32
    %79 = vector.broadcast %c0_i32_28 : i32 to vector<128x1xi32>
    %80 = arith.cmpi eq, %78, %79 : vector<128x1xi32>
    %cst_29 = arith.constant 0.000000e+00 : f32
    %81 = vector.shape_cast %80 : vector<128x1xi1> to vector<128x1xi1>
    %82 = vector.broadcast %81 : vector<128x1xi1> to vector<128x64xi1>
    %83 = vector.broadcast %cst_29 : f32 to vector<128x64xf32>
    %84 = arith.select %82, %83, %60 : vector<128x64xi1>, vector<128x64xf32>
    %c64_i32_30 = arith.constant 64 : i32
    %c0_i32_31 = arith.constant 0 : i32
    %85 = arith.cmpi eq, %c64_i32_30, %c0_i32_31 : i32
    %c1_i32_32 = arith.constant 1 : i32
    %86 = arith.select %85, %c1_i32_32, %c64_i32_30 : i32
    %87 = vector.broadcast %86 : i32 to vector<128x1xi32>
    %88 = arith.remsi %62, %87 : vector<128x1xi32>
    %c0_i32_33 = arith.constant 0 : i32
    %89 = vector.broadcast %c0_i32_33 : i32 to vector<128x1xi32>
    %90 = arith.cmpi ne, %88, %89 : vector<128x1xi32>
    %c0_i32_34 = arith.constant 0 : i32
    %91 = vector.broadcast %c0_i32_34 : i32 to vector<128x1xi32>
    %92 = arith.cmpi slt, %88, %91 : vector<128x1xi32>
    %c0_i32_35 = arith.constant 0 : i32
    %93 = arith.cmpi slt, %86, %c0_i32_35 : i32
    %94 = vector.broadcast %93 : i1 to vector<128x1xi1>
    %95 = vector.broadcast %94 : vector<128x1xi1> to vector<128x1xi1>
    %96 = arith.xori %92, %95 : vector<128x1xi1>
    %97 = arith.andi %96, %90 : vector<128x1xi1>
    %98 = vector.broadcast %86 : i32 to vector<128x1xi32>
    %99 = arith.addi %88, %98 : vector<128x1xi32>
    %100 = arith.select %97, %99, %88 : vector<128x1xi1>, vector<128x1xi32>
    %c63_i32_36 = arith.constant 63 : i32
    %101 = vector.broadcast %c63_i32_36 : i32 to vector<128x1xi32>
    %102 = arith.cmpi eq, %100, %101 : vector<128x1xi32>
    %cst_37 = arith.constant 0.000000e+00 : f32
    %103 = vector.shape_cast %102 : vector<128x1xi1> to vector<128x1xi1>
    %104 = vector.broadcast %103 : vector<128x1xi1> to vector<128x64xi1>
    %105 = vector.broadcast %cst_37 : f32 to vector<128x64xf32>
    %106 = arith.select %104, %105, %61 : vector<128x64xi1>, vector<128x64xf32>
    %107 = arith.truncf %84 : vector<128x64xf32> to vector<128x64xbf16>
    %108 = arith.truncf %59 : vector<128x64xf32> to vector<128x64xbf16>
    %109 = arith.truncf %106 : vector<128x64xf32> to vector<128x64xbf16>
    %c0_38 = arith.constant 0 : index
    %c0_39 = arith.constant 0 : index
    %110 = vector.load %arg5[%c0_38, %c0_39] : memref<64x64xbf16, #tpu.memory_space<vmem>>, vector<64x64xbf16>
    %cst_40 = arith.constant dense<0.000000e+00> : vector<128x64xf32>
    %111 = tpu.matmul %108, %110, %cst_40 {dimension_numbers = #tpu.dot_dimension_numbers<[1], [0], [0], [1], [0, 0, 1, 1], [], []>} : vector<128x64xbf16>, vector<64x64xbf16>, vector<128x64xf32> -> vector<128x64xf32>
    %c0_41 = arith.constant 0 : index
    %c0_42 = arith.constant 0 : index
    %112 = vector.load %arg4[%c0_41, %c0_42] : memref<64x64xbf16, #tpu.memory_space<vmem>>, vector<64x64xbf16>
    %cst_43 = arith.constant dense<0.000000e+00> : vector<128x64xf32>
    %113 = tpu.matmul %107, %112, %cst_43 {dimension_numbers = #tpu.dot_dimension_numbers<[1], [0], [0], [1], [0, 0, 1, 1], [], []>} : vector<128x64xbf16>, vector<64x64xbf16>, vector<128x64xf32> -> vector<128x64xf32>
    %114 = arith.addf %111, %113 : vector<128x64xf32>
    %c0_44 = arith.constant 0 : index
    %c0_45 = arith.constant 0 : index
    %115 = vector.load %arg6[%c0_44, %c0_45] : memref<64x64xbf16, #tpu.memory_space<vmem>>, vector<64x64xbf16>
    %cst_46 = arith.constant dense<0.000000e+00> : vector<128x64xf32>
    %116 = tpu.matmul %109, %115, %cst_46 {dimension_numbers = #tpu.dot_dimension_numbers<[1], [0], [0], [1], [0, 0, 1, 1], [], []>} : vector<128x64xbf16>, vector<64x64xbf16>, vector<128x64xf32> -> vector<128x64xf32>
    %117 = arith.addf %114, %116 : vector<128x64xf32>
    %c0_47 = arith.constant 0 : index
    %c0_48 = arith.constant 0 : index
    %118 = vector.load %arg7[%c0_47, %c0_48] : memref<1x64xf32, #tpu.memory_space<vmem>>, vector<1x64xf32>
    %119 = vector.broadcast %118 : vector<1x64xf32> to vector<128x64xf32>
    %120 = arith.addf %117, %119 : vector<128x64xf32>
    %cst_49 = arith.constant 0.000000e+00 : f32
    %121 = vector.broadcast %cst_49 : f32 to vector<128x64xf32>
    %122 = arith.maximumf %120, %121 : vector<128x64xf32>
    %123 = vector.shape_cast %122 : vector<128x64xf32> to vector<64x2x64xf32>
    %cst_50 = arith.constant dense<0xFF800000> : vector<64x64xf32>
    %124 = vector.multi_reduction <maximumf>, %123, %cst_50 [1] : vector<64x2x64xf32> to vector<64x64xf32>
    %c1_i32_51 = arith.constant 1 : i32
    %125 = tpu.dynamic_rotate %124 by %c1_i32_51 dim 0 : vector<64x64xf32>, i32 -> vector<64x64xf32>
    %c63_i32_52 = arith.constant 63 : i32
    %126 = tpu.dynamic_rotate %124 by %c63_i32_52 dim 0 : vector<64x64xf32>, i32 -> vector<64x64xf32>
    %127 = tpu.iota {dimensions = array<i32: 0>} : vector<64x1xi32>
    %c32_i32 = arith.constant 32 : i32
    %c0_i32_53 = arith.constant 0 : i32
    %128 = arith.cmpi eq, %c32_i32, %c0_i32_53 : i32
    %c1_i32_54 = arith.constant 1 : i32
    %129 = arith.select %128, %c1_i32_54, %c32_i32 : i32
    %130 = vector.broadcast %129 : i32 to vector<64x1xi32>
    %131 = arith.remsi %127, %130 : vector<64x1xi32>
    %c0_i32_55 = arith.constant 0 : i32
    %132 = vector.broadcast %c0_i32_55 : i32 to vector<64x1xi32>
    %133 = arith.cmpi ne, %131, %132 : vector<64x1xi32>
    %c0_i32_56 = arith.constant 0 : i32
    %134 = vector.broadcast %c0_i32_56 : i32 to vector<64x1xi32>
    %135 = arith.cmpi slt, %131, %134 : vector<64x1xi32>
    %c0_i32_57 = arith.constant 0 : i32
    %136 = arith.cmpi slt, %129, %c0_i32_57 : i32
    %137 = vector.broadcast %136 : i1 to vector<64x1xi1>
    %138 = vector.broadcast %137 : vector<64x1xi1> to vector<64x1xi1>
    %139 = arith.xori %135, %138 : vector<64x1xi1>
    %140 = arith.andi %139, %133 : vector<64x1xi1>
    %141 = vector.broadcast %129 : i32 to vector<64x1xi32>
    %142 = arith.addi %131, %141 : vector<64x1xi32>
    %143 = arith.select %140, %142, %131 : vector<64x1xi1>, vector<64x1xi32>
    %c0_i32_58 = arith.constant 0 : i32
    %144 = vector.broadcast %c0_i32_58 : i32 to vector<64x1xi32>
    %145 = arith.cmpi eq, %143, %144 : vector<64x1xi32>
    %cst_59 = arith.constant 0.000000e+00 : f32
    %146 = vector.shape_cast %145 : vector<64x1xi1> to vector<64x1xi1>
    %147 = vector.broadcast %146 : vector<64x1xi1> to vector<64x64xi1>
    %148 = vector.broadcast %cst_59 : f32 to vector<64x64xf32>
    %149 = arith.select %147, %148, %125 : vector<64x64xi1>, vector<64x64xf32>
    %c32_i32_60 = arith.constant 32 : i32
    %c0_i32_61 = arith.constant 0 : i32
    %150 = arith.cmpi eq, %c32_i32_60, %c0_i32_61 : i32
    %c1_i32_62 = arith.constant 1 : i32
    %151 = arith.select %150, %c1_i32_62, %c32_i32_60 : i32
    %152 = vector.broadcast %151 : i32 to vector<64x1xi32>
    %153 = arith.remsi %127, %152 : vector<64x1xi32>
    %c0_i32_63 = arith.constant 0 : i32
    %154 = vector.broadcast %c0_i32_63 : i32 to vector<64x1xi32>
    %155 = arith.cmpi ne, %153, %154 : vector<64x1xi32>
    %c0_i32_64 = arith.constant 0 : i32
    %156 = vector.broadcast %c0_i32_64 : i32 to vector<64x1xi32>
    %157 = arith.cmpi slt, %153, %156 : vector<64x1xi32>
    %c0_i32_65 = arith.constant 0 : i32
    %158 = arith.cmpi slt, %151, %c0_i32_65 : i32
    %159 = vector.broadcast %158 : i1 to vector<64x1xi1>
    %160 = vector.broadcast %159 : vector<64x1xi1> to vector<64x1xi1>
    %161 = arith.xori %157, %160 : vector<64x1xi1>
    %162 = arith.andi %161, %155 : vector<64x1xi1>
    %163 = vector.broadcast %151 : i32 to vector<64x1xi32>
    %164 = arith.addi %153, %163 : vector<64x1xi32>
    %165 = arith.select %162, %164, %153 : vector<64x1xi1>, vector<64x1xi32>
    %c31_i32 = arith.constant 31 : i32
    %166 = vector.broadcast %c31_i32 : i32 to vector<64x1xi32>
    %167 = arith.cmpi eq, %165, %166 : vector<64x1xi32>
    %cst_66 = arith.constant 0.000000e+00 : f32
    %168 = vector.shape_cast %167 : vector<64x1xi1> to vector<64x1xi1>
    %169 = vector.broadcast %168 : vector<64x1xi1> to vector<64x64xi1>
    %170 = vector.broadcast %cst_66 : f32 to vector<64x64xf32>
    %171 = arith.select %169, %170, %126 : vector<64x64xi1>, vector<64x64xf32>
    %172 = arith.truncf %149 : vector<64x64xf32> to vector<64x64xbf16>
    %173 = arith.truncf %124 : vector<64x64xf32> to vector<64x64xbf16>
    %174 = arith.truncf %171 : vector<64x64xf32> to vector<64x64xbf16>
    %c0_67 = arith.constant 0 : index
    %c0_68 = arith.constant 0 : index
    %175 = vector.load %arg9[%c0_67, %c0_68] : memref<64x128xbf16, #tpu.memory_space<vmem>>, vector<64x128xbf16>
    %cst_69 = arith.constant dense<0.000000e+00> : vector<64x128xf32>
    %176 = tpu.matmul %173, %175, %cst_69 {dimension_numbers = #tpu.dot_dimension_numbers<[1], [0], [0], [1], [0, 0, 1, 1], [], []>} : vector<64x64xbf16>, vector<64x128xbf16>, vector<64x128xf32> -> vector<64x128xf32>
    %c0_70 = arith.constant 0 : index
    %c0_71 = arith.constant 0 : index
    %177 = vector.load %arg8[%c0_70, %c0_71] : memref<64x128xbf16, #tpu.memory_space<vmem>>, vector<64x128xbf16>
    %cst_72 = arith.constant dense<0.000000e+00> : vector<64x128xf32>
    %178 = tpu.matmul %172, %177, %cst_72 {dimension_numbers = #tpu.dot_dimension_numbers<[1], [0], [0], [1], [0, 0, 1, 1], [], []>} : vector<64x64xbf16>, vector<64x128xbf16>, vector<64x128xf32> -> vector<64x128xf32>
    %179 = arith.addf %176, %178 : vector<64x128xf32>
    %c0_73 = arith.constant 0 : index
    %c0_74 = arith.constant 0 : index
    %180 = vector.load %arg10[%c0_73, %c0_74] : memref<64x128xbf16, #tpu.memory_space<vmem>>, vector<64x128xbf16>
    %cst_75 = arith.constant dense<0.000000e+00> : vector<64x128xf32>
    %181 = tpu.matmul %174, %180, %cst_75 {dimension_numbers = #tpu.dot_dimension_numbers<[1], [0], [0], [1], [0, 0, 1, 1], [], []>} : vector<64x64xbf16>, vector<64x128xbf16>, vector<64x128xf32> -> vector<64x128xf32>
    %182 = arith.addf %179, %181 : vector<64x128xf32>
    %c0_76 = arith.constant 0 : index
    %c0_77 = arith.constant 0 : index
    %183 = vector.load %arg11[%c0_76, %c0_77] : memref<1x128xf32, #tpu.memory_space<vmem>>, vector<1x128xf32>
    %184 = vector.broadcast %183 : vector<1x128xf32> to vector<64x128xf32>
    %185 = arith.addf %182, %184 : vector<64x128xf32>
    %cst_78 = arith.constant 0.000000e+00 : f32
    %186 = vector.broadcast %cst_78 : f32 to vector<64x128xf32>
    %187 = arith.maximumf %185, %186 : vector<64x128xf32>
    %188 = vector.shape_cast %187 : vector<64x128xf32> to vector<32x2x128xf32>
    %cst_79 = arith.constant dense<0xFF800000> : vector<32x128xf32>
    %189 = vector.multi_reduction <maximumf>, %188, %cst_79 [1] : vector<32x2x128xf32> to vector<32x128xf32>
    %c1_i32_80 = arith.constant 1 : i32
    %190 = tpu.dynamic_rotate %189 by %c1_i32_80 dim 0 : vector<32x128xf32>, i32 -> vector<32x128xf32>
    %c31_i32_81 = arith.constant 31 : i32
    %191 = tpu.dynamic_rotate %189 by %c31_i32_81 dim 0 : vector<32x128xf32>, i32 -> vector<32x128xf32>
    %192 = tpu.iota {dimensions = array<i32: 0>} : vector<32x1xi32>
    %c16_i32 = arith.constant 16 : i32
    %c0_i32_82 = arith.constant 0 : i32
    %193 = arith.cmpi eq, %c16_i32, %c0_i32_82 : i32
    %c1_i32_83 = arith.constant 1 : i32
    %194 = arith.select %193, %c1_i32_83, %c16_i32 : i32
    %195 = vector.broadcast %194 : i32 to vector<32x1xi32>
    %196 = arith.remsi %192, %195 : vector<32x1xi32>
    %c0_i32_84 = arith.constant 0 : i32
    %197 = vector.broadcast %c0_i32_84 : i32 to vector<32x1xi32>
    %198 = arith.cmpi ne, %196, %197 : vector<32x1xi32>
    %c0_i32_85 = arith.constant 0 : i32
    %199 = vector.broadcast %c0_i32_85 : i32 to vector<32x1xi32>
    %200 = arith.cmpi slt, %196, %199 : vector<32x1xi32>
    %c0_i32_86 = arith.constant 0 : i32
    %201 = arith.cmpi slt, %194, %c0_i32_86 : i32
    %202 = vector.broadcast %201 : i1 to vector<32x1xi1>
    %203 = vector.broadcast %202 : vector<32x1xi1> to vector<32x1xi1>
    %204 = arith.xori %200, %203 : vector<32x1xi1>
    %205 = arith.andi %204, %198 : vector<32x1xi1>
    %206 = vector.broadcast %194 : i32 to vector<32x1xi32>
    %207 = arith.addi %196, %206 : vector<32x1xi32>
    %208 = arith.select %205, %207, %196 : vector<32x1xi1>, vector<32x1xi32>
    %c0_i32_87 = arith.constant 0 : i32
    %209 = vector.broadcast %c0_i32_87 : i32 to vector<32x1xi32>
    %210 = arith.cmpi eq, %208, %209 : vector<32x1xi32>
    %cst_88 = arith.constant 0.000000e+00 : f32
    %211 = vector.shape_cast %210 : vector<32x1xi1> to vector<32x1xi1>
    %212 = vector.broadcast %211 : vector<32x1xi1> to vector<32x128xi1>
    %213 = vector.broadcast %cst_88 : f32 to vector<32x128xf32>
    %214 = arith.select %212, %213, %190 : vector<32x128xi1>, vector<32x128xf32>
    %c16_i32_89 = arith.constant 16 : i32
    %c0_i32_90 = arith.constant 0 : i32
    %215 = arith.cmpi eq, %c16_i32_89, %c0_i32_90 : i32
    %c1_i32_91 = arith.constant 1 : i32
    %216 = arith.select %215, %c1_i32_91, %c16_i32_89 : i32
    %217 = vector.broadcast %216 : i32 to vector<32x1xi32>
    %218 = arith.remsi %192, %217 : vector<32x1xi32>
    %c0_i32_92 = arith.constant 0 : i32
    %219 = vector.broadcast %c0_i32_92 : i32 to vector<32x1xi32>
    %220 = arith.cmpi ne, %218, %219 : vector<32x1xi32>
    %c0_i32_93 = arith.constant 0 : i32
    %221 = vector.broadcast %c0_i32_93 : i32 to vector<32x1xi32>
    %222 = arith.cmpi slt, %218, %221 : vector<32x1xi32>
    %c0_i32_94 = arith.constant 0 : i32
    %223 = arith.cmpi slt, %216, %c0_i32_94 : i32
    %224 = vector.broadcast %223 : i1 to vector<32x1xi1>
    %225 = vector.broadcast %224 : vector<32x1xi1> to vector<32x1xi1>
    %226 = arith.xori %222, %225 : vector<32x1xi1>
    %227 = arith.andi %226, %220 : vector<32x1xi1>
    %228 = vector.broadcast %216 : i32 to vector<32x1xi32>
    %229 = arith.addi %218, %228 : vector<32x1xi32>
    %230 = arith.select %227, %229, %218 : vector<32x1xi1>, vector<32x1xi32>
    %c15_i32 = arith.constant 15 : i32
    %231 = vector.broadcast %c15_i32 : i32 to vector<32x1xi32>
    %232 = arith.cmpi eq, %230, %231 : vector<32x1xi32>
    %cst_95 = arith.constant 0.000000e+00 : f32
    %233 = vector.shape_cast %232 : vector<32x1xi1> to vector<32x1xi1>
    %234 = vector.broadcast %233 : vector<32x1xi1> to vector<32x128xi1>
    %235 = vector.broadcast %cst_95 : f32 to vector<32x128xf32>
    %236 = arith.select %234, %235, %191 : vector<32x128xi1>, vector<32x128xf32>
    %237 = arith.truncf %214 : vector<32x128xf32> to vector<32x128xbf16>
    %238 = arith.truncf %189 : vector<32x128xf32> to vector<32x128xbf16>
    %239 = arith.truncf %236 : vector<32x128xf32> to vector<32x128xbf16>
    %c0_96 = arith.constant 0 : index
    %c0_97 = arith.constant 0 : index
    %240 = vector.load %arg13[%c0_96, %c0_97] : memref<128x256xbf16, #tpu.memory_space<vmem>>, vector<128x256xbf16>
    %cst_98 = arith.constant dense<0.000000e+00> : vector<32x256xf32>
    %241 = tpu.matmul %238, %240, %cst_98 {dimension_numbers = #tpu.dot_dimension_numbers<[1], [0], [0], [1], [0, 0, 1, 1], [], []>} : vector<32x128xbf16>, vector<128x256xbf16>, vector<32x256xf32> -> vector<32x256xf32>
    %c0_99 = arith.constant 0 : index
    %c0_100 = arith.constant 0 : index
    %242 = vector.load %arg12[%c0_99, %c0_100] : memref<128x256xbf16, #tpu.memory_space<vmem>>, vector<128x256xbf16>
    %cst_101 = arith.constant dense<0.000000e+00> : vector<32x256xf32>
    %243 = tpu.matmul %237, %242, %cst_101 {dimension_numbers = #tpu.dot_dimension_numbers<[1], [0], [0], [1], [0, 0, 1, 1], [], []>} : vector<32x128xbf16>, vector<128x256xbf16>, vector<32x256xf32> -> vector<32x256xf32>
    %244 = arith.addf %241, %243 : vector<32x256xf32>
    %c0_102 = arith.constant 0 : index
    %c0_103 = arith.constant 0 : index
    %245 = vector.load %arg14[%c0_102, %c0_103] : memref<128x256xbf16, #tpu.memory_space<vmem>>, vector<128x256xbf16>
    %cst_104 = arith.constant dense<0.000000e+00> : vector<32x256xf32>
    %246 = tpu.matmul %239, %245, %cst_104 {dimension_numbers = #tpu.dot_dimension_numbers<[1], [0], [0], [1], [0, 0, 1, 1], [], []>} : vector<32x128xbf16>, vector<128x256xbf16>, vector<32x256xf32> -> vector<32x256xf32>
    %247 = arith.addf %244, %246 : vector<32x256xf32>
    %c0_105 = arith.constant 0 : index
    %c0_106 = arith.constant 0 : index
    %248 = vector.load %arg15[%c0_105, %c0_106] : memref<1x256xf32, #tpu.memory_space<vmem>>, vector<1x256xf32>
    %249 = vector.broadcast %248 : vector<1x256xf32> to vector<32x256xf32>
    %250 = arith.addf %247, %249 : vector<32x256xf32>
    %cst_107 = arith.constant 0.000000e+00 : f32
    %251 = vector.broadcast %cst_107 : f32 to vector<32x256xf32>
    %252 = arith.maximumf %250, %251 : vector<32x256xf32>
    %253 = vector.shape_cast %252 : vector<32x256xf32> to vector<16x2x256xf32>
    %cst_108 = arith.constant dense<0xFF800000> : vector<16x256xf32>
    %254 = vector.multi_reduction <maximumf>, %253, %cst_108 [1] : vector<16x2x256xf32> to vector<16x256xf32>
    %c1_i32_109 = arith.constant 1 : i32
    %255 = tpu.dynamic_rotate %254 by %c1_i32_109 dim 0 : vector<16x256xf32>, i32 -> vector<16x256xf32>
    %c15_i32_110 = arith.constant 15 : i32
    %256 = tpu.dynamic_rotate %254 by %c15_i32_110 dim 0 : vector<16x256xf32>, i32 -> vector<16x256xf32>
    %257 = tpu.iota {dimensions = array<i32: 0>} : vector<16x1xi32>
    %c8_i32 = arith.constant 8 : i32
    %c0_i32_111 = arith.constant 0 : i32
    %258 = arith.cmpi eq, %c8_i32, %c0_i32_111 : i32
    %c1_i32_112 = arith.constant 1 : i32
    %259 = arith.select %258, %c1_i32_112, %c8_i32 : i32
    %260 = vector.broadcast %259 : i32 to vector<16x1xi32>
    %261 = arith.remsi %257, %260 : vector<16x1xi32>
    %c0_i32_113 = arith.constant 0 : i32
    %262 = vector.broadcast %c0_i32_113 : i32 to vector<16x1xi32>
    %263 = arith.cmpi ne, %261, %262 : vector<16x1xi32>
    %c0_i32_114 = arith.constant 0 : i32
    %264 = vector.broadcast %c0_i32_114 : i32 to vector<16x1xi32>
    %265 = arith.cmpi slt, %261, %264 : vector<16x1xi32>
    %c0_i32_115 = arith.constant 0 : i32
    %266 = arith.cmpi slt, %259, %c0_i32_115 : i32
    %267 = vector.broadcast %266 : i1 to vector<16x1xi1>
    %268 = vector.broadcast %267 : vector<16x1xi1> to vector<16x1xi1>
    %269 = arith.xori %265, %268 : vector<16x1xi1>
    %270 = arith.andi %269, %263 : vector<16x1xi1>
    %271 = vector.broadcast %259 : i32 to vector<16x1xi32>
    %272 = arith.addi %261, %271 : vector<16x1xi32>
    %273 = arith.select %270, %272, %261 : vector<16x1xi1>, vector<16x1xi32>
    %c0_i32_116 = arith.constant 0 : i32
    %274 = vector.broadcast %c0_i32_116 : i32 to vector<16x1xi32>
    %275 = arith.cmpi eq, %273, %274 : vector<16x1xi32>
    %cst_117 = arith.constant 0.000000e+00 : f32
    %276 = vector.shape_cast %275 : vector<16x1xi1> to vector<16x1xi1>
    %277 = vector.broadcast %276 : vector<16x1xi1> to vector<16x256xi1>
    %278 = vector.broadcast %cst_117 : f32 to vector<16x256xf32>
    %279 = arith.select %277, %278, %255 : vector<16x256xi1>, vector<16x256xf32>
    %c8_i32_118 = arith.constant 8 : i32
    %c0_i32_119 = arith.constant 0 : i32
    %280 = arith.cmpi eq, %c8_i32_118, %c0_i32_119 : i32
    %c1_i32_120 = arith.constant 1 : i32
    %281 = arith.select %280, %c1_i32_120, %c8_i32_118 : i32
    %282 = vector.broadcast %281 : i32 to vector<16x1xi32>
    %283 = arith.remsi %257, %282 : vector<16x1xi32>
    %c0_i32_121 = arith.constant 0 : i32
    %284 = vector.broadcast %c0_i32_121 : i32 to vector<16x1xi32>
    %285 = arith.cmpi ne, %283, %284 : vector<16x1xi32>
    %c0_i32_122 = arith.constant 0 : i32
    %286 = vector.broadcast %c0_i32_122 : i32 to vector<16x1xi32>
    %287 = arith.cmpi slt, %283, %286 : vector<16x1xi32>
    %c0_i32_123 = arith.constant 0 : i32
    %288 = arith.cmpi slt, %281, %c0_i32_123 : i32
    %289 = vector.broadcast %288 : i1 to vector<16x1xi1>
    %290 = vector.broadcast %289 : vector<16x1xi1> to vector<16x1xi1>
    %291 = arith.xori %287, %290 : vector<16x1xi1>
    %292 = arith.andi %291, %285 : vector<16x1xi1>
    %293 = vector.broadcast %281 : i32 to vector<16x1xi32>
    %294 = arith.addi %283, %293 : vector<16x1xi32>
    %295 = arith.select %292, %294, %283 : vector<16x1xi1>, vector<16x1xi32>
    %c7_i32 = arith.constant 7 : i32
    %296 = vector.broadcast %c7_i32 : i32 to vector<16x1xi32>
    %297 = arith.cmpi eq, %295, %296 : vector<16x1xi32>
    %cst_124 = arith.constant 0.000000e+00 : f32
    %298 = vector.shape_cast %297 : vector<16x1xi1> to vector<16x1xi1>
    %299 = vector.broadcast %298 : vector<16x1xi1> to vector<16x256xi1>
    %300 = vector.broadcast %cst_124 : f32 to vector<16x256xf32>
    %301 = arith.select %299, %300, %256 : vector<16x256xi1>, vector<16x256xf32>
    %302 = arith.truncf %279 : vector<16x256xf32> to vector<16x256xbf16>
    %303 = arith.truncf %254 : vector<16x256xf32> to vector<16x256xbf16>
    %304 = arith.truncf %301 : vector<16x256xf32> to vector<16x256xbf16>
    %c0_125 = arith.constant 0 : index
    %c0_126 = arith.constant 0 : index
    %305 = vector.load %arg17[%c0_125, %c0_126] : memref<256x512xbf16, #tpu.memory_space<vmem>>, vector<256x512xbf16>
    %cst_127 = arith.constant dense<0.000000e+00> : vector<16x512xf32>
    %306 = tpu.matmul %303, %305, %cst_127 {dimension_numbers = #tpu.dot_dimension_numbers<[1], [0], [0], [1], [0, 0, 1, 1], [], []>} : vector<16x256xbf16>, vector<256x512xbf16>, vector<16x512xf32> -> vector<16x512xf32>
    %c0_128 = arith.constant 0 : index
    %c0_129 = arith.constant 0 : index
    %307 = vector.load %arg16[%c0_128, %c0_129] : memref<256x512xbf16, #tpu.memory_space<vmem>>, vector<256x512xbf16>
    %cst_130 = arith.constant dense<0.000000e+00> : vector<16x512xf32>
    %308 = tpu.matmul %302, %307, %cst_130 {dimension_numbers = #tpu.dot_dimension_numbers<[1], [0], [0], [1], [0, 0, 1, 1], [], []>} : vector<16x256xbf16>, vector<256x512xbf16>, vector<16x512xf32> -> vector<16x512xf32>
    %309 = arith.addf %306, %308 : vector<16x512xf32>
    %c0_131 = arith.constant 0 : index
    %c0_132 = arith.constant 0 : index
    %310 = vector.load %arg18[%c0_131, %c0_132] : memref<256x512xbf16, #tpu.memory_space<vmem>>, vector<256x512xbf16>
    %cst_133 = arith.constant dense<0.000000e+00> : vector<16x512xf32>
    %311 = tpu.matmul %304, %310, %cst_133 {dimension_numbers = #tpu.dot_dimension_numbers<[1], [0], [0], [1], [0, 0, 1, 1], [], []>} : vector<16x256xbf16>, vector<256x512xbf16>, vector<16x512xf32> -> vector<16x512xf32>
    %312 = arith.addf %309, %311 : vector<16x512xf32>
    %c0_134 = arith.constant 0 : index
    %c0_135 = arith.constant 0 : index
    %313 = vector.load %arg19[%c0_134, %c0_135] : memref<1x512xf32, #tpu.memory_space<vmem>>, vector<1x512xf32>
    %314 = vector.broadcast %313 : vector<1x512xf32> to vector<16x512xf32>
    %315 = arith.addf %312, %314 : vector<16x512xf32>
    %cst_136 = arith.constant 0.000000e+00 : f32
    %316 = vector.broadcast %cst_136 : f32 to vector<16x512xf32>
    %317 = arith.maximumf %315, %316 : vector<16x512xf32>
    %318 = vector.shape_cast %317 : vector<16x512xf32> to vector<8x2x512xf32>
    %cst_137 = arith.constant dense<0xFF800000> : vector<8x512xf32>
    %319 = vector.multi_reduction <maximumf>, %318, %cst_137 [1] : vector<8x2x512xf32> to vector<8x512xf32>
    %c1_i32_138 = arith.constant 1 : i32
    %320 = tpu.dynamic_rotate %319 by %c1_i32_138 dim 0 : vector<8x512xf32>, i32 -> vector<8x512xf32>
    %c7_i32_139 = arith.constant 7 : i32
    %321 = tpu.dynamic_rotate %319 by %c7_i32_139 dim 0 : vector<8x512xf32>, i32 -> vector<8x512xf32>
    %322 = tpu.iota {dimensions = array<i32: 0>} : vector<8x1xi32>
    %c4_i32 = arith.constant 4 : i32
    %c0_i32_140 = arith.constant 0 : i32
    %323 = arith.cmpi eq, %c4_i32, %c0_i32_140 : i32
    %c1_i32_141 = arith.constant 1 : i32
    %324 = arith.select %323, %c1_i32_141, %c4_i32 : i32
    %325 = vector.broadcast %324 : i32 to vector<8x1xi32>
    %326 = arith.remsi %322, %325 : vector<8x1xi32>
    %c0_i32_142 = arith.constant 0 : i32
    %327 = vector.broadcast %c0_i32_142 : i32 to vector<8x1xi32>
    %328 = arith.cmpi ne, %326, %327 : vector<8x1xi32>
    %c0_i32_143 = arith.constant 0 : i32
    %329 = vector.broadcast %c0_i32_143 : i32 to vector<8x1xi32>
    %330 = arith.cmpi slt, %326, %329 : vector<8x1xi32>
    %c0_i32_144 = arith.constant 0 : i32
    %331 = arith.cmpi slt, %324, %c0_i32_144 : i32
    %332 = vector.broadcast %331 : i1 to vector<8x1xi1>
    %333 = vector.broadcast %332 : vector<8x1xi1> to vector<8x1xi1>
    %334 = arith.xori %330, %333 : vector<8x1xi1>
    %335 = arith.andi %334, %328 : vector<8x1xi1>
    %336 = vector.broadcast %324 : i32 to vector<8x1xi32>
    %337 = arith.addi %326, %336 : vector<8x1xi32>
    %338 = arith.select %335, %337, %326 : vector<8x1xi1>, vector<8x1xi32>
    %c0_i32_145 = arith.constant 0 : i32
    %339 = vector.broadcast %c0_i32_145 : i32 to vector<8x1xi32>
    %340 = arith.cmpi eq, %338, %339 : vector<8x1xi32>
    %cst_146 = arith.constant 0.000000e+00 : f32
    %341 = vector.shape_cast %340 : vector<8x1xi1> to vector<8x1xi1>
    %342 = vector.broadcast %341 : vector<8x1xi1> to vector<8x512xi1>
    %343 = vector.broadcast %cst_146 : f32 to vector<8x512xf32>
    %344 = arith.select %342, %343, %320 : vector<8x512xi1>, vector<8x512xf32>
    %c4_i32_147 = arith.constant 4 : i32
    %c0_i32_148 = arith.constant 0 : i32
    %345 = arith.cmpi eq, %c4_i32_147, %c0_i32_148 : i32
    %c1_i32_149 = arith.constant 1 : i32
    %346 = arith.select %345, %c1_i32_149, %c4_i32_147 : i32
    %347 = vector.broadcast %346 : i32 to vector<8x1xi32>
    %348 = arith.remsi %322, %347 : vector<8x1xi32>
    %c0_i32_150 = arith.constant 0 : i32
    %349 = vector.broadcast %c0_i32_150 : i32 to vector<8x1xi32>
    %350 = arith.cmpi ne, %348, %349 : vector<8x1xi32>
    %c0_i32_151 = arith.constant 0 : i32
    %351 = vector.broadcast %c0_i32_151 : i32 to vector<8x1xi32>
    %352 = arith.cmpi slt, %348, %351 : vector<8x1xi32>
    %c0_i32_152 = arith.constant 0 : i32
    %353 = arith.cmpi slt, %346, %c0_i32_152 : i32
    %354 = vector.broadcast %353 : i1 to vector<8x1xi1>
    %355 = vector.broadcast %354 : vector<8x1xi1> to vector<8x1xi1>
    %356 = arith.xori %352, %355 : vector<8x1xi1>
    %357 = arith.andi %356, %350 : vector<8x1xi1>
    %358 = vector.broadcast %346 : i32 to vector<8x1xi32>
    %359 = arith.addi %348, %358 : vector<8x1xi32>
    %360 = arith.select %357, %359, %348 : vector<8x1xi1>, vector<8x1xi32>
    %c3_i32 = arith.constant 3 : i32
    %361 = vector.broadcast %c3_i32 : i32 to vector<8x1xi32>
    %362 = arith.cmpi eq, %360, %361 : vector<8x1xi32>
    %cst_153 = arith.constant 0.000000e+00 : f32
    %363 = vector.shape_cast %362 : vector<8x1xi1> to vector<8x1xi1>
    %364 = vector.broadcast %363 : vector<8x1xi1> to vector<8x512xi1>
    %365 = vector.broadcast %cst_153 : f32 to vector<8x512xf32>
    %366 = arith.select %364, %365, %321 : vector<8x512xi1>, vector<8x512xf32>
    %367 = arith.truncf %344 : vector<8x512xf32> to vector<8x512xbf16>
    %368 = arith.truncf %319 : vector<8x512xf32> to vector<8x512xbf16>
    %369 = arith.truncf %366 : vector<8x512xf32> to vector<8x512xbf16>
    %c0_154 = arith.constant 0 : index
    %c0_155 = arith.constant 0 : index
    %370 = vector.load %arg21[%c0_154, %c0_155] : memref<512x256xbf16, #tpu.memory_space<vmem>>, vector<512x256xbf16>
    %cst_156 = arith.constant dense<0.000000e+00> : vector<8x256xf32>
    %371 = tpu.matmul %368, %370, %cst_156 {dimension_numbers = #tpu.dot_dimension_numbers<[1], [0], [0], [1], [0, 0, 1, 1], [], []>} : vector<8x512xbf16>, vector<512x256xbf16>, vector<8x256xf32> -> vector<8x256xf32>
    %c0_157 = arith.constant 0 : index
    %c0_158 = arith.constant 0 : index
    %372 = vector.load %arg20[%c0_157, %c0_158] : memref<512x256xbf16, #tpu.memory_space<vmem>>, vector<512x256xbf16>
    %cst_159 = arith.constant dense<0.000000e+00> : vector<8x256xf32>
    %373 = tpu.matmul %367, %372, %cst_159 {dimension_numbers = #tpu.dot_dimension_numbers<[1], [0], [0], [1], [0, 0, 1, 1], [], []>} : vector<8x512xbf16>, vector<512x256xbf16>, vector<8x256xf32> -> vector<8x256xf32>
    %374 = arith.addf %371, %373 : vector<8x256xf32>
    %c0_160 = arith.constant 0 : index
    %c0_161 = arith.constant 0 : index
    %375 = vector.load %arg22[%c0_160, %c0_161] : memref<512x256xbf16, #tpu.memory_space<vmem>>, vector<512x256xbf16>
    %cst_162 = arith.constant dense<0.000000e+00> : vector<8x256xf32>
    %376 = tpu.matmul %369, %375, %cst_162 {dimension_numbers = #tpu.dot_dimension_numbers<[1], [0], [0], [1], [0, 0, 1, 1], [], []>} : vector<8x512xbf16>, vector<512x256xbf16>, vector<8x256xf32> -> vector<8x256xf32>
    %377 = arith.addf %374, %376 : vector<8x256xf32>
    %c0_163 = arith.constant 0 : index
    %c0_164 = arith.constant 0 : index
    %378 = vector.load %arg23[%c0_163, %c0_164] : memref<1x256xf32, #tpu.memory_space<vmem>>, vector<1x256xf32>
    %379 = vector.broadcast %378 : vector<1x256xf32> to vector<8x256xf32>
    %380 = arith.addf %377, %379 : vector<8x256xf32>
    %cst_165 = arith.constant 0.000000e+00 : f32
    %381 = vector.broadcast %cst_165 : f32 to vector<8x256xf32>
    %382 = arith.maximumf %380, %381 : vector<8x256xf32>
    %383 = vector.shape_cast %382 : vector<8x256xf32> to vector<4x2x256xf32>
    %cst_166 = arith.constant dense<0xFF800000> : vector<4x256xf32>
    %384 = vector.multi_reduction <maximumf>, %383, %cst_166 [1] : vector<4x2x256xf32> to vector<4x256xf32>
    %385 = vector.shape_cast %384 : vector<4x256xf32> to vector<2x2x256xf32>
    %c0_167 = arith.constant 0 : index
    %c0_168 = arith.constant 0 : index
    %c0_169 = arith.constant 0 : index
    %386 = vector.load %arg24[%c0_167, %c0_168, %c0_169] : memref<2x2x256xf32, #tpu.memory_space<vmem>>, vector<2x2x256xf32>
    tpu.vector_store %arg24[%c0_167, %c0_168, %c0_169], %385 {strides = array<i32>} : memref<2x2x256xf32, #tpu.memory_space<vmem>>, vector<2x2x256xf32>,
    return
  }
  func.func @transform_0(%arg0: i32) -> (i32, i32, i32) {
    %c0_i32 = arith.constant 0 : i32
    %c0_i32_0 = arith.constant 0 : i32
    %c0_i32_1 = arith.constant 0 : i32
    return %arg0, %c0_i32, %c0_i32_0 : i32, i32, i32
  }
  func.func @transform_1(%arg0: i32) -> (i32, i32) {
    %c0_i32 = arith.constant 0 : i32
    %c0_i32_0 = arith.constant 0 : i32
    %c0_i32_1 = arith.constant 0 : i32
    return %c0_i32, %c0_i32_0 : i32, i32
  }
  func.func @transform_2(%arg0: i32) -> (i32, i32) {
    %c0_i32 = arith.constant 0 : i32
    %c0_i32_0 = arith.constant 0 : i32
    %c0_i32_1 = arith.constant 0 : i32
    return %c0_i32, %c0_i32_0 : i32, i32
  }
  func.func @transform_3(%arg0: i32) -> (i32, i32) {
    %c0_i32 = arith.constant 0 : i32
    %c0_i32_0 = arith.constant 0 : i32
    %c0_i32_1 = arith.constant 0 : i32
    return %c0_i32, %c0_i32_0 : i32, i32
  }
  func.func @transform_4(%arg0: i32) -> (i32, i32) {
    %c0_i32 = arith.constant 0 : i32
    %c0_i32_0 = arith.constant 0 : i32
    %c0_i32_1 = arith.constant 0 : i32
    return %c0_i32, %c0_i32_0 : i32, i32
  }
  func.func @transform_5(%arg0: i32) -> (i32, i32) {
    %c0_i32 = arith.constant 0 : i32
    %c0_i32_0 = arith.constant 0 : i32
    %c0_i32_1 = arith.constant 0 : i32
    return %c0_i32, %c0_i32_0 : i32, i32
  }
  func.func @transform_6(%arg0: i32) -> (i32, i32) {
    %c0_i32 = arith.constant 0 : i32
    %c0_i32_0 = arith.constant 0 : i32
    %c0_i32_1 = arith.constant 0 : i32
    return %c0_i32, %c0_i32_0 : i32, i32
  }
  func.func @transform_7(%arg0: i32) -> (i32, i32) {
    %c0_i32 = arith.constant 0 : i32
    %c0_i32_0 = arith.constant 0 : i32
    %c0_i32_1 = arith.constant 0 : i32
    return %c0_i32, %c0_i32_0 : i32, i32
  }
  func.func @transform_8(%arg0: i32) -> (i32, i32) {
    %c0_i32 = arith.constant 0 : i32
    %c0_i32_0 = arith.constant 0 : i32
    %c0_i32_1 = arith.constant 0 : i32
    return %c0_i32, %c0_i32_0 : i32, i32
  }
  func.func @transform_9(%arg0: i32) -> (i32, i32) {
    %c0_i32 = arith.constant 0 : i32
    %c0_i32_0 = arith.constant 0 : i32
    %c0_i32_1 = arith.constant 0 : i32
    return %c0_i32, %c0_i32_0 : i32, i32
  }
  func.func @transform_10(%arg0: i32) -> (i32, i32) {
    %c0_i32 = arith.constant 0 : i32
    %c0_i32_0 = arith.constant 0 : i32
    %c0_i32_1 = arith.constant 0 : i32
    return %c0_i32, %c0_i32_0 : i32, i32
  }
  func.func @transform_11(%arg0: i32) -> (i32, i32) {
    %c0_i32 = arith.constant 0 : i32
    %c0_i32_0 = arith.constant 0 : i32
    %c0_i32_1 = arith.constant 0 : i32
    return %c0_i32, %c0_i32_0 : i32, i32
  }
  func.func @transform_12(%arg0: i32) -> (i32, i32) {
    %c0_i32 = arith.constant 0 : i32
    %c0_i32_0 = arith.constant 0 : i32
    %c0_i32_1 = arith.constant 0 : i32
    return %c0_i32, %c0_i32_0 : i32, i32
  }
  func.func @transform_13(%arg0: i32) -> (i32, i32) {
    %c0_i32 = arith.constant 0 : i32
    %c0_i32_0 = arith.constant 0 : i32
    %c0_i32_1 = arith.constant 0 : i32
    return %c0_i32, %c0_i32_0 : i32, i32
  }
  func.func @transform_14(%arg0: i32) -> (i32, i32) {
    %c0_i32 = arith.constant 0 : i32
    %c0_i32_0 = arith.constant 0 : i32
    %c0_i32_1 = arith.constant 0 : i32
    return %c0_i32, %c0_i32_0 : i32, i32
  }
  func.func @transform_15(%arg0: i32) -> (i32, i32) {
    %c0_i32 = arith.constant 0 : i32
    %c0_i32_0 = arith.constant 0 : i32
    %c0_i32_1 = arith.constant 0 : i32
    return %c0_i32, %c0_i32_0 : i32, i32
  }
  func.func @transform_16(%arg0: i32) -> (i32, i32) {
    %c0_i32 = arith.constant 0 : i32
    %c0_i32_0 = arith.constant 0 : i32
    %c0_i32_1 = arith.constant 0 : i32
    return %c0_i32, %c0_i32_0 : i32, i32
  }
  func.func @transform_17(%arg0: i32) -> (i32, i32) {
    %c0_i32 = arith.constant 0 : i32
    %c0_i32_0 = arith.constant 0 : i32
    %c0_i32_1 = arith.constant 0 : i32
    return %c0_i32, %c0_i32_0 : i32, i32
  }
  func.func @transform_18(%arg0: i32) -> (i32, i32) {
    %c0_i32 = arith.constant 0 : i32
    %c0_i32_0 = arith.constant 0 : i32
    %c0_i32_1 = arith.constant 0 : i32
    return %c0_i32, %c0_i32_0 : i32, i32
  }
  func.func @transform_19(%arg0: i32) -> (i32, i32) {
    %c0_i32 = arith.constant 0 : i32
    %c0_i32_0 = arith.constant 0 : i32
    %c0_i32_1 = arith.constant 0 : i32
    return %c0_i32, %c0_i32_0 : i32, i32
  }
  func.func @transform_20(%arg0: i32) -> (i32, i32) {
    %c0_i32 = arith.constant 0 : i32
    %c0_i32_0 = arith.constant 0 : i32
    %c0_i32_1 = arith.constant 0 : i32
    return %c0_i32, %c0_i32_0 : i32, i32
  }
  func.func @transform_21(%arg0: i32) -> (i32, i32) {
    %c0_i32 = arith.constant 0 : i32
    %c0_i32_0 = arith.constant 0 : i32
    %c0_i32_1 = arith.constant 0 : i32
    return %c0_i32, %c0_i32_0 : i32, i32
  }
  func.func @transform_22(%arg0: i32) -> (i32, i32) {
    %c0_i32 = arith.constant 0 : i32
    %c0_i32_0 = arith.constant 0 : i32
    %c0_i32_1 = arith.constant 0 : i32
    return %c0_i32, %c0_i32_0 : i32, i32
  }
  func.func @transform_23(%arg0: i32) -> (i32, i32, i32) {
    %c0_i32 = arith.constant 0 : i32
    %c0_i32_0 = arith.constant 0 : i32
    %c0_i32_1 = arith.constant 0 : i32
    return %arg0, %c0_i32, %c0_i32_0 : i32, i32, i32
  }
}

</mosaic_0001>

<llo_original>
// kernel: backbone_forward.1
$region0: #{backbone_forward.1}
  #allocation0 [shape = 'u32[]', space=smem, size = 0x4, offset = 0x4, fixed_abs, tag = 'smem constant byte address 0x4 - core index']
  #allocation1 [shape = 'u32[72,128]{1,0:T(1,128)}', space=vmem, size = 0x9000, scoped, tag = 'internal scratch']
  %s0 = inlined_call_operand.vmem [shape: f32[4,64,8], index: 0, kind: input, shape index: {}]
  %s1 = inlined_call_operand.vmem [shape: bf16[24,64], index: 1, kind: input, shape index: {}]
  %s2 = inlined_call_operand.vmem [shape: f32[1,64], index: 2, kind: input, shape index: {}]
  %s3 = inlined_call_operand.vmem [shape: bf16[64,64], index: 3, kind: input, shape index: {}]
  %s4 = inlined_call_operand.vmem [shape: bf16[64,64], index: 4, kind: input, shape index: {}]
  %s5 = inlined_call_operand.vmem [shape: bf16[64,64], index: 5, kind: input, shape index: {}]
  %s6 = inlined_call_operand.vmem [shape: f32[1,64], index: 6, kind: input, shape index: {}]
  %s7 = inlined_call_operand.vmem [shape: bf16[64,128], index: 7, kind: input, shape index: {}]
  %s8 = inlined_call_operand.vmem [shape: bf16[64,128], index: 8, kind: input, shape index: {}]
  %s9 = inlined_call_operand.vmem [shape: bf16[64,128], index: 9, kind: input, shape index: {}]
  %s10 = inlined_call_operand.vmem [shape: f32[1,128], index: 10, kind: input, shape index: {}]
  %s11 = inlined_call_operand.vmem [shape: bf16[128,256], index: 11, kind: input, shape index: {}]
  %s12 = inlined_call_operand.vmem [shape: bf16[128,256], index: 12, kind: input, shape index: {}]
  %s13 = inlined_call_operand.vmem [shape: bf16[128,256], index: 13, kind: input, shape index: {}]
  %s14 = inlined_call_operand.vmem [shape: f32[1,256], index: 14, kind: input, shape index: {}]
  %s15 = inlined_call_operand.vmem [shape: bf16[256,512], index: 15, kind: input, shape index: {}]
  %s16 = inlined_call_operand.vmem [shape: bf16[256,512], index: 16, kind: input, shape index: {}]
  %s17 = inlined_call_operand.vmem [shape: bf16[256,512], index: 17, kind: input, shape index: {}]
  %s18 = inlined_call_operand.vmem [shape: f32[1,512], index: 18, kind: input, shape index: {}]
  %s19 = inlined_call_operand.vmem [shape: bf16[512,256], index: 19, kind: input, shape index: {}]
  %s20 = inlined_call_operand.vmem [shape: bf16[512,256], index: 20, kind: input, shape index: {}]
  %s21 = inlined_call_operand.vmem [shape: bf16[512,256], index: 21, kind: input, shape index: {}]
  %s22 = inlined_call_operand.vmem [shape: f32[1,256], index: 22, kind: input, shape index: {}]
  %s23 = inlined_call_operand.vmem [shape: f32[4,2,256], index: 23, kind: output, shape index: {}]
  %s24 = sld [smem:[#allocation0]]
  $region125: #{backbone_forward.1} parent=0
    _
  %s26 = ssub.s32 1, %s24
  %s27 = scalar_select 0, %s26, %s24
  loop: start=0, step=1, limit=4
  $region2: #{backbone_forward.1} parent=0 // loop_pre_header
    _
  $region3: #{backbone_forward.1} parent=0 // loop_header
    %s29 = sphi 0, %s33
    %p30 = scmp.ge.s32.totalorder %s29, 4
    %s39 = sphi 0, %s41
    %s42 = sphi 0, %s39
    %s43 = sphi 0, %s42
    %s59 = sphi 0, %s43
    %s63 = sphi 0, %s63
    %s65 = sphi 0, %s63
    %s66 = sphi 0, %s65
    %s80 = sphi 0, %s66
    %s84 = sphi 0, %s84
    %s86 = sphi 0, %s84
    %s87 = sphi 0, %s86
    %s101 = sphi 0, %s87
    %s105 = sphi 0, %s105
    %s107 = sphi 0, %s105
    %s108 = sphi 0, %s107
    %s122 = sphi 0, %s108
    %s126 = sphi 0, %s126
    %s128 = sphi 0, %s126
    %s129 = sphi 0, %s128
    %s143 = sphi 0, %s129
    %s147 = sphi 0, %s147
    %s149 = sphi 0, %s147
    %s150 = sphi 0, %s149
    %s164 = sphi 0, %s150
    %s168 = sphi 0, %s168
    %s170 = sphi 0, %s168
    %s171 = sphi 0, %s170
    %s185 = sphi 0, %s171
    %s189 = sphi 0, %s189
    %s191 = sphi 0, %s189
    %s192 = sphi 0, %s191
    %s206 = sphi 0, %s192
    %s210 = sphi 0, %s210
    %s212 = sphi 0, %s210
    %s213 = sphi 0, %s212
    %s227 = sphi 0, %s213
    %s231 = sphi 0, %s231
    %s233 = sphi 0, %s231
    %s234 = sphi 0, %s233
    %s248 = sphi 0, %s234
    %s252 = sphi 0, %s252
    %s254 = sphi 0, %s252
    %s255 = sphi 0, %s254
    %s269 = sphi 0, %s255
    %s273 = sphi 0, %s273
    %s275 = sphi 0, %s273
    %s276 = sphi 0, %s275
    %s290 = sphi 0, %s276
    %s294 = sphi 0, %s294
    %s296 = sphi 0, %s294
    %s297 = sphi 0, %s296
    %s311 = sphi 0, %s297
    %s315 = sphi 0, %s315
    %s317 = sphi 0, %s315
    %s318 = sphi 0, %s317
    %s332 = sphi 0, %s318
    %s336 = sphi 0, %s336
    %s338 = sphi 0, %s336
    %s339 = sphi 0, %s338
    %s353 = sphi 0, %s339
    %s357 = sphi 0, %s357
    %s359 = sphi 0, %s357
    %s360 = sphi 0, %s359
    %s374 = sphi 0, %s360
    %s378 = sphi 0, %s378
    %s380 = sphi 0, %s378
    %s381 = sphi 0, %s380
    %s395 = sphi 0, %s381
    %s399 = sphi 0, %s399
    %s401 = sphi 0, %s399
    %s402 = sphi 0, %s401
    %s416 = sphi 0, %s402
    %s420 = sphi 0, %s420
    %s422 = sphi 0, %s420
    %s423 = sphi 0, %s422
    %s437 = sphi 0, %s423
    %s441 = sphi 0, %s441
    %s443 = sphi 0, %s441
    %s444 = sphi 0, %s443
    %s458 = sphi 0, %s444
    %s462 = sphi 0, %s462
    %s464 = sphi 0, %s462
    %s465 = sphi 0, %s464
    %s479 = sphi 0, %s465
    %s483 = sphi 0, %s483
    %s485 = sphi 0, %s483
    %s486 = sphi 0, %s485
    %s500 = sphi 0, %s486
    %s504 = sphi 0, %s504
    %s506 = sphi 0, %s504
    %s507 = sphi 0, %s506
    %s521 = sphi 0, %s507
    %s527 = sphi 0, %s529
    %s530 = sphi 0, %s527
    %s531 = sphi 0, %s530
    %s547 = sphi 0, %s531
  $region4: #{backbone_forward.1} parent=0 // loop_header_branch
    %32 = sbr.rel (%p30) target = $region8
  $region5: #{backbone_forward.1} parent=0 // loop_body
    %s34 = ssub.s32 %s29, 1
    %s35 = ssub.s32 %s29, 2
    %s36 = sadd.s32 %s29, 1
    %s37 = ssub.s32 %s29, %s36
    %p38 = scmp.eq.s32.totalorder %s37, 0
    %s40 = sadd.s32 %s39, 1
    %s41 = scalar_select %p38, %s39, %s40
    %p44 = pneg %p38
    %p45 = scmp.eq.s32.totalorder %s29, 1
    %p46 = por %p44, %p45
    %p47 = scmp.ne.s32.totalorder %s39, %s42
    %p48 = scmp.eq.s32.totalorder %s29, 0
    %p49 = por %p47, %p48
    %p50 = scmp.ne.s32.totalorder %s39, %s42
    %p51 = scmp.eq.s32.totalorder %s34, 1
    %p52 = por %p50, %p51
    %p53 = scmp.ne.s32.totalorder %s42, %s43
    %p54 = scmp.eq.s32.totalorder %s34, 0
    %p55 = por %p53, %p54
    %p56 = scmp.ne.s32.totalorder %s42, %s43
    %p57 = scmp.eq.s32.totalorder %s35, 1
    %p58 = por %p56, %p57
    %p60 = scmp.ne.s32.totalorder %s43, %s59
    %p61 = scmp.eq.s32.totalorder %s35, 0
    %p62 = por %p60, %p61
    %s64 = sadd.s32 %s63, 1
    %p67 = scmp.eq.s32.totalorder %s29, 1
    %p68 = scmp.ne.s32.totalorder %s63, %s65
    %p69 = scmp.eq.s32.totalorder %s29, 0
    %p70 = por %p68, %p69
    %p71 = scmp.ne.s32.totalorder %s63, %s65
    %p72 = scmp.eq.s32.totalorder %s34, 1
    %p73 = por %p71, %p72
    %p74 = scmp.ne.s32.totalorder %s65, %s66
    %p75 = scmp.eq.s32.totalorder %s34, 0
    %p76 = por %p74, %p75
    %p77 = scmp.ne.s32.totalorder %s65, %s66
    %p78 = scmp.eq.s32.totalorder %s35, 1
    %p79 = por %p77, %p78
    %p81 = scmp.ne.s32.totalorder %s66, %s80
    %p82 = scmp.eq.s32.totalorder %s35, 0
    %p83 = por %p81, %p82
    %s85 = sadd.s32 %s84, 1
    %p88 = scmp.eq.s32.totalorder %s29, 1
    %p89 = scmp.ne.s32.totalorder %s84, %s86
    %p90 = scmp.eq.s32.totalorder %s29, 0
    %p91 = por %p89, %p90
    %p92 = scmp.ne.s32.totalorder %s84, %s86
    %p93 = scmp.eq.s32.totalorder %s34, 1
    %p94 = por %p92, %p93
    %p95 = scmp.ne.s32.totalorder %s86, %s87
    %p96 = scmp.eq.s32.totalorder %s34, 0
    %p97 = por %p95, %p96
    %p98 = scmp.ne.s32.totalorder %s86, %s87
    %p99 = scmp.eq.s32.totalorder %s35, 1
    %p100 = por %p98, %p99
    %p102 = scmp.ne.s32.totalorder %s87, %s101
    %p103 = scmp.eq.s32.totalorder %s35, 0
    %p104 = por %p102, %p103
    %s106 = sadd.s32 %s105, 1
    %p109 = scmp.eq.s32.totalorder %s29, 1
    %p110 = scmp.ne.s32.totalorder %s105, %s107
    %p111 = scmp.eq.s32.totalorder %s29, 0
    %p112 = por %p110, %p111
    %p113 = scmp.ne.s32.totalorder %s105, %s107
    %p114 = scmp.eq.s32.totalorder %s34, 1
    %p115 = por %p113, %p114
    %p116 = scmp.ne.s32.totalorder %s107, %s108
    %p117 = scmp.eq.s32.totalorder %s34, 0
    %p118 = por %p116, %p117
    %p119 = scmp.ne.s32.totalorder %s107, %s108
    %p120 = scmp.eq.s32.totalorder %s35, 1
    %p121 = por %p119, %p120
    %p123 = scmp.ne.s32.totalorder %s108, %s122
    %p124 = scmp.eq.s32.totalorder %s35, 0
    %p125 = por %p123, %p124
    %s127 = sadd.s32 %s126, 1
    %p130 = scmp.eq.s32.totalorder %s29, 1
    %p131 = scmp.ne.s32.totalorder %s126, %s128
    %p132 = scmp.eq.s32.totalorder %s29, 0
    %p133 = por %p131, %p132
    %p134 = scmp.ne.s32.totalorder %s126, %s128
    %p135 = scmp.eq.s32.totalorder %s34, 1
    %p136 = por %p134, %p135
    %p137 = scmp.ne.s32.totalorder %s128, %s129
    %p138 = scmp.eq.s32.totalorder %s34, 0
    %p139 = por %p137, %p138
    %p140 = scmp.ne.s32.totalorder %s128, %s129
    %p141 = scmp.eq.s32.totalorder %s35, 1
    %p142 = por %p140, %p141
    %p144 = scmp.ne.s32.totalorder %s129, %s143
    %p145 = scmp.eq.s32.totalorder %s35, 0
    %p146 = por %p144, %p145
    %s148 = sadd.s32 %s147, 1
    %p151 = scmp.eq.s32.totalorder %s29, 1
    %p152 = scmp.ne.s32.totalorder %s147, %s149
    %p153 = scmp.eq.s32.totalorder %s29, 0
    %p154 = por %p152, %p153
    %p155 = scmp.ne.s32.totalorder %s147, %s149
    %p156 = scmp.eq.s32.totalorder %s34, 1
    %p157 = por %p155, %p156
    %p158 = scmp.ne.s32.totalorder %s149, %s150
    %p159 = scmp.eq.s32.totalorder %s34, 0
    %p160 = por %p158, %p159
    %p161 = scmp.ne.s32.totalorder %s149, %s150
    %p162 = scmp.eq.s32.totalorder %s35, 1
    %p163 = por %p161, %p162
    %p165 = scmp.ne.s32.totalorder %s150, %s164
    %p166 = scmp.eq.s32.totalorder %s35, 0
    %p167 = por %p165, %p166
    %s169 = sadd.s32 %s168, 1
    %p172 = scmp.eq.s32.totalorder %s29, 1
    %p173 = scmp.ne.s32.totalorder %s168, %s170
    %p174 = scmp.eq.s32.totalorder %s29, 0
    %p175 = por %p173, %p174
    %p176 = scmp.ne.s32.totalorder %s168, %s170
    %p177 = scmp.eq.s32.totalorder %s34, 1
    %p178 = por %p176, %p177
    %p179 = scmp.ne.s32.totalorder %s170, %s171
    %p180 = scmp.eq.s32.totalorder %s34, 0
    %p181 = por %p179, %p180
    %p182 = scmp.ne.s32.totalorder %s170, %s171
    %p183 = scmp.eq.s32.totalorder %s35, 1
    %p184 = por %p182, %p183
    %p186 = scmp.ne.s32.totalorder %s171, %s185
    %p187 = scmp.eq.s32.totalorder %s35, 0
    %p188 = por %p186, %p187
    %s190 = sadd.s32 %s189, 1
    %p193 = scmp.eq.s32.totalorder %s29, 1
    %p194 = scmp.ne.s32.totalorder %s189, %s191
    %p195 = scmp.eq.s32.totalorder %s29, 0
    %p196 = por %p194, %p195
    %p197 = scmp.ne.s32.totalorder %s189, %s191
    %p198 = scmp.eq.s32.totalorder %s34, 1
    %p199 = por %p197, %p198
    %p200 = scmp.ne.s32.totalorder %s191, %s192
    %p201 = scmp.eq.s32.totalorder %s34, 0
    %p202 = por %p200, %p201
    %p203 = scmp.ne.s32.totalorder %s191, %s192
    %p204 = scmp.eq.s32.totalorder %s35, 1
    %p205 = por %p203, %p204
    %p207 = scmp.ne.s32.totalorder %s192, %s206
    %p208 = scmp.eq.s32.totalorder %s35, 0
    %p209 = por %p207, %p208
    %s211 = sadd.s32 %s210, 1
    %p214 = scmp.eq.s32.totalorder %s29, 1
    %p215 = scmp.ne.s32.totalorder %s210, %s212
    %p216 = scmp.eq.s32.totalorder %s29, 0
    %p217 = por %p215, %p216
    %p218 = scmp.ne.s32.totalorder %s210, %s212
    %p219 = scmp.eq.s32.totalorder %s34, 1
    %p220 = por %p218, %p219
    %p221 = scmp.ne.s32.totalorder %s212, %s213
    %p222 = scmp.eq.s32.totalorder %s34, 0
    %p223 = por %p221, %p222
    %p224 = scmp.ne.s32.totalorder %s212, %s213
    %p225 = scmp.eq.s32.totalorder %s35, 1
    %p226 = por %p224, %p225
    %p228 = scmp.ne.s32.totalorder %s213, %s227
    %p229 = scmp.eq.s32.totalorder %s35, 0
    %p230 = por %p228, %p229
    %s232 = sadd.s32 %s231, 1
    %p235 = scmp.eq.s32.totalorder %s29, 1
    %p236 = scmp.ne.s32.totalorder %s231, %s233
    %p237 = scmp.eq.s32.totalorder %s29, 0
    %p238 = por %p236, %p237
    %p239 = scmp.ne.s32.totalorder %s231, %s233
    %p240 = scmp.eq.s32.totalorder %s34, 1
    %p241 = por %p239, %p240
    %p242 = scmp.ne.s32.totalorder %s233, %s234
    %p243 = scmp.eq.s32.totalorder %s34, 0
    %p244 = por %p242, %p243
    %p245 = scmp.ne.s32.totalorder %s233, %s234
    %p246 = scmp.eq.s32.totalorder %s35, 1
    %p247 = por %p245, %p246
    %p249 = scmp.ne.s32.totalorder %s234, %s248
    %p250 = scmp.eq.s32.totalorder %s35, 0
    %p251 = por %p249, %p250
    %s253 = sadd.s32 %s252, 1
    %p256 = scmp.eq.s32.totalorder %s29, 1
    %p257 = scmp.ne.s32.totalorder %s252, %s254
    %p258 = scmp.eq.s32.totalorder %s29, 0
    %p259 = por %p257, %p258
    %p260 = scmp.ne.s32.totalorder %s252, %s254
    %p261 = scmp.eq.s32.totalorder %s34, 1
    %p262 = por %p260, %p261
    %p263 = scmp.ne.s32.totalorder %s254, %s255
    %p264 = scmp.eq.s32.totalorder %s34, 0
    %p265 = por %p263, %p264
    %p266 = scmp.ne.s32.totalorder %s254, %s255
    %p267 = scmp.eq.s32.totalorder %s35, 1
    %p268 = por %p266, %p267
    %p270 = scmp.ne.s32.totalorder %s255, %s269
    %p271 = scmp.eq.s32.totalorder %s35, 0
    %p272 = por %p270, %p271
    %s274 = sadd.s32 %s273, 1
    %p277 = scmp.eq.s32.totalorder %s29, 1
    %p278 = scmp.ne.s32.totalorder %s273, %s275
    %p279 = scmp.eq.s32.totalorder %s29, 0
    %p280 = por %p278, %p279
    %p281 = scmp.ne.s32.totalorder %s273, %s275
    %p282 = scmp.eq.s32.totalorder %s34, 1
    %p283 = por %p281, %p282
    %p284 = scmp.ne.s32.totalorder %s275, %s276
    %p285 = scmp.eq.s32.totalorder %s34, 0
    %p286 = por %p284, %p285
    %p287 = scmp.ne.s32.totalorder %s275, %s276
    %p288 = scmp.eq.s32.totalorder %s35, 1
    %p289 = por %p287, %p288
    %p291 = scmp.ne.s32.totalorder %s276, %s290
    %p292 = scmp.eq.s32.totalorder %s35, 0
    %p293 = por %p291, %p292
    %s295 = sadd.s32 %s294, 1
    %p298 = scmp.eq.s32.totalorder %s29, 1
    %p299 = scmp.ne.s32.totalorder %s294, %s296
    %p300 = scmp.eq.s32.totalorder %s29, 0
    %p301 = por %p299, %p300
    %p302 = scmp.ne.s32.totalorder %s294, %s296
    %p303 = scmp.eq.s32.totalorder %s34, 1
    %p304 = por %p302, %p303
    %p305 = scmp.ne.s32.totalorder %s296, %s297
    %p306 = scmp.eq.s32.totalorder %s34, 0
    %p307 = por %p305, %p306
    %p308 = scmp.ne.s32.totalorder %s296, %s297
    %p309 = scmp.eq.s32.totalorder %s35, 1
    %p310 = por %p308, %p309
    %p312 = scmp.ne.s32.totalorder %s297, %s311
    %p313 = scmp.eq.s32.totalorder %s35, 0
    %p314 = por %p312, %p313
    %s316 = sadd.s32 %s315, 1
    %p319 = scmp.eq.s32.totalorder %s29, 1
    %p320 = scmp.ne.s32.totalorder %s315, %s317
    %p321 = scmp.eq.s32.totalorder %s29, 0
    %p322 = por %p320, %p321
    %p323 = scmp.ne.s32.totalorder %s315, %s317
    %p324 = scmp.eq.s32.totalorder %s34, 1
    %p325 = por %p323, %p324
    %p326 = scmp.ne.s32.totalorder %s317, %s318
    %p327 = scmp.eq.s32.totalorder %s34, 0
    %p328 = por %p326, %p327
    %p329 = scmp.ne.s32.totalorder %s317, %s318
    %p330 = scmp.eq.s32.totalorder %s35, 1
    %p331 = por %p329, %p330
    %p333 = scmp.ne.s32.totalorder %s318, %s332
    %p334 = scmp.eq.s32.totalorder %s35, 0
    %p335 = por %p333, %p334
    %s337 = sadd.s32 %s336, 1
    %p340 = scmp.eq.s32.totalorder %s29, 1
    %p341 = scmp.ne.s32.totalorder %s336, %s338
    %p342 = scmp.eq.s32.totalorder %s29, 0
    %p343 = por %p341, %p342
    %p344 = scmp.ne.s32.totalorder %s336, %s338
    %p345 = scmp.eq.s32.totalorder %s34, 1
    %p346 = por %p344, %p345
    %p347 = scmp.ne.s32.totalorder %s338, %s339
    %p348 = scmp.eq.s32.totalorder %s34, 0
    %p349 = por %p347, %p348
    %p350 = scmp.ne.s32.totalorder %s338, %s339
    %p351 = scmp.eq.s32.totalorder %s35, 1
    %p352 = por %p350, %p351
    %p354 = scmp.ne.s32.totalorder %s339, %s353
    %p355 = scmp.eq.s32.totalorder %s35, 0
    %p356 = por %p354, %p355
    %s358 = sadd.s32 %s357, 1
    %p361 = scmp.eq.s32.totalorder %s29, 1
    %p362 = scmp.ne.s32.totalorder %s357, %s359
    %p363 = scmp.eq.s32.totalorder %s29, 0
    %p364 = por %p362, %p363
    %p365 = scmp.ne.s32.totalorder %s357, %s359
    %p366 = scmp.eq.s32.totalorder %s34, 1
    %p367 = por %p365, %p366
    %p368 = scmp.ne.s32.totalorder %s359, %s360
    %p369 = scmp.eq.s32.totalorder %s34, 0
    %p370 = por %p368, %p369
    %p371 = scmp.ne.s32.totalorder %s359, %s360
    %p372 = scmp.eq.s32.totalorder %s35, 1
    %p373 = por %p371, %p372
    %p375 = scmp.ne.s32.totalorder %s360, %s374
    %p376 = scmp.eq.s32.totalorder %s35, 0
    %p377 = por %p375, %p376
    %s379 = sadd.s32 %s378, 1
    %p382 = scmp.eq.s32.totalorder %s29, 1
    %p383 = scmp.ne.s32.totalorder %s378, %s380
    %p384 = scmp.eq.s32.totalorder %s29, 0
    %p385 = por %p383, %p384
    %p386 = scmp.ne.s32.totalorder %s378, %s380
    %p387 = scmp.eq.s32.totalorder %s34, 1
    %p388 = por %p386, %p387
    %p389 = scmp.ne.s32.totalorder %s380, %s381
    %p390 = scmp.eq.s32.totalorder %s34, 0
    %p391 = por %p389, %p390
    %p392 = scmp.ne.s32.totalorder %s380, %s381
    %p393 = scmp.eq.s32.totalorder %s35, 1
    %p394 = por %p392, %p393
    %p396 = scmp.ne.s32.totalorder %s381, %s395
    %p397 = scmp.eq.s32.totalorder %s35, 0
    %p398 = por %p396, %p397
    %s400 = sadd.s32 %s399, 1
    %p403 = scmp.eq.s32.totalorder %s29, 1
    %p404 = scmp.ne.s32.totalorder %s399, %s401
    %p405 = scmp.eq.s32.totalorder %s29, 0
    %p406 = por %p404, %p405
    %p407 = scmp.ne.s32.totalorder %s399, %s401
    %p408 = scmp.eq.s32.totalorder %s34, 1
    %p409 = por %p407, %p408
    %p410 = scmp.ne.s32.totalorder %s401, %s402
    %p411 = scmp.eq.s32.totalorder %s34, 0
    %p412 = por %p410, %p411
    %p413 = scmp.ne.s32.totalorder %s401, %s402
    %p414 = scmp.eq.s32.totalorder %s35, 1
    %p415 = por %p413, %p414
    %p417 = scmp.ne.s32.totalorder %s402, %s416
    %p418 = scmp.eq.s32.totalorder %s35, 0
    %p419 = por %p417, %p418
    %s421 = sadd.s32 %s420, 1
    %p424 = scmp.eq.s32.totalorder %s29, 1
    %p425 = scmp.ne.s32.totalorder %s420, %s422
    %p426 = scmp.eq.s32.totalorder %s29, 0
    %p427 = por %p425, %p426
    %p428 = scmp.ne.s32.totalorder %s420, %s422
    %p429 = scmp.eq.s32.totalorder %s34, 1
    %p430 = por %p428, %p429
    %p431 = scmp.ne.s32.totalorder %s422, %s423
    %p432 = scmp.eq.s32.totalorder %s34, 0
    %p433 = por %p431, %p432
    %p434 = scmp.ne.s32.totalorder %s422, %s423
    %p435 = scmp.eq.s32.totalorder %s35, 1
    %p436 = por %p434, %p435
    %p438 = scmp.ne.s32.totalorder %s423, %s437
    %p439 = scmp.eq.s32.totalorder %s35, 0
    %p440 = por %p438, %p439
    %s442 = sadd.s32 %s441, 1
    %p445 = scmp.eq.s32.totalorder %s29, 1
    %p446 = scmp.ne.s32.totalorder %s441, %s443
    %p447 = scmp.eq.s32.totalorder %s29, 0
    %p448 = por %p446, %p447
    %p449 = scmp.ne.s32.totalorder %s441, %s443
    %p450 = scmp.eq.s32.totalorder %s34, 1
    %p451 = por %p449, %p450
    %p452 = scmp.ne.s32.totalorder %s443, %s444
    %p453 = scmp.eq.s32.totalorder %s34, 0
    %p454 = por %p452, %p453
    %p455 = scmp.ne.s32.totalorder %s443, %s444
    %p456 = scmp.eq.s32.totalorder %s35, 1
    %p457 = por %p455, %p456
    %p459 = scmp.ne.s32.totalorder %s444, %s458
    %p460 = scmp.eq.s32.totalorder %s35, 0
    %p461 = por %p459, %p460
    %s463 = sadd.s32 %s462, 1
    %p466 = scmp.eq.s32.totalorder %s29, 1
    %p467 = scmp.ne.s32.totalorder %s462, %s464
    %p468 = scmp.eq.s32.totalorder %s29, 0
    %p469 = por %p467, %p468
    %p470 = scmp.ne.s32.totalorder %s462, %s464
    %p471 = scmp.eq.s32.totalorder %s34, 1
    %p472 = por %p470, %p471
    %p473 = scmp.ne.s32.totalorder %s464, %s465
    %p474 = scmp.eq.s32.totalorder %s34, 0
    %p475 = por %p473, %p474
    %p476 = scmp.ne.s32.totalorder %s464, %s465
    %p477 = scmp.eq.s32.totalorder %s35, 1
    %p478 = por %p476, %p477
    %p480 = scmp.ne.s32.totalorder %s465, %s479
    %p481 = scmp.eq.s32.totalorder %s35, 0
    %p482 = por %p480, %p481
    %s484 = sadd.s32 %s483, 1
    %p487 = scmp.eq.s32.totalorder %s29, 1
    %p488 = scmp.ne.s32.totalorder %s483, %s485
    %p489 = scmp.eq.s32.totalorder %s29, 0
    %p490 = por %p488, %p489
    %p491 = scmp.ne.s32.totalorder %s483, %s485
    %p492 = scmp.eq.s32.totalorder %s34, 1
    %p493 = por %p491, %p492
    %p494 = scmp.ne.s32.totalorder %s485, %s486
    %p495 = scmp.eq.s32.totalorder %s34, 0
    %p496 = por %p494, %p495
    %p497 = scmp.ne.s32.totalorder %s485, %s486
    %p498 = scmp.eq.s32.totalorder %s35, 1
    %p499 = por %p497, %p498
    %p501 = scmp.ne.s32.totalorder %s486, %s500
    %p502 = scmp.eq.s32.totalorder %s35, 0
    %p503 = por %p501, %p502
    %s505 = sadd.s32 %s504, 1
    %p508 = scmp.eq.s32.totalorder %s29, 1
    %p509 = scmp.ne.s32.totalorder %s504, %s506
    %p510 = scmp.eq.s32.totalorder %s29, 0
    %p511 = por %p509, %p510
    %p512 = scmp.ne.s32.totalorder %s504, %s506
    %p513 = scmp.eq.s32.totalorder %s34, 1
    %p514 = por %p512, %p513
    %p515 = scmp.ne.s32.totalorder %s506, %s507
    %p516 = scmp.eq.s32.totalorder %s34, 0
    %p517 = por %p515, %p516
    %p518 = scmp.ne.s32.totalorder %s506, %s507
    %p519 = scmp.eq.s32.totalorder %s35, 1
    %p520 = por %p518, %p519
    %p522 = scmp.ne.s32.totalorder %s507, %s521
    %p523 = scmp.eq.s32.totalorder %s35, 0
    %p524 = por %p522, %p523
    %s525 = ssub.s32 %s29, %s36
    %p526 = scmp.eq.s32.totalorder %s525, 0
    %s528 = sadd.s32 %s527, 1
    %s529 = scalar_select %p526, %s527, %s528
    %p532 = pneg %p526
    %p533 = scmp.eq.s32.totalorder %s29, 1
    %p534 = por %p532, %p533
    %p535 = scmp.ne.s32.totalorder %s527, %s530
    %p536 = scmp.eq.s32.totalorder %s29, 0
    %p537 = por %p535, %p536
    %p538 = scmp.ne.s32.totalorder %s527, %s530
    %p539 = scmp.eq.s32.totalorder %s34, 1
    %p540 = por %p538, %p539
    %p541 = scmp.ne.s32.totalorder %s530, %s531
    %p542 = scmp.eq.s32.totalorder %s34, 0
    %p543 = por %p541, %p542
    %p544 = scmp.ne.s32.totalorder %s530, %s531
    %p545 = scmp.eq.s32.totalorder %s35, 1
    %p546 = por %p544, %p545
    %p548 = scmp.ne.s32.totalorder %s531, %s547
    %p549 = scmp.eq.s32.totalorder %s35, 0
    %p550 = por %p548, %p549
    %p551 = scmp.le.s32.totalorder 1, %s29
    %p552 = scmp.lt.s32.totalorder %s29, 3
    %p553 = pnand %p551, %p552
    %p554 = pneg %p553
    // Predicated region
    $region9: #{backbone_forward.1} parent=5 // pred_check
      _
    $region10: #{backbone_forward.1} parent=5 // pred_check_branch
      %556 = sbr.rel (%p553) target = $region12
    $region11: #{backbone_forward.1} parent=5 // pred_region
      %s557 = ssub.s32 %s29, 1
      // Predicated region
      $region13: #{backbone_forward.1} parent=11 // pred_check
        %p558 = pneg %p76
      $region14: #{backbone_forward.1} parent=11 // pred_check_branch
        %560 = sbr.rel (%p558) target = $region16
      $region15: #{backbone_forward.1} parent=11 // pred_region
        _
      $region16: #{backbone_forward.1} parent=11 // pred_fallthru
        _
      // Predicated region
      $region17: #{backbone_forward.1} parent=11 // pred_check
        %p561 = pneg %p97
      $region18: #{backbone_forward.1} parent=11 // pred_check_branch
        %563 = sbr.rel (%p561) target = $region20
      $region19: #{backbone_forward.1} parent=11 // pred_region
        _
      $region20: #{backbone_forward.1} parent=11 // pred_fallthru
        _
      // Predicated region
      $region21: #{backbone_forward.1} parent=11 // pred_check
        %p564 = pneg %p118
      $region22: #{backbone_forward.1} parent=11 // pred_check_branch
        %566 = sbr.rel (%p564) target = $region24
      $region23: #{backbone_forward.1} parent=11 // pred_region
        _
      $region24: #{backbone_forward.1} parent=11 // pred_fallthru
        _
      // Predicated region
      $region25: #{backbone_forward.1} parent=11 // pred_check
        %p567 = pneg %p139
      $region26: #{backbone_forward.1} parent=11 // pred_check_branch
        %569 = sbr.rel (%p567) target = $region28
      $region27: #{backbone_forward.1} parent=11 // pred_region
        _
      $region28: #{backbone_forward.1} parent=11 // pred_fallthru
        _
      // Predicated region
      $region29: #{backbone_forward.1} parent=11 // pred_check
        %p570 = pneg %p160
      $region30: #{backbone_forward.1} parent=11 // pred_check_branch
        %572 = sbr.rel (%p570) target = $region32
      $region31: #{backbone_forward.1} parent=11 // pred_region
        _
      $region32: #{backbone_forward.1} parent=11 // pred_fallthru
        _
      // Predicated region
      $region33: #{backbone_forward.1} parent=11 // pred_check
        %p573 = pneg %p181
      $region34: #{backbone_forward.1} parent=11 // pred_check_branch
        %575 = sbr.rel (%p573) target = $region36
      $region35: #{backbone_forward.1} parent=11 // pred_region
        _
      $region36: #{backbone_forward.1} parent=11 // pred_fallthru
        _
      // Predicated region
      $region37: #{backbone_forward.1} parent=11 // pred_check
        %p576 = pneg %p202
      $region38: #{backbone_forward.1} parent=11 // pred_check_branch
        %578 = sbr.rel (%p576) target = $region40
      $region39: #{backbone_forward.1} parent=11 // pred_region
        _
      $region40: #{backbone_forward.1} parent=11 // pred_fallthru
        _
      // Predicated region
      $region41: #{backbone_forward.1} parent=11 // pred_check
        %p579 = pneg %p223
      $region42: #{backbone_forward.1} parent=11 // pred_check_branch
        %581 = sbr.rel (%p579) target = $region44
      $region43: #{backbone_forward.1} parent=11 // pred_region
        _
      $region44: #{backbone_forward.1} parent=11 // pred_fallthru
        _
      // Predicated region
      $region45: #{backbone_forward.1} parent=11 // pred_check
        %p582 = pneg %p244
      $region46: #{backbone_forward.1} parent=11 // pred_check_branch
        %584 = sbr.rel (%p582) target = $region48
      $region47: #{backbone_forward.1} parent=11 // pred_region
        _
      $region48: #{backbone_forward.1} parent=11 // pred_fallthru
        _
      // Predicated region
      $region49: #{backbone_forward.1} parent=11 // pred_check
        %p585 = pneg %p265
      $region50: #{backbone_forward.1} parent=11 // pred_check_branch
        %587 = sbr.rel (%p585) target = $region52
      $region51: #{backbone_forward.1} parent=11 // pred_region
        _
      $region52: #{backbone_forward.1} parent=11 // pred_fallthru
        _
      // Predicated region
      $region53: #{backbone_forward.1} parent=11 // pred_check
        %p588 = pneg %p286
      $region54: #{backbone_forward.1} parent=11 // pred_check_branch
        %590 = sbr.rel (%p588) target = $region56
      $region55: #{backbone_forward.1} parent=11 // pred_region
        _
      $region56: #{backbone_forward.1} parent=11 // pred_fallthru
        _
      // Predicated region
      $region57: #{backbone_forward.1} parent=11 // pred_check
        %p591 = pneg %p307
      $region58: #{backbone_forward.1} parent=11 // pred_check_branch
        %593 = sbr.rel (%p591) target = $region60
      $region59: #{backbone_forward.1} parent=11 // pred_region
        _
      $region60: #{backbone_forward.1} parent=11 // pred_fallthru
        _
      // Predicated region
      $region61: #{backbone_forward.1} parent=11 // pred_check
        %p594 = pneg %p328
      $region62: #{backbone_forward.1} parent=11 // pred_check_branch
        %596 = sbr.rel (%p594) target = $region64
      $region63: #{backbone_forward.1} parent=11 // pred_region
        _
      $region64: #{backbone_forward.1} parent=11 // pred_fallthru
        _
      // Predicated region
      $region65: #{backbone_forward.1} parent=11 // pred_check
        %p597 = pneg %p349
      $region66: #{backbone_forward.1} parent=11 // pred_check_branch
        %599 = sbr.rel (%p597) target = $region68
      $region67: #{backbone_forward.1} parent=11 // pred_region
        _
      $region68: #{backbone_forward.1} parent=11 // pred_fallthru
        _
      // Predicated region
      $region69: #{backbone_forward.1} parent=11 // pred_check
        %p600 = pneg %p370
      $region70: #{backbone_forward.1} parent=11 // pred_check_branch
        %602 = sbr.rel (%p600) target = $region72
      $region71: #{backbone_forward.1} parent=11 // pred_region
        _
      $region72: #{backbone_forward.1} parent=11 // pred_fallthru
        _
      // Predicated region
      $region73: #{backbone_forward.1} parent=11 // pred_check
        %p603 = pneg %p391
      $region74: #{backbone_forward.1} parent=11 // pred_check_branch
        %605 = sbr.rel (%p603) target = $region76
      $region75: #{backbone_forward.1} parent=11 // pred_region
        _
      $region76: #{backbone_forward.1} parent=11 // pred_fallthru
        _
      // Predicated region
      $region77: #{backbone_forward.1} parent=11 // pred_check
        %p606 = pneg %p412
      $region78: #{backbone_forward.1} parent=11 // pred_check_branch
        %608 = sbr.rel (%p606) target = $region80
      $region79: #{backbone_forward.1} parent=11 // pred_region
        _
      $region80: #{backbone_forward.1} parent=11 // pred_fallthru
        _
      // Predicated region
      $region81: #{backbone_forward.1} parent=11 // pred_check
        %p609 = pneg %p433
      $region82: #{backbone_forward.1} parent=11 // pred_check_branch
        %611 = sbr.rel (%p609) target = $region84
      $region83: #{backbone_forward.1} parent=11 // pred_region
        _
      $region84: #{backbone_forward.1} parent=11 // pred_fallthru
        _
      // Predicated region
      $region85: #{backbone_forward.1} parent=11 // pred_check
        %p612 = pneg %p454
      $region86: #{backbone_forward.1} parent=11 // pred_check_branch
        %614 = sbr.rel (%p612) target = $region88
      $region87: #{backbone_forward.1} parent=11 // pred_region
        _
      $region88: #{backbone_forward.1} parent=11 // pred_fallthru
        _
      // Predicated region
      $region89: #{backbone_forward.1} parent=11 // pred_check
        %p615 = pneg %p475
      $region90: #{backbone_forward.1} parent=11 // pred_check_branch
        %617 = sbr.rel (%p615) target = $region92
      $region91: #{backbone_forward.1} parent=11 // pred_region
        _
      $region92: #{backbone_forward.1} parent=11 // pred_fallthru
        _
      // Predicated region
      $region93: #{backbone_forward.1} parent=11 // pred_check
        %p618 = pneg %p496
      $region94: #{backbone_forward.1} parent=11 // pred_check_branch
        %620 = sbr.rel (%p618) target = $region96
      $region95: #{backbone_forward.1} parent=11 // pred_region
        _
      $region96: #{backbone_forward.1} parent=11 // pred_fallthru
        _
      // Predicated region
      $region97: #{backbone_forward.1} parent=11 // pred_check
        %p621 = pneg %p517
      $region98: #{backbone_forward.1} parent=11 // pred_check_branch
        %623 = sbr.rel (%p621) target = $region100
      $region99: #{backbone_forward.1} parent=11 // pred_region
        _
      $region100: #{backbone_forward.1} parent=11 // pred_fallthru
        _
    $region12: #{backbone_forward.1} parent=5 // pred_fallthru
      _
    %p624 = scmp.lt.s32.totalorder %s29, 2
    // Predicated region
    $region101: #{backbone_forward.1} parent=5 // pred_check
      %p625 = pneg %p624
    $region102: #{backbone_forward.1} parent=5 // pred_check_branch
      %627 = sbr.rel (%p625) target = $region104
    $region103: #{backbone_forward.1} parent=5 // pred_region
      // Predicated region
      $region105: #{backbone_forward.1} parent=103 // pred_check
        %p628 = pneg %p49
      $region106: #{backbone_forward.1} parent=103 // pred_check_branch
        %630 = sbr.rel (%p628) target = $region108
      $region107: #{backbone_forward.1} parent=103 // pred_region
        %s631 = smul.u32 2, %s29
        %p632 = scmp.lt.s32.totalorder %s631, 3
        %s633 = scalar_select %p632, %s631, 3
        %s634 = smul.addr %s633, 8
        %s635 = smul.addr %s634, 8
        %s636 = scalar_lea.vmem %s0, %s635
        %s637 = smul.u32 2, %s29
      $region108: #{backbone_forward.1} parent=103 // pred_fallthru
        _
    $region104: #{backbone_forward.1} parent=5 // pred_fallthru
      _
    %p638 = scmp.le.s32.totalorder 1, %s29
    %p639 = scmp.lt.s32.totalorder %s29, 3
    %p640 = pnand %p638, %p639
    %p641 = pneg %p640
    // Predicated region
    $region109: #{backbone_forward.1} parent=5 // pred_check
      _
    $region110: #{backbone_forward.1} parent=5 // pred_check_branch
      %643 = sbr.rel (%p640) target = $region112
    $region111: #{backbone_forward.1} parent=5 // pred_region
      %s644 = ssub.s32 %s29, 1
      %s645 = smul.u32 2, %s34
      %p646 = scmp.lt.s32.totalorder %s645, 3
      %s647 = scalar_select %p646, %s645, 3
      %s648 = smul.addr %s647, 8
      %s649 = smul.addr %s648, 8
      %s650 = scalar_lea.vmem %s0, %s649
      %p651 = pneg %p55
      %p652 = pneg %p52
      %p653 = pneg %p76
      %p654 = pneg %p73
      %p655 = pneg %p97
      %p656 = pneg %p94
      %p657 = pneg %p118
      %p658 = pneg %p115
      %p659 = pneg %p139
      %p660 = pneg %p136
      %p661 = pneg %p160
      %p662 = pneg %p157
      %p663 = pneg %p181
      %p664 = pneg %p178
      %p665 = pneg %p202
      %p666 = pneg %p199
      %p667 = pneg %p223
      %p668 = pneg %p220
      %p669 = pneg %p244
      %p670 = pneg %p241
      %p671 = pneg %p265
      %p672 = pneg %p262
      %p673 = pneg %p286
      %p674 = pneg %p283
      %p675 = pneg %p307
      %p676 = pneg %p304
      %p677 = pneg %p328
      %p678 = pneg %p325
      %p679 = pneg %p349
      %p680 = pneg %p346
      %p681 = pneg %p370
      %p682 = pneg %p367
      %p683 = pneg %p391
      %p684 = pneg %p388
      %p685 = pneg %p412
      %p686 = pneg %p409
      %p687 = pneg %p433
      %p688 = pneg %p430
      %p689 = pneg %p454
      %p690 = pneg %p451
      %p691 = pneg %p475
      %p692 = pneg %p472
      %p693 = pneg %p496
      %p694 = pneg %p493
      %p695 = pneg %p517
      %p696 = pneg %p514
      %p697 = pneg %p543
      %p698 = pneg %p540
      %s699 = smul.u32 2, %s34
      %p700 = scmp.lt.s32.totalorder %s699, 3
      %s701 = scalar_select %p700, %s699, 3
      %s702 = smul.addr %s701, 2
      %s703 = smul.addr %s702, 2
      %s704 = scalar_lea.vmem %s23, %s703
      %s705 = smul.u32 2, %s34
      %p706 = scmp.lt.s32.totalorder %s705, 3
      %s707 = scalar_select %p706, %s705, 3
      %s708 = smul.addr %s707, 8
      %s709 = smul.addr %s708, 8
      %s710 = scalar_lea.vmem %s0, %s709
      %s711 = smul.u32 2, %s34
      %s712 = smul.u32 2, %s34
      %p713 = scmp.lt.s32.totalorder %s712, 3
      %s714 = scalar_select %p713, %s712, 3
      %s715 = smul.addr %s714, 2
      %s716 = smul.addr %s715, 2
      %s717 = scalar_lea.vmem %s23, %s716
      %s718 = smul.u32 2, %s34
      %v720 = vld [vmem:[%s710] sm:$0xff]
      %v721 = vld [vmem:[%s710 + $0x8] sm:$0xff]
      %v722 = vld [vmem:[%s710 + $0x10] sm:$0xff]
      %v723 = vld [vmem:[%s710 + $0x18] sm:$0xff]
      %v724 = vld [vmem:[%s710 + $0x20] sm:$0xff]
      %v725 = vld [vmem:[%s710 + $0x28] sm:$0xff]
      %v726 = vld [vmem:[%s710 + $0x30] sm:$0xff]
      %v727 = vld [vmem:[%s710 + $0x38] sm:$0xff]
      %v728 = vld [vmem:[%s710 + $0x40] sm:$0xff]
      %v729 = vld [vmem:[%s710 + $0x48] sm:$0xff]
      %v730 = vld [vmem:[%s710 + $0x50] sm:$0xff]
      %v731 = vld [vmem:[%s710 + $0x58] sm:$0xff]
      %v732 = vld [vmem:[%s710 + $0x60] sm:$0xff]
      %v733 = vld [vmem:[%s710 + $0x68] sm:$0xff]
      %v734 = vld [vmem:[%s710 + $0x70] sm:$0xff]
      %v735 = vld [vmem:[%s710 + $0x78] sm:$0xff]
      %v736 = vrot.slane %v720, 7
      %v737 = vrot.slane %v721, 7
      %v738 = vrot.slane %v722, 7
      %v739 = vrot.slane %v723, 7
      %v740 = vrot.slane %v724, 7
      %v741 = vrot.slane %v725, 7
      %v742 = vrot.slane %v726, 7
      %v743 = vrot.slane %v727, 7
      %v744 = vrot.slane %v728, 7
      %v745 = vrot.slane %v729, 7
      %v746 = vrot.slane %v730, 7
      %v747 = vrot.slane %v731, 7
      %v748 = vrot.slane %v732, 7
      %v749 = vrot.slane %v733, 7
      %v750 = vrot.slane %v734, 7
      %v751 = vrot.slane %v735, 7
      %v752 = vlaneseq
      %v753 = vshrl.u32 %v752, 7
      %vm754 = vcmp.lt.s32.totalorder %v753, 1
      %v755 = vsel %vm754, %v750, %v751
      %v756 = vsel %vm754, %v749, %v750
      %v757 = vsel %vm754, %v748, %v749
      %v758 = vsel %vm754, %v747, %v748
      %v759 = vsel %vm754, %v746, %v747
      %v760 = vsel %vm754, %v745, %v746
      %v761 = vsel %vm754, %v744, %v745
      %v762 = vsel %vm754, %v743, %v744
      %v763 = vsel %vm754, %v742, %v743
      %v764 = vsel %vm754, %v741, %v742
      %v765 = vsel %vm754, %v740, %v741
      %v766 = vsel %vm754, %v739, %v740
      %v767 = vsel %vm754, %v738, %v739
      %v768 = vsel %vm754, %v737, %v738
      %v769 = vsel %vm754, %v736, %v737
      %v770 = vsel %vm754, %v751, %v736
      %v771 = vrot.slane %v720, 1
      %v772 = vrot.slane %v721, 1
      %v773 = vrot.slane %v722, 1
      %v774 = vrot.slane %v723, 1
      %v775 = vrot.slane %v724, 1
      %v776 = vrot.slane %v725, 1
      %v777 = vrot.slane %v726, 1
      %v778 = vrot.slane %v727, 1
      %v779 = vrot.slane %v728, 1
      %v780 = vrot.slane %v729, 1
      %v781 = vrot.slane %v730, 1
      %v782 = vrot.slane %v731, 1
      %v783 = vrot.slane %v732, 1
      %v784 = vrot.slane %v733, 1
      %v785 = vrot.slane %v734, 1
      %v786 = vrot.slane %v735, 1
      %vm787 = vcmp.lt.s32.totalorder %v753, 7
      %v788 = vsel %vm787, %v785, %v786
      %v789 = vsel %vm787, %v784, %v785
      %v790 = vsel %vm787, %v783, %v784
      %v791 = vsel %vm787, %v782, %v783
      %v792 = vsel %vm787, %v781, %v782
      %v793 = vsel %vm787, %v780, %v781
      %v794 = vsel %vm787, %v779, %v780
      %v795 = vsel %vm787, %v778, %v779
      %v796 = vsel %vm787, %v777, %v778
      %v797 = vsel %vm787, %v776, %v777
      %v798 = vsel %vm787, %v775, %v776
      %v799 = vsel %vm787, %v774, %v775
      %v800 = vsel %vm787, %v773, %v774
      %v801 = vsel %vm787, %v772, %v773
      %v802 = vsel %vm787, %v771, %v772
      %v803 = vsel %vm787, %v786, %v771
      %v804 = vadd.s32 %v753, 8
      %v805 = vadd.s32 %v753, 16
      %v806 = vadd.s32 %v753, 24
      %v807 = vadd.s32 %v753, 32
      %v808 = vadd.s32 %v753, 40
      %v809 = vadd.s32 %v753, 48
      %v810 = vadd.s32 %v753, 56
      %v811 = vadd.s32 %v753, 64
      %v812 = vadd.s32 %v753, 72
      %v813 = vadd.s32 %v753, 80
      %v814 = vadd.s32 %v753, 88
      %v815 = vadd.s32 %v753, 96
      %v816 = vadd.s32 %v753, 104
      %v817 = vadd.s32 %v753, 112
      %v818 = vadd.s32 %v753, 120
      %vm819 = vcmp.lt.s32.totalorder %v753, 0
      %v820 = vsub.s32 0, %v753
      %v821 = vsel %vm819, %v820, %v753
      %v822 = vshrl.u32 %v821, 6
      %v823 = vand.u32 %v821, 63
      %v824 = vsub.s32 0, %v823
      %v825 = vsel %vm819, %v824, %v823
      %vm826 = vcmp.lt.s32.totalorder %v804, 0
      %v827 = vsub.s32 0, %v804
      %v828 = vsel %vm826, %v827, %v804
      %v829 = vshrl.u32 %v828, 6
      %v830 = vand.u32 %v828, 63
      %v831 = vsub.s32 0, %v830
      %v832 = vsel %vm826, %v831, %v830
      %vm833 = vcmp.lt.s32.totalorder %v805, 0
      %v834 = vsub.s32 0, %v805
      %v835 = vsel %vm833, %v834, %v805
      %v836 = vshrl.u32 %v835, 6
      %v837 = vand.u32 %v835, 63
      %v838 = vsub.s32 0, %v837
      %v839 = vsel %vm833, %v838, %v837
      %vm840 = vcmp.lt.s32.totalorder %v806, 0
      %v841 = vsub.s32 0, %v806
      %v842 = vsel %vm840, %v841, %v806
      %v843 = vshrl.u32 %v842, 6
      %v844 = vand.u32 %v842, 63
      %v845 = vsub.s32 0, %v844
      %v846 = vsel %vm840, %v845, %v844
      %vm847 = vcmp.lt.s32.totalorder %v807, 0
      %v848 = vsub.s32 0, %v807
      %v849 = vsel %vm847, %v848, %v807
      %v850 = vshrl.u32 %v849, 6
      %v851 = vand.u32 %v849, 63
      %v852 = vsub.s32 0, %v851
      %v853 = vsel %vm847, %v852, %v851
      %vm854 = vcmp.lt.s32.totalorder %v808, 0
      %v855 = vsub.s32 0, %v808
      %v856 = vsel %vm854, %v855, %v808
      %v857 = vshrl.u32 %v856, 6
      %v858 = vand.u32 %v856, 63
      %v859 = vsub.s32 0, %v858
      %v860 = vsel %vm854, %v859, %v858
      %vm861 = vcmp.lt.s32.totalorder %v809, 0
      %v862 = vsub.s32 0, %v809
      %v863 = vsel %vm861, %v862, %v809
      %v864 = vshrl.u32 %v863, 6
      %v865 = vand.u32 %v863, 63
      %v866 = vsub.s32 0, %v865
      %v867 = vsel %vm861, %v866, %v865
      %vm868 = vcmp.lt.s32.totalorder %v810, 0
      %v869 = vsub.s32 0, %v810
      %v870 = vsel %vm868, %v869, %v810
      %v871 = vshrl.u32 %v870, 6
      %v872 = vand.u32 %v870, 63
      %v873 = vsub.s32 0, %v872
      %v874 = vsel %vm868, %v873, %v872
      %vm875 = vcmp.lt.s32.totalorder %v811, 0
      %v876 = vsub.s32 0, %v811
      %v877 = vsel %vm875, %v876, %v811
      %v878 = vshrl.u32 %v877, 6
      %v879 = vand.u32 %v877, 63
      %v880 = vsub.s32 0, %v879
      %v881 = vsel %vm875, %v880, %v879
      %vm882 = vcmp.lt.s32.totalorder %v812, 0
      %v883 = vsub.s32 0, %v812
      %v884 = vsel %vm882, %v883, %v812
      %v885 = vshrl.u32 %v884, 6
      %v886 = vand.u32 %v884, 63
      %v887 = vsub.s32 0, %v886
      %v888 = vsel %vm882, %v887, %v886
      %vm889 = vcmp.lt.s32.totalorder %v813, 0
      %v890 = vsub.s32 0, %v813
      %v891 = vsel %vm889, %v890, %v813
      %v892 = vshrl.u32 %v891, 6
      %v893 = vand.u32 %v891, 63
      %v894 = vsub.s32 0, %v893
      %v895 = vsel %vm889, %v894, %v893
      %vm896 = vcmp.lt.s32.totalorder %v814, 0
      %v897 = vsub.s32 0, %v814
      %v898 = vsel %vm896, %v897, %v814
      %v899 = vshrl.u32 %v898, 6
      %v900 = vand.u32 %v898, 63
      %v901 = vsub.s32 0, %v900
      %v902 = vsel %vm896, %v901, %v900
      %vm903 = vcmp.lt.s32.totalorder %v815, 0
      %v904 = vsub.s32 0, %v815
      %v905 = vsel %vm903, %v904, %v815
      %v906 = vshrl.u32 %v905, 6
      %v907 = vand.u32 %v905, 63
      %v908 = vsub.s32 0, %v907
      %v909 = vsel %vm903, %v908, %v907
      %vm910 = vcmp.lt.s32.totalorder %v816, 0
      %v911 = vsub.s32 0, %v816
      %v912 = vsel %vm910, %v911, %v816
      %v913 = vshrl.u32 %v912, 6
      %v914 = vand.u32 %v912, 63
      %v915 = vsub.s32 0, %v914
      %v916 = vsel %vm910, %v915, %v914
      %vm917 = vcmp.lt.s32.totalorder %v817, 0
      %v918 = vsub.s32 0, %v817
      %v919 = vsel %vm917, %v918, %v817
      %v920 = vshrl.u32 %v919, 6
      %v921 = vand.u32 %v919, 63
      %v922 = vsub.s32 0, %v921
      %v923 = vsel %vm917, %v922, %v921
      %vm924 = vcmp.lt.s32.totalorder %v818, 0
      %v925 = vsub.s32 0, %v818
      %v926 = vsel %vm924, %v925, %v818
      %v927 = vshrl.u32 %v926, 6
      %v928 = vand.u32 %v926, 63
      %v929 = vsub.s32 0, %v928
      %v930 = vsel %vm924, %v929, %v928
      %vm931 = vcmp.ne.s32.totalorder %v825, 0
      %vm932 = vcmp.ne.s32.totalorder %v832, 0
      %vm933 = vcmp.ne.s32.totalorder %v839, 0
      %vm934 = vcmp.ne.s32.totalorder %v846, 0
      %vm935 = vcmp.ne.s32.totalorder %v853, 0
      %vm936 = vcmp.ne.s32.totalorder %v860, 0
      %vm937 = vcmp.ne.s32.totalorder %v867, 0
      %vm938 = vcmp.ne.s32.totalorder %v874, 0
      %vm939 = vcmp.ne.s32.totalorder %v881, 0
      %vm940 = vcmp.ne.s32.totalorder %v888, 0
      %vm941 = vcmp.ne.s32.totalorder %v895, 0
      %vm942 = vcmp.ne.s32.totalorder %v902, 0
      %vm943 = vcmp.ne.s32.totalorder %v909, 0
      %vm944 = vcmp.ne.s32.totalorder %v916, 0
      %vm945 = vcmp.ne.s32.totalorder %v923, 0
      %vm946 = vcmp.ne.s32.totalorder %v930, 0
      %vm947 = vcmp.lt.s32.totalorder %v825, 0
      %vm948 = vcmp.lt.s32.totalorder %v832, 0
      %vm949 = vcmp.lt.s32.totalorder %v839, 0
      %vm950 = vcmp.lt.s32.totalorder %v846, 0
      %vm951 = vcmp.lt.s32.totalorder %v853, 0
      %vm952 = vcmp.lt.s32.totalorder %v860, 0
      %vm953 = vcmp.lt.s32.totalorder %v867, 0
      %vm954 = vcmp.lt.s32.totalorder %v874, 0
      %vm955 = vcmp.lt.s32.totalorder %v881, 0
      %vm956 = vcmp.lt.s32.totalorder %v888, 0
      %vm957 = vcmp.lt.s32.totalorder %v895, 0
      %vm958 = vcmp.lt.s32.totalorder %v902, 0
      %vm959 = vcmp.lt.s32.totalorder %v909, 0
      %vm960 = vcmp.lt.s32.totalorder %v916, 0
      %vm961 = vcmp.lt.s32.totalorder %v923, 0
      %vm962 = vcmp.lt.s32.totalorder %v930, 0
      %vm963 = vmand %vm947, %vm931
      %vm964 = vmand %vm948, %vm932
      %vm965 = vmand %vm949, %vm933
      %vm966 = vmand %vm950, %vm934
      %vm967 = vmand %vm951, %vm935
      %vm968 = vmand %vm952, %vm936
      %vm969 = vmand %vm953, %vm937
      %vm970 = vmand %vm954, %vm938
      %vm971 = vmand %vm955, %vm939
      %vm972 = vmand %vm956, %vm940
      %vm973 = vmand %vm957, %vm941
      %vm974 = vmand %vm958, %vm942
      %vm975 = vmand %vm959, %vm943
      %vm976 = vmand %vm960, %vm944
      %vm977 = vmand %vm961, %vm945
      %vm978 = vmand %vm962, %vm946
      %v979 = vadd.s32 %v825, 64
      %v980 = vadd.s32 %v832, 64
      %v981 = vadd.s32 %v839, 64
      %v982 = vadd.s32 %v846, 64
      %v983 = vadd.s32 %v853, 64
      %v984 = vadd.s32 %v860, 64
      %v985 = vadd.s32 %v867, 64
      %v986 = vadd.s32 %v874, 64
      %v987 = vadd.s32 %v881, 64
      %v988 = vadd.s32 %v888, 64
      %v989 = vadd.s32 %v895, 64
      %v990 = vadd.s32 %v902, 64
      %v991 = vadd.s32 %v909, 64
      %v992 = vadd.s32 %v916, 64
      %v993 = vadd.s32 %v923, 64
      %v994 = vadd.s32 %v930, 64
      %v995 = vsel %vm963, %v979, %v825
      %v996 = vsel %vm964, %v980, %v832
      %v997 = vsel %vm965, %v981, %v839
      %v998 = vsel %vm966, %v982, %v846
      %v999 = vsel %vm967, %v983, %v853
      %v1000 = vsel %vm968, %v984, %v860
      %v1001 = vsel %vm969, %v985, %v867
      %v1002 = vsel %vm970, %v986, %v874
      %v1003 = vsel %vm971, %v987, %v881
      %v1004 = vsel %vm972, %v988, %v888
      %v1005 = vsel %vm973, %v989, %v895
      %v1006 = vsel %vm974, %v990, %v902
      %v1007 = vsel %vm975, %v991, %v909
      %v1008 = vsel %vm976, %v992, %v916
      %v1009 = vsel %vm977, %v993, %v923
      %v1010 = vsel %vm978, %v994, %v930
      %vm1011 = vcmp.eq.s32.totalorder %v995, 0
      %vm1012 = vcmp.eq.s32.totalorder %v996, 0
      %vm1013 = vcmp.eq.s32.totalorder %v997, 0
      %vm1014 = vcmp.eq.s32.totalorder %v998, 0
      %vm1015 = vcmp.eq.s32.totalorder %v999, 0
      %vm1016 = vcmp.eq.s32.totalorder %v1000, 0
      %vm1017 = vcmp.eq.s32.totalorder %v1001, 0
      %vm1018 = vcmp.eq.s32.totalorder %v1002, 0
      %vm1019 = vcmp.eq.s32.totalorder %v1003, 0
      %vm1020 = vcmp.eq.s32.totalorder %v1004, 0
      %vm1021 = vcmp.eq.s32.totalorder %v1005, 0
      %vm1022 = vcmp.eq.s32.totalorder %v1006, 0
      %vm1023 = vcmp.eq.s32.totalorder %v1007, 0
      %vm1024 = vcmp.eq.s32.totalorder %v1008, 0
      %vm1025 = vcmp.eq.s32.totalorder %v1009, 0
      %vm1026 = vcmp.eq.s32.totalorder %v1010, 0
      %v1027 = vsel %vm1011, 1, 0
      %v1028 = vsel %vm1012, 1, 0
      %v1029 = vsel %vm1013, 1, 0
      %v1030 = vsel %vm1014, 1, 0
      %v1031 = vsel %vm1015, 1, 0
      %v1032 = vsel %vm1016, 1, 0
      %v1033 = vsel %vm1017, 1, 0
      %v1034 = vsel %vm1018, 1, 0
      %v1035 = vsel %vm1019, 1, 0
      %v1036 = vsel %vm1020, 1, 0
      %v1037 = vsel %vm1021, 1, 0
      %v1038 = vsel %vm1022, 1, 0
      %v1039 = vsel %vm1023, 1, 0
      %v1040 = vsel %vm1024, 1, 0
      %v1041 = vsel %vm1025, 1, 0
      %v1042 = vsel %vm1026, 1, 0
      %vm1043 = vcmp.eq.s32.totalorder %v1027, 1
      %vm1044 = vcmp.eq.s32.totalorder %v1028, 1
      %vm1045 = vcmp.eq.s32.totalorder %v1029, 1
      %vm1046 = vcmp.eq.s32.totalorder %v1030, 1
      %vm1047 = vcmp.eq.s32.totalorder %v1031, 1
      %vm1048 = vcmp.eq.s32.totalorder %v1032, 1
      %vm1049 = vcmp.eq.s32.totalorder %v1033, 1
      %vm1050 = vcmp.eq.s32.totalorder %v1034, 1
      %vm1051 = vcmp.eq.s32.totalorder %v1035, 1
      %vm1052 = vcmp.eq.s32.totalorder %v1036, 1
      %vm1053 = vcmp.eq.s32.totalorder %v1037, 1
      %vm1054 = vcmp.eq.s32.totalorder %v1038, 1
      %vm1055 = vcmp.eq.s32.totalorder %v1039, 1
      %vm1056 = vcmp.eq.s32.totalorder %v1040, 1
      %vm1057 = vcmp.eq.s32.totalorder %v1041, 1
      %vm1058 = vcmp.eq.s32.totalorder %v1042, 1
      %v1059 = vsel %vm1043, 0.0, %v770
      %v1060 = vsel %vm1044, 0.0, %v769
      %v1061 = vsel %vm1045, 0.0, %v768
      %v1062 = vsel %vm1046, 0.0, %v767
      %v1063 = vsel %vm1047, 0.0, %v766
      %v1064 = vsel %vm1048, 0.0, %v765
      %v1065 = vsel %vm1049, 0.0, %v764
      %v1066 = vsel %vm1050, 0.0, %v763
      %v1067 = vsel %vm1051, 0.0, %v762
      %v1068 = vsel %vm1052, 0.0, %v761
      %v1069 = vsel %vm1053, 0.0, %v760
      %v1070 = vsel %vm1054, 0.0, %v759
      %v1071 = vsel %vm1055, 0.0, %v758
      %v1072 = vsel %vm1056, 0.0, %v757
      %v1073 = vsel %vm1057, 0.0, %v756
      %v1074 = vsel %vm1058, 0.0, %v755
      %vm1075 = vcmp.eq.s32.totalorder %v995, 63
      %vm1076 = vcmp.eq.s32.totalorder %v996, 63
      %vm1077 = vcmp.eq.s32.totalorder %v997, 63
      %vm1078 = vcmp.eq.s32.totalorder %v998, 63
      %vm1079 = vcmp.eq.s32.totalorder %v999, 63
      %vm1080 = vcmp.eq.s32.totalorder %v1000, 63
      %vm1081 = vcmp.eq.s32.totalorder %v1001, 63
      %vm1082 = vcmp.eq.s32.totalorder %v1002, 63
      %vm1083 = vcmp.eq.s32.totalorder %v1003, 63
      %vm1084 = vcmp.eq.s32.totalorder %v1004, 63
      %vm1085 = vcmp.eq.s32.totalorder %v1005, 63
      %vm1086 = vcmp.eq.s32.totalorder %v1006, 63
      %vm1087 = vcmp.eq.s32.totalorder %v1007, 63
      %vm1088 = vcmp.eq.s32.totalorder %v1008, 63
      %vm1089 = vcmp.eq.s32.totalorder %v1009, 63
      %vm1090 = vcmp.eq.s32.totalorder %v1010, 63
      %v1091 = vsel %vm1075, 1, 0
      %v1092 = vsel %vm1076, 1, 0
      %v1093 = vsel %vm1077, 1, 0
      %v1094 = vsel %vm1078, 1, 0
      %v1095 = vsel %vm1079, 1, 0
      %v1096 = vsel %vm1080, 1, 0
      %v1097 = vsel %vm1081, 1, 0
      %v1098 = vsel %vm1082, 1, 0
      %v1099 = vsel %vm1083, 1, 0
      %v1100 = vsel %vm1084, 1, 0
      %v1101 = vsel %vm1085, 1, 0
      %v1102 = vsel %vm1086, 1, 0
      %v1103 = vsel %vm1087, 1, 0
      %v1104 = vsel %vm1088, 1, 0
      %v1105 = vsel %vm1089, 1, 0
      %v1106 = vsel %vm1090, 1, 0
      %vm1107 = vcmp.eq.s32.totalorder %v1091, 1
      %vm1108 = vcmp.eq.s32.totalorder %v1092, 1
      %vm1109 = vcmp.eq.s32.totalorder %v1093, 1
      %vm1110 = vcmp.eq.s32.totalorder %v1094, 1
      %vm1111 = vcmp.eq.s32.totalorder %v1095, 1
      %vm1112 = vcmp.eq.s32.totalorder %v1096, 1
      %vm1113 = vcmp.eq.s32.totalorder %v1097, 1
      %vm1114 = vcmp.eq.s32.totalorder %v1098, 1
      %vm1115 = vcmp.eq.s32.totalorder %v1099, 1
      %vm1116 = vcmp.eq.s32.totalorder %v1100, 1
      %vm1117 = vcmp.eq.s32.totalorder %v1101, 1
      %vm1118 = vcmp.eq.s32.totalorder %v1102, 1
      %vm1119 = vcmp.eq.s32.totalorder %v1103, 1
      %vm1120 = vcmp.eq.s32.totalorder %v1104, 1
      %vm1121 = vcmp.eq.s32.totalorder %v1105, 1
      %vm1122 = vcmp.eq.s32.totalorder %v1106, 1
      %v1123 = vsel %vm1107, 0.0, %v802
      %v1124 = vsel %vm1108, 0.0, %v801
      %v1125 = vsel %vm1109, 0.0, %v800
      %v1126 = vsel %vm1110, 0.0, %v799
      %v1127 = vsel %vm1111, 0.0, %v798
      %v1128 = vsel %vm1112, 0.0, %v797
      %v1129 = vsel %vm1113, 0.0, %v796
      %v1130 = vsel %vm1114, 0.0, %v795
      %v1131 = vsel %vm1115, 0.0, %v794
      %v1132 = vsel %vm1116, 0.0, %v793
      %v1133 = vsel %vm1117, 0.0, %v792
      %v1134 = vsel %vm1118, 0.0, %v791
      %v1135 = vsel %vm1119, 0.0, %v790
      %v1136 = vsel %vm1120, 0.0, %v789
      %v1137 = vsel %vm1121, 0.0, %v788
      %v1138 = vsel %vm1122, 0.0, %v803
      %v1139 = vpack.c.bf16 %v1059, %v1059
      %v1140 = vpack.c.bf16 %v1060, %v1060
      %v1141 = vpack.c.bf16 %v1061, %v1061
      %v1142 = vpack.c.bf16 %v1062, %v1062
      %v1143 = vpack.c.bf16 %v1063, %v1063
      %v1144 = vpack.c.bf16 %v1064, %v1064
      %v1145 = vpack.c.bf16 %v1065, %v1065
      %v1146 = vpack.c.bf16 %v1066, %v1066
      %v1147 = vpack.c.bf16 %v1067, %v1067
      %v1148 = vpack.c.bf16 %v1068, %v1068
      %v1149 = vpack.c.bf16 %v1069, %v1069
      %v1150 = vpack.c.bf16 %v1070, %v1070
      %v1151 = vpack.c.bf16 %v1071, %v1071
      %v1152 = vpack.c.bf16 %v1072, %v1072
      %v1153 = vpack.c.bf16 %v1073, %v1073
      %v1154 = vpack.c.bf16 %v1074, %v1074
      %v1155 = vpack.c.bf16 %v720, %v720
      %v1156 = vpack.c.bf16 %v721, %v721
      %v1157 = vpack.c.bf16 %v722, %v722
      %v1158 = vpack.c.bf16 %v723, %v723
      %v1159 = vpack.c.bf16 %v724, %v724
      %v1160 = vpack.c.bf16 %v725, %v725
      %v1161 = vpack.c.bf16 %v726, %v726
      %v1162 = vpack.c.bf16 %v727, %v727
      %v1163 = vpack.c.bf16 %v728, %v728
      %v1164 = vpack.c.bf16 %v729, %v729
      %v1165 = vpack.c.bf16 %v730, %v730
      %v1166 = vpack.c.bf16 %v731, %v731
      %v1167 = vpack.c.bf16 %v732, %v732
      %v1168 = vpack.c.bf16 %v733, %v733
      %v1169 = vpack.c.bf16 %v734, %v734
      %v1170 = vpack.c.bf16 %v735, %v735
      %v1171 = vpack.c.bf16 %v1123, %v1123
      %v1172 = vpack.c.bf16 %v1124, %v1124
      %v1173 = vpack.c.bf16 %v1125, %v1125
      %v1174 = vpack.c.bf16 %v1126, %v1126
      %v1175 = vpack.c.bf16 %v1127, %v1127
      %v1176 = vpack.c.bf16 %v1128, %v1128
      %v1177 = vpack.c.bf16 %v1129, %v1129
      %v1178 = vpack.c.bf16 %v1130, %v1130
      %v1179 = vpack.c.bf16 %v1131, %v1131
      %v1180 = vpack.c.bf16 %v1132, %v1132
      %v1181 = vpack.c.bf16 %v1133, %v1133
      %v1182 = vpack.c.bf16 %v1134, %v1134
      %v1183 = vpack.c.bf16 %v1135, %v1135
      %v1184 = vpack.c.bf16 %v1136, %v1136
      %v1185 = vpack.c.bf16 %v1137, %v1137
      %v1186 = vpack.c.bf16 %v1138, %v1138
      %v1203 = vunpack.c.l.b16 %v1139
      %v1204 = vunpack.c.l.b16 %v1140
      %v1205 = vunpack.c.l.b16 %v1141
      %v1206 = vunpack.c.l.b16 %v1142
      %v1207 = vunpack.c.l.b16 %v1143
      %v1208 = vunpack.c.l.b16 %v1144
      %v1209 = vunpack.c.l.b16 %v1145
      %v1210 = vunpack.c.l.b16 %v1146
      %v1211 = vunpack.c.l.b16 %v1147
      %v1212 = vunpack.c.l.b16 %v1148
      %v1213 = vunpack.c.l.b16 %v1149
      %v1214 = vunpack.c.l.b16 %v1150
      %v1215 = vunpack.c.l.b16 %v1151
      %v1216 = vunpack.c.l.b16 %v1152
      %v1217 = vunpack.c.l.b16 %v1153
      %v1218 = vunpack.c.l.b16 %v1154
      %v1219 = vpack.c.b16 %v1204, %v1203
      %v1220 = vpack.c.b16 %v1206, %v1205
      %v1221 = vpack.c.b16 %v1208, %v1207
      %v1222 = vpack.c.b16 %v1210, %v1209
      %v1223 = vpack.c.b16 %v1212, %v1211
      %v1224 = vpack.c.b16 %v1214, %v1213
      %v1225 = vpack.c.b16 %v1216, %v1215
      %v1226 = vpack.c.b16 %v1218, %v1217
      %v1243 = vunpack.c.l.b16 %v1155
      %v1244 = vunpack.c.l.b16 %v1156
      %v1245 = vunpack.c.l.b16 %v1157
      %v1246 = vunpack.c.l.b16 %v1158
      %v1247 = vunpack.c.l.b16 %v1159
      %v1248 = vunpack.c.l.b16 %v1160
      %v1249 = vunpack.c.l.b16 %v1161
      %v1250 = vunpack.c.l.b16 %v1162
      %v1251 = vunpack.c.l.b16 %v1163
      %v1252 = vunpack.c.l.b16 %v1164
      %v1253 = vunpack.c.l.b16 %v1165
      %v1254 = vunpack.c.l.b16 %v1166
      %v1255 = vunpack.c.l.b16 %v1167
      %v1256 = vunpack.c.l.b16 %v1168
      %v1257 = vunpack.c.l.b16 %v1169
      %v1258 = vunpack.c.l.b16 %v1170
      %v1259 = vpack.c.b16 %v1244, %v1243
      %v1260 = vpack.c.b16 %v1246, %v1245
      %v1261 = vpack.c.b16 %v1248, %v1247
      %v1262 = vpack.c.b16 %v1250, %v1249
      %v1263 = vpack.c.b16 %v1252, %v1251
      %v1264 = vpack.c.b16 %v1254, %v1253
      %v1265 = vpack.c.b16 %v1256, %v1255
      %v1266 = vpack.c.b16 %v1258, %v1257
      %1267 = vrot.lane.b32.xlu0 %v1259, 8
      %v1268 = vpop.permute.xlu0 %1267
      %1269 = vrot.lane.b32.xlu0 %v1260, 8
      %v1270 = vpop.permute.xlu0 %1269
      %1271 = vrot.lane.b32.xlu0 %v1261, 8
      %v1272 = vpop.permute.xlu0 %1271
      %1273 = vrot.lane.b32.xlu0 %v1262, 8
      %v1274 = vpop.permute.xlu0 %1273
      %1275 = vrot.lane.b32.xlu0 %v1263, 8
      %v1276 = vpop.permute.xlu0 %1275
      %1277 = vrot.lane.b32.xlu0 %v1264, 8
      %v1278 = vpop.permute.xlu0 %1277
      %1279 = vrot.lane.b32.xlu0 %v1265, 8
      %v1280 = vpop.permute.xlu0 %1279
      %1281 = vrot.lane.b32.xlu0 %v1266, 8
      %v1282 = vpop.permute.xlu0 %1281
      %v1299 = vunpack.c.l.b16 %v1171
      %v1300 = vunpack.c.l.b16 %v1172
      %v1301 = vunpack.c.l.b16 %v1173
      %v1302 = vunpack.c.l.b16 %v1174
      %v1303 = vunpack.c.l.b16 %v1175
      %v1304 = vunpack.c.l.b16 %v1176
      %v1305 = vunpack.c.l.b16 %v1177
      %v1306 = vunpack.c.l.b16 %v1178
      %v1307 = vunpack.c.l.b16 %v1179
      %v1308 = vunpack.c.l.b16 %v1180
      %v1309 = vunpack.c.l.b16 %v1181
      %v1310 = vunpack.c.l.b16 %v1182
      %v1311 = vunpack.c.l.b16 %v1183
      %v1312 = vunpack.c.l.b16 %v1184
      %v1313 = vunpack.c.l.b16 %v1185
      %v1314 = vunpack.c.l.b16 %v1186
      %v1315 = vpack.c.b16 %v1300, %v1299
      %v1316 = vpack.c.b16 %v1302, %v1301
      %v1317 = vpack.c.b16 %v1304, %v1303
      %v1318 = vpack.c.b16 %v1306, %v1305
      %v1319 = vpack.c.b16 %v1308, %v1307
      %v1320 = vpack.c.b16 %v1310, %v1309
      %v1321 = vpack.c.b16 %v1312, %v1311
      %v1322 = vpack.c.b16 %v1314, %v1313
      %1323 = vrot.lane.b32.xlu0 %v1315, 16
      %v1324 = vpop.permute.xlu0 %1323
      %1325 = vrot.lane.b32.xlu0 %v1316, 16
      %v1326 = vpop.permute.xlu0 %1325
      %1327 = vrot.lane.b32.xlu0 %v1317, 16
      %v1328 = vpop.permute.xlu0 %1327
      %1329 = vrot.lane.b32.xlu0 %v1318, 16
      %v1330 = vpop.permute.xlu0 %1329
      %1331 = vrot.lane.b32.xlu0 %v1319, 16
      %v1332 = vpop.permute.xlu0 %1331
      %1333 = vrot.lane.b32.xlu0 %v1320, 16
      %v1334 = vpop.permute.xlu0 %1333
      %1335 = vrot.lane.b32.xlu0 %v1321, 16
      %v1336 = vpop.permute.xlu0 %1335
      %1337 = vrot.lane.b32.xlu0 %v1322, 16
      %v1338 = vpop.permute.xlu0 %1337
      %vm1339 = vcmask 64512
      %v1342 = vsel %vm1339, %v1219, %v1268
      %v1345 = vsel %vm1339, %v1220, %v1270
      %v1348 = vsel %vm1339, %v1221, %v1272
      %v1351 = vsel %vm1339, %v1222, %v1274
      %v1354 = vsel %vm1339, %v1223, %v1276
      %v1357 = vsel %vm1339, %v1224, %v1278
      %v1360 = vsel %vm1339, %v1225, %v1280
      %v1363 = vsel %vm1339, %v1226, %v1282
      %vm1364 = vcmask 130048
      %v1366 = vsel %vm1364, %v1342, %v1324
      %v1368 = vsel %vm1364, %v1345, %v1326
      %v1370 = vsel %vm1364, %v1348, %v1328
      %v1372 = vsel %vm1364, %v1351, %v1330
      %v1374 = vsel %vm1364, %v1354, %v1332
      %v1376 = vsel %vm1364, %v1357, %v1334
      %v1378 = vsel %vm1364, %v1360, %v1336
      %v1380 = vsel %vm1364, %v1363, %v1338
      %v1381 = vld [vmem:[%s1] sm:$0xf]
      %v1382 = vld [vmem:[%s1 + $0x4] sm:$0xf]
      %v1383 = vld [vmem:[%s1 + $0x8] sm:$0xf]
      %v1384 = vld [vmem:[%s2] sm:$0x1]
      %v1386 = vperm.slane %v1384, 0
      %v1391 = vunpack.c.l.b16 %v1381
      %v1392 = vunpack.c.l.b16 %v1382
      %v1393 = vunpack.c.l.b16 %v1383
      %v1394 = vpack.c.b16 %v1392, %v1391
      %v1395 = vpack.c.b16 %v1393, %v1393
      %vm1397 = vcmask 195584
      %v1398 = vsel %vm1397, %v1366, 0
      %v1400 = vsel %vm1397, %v1368, 0
      %v1402 = vsel %vm1397, %v1370, 0
      %v1404 = vsel %vm1397, %v1372, 0
      %v1406 = vsel %vm1397, %v1374, 0
      %v1408 = vsel %vm1397, %v1376, 0
      %v1410 = vsel %vm1397, %v1378, 0
      %v1412 = vsel %vm1397, %v1380, 0
      %vm1414 = vcmask 1043456
      %v1416 = vsel %vm1414, %v1395, 0
      %1418 = vmatpush.bf16.msra.mxu0 0
      %1419 = vmatpush.bf16.msra.mxu0 0
      %1420 = vmatpush.bf16.msra.mxu0 0
      %1421 = vmatpush.bf16.msra.mxu0 0
      %1422 = vmatpush.bf16.msra.mxu0 0
      %1423 = vmatpush.bf16.msra.mxu0 0
      %1424 = vmatpush.bf16.msra.mxu0 %v1416
      %1425 = vmatpush.bf16.msra.mxu0 %v1394
      %1426 = vmatmul.bf16.gmra.mxu0 %v1398
      %v1427 = vpop.f32.mrf.mxu0
      %v1428 = vadd.f32 %v1386, %v1427
      %v1429 = vpop.f32.mrf.mxu0
      %v1430 = vadd.f32 %v1386, %v1429
      %1431 = vmatmul.bf16.gmra.mxu0 %v1400
      %v1432 = vpop.f32.mrf.mxu0
      %v1433 = vadd.f32 %v1386, %v1432
      %v1434 = vpop.f32.mrf.mxu0
      %v1435 = vadd.f32 %v1386, %v1434
      %1436 = vmatmul.bf16.gmra.mxu0 %v1402
      %v1437 = vpop.f32.mrf.mxu0
      %v1438 = vadd.f32 %v1386, %v1437
      %v1439 = vpop.f32.mrf.mxu0
      %v1440 = vadd.f32 %v1386, %v1439
      %1441 = vmatmul.bf16.gmra.mxu0 %v1404
      %v1442 = vpop.f32.mrf.mxu0
      %v1443 = vadd.f32 %v1386, %v1442
      %v1444 = vpop.f32.mrf.mxu0
      %v1445 = vadd.f32 %v1386, %v1444
      %1446 = vmatmul.bf16.gmra.mxu0 %v1406
      %v1447 = vpop.f32.mrf.mxu0
      %v1448 = vadd.f32 %v1386, %v1447
      %v1449 = vpop.f32.mrf.mxu0
      %v1450 = vadd.f32 %v1386, %v1449
      %1451 = vmatmul.bf16.gmra.mxu0 %v1408
      %v1452 = vpop.f32.mrf.mxu0
      %v1453 = vadd.f32 %v1386, %v1452
      %v1454 = vpop.f32.mrf.mxu0
      %v1455 = vadd.f32 %v1386, %v1454
      %1456 = vmatmul.bf16.gmra.mxu0 %v1410
      %v1457 = vpop.f32.mrf.mxu0
      %v1458 = vadd.f32 %v1386, %v1457
      %v1459 = vpop.f32.mrf.mxu0
      %v1460 = vadd.f32 %v1386, %v1459
      %1461 = vmatmul.bf16.gmra.mxu0 %v1412
      %v1462 = vpop.f32.mrf.mxu0
      %v1463 = vadd.f32 %v1386, %v1462
      %v1464 = vpop.f32.mrf.mxu0
      %v1465 = vadd.f32 %v1386, %v1464
      %1466 = vdwg.mxu0
      %v1467 = vmax.f32 %v1428, 0.0
      %v1468 = vmax.f32 %v1430, 0.0
      %v1469 = vmax.f32 %v1433, 0.0
      %v1470 = vmax.f32 %v1435, 0.0
      %v1471 = vmax.f32 %v1438, 0.0
      %v1472 = vmax.f32 %v1440, 0.0
      %v1473 = vmax.f32 %v1443, 0.0
      %v1474 = vmax.f32 %v1445, 0.0
      %v1475 = vmax.f32 %v1448, 0.0
      %v1476 = vmax.f32 %v1450, 0.0
      %v1477 = vmax.f32 %v1453, 0.0
      %v1478 = vmax.f32 %v1455, 0.0
      %v1479 = vmax.f32 %v1458, 0.0
      %v1480 = vmax.f32 %v1460, 0.0
      %v1481 = vmax.f32 %v1463, 0.0
      %v1482 = vmax.f32 %v1465, 0.0
      %v1483 = vrot.slane %v1467, 7
      %v1484 = vrot.slane %v1468, 7
      %v1485 = vrot.slane %v1469, 7
      %v1486 = vrot.slane %v1470, 7
      %v1487 = vrot.slane %v1471, 7
      %v1488 = vrot.slane %v1472, 7
      %v1489 = vrot.slane %v1473, 7
      %v1490 = vrot.slane %v1474, 7
      %v1491 = vrot.slane %v1475, 7
      %v1492 = vrot.slane %v1476, 7
      %v1493 = vrot.slane %v1477, 7
      %v1494 = vrot.slane %v1478, 7
      %v1495 = vrot.slane %v1479, 7
      %v1496 = vrot.slane %v1480, 7
      %v1497 = vrot.slane %v1481, 7
      %v1498 = vrot.slane %v1482, 7
      %v1499 = vsel %vm754, %v1497, %v1498
      %v1500 = vsel %vm754, %v1496, %v1497
      %v1501 = vsel %vm754, %v1495, %v1496
      %v1502 = vsel %vm754, %v1494, %v1495
      %v1503 = vsel %vm754, %v1493, %v1494
      %v1504 = vsel %vm754, %v1492, %v1493
      %v1505 = vsel %vm754, %v1491, %v1492
      %v1506 = vsel %vm754, %v1490, %v1491
      %v1507 = vsel %vm754, %v1489, %v1490
      %v1508 = vsel %vm754, %v1488, %v1489
      %v1509 = vsel %vm754, %v1487, %v1488
      %v1510 = vsel %vm754, %v1486, %v1487
      %v1511 = vsel %vm754, %v1485, %v1486
      %v1512 = vsel %vm754, %v1484, %v1485
      %v1513 = vsel %vm754, %v1483, %v1484
      %v1514 = vsel %vm754, %v1498, %v1483
      %v1515 = vrot.slane %v1467, 1
      %v1516 = vrot.slane %v1468, 1
      %v1517 = vrot.slane %v1469, 1
      %v1518 = vrot.slane %v1470, 1
      %v1519 = vrot.slane %v1471, 1
      %v1520 = vrot.slane %v1472, 1
      %v1521 = vrot.slane %v1473, 1
      %v1522 = vrot.slane %v1474, 1
      %v1523 = vrot.slane %v1475, 1
      %v1524 = vrot.slane %v1476, 1
      %v1525 = vrot.slane %v1477, 1
      %v1526 = vrot.slane %v1478, 1
      %v1527 = vrot.slane %v1479, 1
      %v1528 = vrot.slane %v1480, 1
      %v1529 = vrot.slane %v1481, 1
      %v1530 = vrot.slane %v1482, 1
      %v1531 = vsel %vm787, %v1529, %v1530
      %v1532 = vsel %vm787, %v1528, %v1529
      %v1533 = vsel %vm787, %v1527, %v1528
      %v1534 = vsel %vm787, %v1526, %v1527
      %v1535 = vsel %vm787, %v1525, %v1526
      %v1536 = vsel %vm787, %v1524, %v1525
      %v1537 = vsel %vm787, %v1523, %v1524
      %v1538 = vsel %vm787, %v1522, %v1523
      %v1539 = vsel %vm787, %v1521, %v1522
      %v1540 = vsel %vm787, %v1520, %v1521
      %v1541 = vsel %vm787, %v1519, %v1520
      %v1542 = vsel %vm787, %v1518, %v1519
      %v1543 = vsel %vm787, %v1517, %v1518
      %v1544 = vsel %vm787, %v1516, %v1517
      %v1545 = vsel %vm787, %v1515, %v1516
      %v1546 = vsel %vm787, %v1530, %v1515
      %v1547 = vsel %vm1043, 0.0, %v1514
      %v1548 = vsel %vm1044, 0.0, %v1513
      %v1549 = vsel %vm1045, 0.0, %v1512
      %v1550 = vsel %vm1046, 0.0, %v1511
      %v1551 = vsel %vm1047, 0.0, %v1510
      %v1552 = vsel %vm1048, 0.0, %v1509
      %v1553 = vsel %vm1049, 0.0, %v1508
      %v1554 = vsel %vm1050, 0.0, %v1507
      %v1555 = vsel %vm1051, 0.0, %v1506
      %v1556 = vsel %vm1052, 0.0, %v1505
      %v1557 = vsel %vm1053, 0.0, %v1504
      %v1558 = vsel %vm1054, 0.0, %v1503
      %v1559 = vsel %vm1055, 0.0, %v1502
      %v1560 = vsel %vm1056, 0.0, %v1501
      %v1561 = vsel %vm1057, 0.0, %v1500
      %v1562 = vsel %vm1058, 0.0, %v1499
      %v1563 = vsel %vm1107, 0.0, %v1545
      %v1564 = vsel %vm1108, 0.0, %v1544
      %v1565 = vsel %vm1109, 0.0, %v1543
      %v1566 = vsel %vm1110, 0.0, %v1542
      %v1567 = vsel %vm1111, 0.0, %v1541
      %v1568 = vsel %vm1112, 0.0, %v1540
      %v1569 = vsel %vm1113, 0.0, %v1539
      %v1570 = vsel %vm1114, 0.0, %v1538
      %v1571 = vsel %vm1115, 0.0, %v1537
      %v1572 = vsel %vm1116, 0.0, %v1536
      %v1573 = vsel %vm1117, 0.0, %v1535
      %v1574 = vsel %vm1118, 0.0, %v1534
      %v1575 = vsel %vm1119, 0.0, %v1533
      %v1576 = vsel %vm1120, 0.0, %v1532
      %v1577 = vsel %vm1121, 0.0, %v1531
      %v1578 = vsel %vm1122, 0.0, %v1546
      %v1579 = vpack.c.bf16 %v1548, %v1547
      %v1580 = vpack.c.bf16 %v1550, %v1549
      %v1581 = vpack.c.bf16 %v1552, %v1551
      %v1582 = vpack.c.bf16 %v1554, %v1553
      %v1583 = vpack.c.bf16 %v1556, %v1555
      %v1584 = vpack.c.bf16 %v1558, %v1557
      %v1585 = vpack.c.bf16 %v1560, %v1559
      %v1586 = vpack.c.bf16 %v1562, %v1561
      %v1587 = vpack.c.bf16 %v1468, %v1467
      %v1588 = vpack.c.bf16 %v1470, %v1469
      %v1589 = vpack.c.bf16 %v1472, %v1471
      %v1590 = vpack.c.bf16 %v1474, %v1473
      %v1591 = vpack.c.bf16 %v1476, %v1475
      %v1592 = vpack.c.bf16 %v1478, %v1477
      %v1593 = vpack.c.bf16 %v1480, %v1479
      %v1594 = vpack.c.bf16 %v1482, %v1481
      %v1595 = vpack.c.bf16 %v1564, %v1563
      %v1596 = vpack.c.bf16 %v1566, %v1565
      %v1597 = vpack.c.bf16 %v1568, %v1567
      %v1598 = vpack.c.bf16 %v1570, %v1569
      %v1599 = vpack.c.bf16 %v1572, %v1571
      %v1600 = vpack.c.bf16 %v1574, %v1573
      %v1601 = vpack.c.bf16 %v1576, %v1575
      %v1602 = vpack.c.bf16 %v1578, %v1577
      %v1603 = vld [vmem:[%s4] sm:$0xf]
      %v1604 = vld [vmem:[%s4 + $0x4] sm:$0xf]
      %v1605 = vld [vmem:[%s4 + $0x8] sm:$0xf]
      %v1606 = vld [vmem:[%s4 + $0xc] sm:$0xf]
      %v1607 = vld [vmem:[%s4 + $0x10] sm:$0xf]
      %v1608 = vld [vmem:[%s4 + $0x14] sm:$0xf]
      %v1609 = vld [vmem:[%s4 + $0x18] sm:$0xf]
      %v1610 = vld [vmem:[%s4 + $0x1c] sm:$0xf]
      %v1611 = vld [vmem:[%s3] sm:$0xf]
      %v1612 = vld [vmem:[%s3 + $0x4] sm:$0xf]
      %v1613 = vld [vmem:[%s3 + $0x8] sm:$0xf]
      %v1614 = vld [vmem:[%s3 + $0xc] sm:$0xf]
      %v1615 = vld [vmem:[%s3 + $0x10] sm:$0xf]
      %v1616 = vld [vmem:[%s3 + $0x14] sm:$0xf]
      %v1617 = vld [vmem:[%s3 + $0x18] sm:$0xf]
      %v1618 = vld [vmem:[%s3 + $0x1c] sm:$0xf]
      %v1627 = vunpack.c.l.b16 %v1611
      %v1628 = vunpack.c.l.b16 %v1612
      %v1629 = vunpack.c.l.b16 %v1613
      %v1630 = vunpack.c.l.b16 %v1614
      %v1631 = vunpack.c.l.b16 %v1615
      %v1632 = vunpack.c.l.b16 %v1616
      %v1633 = vunpack.c.l.b16 %v1617
      %v1634 = vunpack.c.l.b16 %v1618
      %v1635 = vpack.c.b16 %v1628, %v1627
      %v1636 = vpack.c.b16 %v1630, %v1629
      %v1637 = vpack.c.b16 %v1632, %v1631
      %v1638 = vpack.c.b16 %v1634, %v1633
      %vm1643 = vcmask 523264
      %v1645 = vsel %vm1643, %v1579, 0
      %v1648 = vsel %vm1643, %v1580, 0
      %v1651 = vsel %vm1643, %v1581, 0
      %v1654 = vsel %vm1643, %v1582, 0
      %v1657 = vsel %vm1643, %v1583, 0
      %v1660 = vsel %vm1643, %v1584, 0
      %v1663 = vsel %vm1643, %v1585, 0
      %v1666 = vsel %vm1643, %v1586, 0
      %1668 = vmatpush.bf16.msra.mxu0 0
      %1669 = vmatpush.bf16.msra.mxu0 0
      %1670 = vmatpush.bf16.msra.mxu0 0
      %1671 = vmatpush.bf16.msra.mxu0 0
      %1672 = vmatpush.bf16.msra.mxu0 %v1638
      %1673 = vmatpush.bf16.msra.mxu0 %v1637
      %1674 = vmatpush.bf16.msra.mxu0 %v1636
      %1675 = vmatpush.bf16.msra.mxu0 %v1635
      %1676 = vmatmul.bf16.gmra.mxu0 %v1645
      %v1677 = vpop.f32.mrf.mxu0
      %v1678 = vadd.f32 0.0, %v1677
      %v1679 = vpop.f32.mrf.mxu0
      %v1680 = vadd.f32 0.0, %v1679
      %1681 = vmatmul.bf16.gmra.mxu0 %v1648
      %v1682 = vpop.f32.mrf.mxu0
      %v1683 = vadd.f32 0.0, %v1682
      %v1684 = vpop.f32.mrf.mxu0
      %v1685 = vadd.f32 0.0, %v1684
      %1686 = vmatmul.bf16.gmra.mxu0 %v1651
      %v1687 = vpop.f32.mrf.mxu0
      %v1688 = vadd.f32 0.0, %v1687
      %v1689 = vpop.f32.mrf.mxu0
      %v1690 = vadd.f32 0.0, %v1689
      %1691 = vmatmul.bf16.gmra.mxu0 %v1654
      %v1692 = vpop.f32.mrf.mxu0
      %v1693 = vadd.f32 0.0, %v1692
      %v1694 = vpop.f32.mrf.mxu0
      %v1695 = vadd.f32 0.0, %v1694
      %1696 = vmatmul.bf16.gmra.mxu0 %v1657
      %v1697 = vpop.f32.mrf.mxu0
      %v1698 = vadd.f32 0.0, %v1697
      %v1699 = vpop.f32.mrf.mxu0
      %v1700 = vadd.f32 0.0, %v1699
      %1701 = vmatmul.bf16.gmra.mxu0 %v1660
      %v1702 = vpop.f32.mrf.mxu0
      %v1703 = vadd.f32 0.0, %v1702
      %v1704 = vpop.f32.mrf.mxu0
      %v1705 = vadd.f32 0.0, %v1704
      %1706 = vmatmul.bf16.gmra.mxu0 %v1663
      %v1707 = vpop.f32.mrf.mxu0
      %v1708 = vadd.f32 0.0, %v1707
      %v1709 = vpop.f32.mrf.mxu0
      %v1710 = vadd.f32 0.0, %v1709
      %1711 = vmatmul.bf16.gmra.mxu0 %v1666
      %v1712 = vpop.f32.mrf.mxu0
      %v1713 = vadd.f32 0.0, %v1712
      %v1714 = vpop.f32.mrf.mxu0
      %v1715 = vadd.f32 0.0, %v1714
      %1716 = vdwg.mxu0
      %v1725 = vunpack.c.l.b16 %v1603
      %v1726 = vunpack.c.l.b16 %v1604
      %v1727 = vunpack.c.l.b16 %v1605
      %v1728 = vunpack.c.l.b16 %v1606
      %v1729 = vunpack.c.l.b16 %v1607
      %v1730 = vunpack.c.l.b16 %v1608
      %v1731 = vunpack.c.l.b16 %v1609
      %v1732 = vunpack.c.l.b16 %v1610
      %v1733 = vpack.c.b16 %v1726, %v1725
      %v1734 = vpack.c.b16 %v1728, %v1727
      %v1735 = vpack.c.b16 %v1730, %v1729
      %v1736 = vpack.c.b16 %v1732, %v1731
      %v1742 = vsel %vm1643, %v1587, 0
      %v1745 = vsel %vm1643, %v1588, 0
      %v1748 = vsel %vm1643, %v1589, 0
      %v1751 = vsel %vm1643, %v1590, 0
      %v1754 = vsel %vm1643, %v1591, 0
      %v1757 = vsel %vm1643, %v1592, 0
      %v1760 = vsel %vm1643, %v1593, 0
      %v1763 = vsel %vm1643, %v1594, 0
      %1765 = vmatpush.bf16.msra.mxu0 0
      %1766 = vmatpush.bf16.msra.mxu0 0
      %1767 = vmatpush.bf16.msra.mxu0 0
      %1768 = vmatpush.bf16.msra.mxu0 0
      %1769 = vmatpush.bf16.msra.mxu0 %v1736
      %1770 = vmatpush.bf16.msra.mxu0 %v1735
      %1771 = vmatpush.bf16.msra.mxu0 %v1734
      %1772 = vmatpush.bf16.msra.mxu0 %v1733
      %1773 = vmatmul.bf16.gmra.mxu0 %v1742
      %v1774 = vpop.f32.mrf.mxu0
      %v1775 = vadd.f32 %v1678, %v1774
      %v1776 = vpop.f32.mrf.mxu0
      %v1777 = vadd.f32 %v1680, %v1776
      %1778 = vmatmul.bf16.gmra.mxu0 %v1745
      %v1779 = vpop.f32.mrf.mxu0
      %v1780 = vadd.f32 %v1683, %v1779
      %v1781 = vpop.f32.mrf.mxu0
      %v1782 = vadd.f32 %v1685, %v1781
      %1783 = vmatmul.bf16.gmra.mxu0 %v1748
      %v1784 = vpop.f32.mrf.mxu0
      %v1785 = vadd.f32 %v1688, %v1784
      %v1786 = vpop.f32.mrf.mxu0
      %v1787 = vadd.f32 %v1690, %v1786
      %1788 = vmatmul.bf16.gmra.mxu0 %v1751
      %v1789 = vpop.f32.mrf.mxu0
      %v1790 = vadd.f32 %v1693, %v1789
      %v1791 = vpop.f32.mrf.mxu0
      %v1792 = vadd.f32 %v1695, %v1791
      %1793 = vmatmul.bf16.gmra.mxu0 %v1754
      %v1794 = vpop.f32.mrf.mxu0
      %v1795 = vadd.f32 %v1698, %v1794
      %v1796 = vpop.f32.mrf.mxu0
      %v1797 = vadd.f32 %v1700, %v1796
      %1798 = vmatmul.bf16.gmra.mxu0 %v1757
      %v1799 = vpop.f32.mrf.mxu0
      %v1800 = vadd.f32 %v1703, %v1799
      %v1801 = vpop.f32.mrf.mxu0
      %v1802 = vadd.f32 %v1705, %v1801
      %1803 = vmatmul.bf16.gmra.mxu0 %v1760
      %v1804 = vpop.f32.mrf.mxu0
      %v1805 = vadd.f32 %v1708, %v1804
      %v1806 = vpop.f32.mrf.mxu0
      %v1807 = vadd.f32 %v1710, %v1806
      %1808 = vmatmul.bf16.gmra.mxu0 %v1763
      %v1809 = vpop.f32.mrf.mxu0
      %v1810 = vadd.f32 %v1713, %v1809
      %v1811 = vpop.f32.mrf.mxu0
      %v1812 = vadd.f32 %v1715, %v1811
      %1813 = vdwg.mxu0
      %v1814 = vld [vmem:[%s5] sm:$0xf]
      %v1815 = vld [vmem:[%s5 + $0x4] sm:$0xf]
      %v1816 = vld [vmem:[%s5 + $0x8] sm:$0xf]
      %v1817 = vld [vmem:[%s5 + $0xc] sm:$0xf]
      %v1818 = vld [vmem:[%s5 + $0x10] sm:$0xf]
      %v1819 = vld [vmem:[%s5 + $0x14] sm:$0xf]
      %v1820 = vld [vmem:[%s5 + $0x18] sm:$0xf]
      %v1821 = vld [vmem:[%s5 + $0x1c] sm:$0xf]
      %v1830 = vunpack.c.l.b16 %v1814
      %v1831 = vunpack.c.l.b16 %v1815
      %v1832 = vunpack.c.l.b16 %v1816
      %v1833 = vunpack.c.l.b16 %v1817
      %v1834 = vunpack.c.l.b16 %v1818
      %v1835 = vunpack.c.l.b16 %v1819
      %v1836 = vunpack.c.l.b16 %v1820
      %v1837 = vunpack.c.l.b16 %v1821
      %v1838 = vpack.c.b16 %v1831, %v1830
      %v1839 = vpack.c.b16 %v1833, %v1832
      %v1840 = vpack.c.b16 %v1835, %v1834
      %v1841 = vpack.c.b16 %v1837, %v1836
      %v1847 = vsel %vm1643, %v1595, 0
      %v1850 = vsel %vm1643, %v1596, 0
      %v1853 = vsel %vm1643, %v1597, 0
      %v1856 = vsel %vm1643, %v1598, 0
      %v1859 = vsel %vm1643, %v1599, 0
      %v1862 = vsel %vm1643, %v1600, 0
      %v1865 = vsel %vm1643, %v1601, 0
      %v1868 = vsel %vm1643, %v1602, 0
      %1870 = vmatpush.bf16.msra.mxu0 0
      %1871 = vmatpush.bf16.msra.mxu0 0
      %1872 = vmatpush.bf16.msra.mxu0 0
      %1873 = vmatpush.bf16.msra.mxu0 0
      %1874 = vmatpush.bf16.msra.mxu0 %v1841
      %1875 = vmatpush.bf16.msra.mxu0 %v1840
      %1876 = vmatpush.bf16.msra.mxu0 %v1839
      %1877 = vmatpush.bf16.msra.mxu0 %v1838
      %1878 = vmatmul.bf16.gmra.mxu0 %v1847
      %v1879 = vpop.f32.mrf.mxu0
      %v1880 = vadd.f32 0.0, %v1879
      %v1881 = vpop.f32.mrf.mxu0
      %v1882 = vadd.f32 0.0, %v1881
      %1883 = vmatmul.bf16.gmra.mxu0 %v1850
      %v1884 = vpop.f32.mrf.mxu0
      %v1885 = vadd.f32 0.0, %v1884
      %v1886 = vpop.f32.mrf.mxu0
      %v1887 = vadd.f32 0.0, %v1886
      %1888 = vmatmul.bf16.gmra.mxu0 %v1853
      %v1889 = vpop.f32.mrf.mxu0
      %v1890 = vadd.f32 0.0, %v1889
      %v1891 = vpop.f32.mrf.mxu0
      %v1892 = vadd.f32 0.0, %v1891
      %1893 = vmatmul.bf16.gmra.mxu0 %v1856
      %v1894 = vpop.f32.mrf.mxu0
      %v1895 = vadd.f32 0.0, %v1894
      %v1896 = vpop.f32.mrf.mxu0
      %v1897 = vadd.f32 0.0, %v1896
      %1898 = vmatmul.bf16.gmra.mxu0 %v1859
      %v1899 = vpop.f32.mrf.mxu0
      %v1900 = vadd.f32 0.0, %v1899
      %v1901 = vpop.f32.mrf.mxu0
      %v1902 = vadd.f32 0.0, %v1901
      %1903 = vmatmul.bf16.gmra.mxu0 %v1862
      %v1904 = vpop.f32.mrf.mxu0
      %v1905 = vadd.f32 0.0, %v1904
      %v1906 = vpop.f32.mrf.mxu0
      %v1907 = vadd.f32 0.0, %v1906
      %1908 = vmatmul.bf16.gmra.mxu0 %v1865
      %v1909 = vpop.f32.mrf.mxu0
      %v1910 = vadd.f32 0.0, %v1909
      %v1911 = vpop.f32.mrf.mxu0
      %v1912 = vadd.f32 0.0, %v1911
      %1913 = vmatmul.bf16.gmra.mxu0 %v1868
      %v1914 = vpop.f32.mrf.mxu0
      %v1915 = vadd.f32 0.0, %v1914
      %v1916 = vpop.f32.mrf.mxu0
      %v1917 = vadd.f32 0.0, %v1916
      %1918 = vdwg.mxu0
      %v1919 = vadd.f32 %v1775, %v1880
      %v1920 = vadd.f32 %v1777, %v1882
      %v1921 = vadd.f32 %v1780, %v1885
      %v1922 = vadd.f32 %v1782, %v1887
      %v1923 = vadd.f32 %v1785, %v1890
      %v1924 = vadd.f32 %v1787, %v1892
      %v1925 = vadd.f32 %v1790, %v1895
      %v1926 = vadd.f32 %v1792, %v1897
      %v1927 = vadd.f32 %v1795, %v1900
      %v1928 = vadd.f32 %v1797, %v1902
      %v1929 = vadd.f32 %v1800, %v1905
      %v1930 = vadd.f32 %v1802, %v1907
      %v1931 = vadd.f32 %v1805, %v1910
      %v1932 = vadd.f32 %v1807, %v1912
      %v1933 = vadd.f32 %v1810, %v1915
      %v1934 = vadd.f32 %v1812, %v1917
      %v1935 = vld [vmem:[%s6] sm:$0x1]
      %v1937 = vperm.slane %v1935, 0
      %v1939 = vadd.f32 %v1919, %v1937
      %v1940 = vadd.f32 %v1920, %v1937
      %v1941 = vadd.f32 %v1921, %v1937
      %v1942 = vadd.f32 %v1922, %v1937
      %v1943 = vadd.f32 %v1923, %v1937
      %v1944 = vadd.f32 %v1924, %v1937
      %v1945 = vadd.f32 %v1925, %v1937
      %v1946 = vadd.f32 %v1926, %v1937
      %v1947 = vadd.f32 %v1927, %v1937
      %v1948 = vadd.f32 %v1928, %v1937
      %v1949 = vadd.f32 %v1929, %v1937
      %v1950 = vadd.f32 %v1930, %v1937
      %v1951 = vadd.f32 %v1931, %v1937
      %v1952 = vadd.f32 %v1932, %v1937
      %v1953 = vadd.f32 %v1933, %v1937
      %v1954 = vadd.f32 %v1934, %v1937
      %v1955 = vmax.f32 %v1939, 0.0
      %v1956 = vmax.f32 %v1940, 0.0
      %v1957 = vmax.f32 %v1941, 0.0
      %v1958 = vmax.f32 %v1942, 0.0
      %v1959 = vmax.f32 %v1943, 0.0
      %v1960 = vmax.f32 %v1944, 0.0
      %v1961 = vmax.f32 %v1945, 0.0
      %v1962 = vmax.f32 %v1946, 0.0
      %v1963 = vmax.f32 %v1947, 0.0
      %v1964 = vmax.f32 %v1948, 0.0
      %v1965 = vmax.f32 %v1949, 0.0
      %v1966 = vmax.f32 %v1950, 0.0
      %v1967 = vmax.f32 %v1951, 0.0
      %v1968 = vmax.f32 %v1952, 0.0
      %v1969 = vmax.f32 %v1953, 0.0
      %v1970 = vmax.f32 %v1954, 0.0
      %v1987 = vrot.slane %v1955, 2
      %v1988 = vrot.slane %v1955, 4
      %v1989 = vrot.slane %v1955, 6
      %v1990 = vrot.slane %v1956, 2
      %v1991 = vrot.slane %v1956, 4
      %v1992 = vrot.slane %v1956, 6
      %v1993 = vrot.slane %v1957, 2
      %v1994 = vrot.slane %v1957, 4
      %v1995 = vrot.slane %v1957, 6
      %v1996 = vrot.slane %v1958, 2
      %v1997 = vrot.slane %v1958, 4
      %v1998 = vrot.slane %v1958, 6
      %v1999 = vrot.slane %v1959, 2
      %v2000 = vrot.slane %v1959, 4
      %v2001 = vrot.slane %v1959, 6
      %v2002 = vrot.slane %v1960, 2
      %v2003 = vrot.slane %v1960, 4
      %v2004 = vrot.slane %v1960, 6
      %v2005 = vrot.slane %v1961, 2
      %v2006 = vrot.slane %v1961, 4
      %v2007 = vrot.slane %v1961, 6
      %v2008 = vrot.slane %v1962, 2
      %v2009 = vrot.slane %v1962, 4
      %v2010 = vrot.slane %v1962, 6
      %v2011 = vrot.slane %v1963, 2
      %v2012 = vrot.slane %v1963, 4
      %v2013 = vrot.slane %v1963, 6
      %v2014 = vrot.slane %v1964, 2
      %v2015 = vrot.slane %v1964, 4
      %v2016 = vrot.slane %v1964, 6
      %v2017 = vrot.slane %v1965, 2
      %v2018 = vrot.slane %v1965, 4
      %v2019 = vrot.slane %v1965, 6
      %v2020 = vrot.slane %v1966, 2
      %v2021 = vrot.slane %v1966, 4
      %v2022 = vrot.slane %v1966, 6
      %v2023 = vrot.slane %v1967, 2
      %v2024 = vrot.slane %v1967, 4
      %v2025 = vrot.slane %v1967, 6
      %v2026 = vrot.slane %v1968, 2
      %v2027 = vrot.slane %v1968, 4
      %v2028 = vrot.slane %v1968, 6
      %v2029 = vrot.slane %v1969, 2
      %v2030 = vrot.slane %v1969, 4
      %v2031 = vrot.slane %v1969, 6
      %v2032 = vrot.slane %v1970, 2
      %v2033 = vrot.slane %v1970, 4
      %v2034 = vrot.slane %v1970, 6
      %vm2083 = vcmask 517120
      %v2084 = vsel %vm2083, %v1955, -inf
      %v2085 = vrot.slane %v2084, 4
      %v2086 = vmax.f32 %v2084, %v2085
      %v2087 = vrot.slane %v2086, 2
      %v2088 = vmax.f32 %v2086, %v2087
      %v2089 = vrot.slane %v2088, 1
      %v2090 = vmax.f32 %v2088, %v2089
      %v2091 = vsel %vm2083, %v1987, -inf
      %v2092 = vrot.slane %v2091, 4
      %v2093 = vmax.f32 %v2091, %v2092
      %v2094 = vrot.slane %v2093, 2
      %v2095 = vmax.f32 %v2093, %v2094
      %v2096 = vrot.slane %v2095, 1
      %v2097 = vmax.f32 %v2095, %v2096
      %v2098 = vsel %vm2083, %v1988, -inf
      %v2099 = vrot.slane %v2098, 4
      %v2100 = vmax.f32 %v2098, %v2099
      %v2101 = vrot.slane %v2100, 2
      %v2102 = vmax.f32 %v2100, %v2101
      %v2103 = vrot.slane %v2102, 1
      %v2104 = vmax.f32 %v2102, %v2103
      %v2105 = vsel %vm2083, %v1989, -inf
      %v2106 = vrot.slane %v2105, 4
      %v2107 = vmax.f32 %v2105, %v2106
      %v2108 = vrot.slane %v2107, 2
      %v2109 = vmax.f32 %v2107, %v2108
      %v2110 = vrot.slane %v2109, 1
      %v2111 = vmax.f32 %v2109, %v2110
      %v2112 = vsel %vm2083, %v1956, -inf
      %v2113 = vrot.slane %v2112, 4
      %v2114 = vmax.f32 %v2112, %v2113
      %v2115 = vrot.slane %v2114, 2
      %v2116 = vmax.f32 %v2114, %v2115
      %v2117 = vrot.slane %v2116, 1
      %v2118 = vmax.f32 %v2116, %v2117
      %v2119 = vsel %vm2083, %v1990, -inf
      %v2120 = vrot.slane %v2119, 4
      %v2121 = vmax.f32 %v2119, %v2120
      %v2122 = vrot.slane %v2121, 2
      %v2123 = vmax.f32 %v2121, %v2122
      %v2124 = vrot.slane %v2123, 1
      %v2125 = vmax.f32 %v2123, %v2124
      %v2126 = vsel %vm2083, %v1991, -inf
      %v2127 = vrot.slane %v2126, 4
      %v2128 = vmax.f32 %v2126, %v2127
      %v2129 = vrot.slane %v2128, 2
      %v2130 = vmax.f32 %v2128, %v2129
      %v2131 = vrot.slane %v2130, 1
      %v2132 = vmax.f32 %v2130, %v2131
      %v2133 = vsel %vm2083, %v1992, -inf
      %v2134 = vrot.slane %v2133, 4
      %v2135 = vmax.f32 %v2133, %v2134
      %v2136 = vrot.slane %v2135, 2
      %v2137 = vmax.f32 %v2135, %v2136
      %v2138 = vrot.slane %v2137, 1
      %v2139 = vmax.f32 %v2137, %v2138
      %v2140 = vsel %vm2083, %v1957, -inf
      %v2141 = vrot.slane %v2140, 4
      %v2142 = vmax.f32 %v2140, %v2141
      %v2143 = vrot.slane %v2142, 2
      %v2144 = vmax.f32 %v2142, %v2143
      %v2145 = vrot.slane %v2144, 1
      %v2146 = vmax.f32 %v2144, %v2145
      %v2147 = vsel %vm2083, %v1993, -inf
      %v2148 = vrot.slane %v2147, 4
      %v2149 = vmax.f32 %v2147, %v2148
      %v2150 = vrot.slane %v2149, 2
      %v2151 = vmax.f32 %v2149, %v2150
      %v2152 = vrot.slane %v2151, 1
      %v2153 = vmax.f32 %v2151, %v2152
      %v2154 = vsel %vm2083, %v1994, -inf
      %v2155 = vrot.slane %v2154, 4
      %v2156 = vmax.f32 %v2154, %v2155
      %v2157 = vrot.slane %v2156, 2
      %v2158 = vmax.f32 %v2156, %v2157
      %v2159 = vrot.slane %v2158, 1
      %v2160 = vmax.f32 %v2158, %v2159
      %v2161 = vsel %vm2083, %v1995, -inf
      %v2162 = vrot.slane %v2161, 4
      %v2163 = vmax.f32 %v2161, %v2162
      %v2164 = vrot.slane %v2163, 2
      %v2165 = vmax.f32 %v2163, %v2164
      %v2166 = vrot.slane %v2165, 1
      %v2167 = vmax.f32 %v2165, %v2166
      %v2168 = vsel %vm2083, %v1958, -inf
      %v2169 = vrot.slane %v2168, 4
      %v2170 = vmax.f32 %v2168, %v2169
      %v2171 = vrot.slane %v2170, 2
      %v2172 = vmax.f32 %v2170, %v2171
      %v2173 = vrot.slane %v2172, 1
      %v2174 = vmax.f32 %v2172, %v2173
      %v2175 = vsel %vm2083, %v1996, -inf
      %v2176 = vrot.slane %v2175, 4
      %v2177 = vmax.f32 %v2175, %v2176
      %v2178 = vrot.slane %v2177, 2
      %v2179 = vmax.f32 %v2177, %v2178
      %v2180 = vrot.slane %v2179, 1
      %v2181 = vmax.f32 %v2179, %v2180
      %v2182 = vsel %vm2083, %v1997, -inf
      %v2183 = vrot.slane %v2182, 4
      %v2184 = vmax.f32 %v2182, %v2183
      %v2185 = vrot.slane %v2184, 2
      %v2186 = vmax.f32 %v2184, %v2185
      %v2187 = vrot.slane %v2186, 1
      %v2188 = vmax.f32 %v2186, %v2187
      %v2189 = vsel %vm2083, %v1998, -inf
      %v2190 = vrot.slane %v2189, 4
      %v2191 = vmax.f32 %v2189, %v2190
      %v2192 = vrot.slane %v2191, 2
      %v2193 = vmax.f32 %v2191, %v2192
      %v2194 = vrot.slane %v2193, 1
      %v2195 = vmax.f32 %v2193, %v2194
      %v2196 = vsel %vm2083, %v1959, -inf
      %v2197 = vrot.slane %v2196, 4
      %v2198 = vmax.f32 %v2196, %v2197
      %v2199 = vrot.slane %v2198, 2
      %v2200 = vmax.f32 %v2198, %v2199
      %v2201 = vrot.slane %v2200, 1
      %v2202 = vmax.f32 %v2200, %v2201
      %v2203 = vsel %vm2083, %v1999, -inf
      %v2204 = vrot.slane %v2203, 4
      %v2205 = vmax.f32 %v2203, %v2204
      %v2206 = vrot.slane %v2205, 2
      %v2207 = vmax.f32 %v2205, %v2206
      %v2208 = vrot.slane %v2207, 1
      %v2209 = vmax.f32 %v2207, %v2208
      %v2210 = vsel %vm2083, %v2000, -inf
      %v2211 = vrot.slane %v2210, 4
      %v2212 = vmax.f32 %v2210, %v2211
      %v2213 = vrot.slane %v2212, 2
      %v2214 = vmax.f32 %v2212, %v2213
      %v2215 = vrot.slane %v2214, 1
      %v2216 = vmax.f32 %v2214, %v2215
      %v2217 = vsel %vm2083, %v2001, -inf
      %v2218 = vrot.slane %v2217, 4
      %v2219 = vmax.f32 %v2217, %v2218
      %v2220 = vrot.slane %v2219, 2
      %v2221 = vmax.f32 %v2219, %v2220
      %v2222 = vrot.slane %v2221, 1
      %v2223 = vmax.f32 %v2221, %v2222
      %v2224 = vsel %vm2083, %v1960, -inf
      %v2225 = vrot.slane %v2224, 4
      %v2226 = vmax.f32 %v2224, %v2225
      %v2227 = vrot.slane %v2226, 2
      %v2228 = vmax.f32 %v2226, %v2227
      %v2229 = vrot.slane %v2228, 1
      %v2230 = vmax.f32 %v2228, %v2229
      %v2231 = vsel %vm2083, %v2002, -inf
      %v2232 = vrot.slane %v2231, 4
      %v2233 = vmax.f32 %v2231, %v2232
      %v2234 = vrot.slane %v2233, 2
      %v2235 = vmax.f32 %v2233, %v2234
      %v2236 = vrot.slane %v2235, 1
      %v2237 = vmax.f32 %v2235, %v2236
      %v2238 = vsel %vm2083, %v2003, -inf
      %v2239 = vrot.slane %v2238, 4
      %v2240 = vmax.f32 %v2238, %v2239
      %v2241 = vrot.slane %v2240, 2
      %v2242 = vmax.f32 %v2240, %v2241
      %v2243 = vrot.slane %v2242, 1
      %v2244 = vmax.f32 %v2242, %v2243
      %v2245 = vsel %vm2083, %v2004, -inf
      %v2246 = vrot.slane %v2245, 4
      %v2247 = vmax.f32 %v2245, %v2246
      %v2248 = vrot.slane %v2247, 2
      %v2249 = vmax.f32 %v2247, %v2248
      %v2250 = vrot.slane %v2249, 1
      %v2251 = vmax.f32 %v2249, %v2250
      %v2252 = vsel %vm2083, %v1961, -inf
      %v2253 = vrot.slane %v2252, 4
      %v2254 = vmax.f32 %v2252, %v2253
      %v2255 = vrot.slane %v2254, 2
      %v2256 = vmax.f32 %v2254, %v2255
      %v2257 = vrot.slane %v2256, 1
      %v2258 = vmax.f32 %v2256, %v2257
      %v2259 = vsel %vm2083, %v2005, -inf
      %v2260 = vrot.slane %v2259, 4
      %v2261 = vmax.f32 %v2259, %v2260
      %v2262 = vrot.slane %v2261, 2
      %v2263 = vmax.f32 %v2261, %v2262
      %v2264 = vrot.slane %v2263, 1
      %v2265 = vmax.f32 %v2263, %v2264
      %v2266 = vsel %vm2083, %v2006, -inf
      %v2267 = vrot.slane %v2266, 4
      %v2268 = vmax.f32 %v2266, %v2267
      %v2269 = vrot.slane %v2268, 2
      %v2270 = vmax.f32 %v2268, %v2269
      %v2271 = vrot.slane %v2270, 1
      %v2272 = vmax.f32 %v2270, %v2271
      %v2273 = vsel %vm2083, %v2007, -inf
      %v2274 = vrot.slane %v2273, 4
      %v2275 = vmax.f32 %v2273, %v2274
      %v2276 = vrot.slane %v2275, 2
      %v2277 = vmax.f32 %v2275, %v2276
      %v2278 = vrot.slane %v2277, 1
      %v2279 = vmax.f32 %v2277, %v2278
      %v2280 = vsel %vm2083, %v1962, -inf
      %v2281 = vrot.slane %v2280, 4
      %v2282 = vmax.f32 %v2280, %v2281
      %v2283 = vrot.slane %v2282, 2
      %v2284 = vmax.f32 %v2282, %v2283
      %v2285 = vrot.slane %v2284, 1
      %v2286 = vmax.f32 %v2284, %v2285
      %v2287 = vsel %vm2083, %v2008, -inf
      %v2288 = vrot.slane %v2287, 4
      %v2289 = vmax.f32 %v2287, %v2288
      %v2290 = vrot.slane %v2289, 2
      %v2291 = vmax.f32 %v2289, %v2290
      %v2292 = vrot.slane %v2291, 1
      %v2293 = vmax.f32 %v2291, %v2292
      %v2294 = vsel %vm2083, %v2009, -inf
      %v2295 = vrot.slane %v2294, 4
      %v2296 = vmax.f32 %v2294, %v2295
      %v2297 = vrot.slane %v2296, 2
      %v2298 = vmax.f32 %v2296, %v2297
      %v2299 = vrot.slane %v2298, 1
      %v2300 = vmax.f32 %v2298, %v2299
      %v2301 = vsel %vm2083, %v2010, -inf
      %v2302 = vrot.slane %v2301, 4
      %v2303 = vmax.f32 %v2301, %v2302
      %v2304 = vrot.slane %v2303, 2
      %v2305 = vmax.f32 %v2303, %v2304
      %v2306 = vrot.slane %v2305, 1
      %v2307 = vmax.f32 %v2305, %v2306
      %v2308 = vsel %vm2083, %v1963, -inf
      %v2309 = vrot.slane %v2308, 4
      %v2310 = vmax.f32 %v2308, %v2309
      %v2311 = vrot.slane %v2310, 2
      %v2312 = vmax.f32 %v2310, %v2311
      %v2313 = vrot.slane %v2312, 1
      %v2314 = vmax.f32 %v2312, %v2313
      %v2315 = vsel %vm2083, %v2011, -inf
      %v2316 = vrot.slane %v2315, 4
      %v2317 = vmax.f32 %v2315, %v2316
      %v2318 = vrot.slane %v2317, 2
      %v2319 = vmax.f32 %v2317, %v2318
      %v2320 = vrot.slane %v2319, 1
      %v2321 = vmax.f32 %v2319, %v2320
      %v2322 = vsel %vm2083, %v2012, -inf
      %v2323 = vrot.slane %v2322, 4
      %v2324 = vmax.f32 %v2322, %v2323
      %v2325 = vrot.slane %v2324, 2
      %v2326 = vmax.f32 %v2324, %v2325
      %v2327 = vrot.slane %v2326, 1
      %v2328 = vmax.f32 %v2326, %v2327
      %v2329 = vsel %vm2083, %v2013, -inf
      %v2330 = vrot.slane %v2329, 4
      %v2331 = vmax.f32 %v2329, %v2330
      %v2332 = vrot.slane %v2331, 2
      %v2333 = vmax.f32 %v2331, %v2332
      %v2334 = vrot.slane %v2333, 1
      %v2335 = vmax.f32 %v2333, %v2334
      %v2336 = vsel %vm2083, %v1964, -inf
      %v2337 = vrot.slane %v2336, 4
      %v2338 = vmax.f32 %v2336, %v2337
      %v2339 = vrot.slane %v2338, 2
      %v2340 = vmax.f32 %v2338, %v2339
      %v2341 = vrot.slane %v2340, 1
      %v2342 = vmax.f32 %v2340, %v2341
      %v2343 = vsel %vm2083, %v2014, -inf
      %v2344 = vrot.slane %v2343, 4
      %v2345 = vmax.f32 %v2343, %v2344
      %v2346 = vrot.slane %v2345, 2
      %v2347 = vmax.f32 %v2345, %v2346
      %v2348 = vrot.slane %v2347, 1
      %v2349 = vmax.f32 %v2347, %v2348
      %v2350 = vsel %vm2083, %v2015, -inf
      %v2351 = vrot.slane %v2350, 4
      %v2352 = vmax.f32 %v2350, %v2351
      %v2353 = vrot.slane %v2352, 2
      %v2354 = vmax.f32 %v2352, %v2353
      %v2355 = vrot.slane %v2354, 1
      %v2356 = vmax.f32 %v2354, %v2355
      %v2357 = vsel %vm2083, %v2016, -inf
      %v2358 = vrot.slane %v2357, 4
      %v2359 = vmax.f32 %v2357, %v2358
      %v2360 = vrot.slane %v2359, 2
      %v2361 = vmax.f32 %v2359, %v2360
      %v2362 = vrot.slane %v2361, 1
      %v2363 = vmax.f32 %v2361, %v2362
      %v2364 = vsel %vm2083, %v1965, -inf
      %v2365 = vrot.slane %v2364, 4
      %v2366 = vmax.f32 %v2364, %v2365
      %v2367 = vrot.slane %v2366, 2
      %v2368 = vmax.f32 %v2366, %v2367
      %v2369 = vrot.slane %v2368, 1
      %v2370 = vmax.f32 %v2368, %v2369
      %v2371 = vsel %vm2083, %v2017, -inf
      %v2372 = vrot.slane %v2371, 4
      %v2373 = vmax.f32 %v2371, %v2372
      %v2374 = vrot.slane %v2373, 2
      %v2375 = vmax.f32 %v2373, %v2374
      %v2376 = vrot.slane %v2375, 1
      %v2377 = vmax.f32 %v2375, %v2376
      %v2378 = vsel %vm2083, %v2018, -inf
      %v2379 = vrot.slane %v2378, 4
      %v2380 = vmax.f32 %v2378, %v2379
      %v2381 = vrot.slane %v2380, 2
      %v2382 = vmax.f32 %v2380, %v2381
      %v2383 = vrot.slane %v2382, 1
      %v2384 = vmax.f32 %v2382, %v2383
      %v2385 = vsel %vm2083, %v2019, -inf
      %v2386 = vrot.slane %v2385, 4
      %v2387 = vmax.f32 %v2385, %v2386
      %v2388 = vrot.slane %v2387, 2
      %v2389 = vmax.f32 %v2387, %v2388
      %v2390 = vrot.slane %v2389, 1
      %v2391 = vmax.f32 %v2389, %v2390
      %v2392 = vsel %vm2083, %v1966, -inf
      %v2393 = vrot.slane %v2392, 4
      %v2394 = vmax.f32 %v2392, %v2393
      %v2395 = vrot.slane %v2394, 2
      %v2396 = vmax.f32 %v2394, %v2395
      %v2397 = vrot.slane %v2396, 1
      %v2398 = vmax.f32 %v2396, %v2397
      %v2399 = vsel %vm2083, %v2020, -inf
      %v2400 = vrot.slane %v2399, 4
      %v2401 = vmax.f32 %v2399, %v2400
      %v2402 = vrot.slane %v2401, 2
      %v2403 = vmax.f32 %v2401, %v2402
      %v2404 = vrot.slane %v2403, 1
      %v2405 = vmax.f32 %v2403, %v2404
      %v2406 = vsel %vm2083, %v2021, -inf
      %v2407 = vrot.slane %v2406, 4
      %v2408 = vmax.f32 %v2406, %v2407
      %v2409 = vrot.slane %v2408, 2
      %v2410 = vmax.f32 %v2408, %v2409
      %v2411 = vrot.slane %v2410, 1
      %v2412 = vmax.f32 %v2410, %v2411
      %v2413 = vsel %vm2083, %v2022, -inf
      %v2414 = vrot.slane %v2413, 4
      %v2415 = vmax.f32 %v2413, %v2414
      %v2416 = vrot.slane %v2415, 2
      %v2417 = vmax.f32 %v2415, %v2416
      %v2418 = vrot.slane %v2417, 1
      %v2419 = vmax.f32 %v2417, %v2418
      %v2420 = vsel %vm2083, %v1967, -inf
      %v2421 = vrot.slane %v2420, 4
      %v2422 = vmax.f32 %v2420, %v2421
      %v2423 = vrot.slane %v2422, 2
      %v2424 = vmax.f32 %v2422, %v2423
      %v2425 = vrot.slane %v2424, 1
      %v2426 = vmax.f32 %v2424, %v2425
      %v2427 = vsel %vm2083, %v2023, -inf
      %v2428 = vrot.slane %v2427, 4
      %v2429 = vmax.f32 %v2427, %v2428
      %v2430 = vrot.slane %v2429, 2
      %v2431 = vmax.f32 %v2429, %v2430
      %v2432 = vrot.slane %v2431, 1
      %v2433 = vmax.f32 %v2431, %v2432
      %v2434 = vsel %vm2083, %v2024, -inf
      %v2435 = vrot.slane %v2434, 4
      %v2436 = vmax.f32 %v2434, %v2435
      %v2437 = vrot.slane %v2436, 2
      %v2438 = vmax.f32 %v2436, %v2437
      %v2439 = vrot.slane %v2438, 1
      %v2440 = vmax.f32 %v2438, %v2439
      %v2441 = vsel %vm2083, %v2025, -inf
      %v2442 = vrot.slane %v2441, 4
      %v2443 = vmax.f32 %v2441, %v2442
      %v2444 = vrot.slane %v2443, 2
      %v2445 = vmax.f32 %v2443, %v2444
      %v2446 = vrot.slane %v2445, 1
      %v2447 = vmax.f32 %v2445, %v2446
      %v2448 = vsel %vm2083, %v1968, -inf
      %v2449 = vrot.slane %v2448, 4
      %v2450 = vmax.f32 %v2448, %v2449
      %v2451 = vrot.slane %v2450, 2
      %v2452 = vmax.f32 %v2450, %v2451
      %v2453 = vrot.slane %v2452, 1
      %v2454 = vmax.f32 %v2452, %v2453
      %v2455 = vsel %vm2083, %v2026, -inf
      %v2456 = vrot.slane %v2455, 4
      %v2457 = vmax.f32 %v2455, %v2456
      %v2458 = vrot.slane %v2457, 2
      %v2459 = vmax.f32 %v2457, %v2458
      %v2460 = vrot.slane %v2459, 1
      %v2461 = vmax.f32 %v2459, %v2460
      %v2462 = vsel %vm2083, %v2027, -inf
      %v2463 = vrot.slane %v2462, 4
      %v2464 = vmax.f32 %v2462, %v2463
      %v2465 = vrot.slane %v2464, 2
      %v2466 = vmax.f32 %v2464, %v2465
      %v2467 = vrot.slane %v2466, 1
      %v2468 = vmax.f32 %v2466, %v2467
      %v2469 = vsel %vm2083, %v2028, -inf
      %v2470 = vrot.slane %v2469, 4
      %v2471 = vmax.f32 %v2469, %v2470
      %v2472 = vrot.slane %v2471, 2
      %v2473 = vmax.f32 %v2471, %v2472
      %v2474 = vrot.slane %v2473, 1
      %v2475 = vmax.f32 %v2473, %v2474
      %v2476 = vsel %vm2083, %v1969, -inf
      %v2477 = vrot.slane %v2476, 4
      %v2478 = vmax.f32 %v2476, %v2477
      %v2479 = vrot.slane %v2478, 2
      %v2480 = vmax.f32 %v2478, %v2479
      %v2481 = vrot.slane %v2480, 1
      %v2482 = vmax.f32 %v2480, %v2481
      %v2483 = vsel %vm2083, %v2029, -inf
      %v2484 = vrot.slane %v2483, 4
      %v2485 = vmax.f32 %v2483, %v2484
      %v2486 = vrot.slane %v2485, 2
      %v2487 = vmax.f32 %v2485, %v2486
      %v2488 = vrot.slane %v2487, 1
      %v2489 = vmax.f32 %v2487, %v2488
      %v2490 = vsel %vm2083, %v2030, -inf
      %v2491 = vrot.slane %v2490, 4
      %v2492 = vmax.f32 %v2490, %v2491
      %v2493 = vrot.slane %v2492, 2
      %v2494 = vmax.f32 %v2492, %v2493
      %v2495 = vrot.slane %v2494, 1
      %v2496 = vmax.f32 %v2494, %v2495
      %v2497 = vsel %vm2083, %v2031, -inf
      %v2498 = vrot.slane %v2497, 4
      %v2499 = vmax.f32 %v2497, %v2498
      %v2500 = vrot.slane %v2499, 2
      %v2501 = vmax.f32 %v2499, %v2500
      %v2502 = vrot.slane %v2501, 1
      %v2503 = vmax.f32 %v2501, %v2502
      %v2504 = vsel %vm2083, %v1970, -inf
      %v2505 = vrot.slane %v2504, 4
      %v2506 = vmax.f32 %v2504, %v2505
      %v2507 = vrot.slane %v2506, 2
      %v2508 = vmax.f32 %v2506, %v2507
      %v2509 = vrot.slane %v2508, 1
      %v2510 = vmax.f32 %v2508, %v2509
      %v2511 = vsel %vm2083, %v2032, -inf
      %v2512 = vrot.slane %v2511, 4
      %v2513 = vmax.f32 %v2511, %v2512
      %v2514 = vrot.slane %v2513, 2
      %v2515 = vmax.f32 %v2513, %v2514
      %v2516 = vrot.slane %v2515, 1
      %v2517 = vmax.f32 %v2515, %v2516
      %v2518 = vsel %vm2083, %v2033, -inf
      %v2519 = vrot.slane %v2518, 4
      %v2520 = vmax.f32 %v2518, %v2519
      %v2521 = vrot.slane %v2520, 2
      %v2522 = vmax.f32 %v2520, %v2521
      %v2523 = vrot.slane %v2522, 1
      %v2524 = vmax.f32 %v2522, %v2523
      %v2525 = vsel %vm2083, %v2034, -inf
      %v2526 = vrot.slane %v2525, 4
      %v2527 = vmax.f32 %v2525, %v2526
      %v2528 = vrot.slane %v2527, 2
      %v2529 = vmax.f32 %v2527, %v2528
      %v2530 = vrot.slane %v2529, 1
      %v2531 = vmax.f32 %v2529, %v2530
      %vm2596 = vcmask 1041409
      %v2597 = vsel %vm2596, %v2097, %v2090
      %vm2598 = vcmask 1042434
      %v2599 = vsel %vm2598, %v2104, %v2597
      %vm2600 = vcmask 1043459
      %v2601 = vsel %vm2600, %v2111, %v2599
      %vm2602 = vcmask 1044484
      %v2603 = vsel %vm2602, %v2118, %v2601
      %vm2604 = vcmask 1045509
      %v2605 = vsel %vm2604, %v2125, %v2603
      %vm2606 = vcmask 1046534
      %v2607 = vsel %vm2606, %v2132, %v2605
      %vm2608 = vcmask 1047559
      %v2609 = vsel %vm2608, %v2139, %v2607
      %v2610 = vsel %vm2596, %v2153, %v2146
      %v2611 = vsel %vm2598, %v2160, %v2610
      %v2612 = vsel %vm2600, %v2167, %v2611
      %v2613 = vsel %vm2602, %v2174, %v2612
      %v2614 = vsel %vm2604, %v2181, %v2613
      %v2615 = vsel %vm2606, %v2188, %v2614
      %v2616 = vsel %vm2608, %v2195, %v2615
      %v2617 = vsel %vm2596, %v2209, %v2202
      %v2618 = vsel %vm2598, %v2216, %v2617
      %v2619 = vsel %vm2600, %v2223, %v2618
      %v2620 = vsel %vm2602, %v2230, %v2619
      %v2621 = vsel %vm2604, %v2237, %v2620
      %v2622 = vsel %vm2606, %v2244, %v2621
      %v2623 = vsel %vm2608, %v2251, %v2622
      %v2624 = vsel %vm2596, %v2265, %v2258
      %v2625 = vsel %vm2598, %v2272, %v2624
      %v2626 = vsel %vm2600, %v2279, %v2625
      %v2627 = vsel %vm2602, %v2286, %v2626
      %v2628 = vsel %vm2604, %v2293, %v2627
      %v2629 = vsel %vm2606, %v2300, %v2628
      %v2630 = vsel %vm2608, %v2307, %v2629
      %v2631 = vsel %vm2596, %v2321, %v2314
      %v2632 = vsel %vm2598, %v2328, %v2631
      %v2633 = vsel %vm2600, %v2335, %v2632
      %v2634 = vsel %vm2602, %v2342, %v2633
      %v2635 = vsel %vm2604, %v2349, %v2634
      %v2636 = vsel %vm2606, %v2356, %v2635
      %v2637 = vsel %vm2608, %v2363, %v2636
      %v2638 = vsel %vm2596, %v2377, %v2370
      %v2639 = vsel %vm2598, %v2384, %v2638
      %v2640 = vsel %vm2600, %v2391, %v2639
      %v2641 = vsel %vm2602, %v2398, %v2640
      %v2642 = vsel %vm2604, %v2405, %v2641
      %v2643 = vsel %vm2606, %v2412, %v2642
      %v2644 = vsel %vm2608, %v2419, %v2643
      %v2645 = vsel %vm2596, %v2433, %v2426
      %v2646 = vsel %vm2598, %v2440, %v2645
      %v2647 = vsel %vm2600, %v2447, %v2646
      %v2648 = vsel %vm2602, %v2454, %v2647
      %v2649 = vsel %vm2604, %v2461, %v2648
      %v2650 = vsel %vm2606, %v2468, %v2649
      %v2651 = vsel %vm2608, %v2475, %v2650
      %v2652 = vsel %vm2596, %v2489, %v2482
      %v2653 = vsel %vm2598, %v2496, %v2652
      %v2654 = vsel %vm2600, %v2503, %v2653
      %v2655 = vsel %vm2602, %v2510, %v2654
      %v2656 = vsel %vm2604, %v2517, %v2655
      %v2657 = vsel %vm2606, %v2524, %v2656
      %v2658 = vsel %vm2608, %v2531, %v2657
      %v2667 = vrot.slane %v2609, 7
      %v2668 = vrot.slane %v2616, 7
      %v2669 = vrot.slane %v2623, 7
      %v2670 = vrot.slane %v2630, 7
      %v2671 = vrot.slane %v2637, 7
      %v2672 = vrot.slane %v2644, 7
      %v2673 = vrot.slane %v2651, 7
      %v2674 = vrot.slane %v2658, 7
      %v2675 = vsel %vm754, %v2673, %v2674
      %v2676 = vsel %vm754, %v2672, %v2673
      %v2677 = vsel %vm754, %v2671, %v2672
      %v2678 = vsel %vm754, %v2670, %v2671
      %v2679 = vsel %vm754, %v2669, %v2670
      %v2680 = vsel %vm754, %v2668, %v2669
      %v2681 = vsel %vm754, %v2667, %v2668
      %v2682 = vsel %vm754, %v2674, %v2667
      %v2683 = vrot.slane %v2609, 1
      %v2684 = vrot.slane %v2616, 1
      %v2685 = vrot.slane %v2623, 1
      %v2686 = vrot.slane %v2630, 1
      %v2687 = vrot.slane %v2637, 1
      %v2688 = vrot.slane %v2644, 1
      %v2689 = vrot.slane %v2651, 1
      %v2690 = vrot.slane %v2658, 1
      %v2691 = vsel %vm787, %v2689, %v2690
      %v2692 = vsel %vm787, %v2688, %v2689
      %v2693 = vsel %vm787, %v2687, %v2688
      %v2694 = vsel %vm787, %v2686, %v2687
      %v2695 = vsel %vm787, %v2685, %v2686
      %v2696 = vsel %vm787, %v2684, %v2685
      %v2697 = vsel %vm787, %v2683, %v2684
      %v2698 = vsel %vm787, %v2690, %v2683
      %vm2699 = vcmp.lt.s32.totalorder %v753, 0
      %v2700 = vsub.s32 0, %v753
      %v2701 = vsel %vm2699, %v2700, %v753
      %v2702 = vshrl.u32 %v2701, 5
      %v2703 = vand.u32 %v2701, 31
      %v2704 = vsub.s32 0, %v2703
      %v2705 = vsel %vm2699, %v2704, %v2703
      %vm2706 = vcmp.lt.s32.totalorder %v804, 0
      %v2707 = vsub.s32 0, %v804
      %v2708 = vsel %vm2706, %v2707, %v804
      %v2709 = vshrl.u32 %v2708, 5
      %v2710 = vand.u32 %v2708, 31
      %v2711 = vsub.s32 0, %v2710
      %v2712 = vsel %vm2706, %v2711, %v2710
      %vm2713 = vcmp.lt.s32.totalorder %v805, 0
      %v2714 = vsub.s32 0, %v805
      %v2715 = vsel %vm2713, %v2714, %v805
      %v2716 = vshrl.u32 %v2715, 5
      %v2717 = vand.u32 %v2715, 31
      %v2718 = vsub.s32 0, %v2717
      %v2719 = vsel %vm2713, %v2718, %v2717
      %vm2720 = vcmp.lt.s32.totalorder %v806, 0
      %v2721 = vsub.s32 0, %v806
      %v2722 = vsel %vm2720, %v2721, %v806
      %v2723 = vshrl.u32 %v2722, 5
      %v2724 = vand.u32 %v2722, 31
      %v2725 = vsub.s32 0, %v2724
      %v2726 = vsel %vm2720, %v2725, %v2724
      %vm2727 = vcmp.lt.s32.totalorder %v807, 0
      %v2728 = vsub.s32 0, %v807
      %v2729 = vsel %vm2727, %v2728, %v807
      %v2730 = vshrl.u32 %v2729, 5
      %v2731 = vand.u32 %v2729, 31
      %v2732 = vsub.s32 0, %v2731
      %v2733 = vsel %vm2727, %v2732, %v2731
      %vm2734 = vcmp.lt.s32.totalorder %v808, 0
      %v2735 = vsub.s32 0, %v808
      %v2736 = vsel %vm2734, %v2735, %v808
      %v2737 = vshrl.u32 %v2736, 5
      %v2738 = vand.u32 %v2736, 31
      %v2739 = vsub.s32 0, %v2738
      %v2740 = vsel %vm2734, %v2739, %v2738
      %vm2741 = vcmp.lt.s32.totalorder %v809, 0
      %v2742 = vsub.s32 0, %v809
      %v2743 = vsel %vm2741, %v2742, %v809
      %v2744 = vshrl.u32 %v2743, 5
      %v2745 = vand.u32 %v2743, 31
      %v2746 = vsub.s32 0, %v2745
      %v2747 = vsel %vm2741, %v2746, %v2745
      %vm2748 = vcmp.lt.s32.totalorder %v810, 0
      %v2749 = vsub.s32 0, %v810
      %v2750 = vsel %vm2748, %v2749, %v810
      %v2751 = vshrl.u32 %v2750, 5
      %v2752 = vand.u32 %v2750, 31
      %v2753 = vsub.s32 0, %v2752
      %v2754 = vsel %vm2748, %v2753, %v2752
      %vm2755 = vcmp.ne.s32.totalorder %v2705, 0
      %vm2756 = vcmp.ne.s32.totalorder %v2712, 0
      %vm2757 = vcmp.ne.s32.totalorder %v2719, 0
      %vm2758 = vcmp.ne.s32.totalorder %v2726, 0
      %vm2759 = vcmp.ne.s32.totalorder %v2733, 0
      %vm2760 = vcmp.ne.s32.totalorder %v2740, 0
      %vm2761 = vcmp.ne.s32.totalorder %v2747, 0
      %vm2762 = vcmp.ne.s32.totalorder %v2754, 0
      %vm2763 = vcmp.lt.s32.totalorder %v2705, 0
      %vm2764 = vcmp.lt.s32.totalorder %v2712, 0
      %vm2765 = vcmp.lt.s32.totalorder %v2719, 0
      %vm2766 = vcmp.lt.s32.totalorder %v2726, 0
      %vm2767 = vcmp.lt.s32.totalorder %v2733, 0
      %vm2768 = vcmp.lt.s32.totalorder %v2740, 0
      %vm2769 = vcmp.lt.s32.totalorder %v2747, 0
      %vm2770 = vcmp.lt.s32.totalorder %v2754, 0
      %vm2771 = vmand %vm2763, %vm2755
      %vm2772 = vmand %vm2764, %vm2756
      %vm2773 = vmand %vm2765, %vm2757
      %vm2774 = vmand %vm2766, %vm2758
      %vm2775 = vmand %vm2767, %vm2759
      %vm2776 = vmand %vm2768, %vm2760
      %vm2777 = vmand %vm2769, %vm2761
      %vm2778 = vmand %vm2770, %vm2762
      %v2779 = vadd.s32 %v2705, 32
      %v2780 = vadd.s32 %v2712, 32
      %v2781 = vadd.s32 %v2719, 32
      %v2782 = vadd.s32 %v2726, 32
      %v2783 = vadd.s32 %v2733, 32
      %v2784 = vadd.s32 %v2740, 32
      %v2785 = vadd.s32 %v2747, 32
      %v2786 = vadd.s32 %v2754, 32
      %v2787 = vsel %vm2771, %v2779, %v2705
      %v2788 = vsel %vm2772, %v2780, %v2712
      %v2789 = vsel %vm2773, %v2781, %v2719
      %v2790 = vsel %vm2774, %v2782, %v2726
      %v2791 = vsel %vm2775, %v2783, %v2733
      %v2792 = vsel %vm2776, %v2784, %v2740
      %v2793 = vsel %vm2777, %v2785, %v2747
      %v2794 = vsel %vm2778, %v2786, %v2754
      %vm2795 = vcmp.eq.s32.totalorder %v2787, 0
      %vm2796 = vcmp.eq.s32.totalorder %v2788, 0
      %vm2797 = vcmp.eq.s32.totalorder %v2789, 0
      %vm2798 = vcmp.eq.s32.totalorder %v2790, 0
      %vm2799 = vcmp.eq.s32.totalorder %v2791, 0
      %vm2800 = vcmp.eq.s32.totalorder %v2792, 0
      %vm2801 = vcmp.eq.s32.totalorder %v2793, 0
      %vm2802 = vcmp.eq.s32.totalorder %v2794, 0
      %v2803 = vsel %vm2795, 1, 0
      %v2804 = vsel %vm2796, 1, 0
      %v2805 = vsel %vm2797, 1, 0
      %v2806 = vsel %vm2798, 1, 0
      %v2807 = vsel %vm2799, 1, 0
      %v2808 = vsel %vm2800, 1, 0
      %v2809 = vsel %vm2801, 1, 0
      %v2810 = vsel %vm2802, 1, 0
      %vm2811 = vcmp.eq.s32.totalorder %v2803, 1
      %vm2812 = vcmp.eq.s32.totalorder %v2804, 1
      %vm2813 = vcmp.eq.s32.totalorder %v2805, 1
      %vm2814 = vcmp.eq.s32.totalorder %v2806, 1
      %vm2815 = vcmp.eq.s32.totalorder %v2807, 1
      %vm2816 = vcmp.eq.s32.totalorder %v2808, 1
      %vm2817 = vcmp.eq.s32.totalorder %v2809, 1
      %vm2818 = vcmp.eq.s32.totalorder %v2810, 1
      %v2819 = vsel %vm2811, 0.0, %v2682
      %v2820 = vsel %vm2812, 0.0, %v2681
      %v2821 = vsel %vm2813, 0.0, %v2680
      %v2822 = vsel %vm2814, 0.0, %v2679
      %v2823 = vsel %vm2815, 0.0, %v2678
      %v2824 = vsel %vm2816, 0.0, %v2677
      %v2825 = vsel %vm2817, 0.0, %v2676
      %v2826 = vsel %vm2818, 0.0, %v2675
      %vm2827 = vcmp.eq.s32.totalorder %v2787, 31
      %vm2828 = vcmp.eq.s32.totalorder %v2788, 31
      %vm2829 = vcmp.eq.s32.totalorder %v2789, 31
      %vm2830 = vcmp.eq.s32.totalorder %v2790, 31
      %vm2831 = vcmp.eq.s32.totalorder %v2791, 31
      %vm2832 = vcmp.eq.s32.totalorder %v2792, 31
      %vm2833 = vcmp.eq.s32.totalorder %v2793, 31
      %vm2834 = vcmp.eq.s32.totalorder %v2794, 31
      %v2835 = vsel %vm2827, 1, 0
      %v2836 = vsel %vm2828, 1, 0
      %v2837 = vsel %vm2829, 1, 0
      %v2838 = vsel %vm2830, 1, 0
      %v2839 = vsel %vm2831, 1, 0
      %v2840 = vsel %vm2832, 1, 0
      %v2841 = vsel %vm2833, 1, 0
      %v2842 = vsel %vm2834, 1, 0
      %vm2843 = vcmp.eq.s32.totalorder %v2835, 1
      %vm2844 = vcmp.eq.s32.totalorder %v2836, 1
      %vm2845 = vcmp.eq.s32.totalorder %v2837, 1
      %vm2846 = vcmp.eq.s32.totalorder %v2838, 1
      %vm2847 = vcmp.eq.s32.totalorder %v2839, 1
      %vm2848 = vcmp.eq.s32.totalorder %v2840, 1
      %vm2849 = vcmp.eq.s32.totalorder %v2841, 1
      %vm2850 = vcmp.eq.s32.totalorder %v2842, 1
      %v2851 = vsel %vm2843, 0.0, %v2697
      %v2852 = vsel %vm2844, 0.0, %v2696
      %v2853 = vsel %vm2845, 0.0, %v2695
      %v2854 = vsel %vm2846, 0.0, %v2694
      %v2855 = vsel %vm2847, 0.0, %v2693
      %v2856 = vsel %vm2848, 0.0, %v2692
      %v2857 = vsel %vm2849, 0.0, %v2691
      %v2858 = vsel %vm2850, 0.0, %v2698
      %v2859 = vpack.c.bf16 %v2820, %v2819
      %v2860 = vpack.c.bf16 %v2822, %v2821
      %v2861 = vpack.c.bf16 %v2824, %v2823
      %v2862 = vpack.c.bf16 %v2826, %v2825
      %v2863 = vpack.c.bf16 %v2090, %v2090
      %v2864 = vpack.c.bf16 %v2097, %v2097
      %v2865 = vpack.c.bf16 %v2104, %v2104
      %v2866 = vpack.c.bf16 %v2111, %v2111
      %v2867 = vpack.c.bf16 %v2118, %v2118
      %v2868 = vpack.c.bf16 %v2125, %v2125
      %v2869 = vpack.c.bf16 %v2132, %v2132
      %v2870 = vpack.c.bf16 %v2139, %v2139
      %v2871 = vpack.c.bf16 %v2146, %v2146
      %v2872 = vpack.c.bf16 %v2153, %v2153
      %v2873 = vpack.c.bf16 %v2160, %v2160
      %v2874 = vpack.c.bf16 %v2167, %v2167
      %v2875 = vpack.c.bf16 %v2174, %v2174
      %v2876 = vpack.c.bf16 %v2181, %v2181
      %v2877 = vpack.c.bf16 %v2188, %v2188
      %v2878 = vpack.c.bf16 %v2195, %v2195
      %v2879 = vpack.c.bf16 %v2202, %v2202
      %v2880 = vpack.c.bf16 %v2209, %v2209
      %v2881 = vpack.c.bf16 %v2216, %v2216
      %v2882 = vpack.c.bf16 %v2223, %v2223
      %v2883 = vpack.c.bf16 %v2230, %v2230
      %v2884 = vpack.c.bf16 %v2237, %v2237
      %v2885 = vpack.c.bf16 %v2244, %v2244
      %v2886 = vpack.c.bf16 %v2251, %v2251
      %v2887 = vpack.c.bf16 %v2258, %v2258
      %v2888 = vpack.c.bf16 %v2265, %v2265
      %v2889 = vpack.c.bf16 %v2272, %v2272
      %v2890 = vpack.c.bf16 %v2279, %v2279
      %v2891 = vpack.c.bf16 %v2286, %v2286
      %v2892 = vpack.c.bf16 %v2293, %v2293
      %v2893 = vpack.c.bf16 %v2300, %v2300
      %v2894 = vpack.c.bf16 %v2307, %v2307
      %v2895 = vpack.c.bf16 %v2314, %v2314
      %v2896 = vpack.c.bf16 %v2321, %v2321
      %v2897 = vpack.c.bf16 %v2328, %v2328
      %v2898 = vpack.c.bf16 %v2335, %v2335
      %v2899 = vpack.c.bf16 %v2342, %v2342
      %v2900 = vpack.c.bf16 %v2349, %v2349
      %v2901 = vpack.c.bf16 %v2356, %v2356
      %v2902 = vpack.c.bf16 %v2363, %v2363
      %v2903 = vpack.c.bf16 %v2370, %v2370
      %v2904 = vpack.c.bf16 %v2377, %v2377
      %v2905 = vpack.c.bf16 %v2384, %v2384
      %v2906 = vpack.c.bf16 %v2391, %v2391
      %v2907 = vpack.c.bf16 %v2398, %v2398
      %v2908 = vpack.c.bf16 %v2405, %v2405
      %v2909 = vpack.c.bf16 %v2412, %v2412
      %v2910 = vpack.c.bf16 %v2419, %v2419
      %v2911 = vpack.c.bf16 %v2426, %v2426
      %v2912 = vpack.c.bf16 %v2433, %v2433
      %v2913 = vpack.c.bf16 %v2440, %v2440
      %v2914 = vpack.c.bf16 %v2447, %v2447
      %v2915 = vpack.c.bf16 %v2454, %v2454
      %v2916 = vpack.c.bf16 %v2461, %v2461
      %v2917 = vpack.c.bf16 %v2468, %v2468
      %v2918 = vpack.c.bf16 %v2475, %v2475
      %v2919 = vpack.c.bf16 %v2482, %v2482
      %v2920 = vpack.c.bf16 %v2489, %v2489
      %v2921 = vpack.c.bf16 %v2496, %v2496
      %v2922 = vpack.c.bf16 %v2503, %v2503
      %v2923 = vpack.c.bf16 %v2510, %v2510
      %v2924 = vpack.c.bf16 %v2517, %v2517
      %v2925 = vpack.c.bf16 %v2524, %v2524
      %v2926 = vpack.c.bf16 %v2531, %v2531
      %v2927 = vpack.c.bf16 %v2852, %v2851
      %v2928 = vpack.c.bf16 %v2854, %v2853
      %v2929 = vpack.c.bf16 %v2856, %v2855
      %v2930 = vpack.c.bf16 %v2858, %v2857
      %v2931 = vld [vmem:[%s8] sm:$0xf]
      %v2932 = vld [vmem:[%s8 + $0x4] sm:$0xf]
      %v2933 = vld [vmem:[%s8 + $0x8] sm:$0xf]
      %v2934 = vld [vmem:[%s8 + $0xc] sm:$0xf]
      %v2935 = vld [vmem:[%s8 + $0x10] sm:$0xf]
      %v2936 = vld [vmem:[%s8 + $0x14] sm:$0xf]
      %v2937 = vld [vmem:[%s8 + $0x18] sm:$0xf]
      %v2938 = vld [vmem:[%s8 + $0x1c] sm:$0xf]
      %v2939 = vld [vmem:[%s7] sm:$0xf]
      %v2940 = vld [vmem:[%s7 + $0x4] sm:$0xf]
      %v2941 = vld [vmem:[%s7 + $0x8] sm:$0xf]
      %v2942 = vld [vmem:[%s7 + $0xc] sm:$0xf]
      %v2943 = vld [vmem:[%s7 + $0x10] sm:$0xf]
      %v2944 = vld [vmem:[%s7 + $0x14] sm:$0xf]
      %v2945 = vld [vmem:[%s7 + $0x18] sm:$0xf]
      %v2946 = vld [vmem:[%s7 + $0x1c] sm:$0xf]
      %v2955 = vunpack.c.l.b16 %v2939
      %v2956 = vunpack.c.l.b16 %v2940
      %v2957 = vunpack.c.l.b16 %v2941
      %v2958 = vunpack.c.l.b16 %v2942
      %v2959 = vunpack.c.l.b16 %v2943
      %v2960 = vunpack.c.l.b16 %v2944
      %v2961 = vunpack.c.l.b16 %v2945
      %v2962 = vunpack.c.l.b16 %v2946
      %v2963 = vpack.c.b16 %v2956, %v2955
      %v2964 = vpack.c.b16 %v2958, %v2957
      %v2965 = vpack.c.b16 %v2960, %v2959
      %v2966 = vpack.c.b16 %v2962, %v2961
      %v2972 = vsel %vm1643, %v2859, 0
      %v2975 = vsel %vm1643, %v2860, 0
      %v2978 = vsel %vm1643, %v2861, 0
      %v2981 = vsel %vm1643, %v2862, 0
      %2983 = vmatpush.bf16.msra.mxu0 0
      %2984 = vmatpush.bf16.msra.mxu0 0
      %2985 = vmatpush.bf16.msra.mxu0 0
      %2986 = vmatpush.bf16.msra.mxu0 0
      %2987 = vmatpush.bf16.msra.mxu0 %v2966
      %2988 = vmatpush.bf16.msra.mxu0 %v2965
      %2989 = vmatpush.bf16.msra.mxu0 %v2964
      %2990 = vmatpush.bf16.msra.mxu0 %v2963
      %2991 = vmatmul.bf16.gmra.mxu0 %v2972
      %v2992 = vpop.f32.mrf.mxu0
      %v2993 = vadd.f32 0.0, %v2992
      %v2994 = vpop.f32.mrf.mxu0
      %v2995 = vadd.f32 0.0, %v2994
      %2996 = vmatmul.bf16.gmra.mxu0 %v2975
      %v2997 = vpop.f32.mrf.mxu0
      %v2998 = vadd.f32 0.0, %v2997
      %v2999 = vpop.f32.mrf.mxu0
      %v3000 = vadd.f32 0.0, %v2999
      %3001 = vmatmul.bf16.gmra.mxu0 %v2978
      %v3002 = vpop.f32.mrf.mxu0
      %v3003 = vadd.f32 0.0, %v3002
      %v3004 = vpop.f32.mrf.mxu0
      %v3005 = vadd.f32 0.0, %v3004
      %3006 = vmatmul.bf16.gmra.mxu0 %v2981
      %v3007 = vpop.f32.mrf.mxu0
      %v3008 = vadd.f32 0.0, %v3007
      %v3009 = vpop.f32.mrf.mxu0
      %v3010 = vadd.f32 0.0, %v3009
      %3011 = vdwg.mxu0
      %v3076 = vunpack.c.l.b16 %v2863
      %v3077 = vunpack.c.l.b16 %v2864
      %v3078 = vunpack.c.l.b16 %v2865
      %v3079 = vunpack.c.l.b16 %v2866
      %v3080 = vunpack.c.l.b16 %v2867
      %v3081 = vunpack.c.l.b16 %v2868
      %v3082 = vunpack.c.l.b16 %v2869
      %v3083 = vunpack.c.l.b16 %v2870
      %v3084 = vunpack.c.l.b16 %v2871
      %v3085 = vunpack.c.l.b16 %v2872
      %v3086 = vunpack.c.l.b16 %v2873
      %v3087 = vunpack.c.l.b16 %v2874
      %v3088 = vunpack.c.l.b16 %v2875
      %v3089 = vunpack.c.l.b16 %v2876
      %v3090 = vunpack.c.l.b16 %v2877
      %v3091 = vunpack.c.l.b16 %v2878
      %v3092 = vunpack.c.l.b16 %v2879
      %v3093 = vunpack.c.l.b16 %v2880
      %v3094 = vunpack.c.l.b16 %v2881
      %v3095 = vunpack.c.l.b16 %v2882
      %v3096 = vunpack.c.l.b16 %v2883
      %v3097 = vunpack.c.l.b16 %v2884
      %v3098 = vunpack.c.l.b16 %v2885
      %v3099 = vunpack.c.l.b16 %v2886
      %v3100 = vunpack.c.l.b16 %v2887
      %v3101 = vunpack.c.l.b16 %v2888
      %v3102 = vunpack.c.l.b16 %v2889
      %v3103 = vunpack.c.l.b16 %v2890
      %v3104 = vunpack.c.l.b16 %v2891
      %v3105 = vunpack.c.l.b16 %v2892
      %v3106 = vunpack.c.l.b16 %v2893
      %v3107 = vunpack.c.l.b16 %v2894
      %v3108 = vunpack.c.l.b16 %v2895
      %v3109 = vunpack.c.l.b16 %v2896
      %v3110 = vunpack.c.l.b16 %v2897
      %v3111 = vunpack.c.l.b16 %v2898
      %v3112 = vunpack.c.l.b16 %v2899
      %v3113 = vunpack.c.l.b16 %v2900
      %v3114 = vunpack.c.l.b16 %v2901
      %v3115 = vunpack.c.l.b16 %v2902
      %v3116 = vunpack.c.l.b16 %v2903
      %v3117 = vunpack.c.l.b16 %v2904
      %v3118 = vunpack.c.l.b16 %v2905
      %v3119 = vunpack.c.l.b16 %v2906
      %v3120 = vunpack.c.l.b16 %v2907
      %v3121 = vunpack.c.l.b16 %v2908
      %v3122 = vunpack.c.l.b16 %v2909
      %v3123 = vunpack.c.l.b16 %v2910
      %v3124 = vunpack.c.l.b16 %v2911
      %v3125 = vunpack.c.l.b16 %v2912
      %v3126 = vunpack.c.l.b16 %v2913
      %v3127 = vunpack.c.l.b16 %v2914
      %v3128 = vunpack.c.l.b16 %v2915
      %v3129 = vunpack.c.l.b16 %v2916
      %v3130 = vunpack.c.l.b16 %v2917
      %v3131 = vunpack.c.l.b16 %v2918
      %v3132 = vunpack.c.l.b16 %v2919
      %v3133 = vunpack.c.l.b16 %v2920
      %v3134 = vunpack.c.l.b16 %v2921
      %v3135 = vunpack.c.l.b16 %v2922
      %v3136 = vunpack.c.l.b16 %v2923
      %v3137 = vunpack.c.l.b16 %v2924
      %v3138 = vunpack.c.l.b16 %v2925
      %v3139 = vunpack.c.l.b16 %v2926
      %v3140 = vsel %vm2596, %v3077, %v3076
      %v3141 = vsel %vm2598, %v3078, %v3140
      %v3142 = vsel %vm2600, %v3079, %v3141
      %v3143 = vsel %vm2602, %v3080, %v3142
      %v3144 = vsel %vm2604, %v3081, %v3143
      %v3145 = vsel %vm2606, %v3082, %v3144
      %v3146 = vsel %vm2608, %v3083, %v3145
      %v3147 = vsel %vm2596, %v3085, %v3084
      %v3148 = vsel %vm2598, %v3086, %v3147
      %v3149 = vsel %vm2600, %v3087, %v3148
      %v3150 = vsel %vm2602, %v3088, %v3149
      %v3151 = vsel %vm2604, %v3089, %v3150
      %v3152 = vsel %vm2606, %v3090, %v3151
      %v3153 = vsel %vm2608, %v3091, %v3152
      %v3154 = vsel %vm2596, %v3093, %v3092
      %v3155 = vsel %vm2598, %v3094, %v3154
      %v3156 = vsel %vm2600, %v3095, %v3155
      %v3157 = vsel %vm2602, %v3096, %v3156
      %v3158 = vsel %vm2604, %v3097, %v3157
      %v3159 = vsel %vm2606, %v3098, %v3158
      %v3160 = vsel %vm2608, %v3099, %v3159
      %v3161 = vsel %vm2596, %v3101, %v3100
      %v3162 = vsel %vm2598, %v3102, %v3161
      %v3163 = vsel %vm2600, %v3103, %v3162
      %v3164 = vsel %vm2602, %v3104, %v3163
      %v3165 = vsel %vm2604, %v3105, %v3164
      %v3166 = vsel %vm2606, %v3106, %v3165
      %v3167 = vsel %vm2608, %v3107, %v3166
      %v3168 = vsel %vm2596, %v3109, %v3108
      %v3169 = vsel %vm2598, %v3110, %v3168
      %v3170 = vsel %vm2600, %v3111, %v3169
      %v3171 = vsel %vm2602, %v3112, %v3170
      %v3172 = vsel %vm2604, %v3113, %v3171
      %v3173 = vsel %vm2606, %v3114, %v3172
      %v3174 = vsel %vm2608, %v3115, %v3173
      %v3175 = vsel %vm2596, %v3117, %v3116
      %v3176 = vsel %vm2598, %v3118, %v3175
      %v3177 = vsel %vm2600, %v3119, %v3176
      %v3178 = vsel %vm2602, %v3120, %v3177
      %v3179 = vsel %vm2604, %v3121, %v3178
      %v3180 = vsel %vm2606, %v3122, %v3179
      %v3181 = vsel %vm2608, %v3123, %v3180
      %v3182 = vsel %vm2596, %v3125, %v3124
      %v3183 = vsel %vm2598, %v3126, %v3182
      %v3184 = vsel %vm2600, %v3127, %v3183
      %v3185 = vsel %vm2602, %v3128, %v3184
      %v3186 = vsel %vm2604, %v3129, %v3185
      %v3187 = vsel %vm2606, %v3130, %v3186
      %v3188 = vsel %vm2608, %v3131, %v3187
      %v3189 = vsel %vm2596, %v3133, %v3132
      %v3190 = vsel %vm2598, %v3134, %v3189
      %v3191 = vsel %vm2600, %v3135, %v3190
      %v3192 = vsel %vm2602, %v3136, %v3191
      %v3193 = vsel %vm2604, %v3137, %v3192
      %v3194 = vsel %vm2606, %v3138, %v3193
      %v3195 = vsel %vm2608, %v3139, %v3194
      %v3196 = vpack.c.b16 %v3153, %v3146
      %v3197 = vpack.c.b16 %v3167, %v3160
      %v3198 = vpack.c.b16 %v3181, %v3174
      %v3199 = vpack.c.b16 %v3195, %v3188
      %v3208 = vunpack.c.l.b16 %v2931
      %v3209 = vunpack.c.l.b16 %v2932
      %v3210 = vunpack.c.l.b16 %v2933
      %v3211 = vunpack.c.l.b16 %v2934
      %v3212 = vunpack.c.l.b16 %v2935
      %v3213 = vunpack.c.l.b16 %v2936
      %v3214 = vunpack.c.l.b16 %v2937
      %v3215 = vunpack.c.l.b16 %v2938
      %v3216 = vpack.c.b16 %v3209, %v3208
      %v3217 = vpack.c.b16 %v3211, %v3210
      %v3218 = vpack.c.b16 %v3213, %v3212
      %v3219 = vpack.c.b16 %v3215, %v3214
      %v3225 = vsel %vm1643, %v3196, 0
      %v3228 = vsel %vm1643, %v3197, 0
      %v3231 = vsel %vm1643, %v3198, 0
      %v3234 = vsel %vm1643, %v3199, 0
      %3236 = vmatpush.bf16.msra.mxu0 0
      %3237 = vmatpush.bf16.msra.mxu0 0
      %3238 = vmatpush.bf16.msra.mxu0 0
      %3239 = vmatpush.bf16.msra.mxu0 0
      %3240 = vmatpush.bf16.msra.mxu0 %v3219
      %3241 = vmatpush.bf16.msra.mxu0 %v3218
      %3242 = vmatpush.bf16.msra.mxu0 %v3217
      %3243 = vmatpush.bf16.msra.mxu0 %v3216
      %3244 = vmatmul.bf16.gmra.mxu0 %v3225
      %v3245 = vpop.f32.mrf.mxu0
      %v3246 = vadd.f32 %v2993, %v3245
      %v3247 = vpop.f32.mrf.mxu0
      %v3248 = vadd.f32 %v2995, %v3247
      %3249 = vmatmul.bf16.gmra.mxu0 %v3228
      %v3250 = vpop.f32.mrf.mxu0
      %v3251 = vadd.f32 %v2998, %v3250
      %v3252 = vpop.f32.mrf.mxu0
      %v3253 = vadd.f32 %v3000, %v3252
      %3254 = vmatmul.bf16.gmra.mxu0 %v3231
      %v3255 = vpop.f32.mrf.mxu0
      %v3256 = vadd.f32 %v3003, %v3255
      %v3257 = vpop.f32.mrf.mxu0
      %v3258 = vadd.f32 %v3005, %v3257
      %3259 = vmatmul.bf16.gmra.mxu0 %v3234
      %v3260 = vpop.f32.mrf.mxu0
      %v3261 = vadd.f32 %v3008, %v3260
      %v3262 = vpop.f32.mrf.mxu0
      %v3263 = vadd.f32 %v3010, %v3262
      %3264 = vdwg.mxu0
      %v3265 = vld [vmem:[%s9] sm:$0xf]
      %v3266 = vld [vmem:[%s9 + $0x4] sm:$0xf]
      %v3267 = vld [vmem:[%s9 + $0x8] sm:$0xf]
      %v3268 = vld [vmem:[%s9 + $0xc] sm:$0xf]
      %v3269 = vld [vmem:[%s9 + $0x10] sm:$0xf]
      %v3270 = vld [vmem:[%s9 + $0x14] sm:$0xf]
      %v3271 = vld [vmem:[%s9 + $0x18] sm:$0xf]
      %v3272 = vld [vmem:[%s9 + $0x1c] sm:$0xf]
      %v3281 = vunpack.c.l.b16 %v3265
      %v3282 = vunpack.c.l.b16 %v3266
      %v3283 = vunpack.c.l.b16 %v3267
      %v3284 = vunpack.c.l.b16 %v3268
      %v3285 = vunpack.c.l.b16 %v3269
      %v3286 = vunpack.c.l.b16 %v3270
      %v3287 = vunpack.c.l.b16 %v3271
      %v3288 = vunpack.c.l.b16 %v3272
      %v3289 = vpack.c.b16 %v3282, %v3281
      %v3290 = vpack.c.b16 %v3284, %v3283
      %v3291 = vpack.c.b16 %v3286, %v3285
      %v3292 = vpack.c.b16 %v3288, %v3287
      %v3298 = vsel %vm1643, %v2927, 0
      %v3301 = vsel %vm1643, %v2928, 0
      %v3304 = vsel %vm1643, %v2929, 0
      %v3307 = vsel %vm1643, %v2930, 0
      %3309 = vmatpush.bf16.msra.mxu0 0
      %3310 = vmatpush.bf16.msra.mxu0 0
      %3311 = vmatpush.bf16.msra.mxu0 0
      %3312 = vmatpush.bf16.msra.mxu0 0
      %3313 = vmatpush.bf16.msra.mxu0 %v3292
      %3314 = vmatpush.bf16.msra.mxu0 %v3291
      %3315 = vmatpush.bf16.msra.mxu0 %v3290
      %3316 = vmatpush.bf16.msra.mxu0 %v3289
      %3317 = vmatmul.bf16.gmra.mxu0 %v3298
      %v3318 = vpop.f32.mrf.mxu0
      %v3319 = vadd.f32 0.0, %v3318
      %v3320 = vpop.f32.mrf.mxu0
      %v3321 = vadd.f32 0.0, %v3320
      %3322 = vmatmul.bf16.gmra.mxu0 %v3301
      %v3323 = vpop.f32.mrf.mxu0
      %v3324 = vadd.f32 0.0, %v3323
      %v3325 = vpop.f32.mrf.mxu0
      %v3326 = vadd.f32 0.0, %v3325
      %3327 = vmatmul.bf16.gmra.mxu0 %v3304
      %v3328 = vpop.f32.mrf.mxu0
      %v3329 = vadd.f32 0.0, %v3328
      %v3330 = vpop.f32.mrf.mxu0
      %v3331 = vadd.f32 0.0, %v3330
      %3332 = vmatmul.bf16.gmra.mxu0 %v3307
      %v3333 = vpop.f32.mrf.mxu0
      %v3334 = vadd.f32 0.0, %v3333
      %v3335 = vpop.f32.mrf.mxu0
      %v3336 = vadd.f32 0.0, %v3335
      %3337 = vdwg.mxu0
      %v3338 = vadd.f32 %v3246, %v3319
      %v3339 = vadd.f32 %v3248, %v3321
      %v3340 = vadd.f32 %v3251, %v3324
      %v3341 = vadd.f32 %v3253, %v3326
      %v3342 = vadd.f32 %v3256, %v3329
      %v3343 = vadd.f32 %v3258, %v3331
      %v3344 = vadd.f32 %v3261, %v3334
      %v3345 = vadd.f32 %v3263, %v3336
      %v3346 = vld [vmem:[%s10] sm:$0x1]
      %v3348 = vperm.slane %v3346, 0
      %v3350 = vadd.f32 %v3338, %v3348
      %v3351 = vadd.f32 %v3339, %v3348
      %v3352 = vadd.f32 %v3340, %v3348
      %v3353 = vadd.f32 %v3341, %v3348
      %v3354 = vadd.f32 %v3342, %v3348
      %v3355 = vadd.f32 %v3343, %v3348
      %v3356 = vadd.f32 %v3344, %v3348
      %v3357 = vadd.f32 %v3345, %v3348
      %v3358 = vmax.f32 %v3350, 0.0
      %v3359 = vmax.f32 %v3351, 0.0
      %v3360 = vmax.f32 %v3352, 0.0
      %v3361 = vmax.f32 %v3353, 0.0
      %v3362 = vmax.f32 %v3354, 0.0
      %v3363 = vmax.f32 %v3355, 0.0
      %v3364 = vmax.f32 %v3356, 0.0
      %v3365 = vmax.f32 %v3357, 0.0
      %v3374 = vrot.slane %v3358, 2
      %v3375 = vrot.slane %v3358, 4
      %v3376 = vrot.slane %v3358, 6
      %v3377 = vrot.slane %v3359, 2
      %v3378 = vrot.slane %v3359, 4
      %v3379 = vrot.slane %v3359, 6
      %v3380 = vrot.slane %v3360, 2
      %v3381 = vrot.slane %v3360, 4
      %v3382 = vrot.slane %v3360, 6
      %v3383 = vrot.slane %v3361, 2
      %v3384 = vrot.slane %v3361, 4
      %v3385 = vrot.slane %v3361, 6
      %v3386 = vrot.slane %v3362, 2
      %v3387 = vrot.slane %v3362, 4
      %v3388 = vrot.slane %v3362, 6
      %v3389 = vrot.slane %v3363, 2
      %v3390 = vrot.slane %v3363, 4
      %v3391 = vrot.slane %v3363, 6
      %v3392 = vrot.slane %v3364, 2
      %v3393 = vrot.slane %v3364, 4
      %v3394 = vrot.slane %v3364, 6
      %v3395 = vrot.slane %v3365, 2
      %v3396 = vrot.slane %v3365, 4
      %v3397 = vrot.slane %v3365, 6
      %vm3422 = vcmask 1041408
      %v3423 = vsel %vm3422, %v3358, -inf
      %v3424 = vrot.slane %v3423, 4
      %v3425 = vmax.f32 %v3423, %v3424
      %v3426 = vrot.slane %v3425, 2
      %v3427 = vmax.f32 %v3425, %v3426
      %v3428 = vrot.slane %v3427, 1
      %v3429 = vmax.f32 %v3427, %v3428
      %v3430 = vsel %vm3422, %v3374, -inf
      %v3431 = vrot.slane %v3430, 4
      %v3432 = vmax.f32 %v3430, %v3431
      %v3433 = vrot.slane %v3432, 2
      %v3434 = vmax.f32 %v3432, %v3433
      %v3435 = vrot.slane %v3434, 1
      %v3436 = vmax.f32 %v3434, %v3435
      %v3437 = vsel %vm3422, %v3375, -inf
      %v3438 = vrot.slane %v3437, 4
      %v3439 = vmax.f32 %v3437, %v3438
      %v3440 = vrot.slane %v3439, 2
      %v3441 = vmax.f32 %v3439, %v3440
      %v3442 = vrot.slane %v3441, 1
      %v3443 = vmax.f32 %v3441, %v3442
      %v3444 = vsel %vm3422, %v3376, -inf
      %v3445 = vrot.slane %v3444, 4
      %v3446 = vmax.f32 %v3444, %v3445
      %v3447 = vrot.slane %v3446, 2
      %v3448 = vmax.f32 %v3446, %v3447
      %v3449 = vrot.slane %v3448, 1
      %v3450 = vmax.f32 %v3448, %v3449
      %v3451 = vsel %vm3422, %v3359, -inf
      %v3452 = vrot.slane %v3451, 4
      %v3453 = vmax.f32 %v3451, %v3452
      %v3454 = vrot.slane %v3453, 2
      %v3455 = vmax.f32 %v3453, %v3454
      %v3456 = vrot.slane %v3455, 1
      %v3457 = vmax.f32 %v3455, %v3456
      %v3458 = vsel %vm3422, %v3377, -inf
      %v3459 = vrot.slane %v3458, 4
      %v3460 = vmax.f32 %v3458, %v3459
      %v3461 = vrot.slane %v3460, 2
      %v3462 = vmax.f32 %v3460, %v3461
      %v3463 = vrot.slane %v3462, 1
      %v3464 = vmax.f32 %v3462, %v3463
      %v3465 = vsel %vm3422, %v3378, -inf
      %v3466 = vrot.slane %v3465, 4
      %v3467 = vmax.f32 %v3465, %v3466
      %v3468 = vrot.slane %v3467, 2
      %v3469 = vmax.f32 %v3467, %v3468
      %v3470 = vrot.slane %v3469, 1
      %v3471 = vmax.f32 %v3469, %v3470
      %v3472 = vsel %vm3422, %v3379, -inf
      %v3473 = vrot.slane %v3472, 4
      %v3474 = vmax.f32 %v3472, %v3473
      %v3475 = vrot.slane %v3474, 2
      %v3476 = vmax.f32 %v3474, %v3475
      %v3477 = vrot.slane %v3476, 1
      %v3478 = vmax.f32 %v3476, %v3477
      %v3479 = vsel %vm3422, %v3360, -inf
      %v3480 = vrot.slane %v3479, 4
      %v3481 = vmax.f32 %v3479, %v3480
      %v3482 = vrot.slane %v3481, 2
      %v3483 = vmax.f32 %v3481, %v3482
      %v3484 = vrot.slane %v3483, 1
      %v3485 = vmax.f32 %v3483, %v3484
      %v3486 = vsel %vm3422, %v3380, -inf
      %v3487 = vrot.slane %v3486, 4
      %v3488 = vmax.f32 %v3486, %v3487
      %v3489 = vrot.slane %v3488, 2
      %v3490 = vmax.f32 %v3488, %v3489
      %v3491 = vrot.slane %v3490, 1
      %v3492 = vmax.f32 %v3490, %v3491
      %v3493 = vsel %vm3422, %v3381, -inf
      %v3494 = vrot.slane %v3493, 4
      %v3495 = vmax.f32 %v3493, %v3494
      %v3496 = vrot.slane %v3495, 2
      %v3497 = vmax.f32 %v3495, %v3496
      %v3498 = vrot.slane %v3497, 1
      %v3499 = vmax.f32 %v3497, %v3498
      %v3500 = vsel %vm3422, %v3382, -inf
      %v3501 = vrot.slane %v3500, 4
      %v3502 = vmax.f32 %v3500, %v3501
      %v3503 = vrot.slane %v3502, 2
      %v3504 = vmax.f32 %v3502, %v3503
      %v3505 = vrot.slane %v3504, 1
      %v3506 = vmax.f32 %v3504, %v3505
      %v3507 = vsel %vm3422, %v3361, -inf
      %v3508 = vrot.slane %v3507, 4
      %v3509 = vmax.f32 %v3507, %v3508
      %v3510 = vrot.slane %v3509, 2
      %v3511 = vmax.f32 %v3509, %v3510
      %v3512 = vrot.slane %v3511, 1
      %v3513 = vmax.f32 %v3511, %v3512
      %v3514 = vsel %vm3422, %v3383, -inf
      %v3515 = vrot.slane %v3514, 4
      %v3516 = vmax.f32 %v3514, %v3515
      %v3517 = vrot.slane %v3516, 2
      %v3518 = vmax.f32 %v3516, %v3517
      %v3519 = vrot.slane %v3518, 1
      %v3520 = vmax.f32 %v3518, %v3519
      %v3521 = vsel %vm3422, %v3384, -inf
      %v3522 = vrot.slane %v3521, 4
      %v3523 = vmax.f32 %v3521, %v3522
      %v3524 = vrot.slane %v3523, 2
      %v3525 = vmax.f32 %v3523, %v3524
      %v3526 = vrot.slane %v3525, 1
      %v3527 = vmax.f32 %v3525, %v3526
      %v3528 = vsel %vm3422, %v3385, -inf
      %v3529 = vrot.slane %v3528, 4
      %v3530 = vmax.f32 %v3528, %v3529
      %v3531 = vrot.slane %v3530, 2
      %v3532 = vmax.f32 %v3530, %v3531
      %v3533 = vrot.slane %v3532, 1
      %v3534 = vmax.f32 %v3532, %v3533
      %v3535 = vsel %vm3422, %v3362, -inf
      %v3536 = vrot.slane %v3535, 4
      %v3537 = vmax.f32 %v3535, %v3536
      %v3538 = vrot.slane %v3537, 2
      %v3539 = vmax.f32 %v3537, %v3538
      %v3540 = vrot.slane %v3539, 1
      %v3541 = vmax.f32 %v3539, %v3540
      %v3542 = vsel %vm3422, %v3386, -inf
      %v3543 = vrot.slane %v3542, 4
      %v3544 = vmax.f32 %v3542, %v3543
      %v3545 = vrot.slane %v3544, 2
      %v3546 = vmax.f32 %v3544, %v3545
      %v3547 = vrot.slane %v3546, 1
      %v3548 = vmax.f32 %v3546, %v3547
      %v3549 = vsel %vm3422, %v3387, -inf
      %v3550 = vrot.slane %v3549, 4
      %v3551 = vmax.f32 %v3549, %v3550
      %v3552 = vrot.slane %v3551, 2
      %v3553 = vmax.f32 %v3551, %v3552
      %v3554 = vrot.slane %v3553, 1
      %v3555 = vmax.f32 %v3553, %v3554
      %v3556 = vsel %vm3422, %v3388, -inf
      %v3557 = vrot.slane %v3556, 4
      %v3558 = vmax.f32 %v3556, %v3557
      %v3559 = vrot.slane %v3558, 2
      %v3560 = vmax.f32 %v3558, %v3559
      %v3561 = vrot.slane %v3560, 1
      %v3562 = vmax.f32 %v3560, %v3561
      %v3563 = vsel %vm3422, %v3363, -inf
      %v3564 = vrot.slane %v3563, 4
      %v3565 = vmax.f32 %v3563, %v3564
      %v3566 = vrot.slane %v3565, 2
      %v3567 = vmax.f32 %v3565, %v3566
      %v3568 = vrot.slane %v3567, 1
      %v3569 = vmax.f32 %v3567, %v3568
      %v3570 = vsel %vm3422, %v3389, -inf
      %v3571 = vrot.slane %v3570, 4
      %v3572 = vmax.f32 %v3570, %v3571
      %v3573 = vrot.slane %v3572, 2
      %v3574 = vmax.f32 %v3572, %v3573
      %v3575 = vrot.slane %v3574, 1
      %v3576 = vmax.f32 %v3574, %v3575
      %v3577 = vsel %vm3422, %v3390, -inf
      %v3578 = vrot.slane %v3577, 4
      %v3579 = vmax.f32 %v3577, %v3578
      %v3580 = vrot.slane %v3579, 2
      %v3581 = vmax.f32 %v3579, %v3580
      %v3582 = vrot.slane %v3581, 1
      %v3583 = vmax.f32 %v3581, %v3582
      %v3584 = vsel %vm3422, %v3391, -inf
      %v3585 = vrot.slane %v3584, 4
      %v3586 = vmax.f32 %v3584, %v3585
      %v3587 = vrot.slane %v3586, 2
      %v3588 = vmax.f32 %v3586, %v3587
      %v3589 = vrot.slane %v3588, 1
      %v3590 = vmax.f32 %v3588, %v3589
      %v3591 = vsel %vm3422, %v3364, -inf
      %v3592 = vrot.slane %v3591, 4
      %v3593 = vmax.f32 %v3591, %v3592
      %v3594 = vrot.slane %v3593, 2
      %v3595 = vmax.f32 %v3593, %v3594
      %v3596 = vrot.slane %v3595, 1
      %v3597 = vmax.f32 %v3595, %v3596
      %v3598 = vsel %vm3422, %v3392, -inf
      %v3599 = vrot.slane %v3598, 4
      %v3600 = vmax.f32 %v3598, %v3599
      %v3601 = vrot.slane %v3600, 2
      %v3602 = vmax.f32 %v3600, %v3601
      %v3603 = vrot.slane %v3602, 1
      %v3604 = vmax.f32 %v3602, %v3603
      %v3605 = vsel %vm3422, %v3393, -inf
      %v3606 = vrot.slane %v3605, 4
      %v3607 = vmax.f32 %v3605, %v3606
      %v3608 = vrot.slane %v3607, 2
      %v3609 = vmax.f32 %v3607, %v3608
      %v3610 = vrot.slane %v3609, 1
      %v3611 = vmax.f32 %v3609, %v3610
      %v3612 = vsel %vm3422, %v3394, -inf
      %v3613 = vrot.slane %v3612, 4
      %v3614 = vmax.f32 %v3612, %v3613
      %v3615 = vrot.slane %v3614, 2
      %v3616 = vmax.f32 %v3614, %v3615
      %v3617 = vrot.slane %v3616, 1
      %v3618 = vmax.f32 %v3616, %v3617
      %v3619 = vsel %vm3422, %v3365, -inf
      %v3620 = vrot.slane %v3619, 4
      %v3621 = vmax.f32 %v3619, %v3620
      %v3622 = vrot.slane %v3621, 2
      %v3623 = vmax.f32 %v3621, %v3622
      %v3624 = vrot.slane %v3623, 1
      %v3625 = vmax.f32 %v3623, %v3624
      %v3626 = vsel %vm3422, %v3395, -inf
      %v3627 = vrot.slane %v3626, 4
      %v3628 = vmax.f32 %v3626, %v3627
      %v3629 = vrot.slane %v3628, 2
      %v3630 = vmax.f32 %v3628, %v3629
      %v3631 = vrot.slane %v3630, 1
      %v3632 = vmax.f32 %v3630, %v3631
      %v3633 = vsel %vm3422, %v3396, -inf
      %v3634 = vrot.slane %v3633, 4
      %v3635 = vmax.f32 %v3633, %v3634
      %v3636 = vrot.slane %v3635, 2
      %v3637 = vmax.f32 %v3635, %v3636
      %v3638 = vrot.slane %v3637, 1
      %v3639 = vmax.f32 %v3637, %v3638
      %v3640 = vsel %vm3422, %v3397, -inf
      %v3641 = vrot.slane %v3640, 4
      %v3642 = vmax.f32 %v3640, %v3641
      %v3643 = vrot.slane %v3642, 2
      %v3644 = vmax.f32 %v3642, %v3643
      %v3645 = vrot.slane %v3644, 1
      %v3646 = vmax.f32 %v3644, %v3645
      %v3679 = vsel %vm2596, %v3436, %v3429
      %v3680 = vsel %vm2598, %v3443, %v3679
      %v3681 = vsel %vm2600, %v3450, %v3680
      %v3682 = vsel %vm2602, %v3457, %v3681
      %v3683 = vsel %vm2604, %v3464, %v3682
      %v3684 = vsel %vm2606, %v3471, %v3683
      %v3685 = vsel %vm2608, %v3478, %v3684
      %v3686 = vsel %vm2596, %v3492, %v3485
      %v3687 = vsel %vm2598, %v3499, %v3686
      %v3688 = vsel %vm2600, %v3506, %v3687
      %v3689 = vsel %vm2602, %v3513, %v3688
      %v3690 = vsel %vm2604, %v3520, %v3689
      %v3691 = vsel %vm2606, %v3527, %v3690
      %v3692 = vsel %vm2608, %v3534, %v3691
      %v3693 = vsel %vm2596, %v3548, %v3541
      %v3694 = vsel %vm2598, %v3555, %v3693
      %v3695 = vsel %vm2600, %v3562, %v3694
      %v3696 = vsel %vm2602, %v3569, %v3695
      %v3697 = vsel %vm2604, %v3576, %v3696
      %v3698 = vsel %vm2606, %v3583, %v3697
      %v3699 = vsel %vm2608, %v3590, %v3698
      %v3700 = vsel %vm2596, %v3604, %v3597
      %v3701 = vsel %vm2598, %v3611, %v3700
      %v3702 = vsel %vm2600, %v3618, %v3701
      %v3703 = vsel %vm2602, %v3625, %v3702
      %v3704 = vsel %vm2604, %v3632, %v3703
      %v3705 = vsel %vm2606, %v3639, %v3704
      %v3706 = vsel %vm2608, %v3646, %v3705
      %v3711 = vrot.slane %v3685, 7
      %v3712 = vrot.slane %v3692, 7
      %v3713 = vrot.slane %v3699, 7
      %v3714 = vrot.slane %v3706, 7
      %v3715 = vsel %vm754, %v3713, %v3714
      %v3716 = vsel %vm754, %v3712, %v3713
      %v3717 = vsel %vm754, %v3711, %v3712
      %v3718 = vsel %vm754, %v3714, %v3711
      %v3719 = vrot.slane %v3685, 1
      %v3720 = vrot.slane %v3692, 1
      %v3721 = vrot.slane %v3699, 1
      %v3722 = vrot.slane %v3706, 1
      %v3723 = vsel %vm787, %v3721, %v3722
      %v3724 = vsel %vm787, %v3720, %v3721
      %v3725 = vsel %vm787, %v3719, %v3720
      %v3726 = vsel %vm787, %v3722, %v3719
      %vm3727 = vcmp.lt.s32.totalorder %v753, 0
      %v3728 = vsub.s32 0, %v753
      %v3729 = vsel %vm3727, %v3728, %v753
      %v3730 = vshrl.u32 %v3729, 4
      %v3731 = vand.u32 %v3729, 15
      %v3732 = vsub.s32 0, %v3731
      %v3733 = vsel %vm3727, %v3732, %v3731
      %vm3734 = vcmp.lt.s32.totalorder %v804, 0
      %v3735 = vsub.s32 0, %v804
      %v3736 = vsel %vm3734, %v3735, %v804
      %v3737 = vshrl.u32 %v3736, 4
      %v3738 = vand.u32 %v3736, 15
      %v3739 = vsub.s32 0, %v3738
      %v3740 = vsel %vm3734, %v3739, %v3738
      %vm3741 = vcmp.lt.s32.totalorder %v805, 0
      %v3742 = vsub.s32 0, %v805
      %v3743 = vsel %vm3741, %v3742, %v805
      %v3744 = vshrl.u32 %v3743, 4
      %v3745 = vand.u32 %v3743, 15
      %v3746 = vsub.s32 0, %v3745
      %v3747 = vsel %vm3741, %v3746, %v3745
      %vm3748 = vcmp.lt.s32.totalorder %v806, 0
      %v3749 = vsub.s32 0, %v806
      %v3750 = vsel %vm3748, %v3749, %v806
      %v3751 = vshrl.u32 %v3750, 4
      %v3752 = vand.u32 %v3750, 15
      %v3753 = vsub.s32 0, %v3752
      %v3754 = vsel %vm3748, %v3753, %v3752
      %vm3755 = vcmp.ne.s32.totalorder %v3733, 0
      %vm3756 = vcmp.ne.s32.totalorder %v3740, 0
      %vm3757 = vcmp.ne.s32.totalorder %v3747, 0
      %vm3758 = vcmp.ne.s32.totalorder %v3754, 0
      %vm3759 = vcmp.lt.s32.totalorder %v3733, 0
      %vm3760 = vcmp.lt.s32.totalorder %v3740, 0
      %vm3761 = vcmp.lt.s32.totalorder %v3747, 0
      %vm3762 = vcmp.lt.s32.totalorder %v3754, 0
      %vm3763 = vmand %vm3759, %vm3755
      %vm3764 = vmand %vm3760, %vm3756
      %vm3765 = vmand %vm3761, %vm3757
      %vm3766 = vmand %vm3762, %vm3758
      %v3767 = vadd.s32 %v3733, 16
      %v3768 = vadd.s32 %v3740, 16
      %v3769 = vadd.s32 %v3747, 16
      %v3770 = vadd.s32 %v3754, 16
      %v3771 = vsel %vm3763, %v3767, %v3733
      %v3772 = vsel %vm3764, %v3768, %v3740
      %v3773 = vsel %vm3765, %v3769, %v3747
      %v3774 = vsel %vm3766, %v3770, %v3754
      %vm3775 = vcmp.eq.s32.totalorder %v3771, 0
      %vm3776 = vcmp.eq.s32.totalorder %v3772, 0
      %vm3777 = vcmp.eq.s32.totalorder %v3773, 0
      %vm3778 = vcmp.eq.s32.totalorder %v3774, 0
      %v3779 = vsel %vm3775, 1, 0
      %v3780 = vsel %vm3776, 1, 0
      %v3781 = vsel %vm3777, 1, 0
      %v3782 = vsel %vm3778, 1, 0
      %vm3783 = vcmp.eq.s32.totalorder %v3779, 1
      %vm3784 = vcmp.eq.s32.totalorder %v3780, 1
      %vm3785 = vcmp.eq.s32.totalorder %v3781, 1
      %vm3786 = vcmp.eq.s32.totalorder %v3782, 1
      %v3787 = vsel %vm3783, 0.0, %v3718
      %v3788 = vsel %vm3784, 0.0, %v3717
      %v3789 = vsel %vm3785, 0.0, %v3716
      %v3790 = vsel %vm3786, 0.0, %v3715
      %vm3791 = vcmp.eq.s32.totalorder %v3771, 15
      %vm3792 = vcmp.eq.s32.totalorder %v3772, 15
      %vm3793 = vcmp.eq.s32.totalorder %v3773, 15
      %vm3794 = vcmp.eq.s32.totalorder %v3774, 15
      %v3795 = vsel %vm3791, 1, 0
      %v3796 = vsel %vm3792, 1, 0
      %v3797 = vsel %vm3793, 1, 0
      %v3798 = vsel %vm3794, 1, 0
      %vm3799 = vcmp.eq.s32.totalorder %v3795, 1
      %vm3800 = vcmp.eq.s32.totalorder %v3796, 1
      %vm3801 = vcmp.eq.s32.totalorder %v3797, 1
      %vm3802 = vcmp.eq.s32.totalorder %v3798, 1
      %v3803 = vsel %vm3799, 0.0, %v3725
      %v3804 = vsel %vm3800, 0.0, %v3724
      %v3805 = vsel %vm3801, 0.0, %v3723
      %v3806 = vsel %vm3802, 0.0, %v3726
      %v3807 = vpack.c.bf16 %v3788, %v3787
      %v3808 = vpack.c.bf16 %v3790, %v3789
      %v3809 = vpack.c.bf16 %v3429, %v3429
      %v3810 = vpack.c.bf16 %v3436, %v3436
      %v3811 = vpack.c.bf16 %v3443, %v3443
      %v3812 = vpack.c.bf16 %v3450, %v3450
      %v3813 = vpack.c.bf16 %v3457, %v3457
      %v3814 = vpack.c.bf16 %v3464, %v3464
      %v3815 = vpack.c.bf16 %v3471, %v3471
      %v3816 = vpack.c.bf16 %v3478, %v3478
      %v3817 = vpack.c.bf16 %v3485, %v3485
      %v3818 = vpack.c.bf16 %v3492, %v3492
      %v3819 = vpack.c.bf16 %v3499, %v3499
      %v3820 = vpack.c.bf16 %v3506, %v3506
      %v3821 = vpack.c.bf16 %v3513, %v3513
      %v3822 = vpack.c.bf16 %v3520, %v3520
      %v3823 = vpack.c.bf16 %v3527, %v3527
      %v3824 = vpack.c.bf16 %v3534, %v3534
      %v3825 = vpack.c.bf16 %v3541, %v3541
      %v3826 = vpack.c.bf16 %v3548, %v3548
      %v3827 = vpack.c.bf16 %v3555, %v3555
      %v3828 = vpack.c.bf16 %v3562, %v3562
      %v3829 = vpack.c.bf16 %v3569, %v3569
      %v3830 = vpack.c.bf16 %v3576, %v3576
      %v3831 = vpack.c.bf16 %v3583, %v3583
      %v3832 = vpack.c.bf16 %v3590, %v3590
      %v3833 = vpack.c.bf16 %v3597, %v3597
      %v3834 = vpack.c.bf16 %v3604, %v3604
      %v3835 = vpack.c.bf16 %v3611, %v3611
      %v3836 = vpack.c.bf16 %v3618, %v3618
      %v3837 = vpack.c.bf16 %v3625, %v3625
      %v3838 = vpack.c.bf16 %v3632, %v3632
      %v3839 = vpack.c.bf16 %v3639, %v3639
      %v3840 = vpack.c.bf16 %v3646, %v3646
      %v3841 = vpack.c.bf16 %v3804, %v3803
      %v3842 = vpack.c.bf16 %v3806, %v3805
      %v3843 = vld [vmem:[%s12] sm:$0xff]
      %v3844 = vld [vmem:[%s12 + $0x8] sm:$0xff]
      %v3845 = vld [vmem:[%s12 + $0x10] sm:$0xff]
      %v3846 = vld [vmem:[%s12 + $0x18] sm:$0xff]
      %v3847 = vld [vmem:[%s12 + $0x20] sm:$0xff]
      %v3848 = vld [vmem:[%s12 + $0x28] sm:$0xff]
      %v3849 = vld [vmem:[%s12 + $0x30] sm:$0xff]
      %v3850 = vld [vmem:[%s12 + $0x38] sm:$0xff]
      %v3851 = vld [vmem:[%s12 + $0x40] sm:$0xff]
      %v3852 = vld [vmem:[%s12 + $0x48] sm:$0xff]
      %v3853 = vld [vmem:[%s12 + $0x50] sm:$0xff]
      %v3854 = vld [vmem:[%s12 + $0x58] sm:$0xff]
      %v3855 = vld [vmem:[%s12 + $0x60] sm:$0xff]
      %v3856 = vld [vmem:[%s12 + $0x68] sm:$0xff]
      %v3857 = vld [vmem:[%s12 + $0x70] sm:$0xff]
      %v3858 = vld [vmem:[%s12 + $0x78] sm:$0xff]
      %v3859 = vld [vmem:[%s11] sm:$0xff]
      %v3860 = vld [vmem:[%s11 + $0x8] sm:$0xff]
      %v3861 = vld [vmem:[%s11 + $0x10] sm:$0xff]
      %v3862 = vld [vmem:[%s11 + $0x18] sm:$0xff]
      %v3863 = vld [vmem:[%s11 + $0x20] sm:$0xff]
      %v3864 = vld [vmem:[%s11 + $0x28] sm:$0xff]
      %v3865 = vld [vmem:[%s11 + $0x30] sm:$0xff]
      %v3866 = vld [vmem:[%s11 + $0x38] sm:$0xff]
      %v3867 = vld [vmem:[%s11 + $0x40] sm:$0xff]
      %v3868 = vld [vmem:[%s11 + $0x48] sm:$0xff]
      %v3869 = vld [vmem:[%s11 + $0x50] sm:$0xff]
      %v3870 = vld [vmem:[%s11 + $0x58] sm:$0xff]
      %v3871 = vld [vmem:[%s11 + $0x60] sm:$0xff]
      %v3872 = vld [vmem:[%s11 + $0x68] sm:$0xff]
      %v3873 = vld [vmem:[%s11 + $0x70] sm:$0xff]
      %v3874 = vld [vmem:[%s11 + $0x78] sm:$0xff]
      %v3891 = vunpack.c.l.b16 %v3859
      %v3892 = vunpack.c.h.b16 %v3859
      %v3893 = vunpack.c.l.b16 %v3860
      %v3894 = vunpack.c.h.b16 %v3860
      %v3895 = vunpack.c.l.b16 %v3861
      %v3896 = vunpack.c.h.b16 %v3861
      %v3897 = vunpack.c.l.b16 %v3862
      %v3898 = vunpack.c.h.b16 %v3862
      %v3899 = vunpack.c.l.b16 %v3863
      %v3900 = vunpack.c.h.b16 %v3863
      %v3901 = vunpack.c.l.b16 %v3864
      %v3902 = vunpack.c.h.b16 %v3864
      %v3903 = vunpack.c.l.b16 %v3865
      %v3904 = vunpack.c.h.b16 %v3865
      %v3905 = vunpack.c.l.b16 %v3866
      %v3906 = vunpack.c.h.b16 %v3866
      %v3907 = vunpack.c.l.b16 %v3867
      %v3908 = vunpack.c.h.b16 %v3867
      %v3909 = vunpack.c.l.b16 %v3868
      %v3910 = vunpack.c.h.b16 %v3868
      %v3911 = vunpack.c.l.b16 %v3869
      %v3912 = vunpack.c.h.b16 %v3869
      %v3913 = vunpack.c.l.b16 %v3870
      %v3914 = vunpack.c.h.b16 %v3870
      %v3915 = vunpack.c.l.b16 %v3871
      %v3916 = vunpack.c.h.b16 %v3871
      %v3917 = vunpack.c.l.b16 %v3872
      %v3918 = vunpack.c.h.b16 %v3872
      %v3919 = vunpack.c.l.b16 %v3873
      %v3920 = vunpack.c.h.b16 %v3873
      %v3921 = vunpack.c.l.b16 %v3874
      %v3922 = vunpack.c.h.b16 %v3874
      %v3923 = vpack.c.b16 %v3893, %v3891
      %v3924 = vpack.c.b16 %v3894, %v3892
      %v3925 = vpack.c.b16 %v3897, %v3895
      %v3926 = vpack.c.b16 %v3898, %v3896
      %v3927 = vpack.c.b16 %v3901, %v3899
      %v3928 = vpack.c.b16 %v3902, %v3900
      %v3929 = vpack.c.b16 %v3905, %v3903
      %v3930 = vpack.c.b16 %v3906, %v3904
      %v3931 = vpack.c.b16 %v3909, %v3907
      %v3932 = vpack.c.b16 %v3910, %v3908
      %v3933 = vpack.c.b16 %v3913, %v3911
      %v3934 = vpack.c.b16 %v3914, %v3912
      %v3935 = vpack.c.b16 %v3917, %v3915
      %v3936 = vpack.c.b16 %v3918, %v3916
      %v3937 = vpack.c.b16 %v3921, %v3919
      %v3938 = vpack.c.b16 %v3922, %v3920
      %3955 = vmatpush.bf16.msra.mxu0 %v3937
      %3956 = vmatpush.bf16.msra.mxu0 %v3935
      %3957 = vmatpush.bf16.msra.mxu0 %v3933
      %3958 = vmatpush.bf16.msra.mxu0 %v3931
      %3959 = vmatpush.bf16.msra.mxu0 %v3929
      %3960 = vmatpush.bf16.msra.mxu0 %v3927
      %3961 = vmatpush.bf16.msra.mxu0 %v3925
      %3962 = vmatpush.bf16.msra.mxu0 %v3923
      %3963 = vmatmul.bf16.gmra.mxu0 %v3807
      %v3964 = vpop.f32.mrf.mxu0
      %v3965 = vadd.f32 0.0, %v3964
      %v3966 = vpop.f32.mrf.mxu0
      %v3967 = vadd.f32 0.0, %v3966
      %3968 = vmatmul.bf16.gmra.mxu0 %v3808
      %v3969 = vpop.f32.mrf.mxu0
      %v3970 = vadd.f32 0.0, %v3969
      %v3971 = vpop.f32.mrf.mxu0
      %v3972 = vadd.f32 0.0, %v3971
      %3973 = vdwg.mxu0
      %3974 = vmatpush.bf16.msra.mxu0 %v3938
      %3975 = vmatpush.bf16.msra.mxu0 %v3936
      %3976 = vmatpush.bf16.msra.mxu0 %v3934
      %3977 = vmatpush.bf16.msra.mxu0 %v3932
      %3978 = vmatpush.bf16.msra.mxu0 %v3930
      %3979 = vmatpush.bf16.msra.mxu0 %v3928
      %3980 = vmatpush.bf16.msra.mxu0 %v3926
      %3981 = vmatpush.bf16.msra.mxu0 %v3924
      %3982 = vmatmul.bf16.gmra.mxu0 %v3807
      %v3983 = vpop.f32.mrf.mxu0
      %v3984 = vadd.f32 0.0, %v3983
      %v3985 = vpop.f32.mrf.mxu0
      %v3986 = vadd.f32 0.0, %v3985
      %3987 = vmatmul.bf16.gmra.mxu0 %v3808
      %v3988 = vpop.f32.mrf.mxu0
      %v3989 = vadd.f32 0.0, %v3988
      %v3990 = vpop.f32.mrf.mxu0
      %v3991 = vadd.f32 0.0, %v3990
      %3992 = vdwg.mxu0
      %v4025 = vunpack.c.l.b16 %v3809
      %v4026 = vunpack.c.l.b16 %v3810
      %v4027 = vunpack.c.l.b16 %v3811
      %v4028 = vunpack.c.l.b16 %v3812
      %v4029 = vunpack.c.l.b16 %v3813
      %v4030 = vunpack.c.l.b16 %v3814
      %v4031 = vunpack.c.l.b16 %v3815
      %v4032 = vunpack.c.l.b16 %v3816
      %v4033 = vunpack.c.l.b16 %v3817
      %v4034 = vunpack.c.l.b16 %v3818
      %v4035 = vunpack.c.l.b16 %v3819
      %v4036 = vunpack.c.l.b16 %v3820
      %v4037 = vunpack.c.l.b16 %v3821
      %v4038 = vunpack.c.l.b16 %v3822
      %v4039 = vunpack.c.l.b16 %v3823
      %v4040 = vunpack.c.l.b16 %v3824
      %v4041 = vunpack.c.l.b16 %v3825
      %v4042 = vunpack.c.l.b16 %v3826
      %v4043 = vunpack.c.l.b16 %v3827
      %v4044 = vunpack.c.l.b16 %v3828
      %v4045 = vunpack.c.l.b16 %v3829
      %v4046 = vunpack.c.l.b16 %v3830
      %v4047 = vunpack.c.l.b16 %v3831
      %v4048 = vunpack.c.l.b16 %v3832
      %v4049 = vunpack.c.l.b16 %v3833
      %v4050 = vunpack.c.l.b16 %v3834
      %v4051 = vunpack.c.l.b16 %v3835
      %v4052 = vunpack.c.l.b16 %v3836
      %v4053 = vunpack.c.l.b16 %v3837
      %v4054 = vunpack.c.l.b16 %v3838
      %v4055 = vunpack.c.l.b16 %v3839
      %v4056 = vunpack.c.l.b16 %v3840
      %v4057 = vsel %vm2596, %v4026, %v4025
      %v4058 = vsel %vm2598, %v4027, %v4057
      %v4059 = vsel %vm2600, %v4028, %v4058
      %v4060 = vsel %vm2602, %v4029, %v4059
      %v4061 = vsel %vm2604, %v4030, %v4060
      %v4062 = vsel %vm2606, %v4031, %v4061
      %v4063 = vsel %vm2608, %v4032, %v4062
      %v4064 = vsel %vm2596, %v4034, %v4033
      %v4065 = vsel %vm2598, %v4035, %v4064
      %v4066 = vsel %vm2600, %v4036, %v4065
      %v4067 = vsel %vm2602, %v4037, %v4066
      %v4068 = vsel %vm2604, %v4038, %v4067
      %v4069 = vsel %vm2606, %v4039, %v4068
      %v4070 = vsel %vm2608, %v4040, %v4069
      %v4071 = vsel %vm2596, %v4042, %v4041
      %v4072 = vsel %vm2598, %v4043, %v4071
      %v4073 = vsel %vm2600, %v4044, %v4072
      %v4074 = vsel %vm2602, %v4045, %v4073
      %v4075 = vsel %vm2604, %v4046, %v4074
      %v4076 = vsel %vm2606, %v4047, %v4075
      %v4077 = vsel %vm2608, %v4048, %v4076
      %v4078 = vsel %vm2596, %v4050, %v4049
      %v4079 = vsel %vm2598, %v4051, %v4078
      %v4080 = vsel %vm2600, %v4052, %v4079
      %v4081 = vsel %vm2602, %v4053, %v4080
      %v4082 = vsel %vm2604, %v4054, %v4081
      %v4083 = vsel %vm2606, %v4055, %v4082
      %v4084 = vsel %vm2608, %v4056, %v4083
      %v4085 = vpack.c.b16 %v4070, %v4063
      %v4086 = vpack.c.b16 %v4084, %v4077
      %v4105 = vunpack.c.l.b16 %v3843
      %v4106 = vunpack.c.h.b16 %v3843
      %v4107 = vunpack.c.l.b16 %v3844
      %v4108 = vunpack.c.h.b16 %v3844
      %v4109 = vunpack.c.l.b16 %v3845
      %v4110 = vunpack.c.h.b16 %v3845
      %v4111 = vunpack.c.l.b16 %v3846
      %v4112 = vunpack.c.h.b16 %v3846
      %v4113 = vunpack.c.l.b16 %v3847
      %v4114 = vunpack.c.h.b16 %v3847
      %v4115 = vunpack.c.l.b16 %v3848
      %v4116 = vunpack.c.h.b16 %v3848
      %v4117 = vunpack.c.l.b16 %v3849
      %v4118 = vunpack.c.h.b16 %v3849
      %v4119 = vunpack.c.l.b16 %v3850
      %v4120 = vunpack.c.h.b16 %v3850
      %v4121 = vunpack.c.l.b16 %v3851
      %v4122 = vunpack.c.h.b16 %v3851
      %v4123 = vunpack.c.l.b16 %v3852
      %v4124 = vunpack.c.h.b16 %v3852
      %v4125 = vunpack.c.l.b16 %v3853
      %v4126 = vunpack.c.h.b16 %v3853
      %v4127 = vunpack.c.l.b16 %v3854
      %v4128 = vunpack.c.h.b16 %v3854
      %v4129 = vunpack.c.l.b16 %v3855
      %v4130 = vunpack.c.h.b16 %v3855
      %v4131 = vunpack.c.l.b16 %v3856
      %v4132 = vunpack.c.h.b16 %v3856
      %v4133 = vunpack.c.l.b16 %v3857
      %v4134 = vunpack.c.h.b16 %v3857
      %v4135 = vunpack.c.l.b16 %v3858
      %v4136 = vunpack.c.h.b16 %v3858
      %v4137 = vpack.c.b16 %v4107, %v4105
      %v4138 = vpack.c.b16 %v4108, %v4106
      %v4139 = vpack.c.b16 %v4111, %v4109
      %v4140 = vpack.c.b16 %v4112, %v4110
      %v4141 = vpack.c.b16 %v4115, %v4113
      %v4142 = vpack.c.b16 %v4116, %v4114
      %v4143 = vpack.c.b16 %v4119, %v4117
      %v4144 = vpack.c.b16 %v4120, %v4118
      %v4145 = vpack.c.b16 %v4123, %v4121
      %v4146 = vpack.c.b16 %v4124, %v4122
      %v4147 = vpack.c.b16 %v4127, %v4125
      %v4148 = vpack.c.b16 %v4128, %v4126
      %v4149 = vpack.c.b16 %v4131, %v4129
      %v4150 = vpack.c.b16 %v4132, %v4130
      %v4151 = vpack.c.b16 %v4135, %v4133
      %v4152 = vpack.c.b16 %v4136, %v4134
      %4169 = vmatpush.bf16.msra.mxu0 %v4151
      %4170 = vmatpush.bf16.msra.mxu0 %v4149
      %4171 = vmatpush.bf16.msra.mxu0 %v4147
      %4172 = vmatpush.bf16.msra.mxu0 %v4145
      %4173 = vmatpush.bf16.msra.mxu0 %v4143
      %4174 = vmatpush.bf16.msra.mxu0 %v4141
      %4175 = vmatpush.bf16.msra.mxu0 %v4139
      %4176 = vmatpush.bf16.msra.mxu0 %v4137
      %4177 = vmatmul.bf16.gmra.mxu0 %v4085
      %v4178 = vpop.f32.mrf.mxu0
      %v4179 = vadd.f32 %v3965, %v4178
      %v4180 = vpop.f32.mrf.mxu0
      %v4181 = vadd.f32 %v3967, %v4180
      %4182 = vmatmul.bf16.gmra.mxu0 %v4086
      %v4183 = vpop.f32.mrf.mxu0
      %v4184 = vadd.f32 %v3970, %v4183
      %v4185 = vpop.f32.mrf.mxu0
      %v4186 = vadd.f32 %v3972, %v4185
      %4187 = vdwg.mxu0
      %4188 = vmatpush.bf16.msra.mxu0 %v4152
      %4189 = vmatpush.bf16.msra.mxu0 %v4150
      %4190 = vmatpush.bf16.msra.mxu0 %v4148
      %4191 = vmatpush.bf16.msra.mxu0 %v4146
      %4192 = vmatpush.bf16.msra.mxu0 %v4144
      %4193 = vmatpush.bf16.msra.mxu0 %v4142
      %4194 = vmatpush.bf16.msra.mxu0 %v4140
      %4195 = vmatpush.bf16.msra.mxu0 %v4138
      %4196 = vmatmul.bf16.gmra.mxu0 %v4085
      %v4197 = vpop.f32.mrf.mxu0
      %v4198 = vadd.f32 %v3984, %v4197
      %v4199 = vpop.f32.mrf.mxu0
      %v4200 = vadd.f32 %v3986, %v4199
      %4201 = vmatmul.bf16.gmra.mxu0 %v4086
      %v4202 = vpop.f32.mrf.mxu0
      %v4203 = vadd.f32 %v3989, %v4202
      %v4204 = vpop.f32.mrf.mxu0
      %v4205 = vadd.f32 %v3991, %v4204
      %4206 = vdwg.mxu0
      %v4207 = vld [vmem:[%s13] sm:$0xff]
      %v4208 = vld [vmem:[%s13 + $0x8] sm:$0xff]
      %v4209 = vld [vmem:[%s13 + $0x10] sm:$0xff]
      %v4210 = vld [vmem:[%s13 + $0x18] sm:$0xff]
      %v4211 = vld [vmem:[%s13 + $0x20] sm:$0xff]
      %v4212 = vld [vmem:[%s13 + $0x28] sm:$0xff]
      %v4213 = vld [vmem:[%s13 + $0x30] sm:$0xff]
      %v4214 = vld [vmem:[%s13 + $0x38] sm:$0xff]
      %v4215 = vld [vmem:[%s13 + $0x40] sm:$0xff]
      %v4216 = vld [vmem:[%s13 + $0x48] sm:$0xff]
      %v4217 = vld [vmem:[%s13 + $0x50] sm:$0xff]
      %v4218 = vld [vmem:[%s13 + $0x58] sm:$0xff]
      %v4219 = vld [vmem:[%s13 + $0x60] sm:$0xff]
      %v4220 = vld [vmem:[%s13 + $0x68] sm:$0xff]
      %v4221 = vld [vmem:[%s13 + $0x70] sm:$0xff]
      %v4222 = vld [vmem:[%s13 + $0x78] sm:$0xff]
      %v4239 = vunpack.c.l.b16 %v4207
      %v4240 = vunpack.c.h.b16 %v4207
      %v4241 = vunpack.c.l.b16 %v4208
      %v4242 = vunpack.c.h.b16 %v4208
      %v4243 = vunpack.c.l.b16 %v4209
      %v4244 = vunpack.c.h.b16 %v4209
      %v4245 = vunpack.c.l.b16 %v4210
      %v4246 = vunpack.c.h.b16 %v4210
      %v4247 = vunpack.c.l.b16 %v4211
      %v4248 = vunpack.c.h.b16 %v4211
      %v4249 = vunpack.c.l.b16 %v4212
      %v4250 = vunpack.c.h.b16 %v4212
      %v4251 = vunpack.c.l.b16 %v4213
      %v4252 = vunpack.c.h.b16 %v4213
      %v4253 = vunpack.c.l.b16 %v4214
      %v4254 = vunpack.c.h.b16 %v4214
      %v4255 = vunpack.c.l.b16 %v4215
      %v4256 = vunpack.c.h.b16 %v4215
      %v4257 = vunpack.c.l.b16 %v4216
      %v4258 = vunpack.c.h.b16 %v4216
      %v4259 = vunpack.c.l.b16 %v4217
      %v4260 = vunpack.c.h.b16 %v4217
      %v4261 = vunpack.c.l.b16 %v4218
      %v4262 = vunpack.c.h.b16 %v4218
      %v4263 = vunpack.c.l.b16 %v4219
      %v4264 = vunpack.c.h.b16 %v4219
      %v4265 = vunpack.c.l.b16 %v4220
      %v4266 = vunpack.c.h.b16 %v4220
      %v4267 = vunpack.c.l.b16 %v4221
      %v4268 = vunpack.c.h.b16 %v4221
      %v4269 = vunpack.c.l.b16 %v4222
      %v4270 = vunpack.c.h.b16 %v4222
      %v4271 = vpack.c.b16 %v4241, %v4239
      %v4272 = vpack.c.b16 %v4242, %v4240
      %v4273 = vpack.c.b16 %v4245, %v4243
      %v4274 = vpack.c.b16 %v4246, %v4244
      %v4275 = vpack.c.b16 %v4249, %v4247
      %v4276 = vpack.c.b16 %v4250, %v4248
      %v4277 = vpack.c.b16 %v4253, %v4251
      %v4278 = vpack.c.b16 %v4254, %v4252
      %v4279 = vpack.c.b16 %v4257, %v4255
      %v4280 = vpack.c.b16 %v4258, %v4256
      %v4281 = vpack.c.b16 %v4261, %v4259
      %v4282 = vpack.c.b16 %v4262, %v4260
      %v4283 = vpack.c.b16 %v4265, %v4263
      %v4284 = vpack.c.b16 %v4266, %v4264
      %v4285 = vpack.c.b16 %v4269, %v4267
      %v4286 = vpack.c.b16 %v4270, %v4268
      %4303 = vmatpush.bf16.msra.mxu0 %v4285
      %4304 = vmatpush.bf16.msra.mxu0 %v4283
      %4305 = vmatpush.bf16.msra.mxu0 %v4281
      %4306 = vmatpush.bf16.msra.mxu0 %v4279
      %4307 = vmatpush.bf16.msra.mxu0 %v4277
      %4308 = vmatpush.bf16.msra.mxu0 %v4275
      %4309 = vmatpush.bf16.msra.mxu0 %v4273
      %4310 = vmatpush.bf16.msra.mxu0 %v4271
      %4311 = vmatmul.bf16.gmra.mxu0 %v3841
      %v4312 = vpop.f32.mrf.mxu0
      %v4313 = vadd.f32 0.0, %v4312
      %v4314 = vpop.f32.mrf.mxu0
      %v4315 = vadd.f32 0.0, %v4314
      %4316 = vmatmul.bf16.gmra.mxu0 %v3842
      %v4317 = vpop.f32.mrf.mxu0
      %v4318 = vadd.f32 0.0, %v4317
      %v4319 = vpop.f32.mrf.mxu0
      %v4320 = vadd.f32 0.0, %v4319
      %4321 = vdwg.mxu0
      %4322 = vmatpush.bf16.msra.mxu0 %v4286
      %4323 = vmatpush.bf16.msra.mxu0 %v4284
      %4324 = vmatpush.bf16.msra.mxu0 %v4282
      %4325 = vmatpush.bf16.msra.mxu0 %v4280
      %4326 = vmatpush.bf16.msra.mxu0 %v4278
      %4327 = vmatpush.bf16.msra.mxu0 %v4276
      %4328 = vmatpush.bf16.msra.mxu0 %v4274
      %4329 = vmatpush.bf16.msra.mxu0 %v4272
      %4330 = vmatmul.bf16.gmra.mxu0 %v3841
      %v4331 = vpop.f32.mrf.mxu0
      %v4332 = vadd.f32 0.0, %v4331
      %v4333 = vpop.f32.mrf.mxu0
      %v4334 = vadd.f32 0.0, %v4333
      %4335 = vmatmul.bf16.gmra.mxu0 %v3842
      %v4336 = vpop.f32.mrf.mxu0
      %v4337 = vadd.f32 0.0, %v4336
      %v4338 = vpop.f32.mrf.mxu0
      %v4339 = vadd.f32 0.0, %v4338
      %4340 = vdwg.mxu0
      %v4341 = vadd.f32 %v4179, %v4313
      %v4342 = vadd.f32 %v4198, %v4332
      %v4343 = vadd.f32 %v4181, %v4315
      %v4344 = vadd.f32 %v4200, %v4334
      %v4345 = vadd.f32 %v4184, %v4318
      %v4346 = vadd.f32 %v4203, %v4337
      %v4347 = vadd.f32 %v4186, %v4320
      %v4348 = vadd.f32 %v4205, %v4339
      %v4349 = vld [vmem:[%s14] sm:$0x3]
      %v4351 = vperm.slane %v4349, 0
      %v4352 = vperm.slane %v4349, 1
      %v4355 = vadd.f32 %v4341, %v4351
      %v4356 = vadd.f32 %v4342, %v4352
      %v4357 = vadd.f32 %v4343, %v4351
      %v4358 = vadd.f32 %v4344, %v4352
      %v4359 = vadd.f32 %v4345, %v4351
      %v4360 = vadd.f32 %v4346, %v4352
      %v4361 = vadd.f32 %v4347, %v4351
      %v4362 = vadd.f32 %v4348, %v4352
      %v4363 = vmax.f32 %v4355, 0.0
      %v4364 = vmax.f32 %v4356, 0.0
      %v4365 = vmax.f32 %v4357, 0.0
      %v4366 = vmax.f32 %v4358, 0.0
      %v4367 = vmax.f32 %v4359, 0.0
      %v4368 = vmax.f32 %v4360, 0.0
      %v4369 = vmax.f32 %v4361, 0.0
      %v4370 = vmax.f32 %v4362, 0.0
      %v4379 = vrot.slane %v4364, 6
      %v4380 = vrot.slane %v4366, 6
      %v4381 = vrot.slane %v4368, 6
      %v4382 = vrot.slane %v4370, 6
      %v4383 = vsel %vm3422, %v4363, %v4379
      %vm4384 = vcmask 1043458
      %v4385 = vsel %vm4384, %v4363, %v4379
      %v4386 = vrot.slane %v4385, 2
      %vm4387 = vcmask 1045508
      %v4388 = vsel %vm4387, %v4363, %v4379
      %v4389 = vrot.slane %v4388, 4
      %vm4390 = vcmask 1045504
      %v4391 = vsel %vm4390, %v4379, %v4363
      %v4392 = vrot.slane %v4391, 6
      %v4393 = vsel %vm3422, %v4365, %v4380
      %v4394 = vsel %vm4384, %v4365, %v4380
      %v4395 = vrot.slane %v4394, 2
      %v4396 = vsel %vm4387, %v4365, %v4380
      %v4397 = vrot.slane %v4396, 4
      %v4398 = vsel %vm4390, %v4380, %v4365
      %v4399 = vrot.slane %v4398, 6
      %v4400 = vsel %vm3422, %v4367, %v4381
      %v4401 = vsel %vm4384, %v4367, %v4381
      %v4402 = vrot.slane %v4401, 2
      %v4403 = vsel %vm4387, %v4367, %v4381
      %v4404 = vrot.slane %v4403, 4
      %v4405 = vsel %vm4390, %v4381, %v4367
      %v4406 = vrot.slane %v4405, 6
      %v4407 = vsel %vm3422, %v4369, %v4382
      %v4408 = vsel %vm4384, %v4369, %v4382
      %v4409 = vrot.slane %v4408, 2
      %v4410 = vsel %vm4387, %v4369, %v4382
      %v4411 = vrot.slane %v4410, 4
      %v4412 = vsel %vm4390, %v4382, %v4369
      %v4413 = vrot.slane %v4412, 6
      %4414 = vst [vmem:[#allocation1] ss:$4 sm:$0xff] %v4383
      %v4415 = vld.sshfl [vmem:[#allocation1] sm:$0xff pattern:$0x73625140]
      %v4416 = vld.sshfl [vmem:[#allocation1 + $0x8] sm:$0xff pattern:$0x73625140]
      %s4417 = scalar_lea.vmem [#allocation1], 32
      %4418 = vst [vmem:[%s4417] ss:$4 sm:$0xff] %v4386
      %v4419 = vld.sshfl [vmem:[#allocation1 + $0x20] sm:$0xff pattern:$0x73625140]
      %v4420 = vld.sshfl [vmem:[#allocation1 + $0x28] sm:$0xff pattern:$0x73625140]
      %4421 = vst [vmem:[#allocation1] ss:$4 sm:$0xff] %v4389
      %v4422 = vld.sshfl [vmem:[#allocation1] sm:$0xff pattern:$0x73625140]
      %v4423 = vld.sshfl [vmem:[#allocation1 + $0x8] sm:$0xff pattern:$0x73625140]
      %4424 = vst [vmem:[%s4417] ss:$4 sm:$0xff] %v4392
      %v4425 = vld.sshfl [vmem:[#allocation1 + $0x20] sm:$0xff pattern:$0x73625140]
      %v4426 = vld.sshfl [vmem:[#allocation1 + $0x28] sm:$0xff pattern:$0x73625140]
      %4427 = vst [vmem:[#allocation1] ss:$4 sm:$0xff] %v4393
      %v4428 = vld.sshfl [vmem:[#allocation1] sm:$0xff pattern:$0x73625140]
      %v4429 = vld.sshfl [vmem:[#allocation1 + $0x8] sm:$0xff pattern:$0x73625140]
      %4430 = vst [vmem:[%s4417] ss:$4 sm:$0xff] %v4395
      %v4431 = vld.sshfl [vmem:[#allocation1 + $0x20] sm:$0xff pattern:$0x73625140]
      %v4432 = vld.sshfl [vmem:[#allocation1 + $0x28] sm:$0xff pattern:$0x73625140]
      %4433 = vst [vmem:[#allocation1] ss:$4 sm:$0xff] %v4397
      %v4434 = vld.sshfl [vmem:[#allocation1] sm:$0xff pattern:$0x73625140]
      %v4435 = vld.sshfl [vmem:[#allocation1 + $0x8] sm:$0xff pattern:$0x73625140]
      %4436 = vst [vmem:[%s4417] ss:$4 sm:$0xff] %v4399
      %v4437 = vld.sshfl [vmem:[#allocation1 + $0x20] sm:$0xff pattern:$0x73625140]
      %v4438 = vld.sshfl [vmem:[#allocation1 + $0x28] sm:$0xff pattern:$0x73625140]
      %4439 = vst [vmem:[#allocation1] ss:$4 sm:$0xff] %v4400
      %v4440 = vld.sshfl [vmem:[#allocation1] sm:$0xff pattern:$0x73625140]
      %v4441 = vld.sshfl [vmem:[#allocation1 + $0x8] sm:$0xff pattern:$0x73625140]
      %4442 = vst [vmem:[%s4417] ss:$4 sm:$0xff] %v4402
      %v4443 = vld.sshfl [vmem:[#allocation1 + $0x20] sm:$0xff pattern:$0x73625140]
      %v4444 = vld.sshfl [vmem:[#allocation1 + $0x28] sm:$0xff pattern:$0x73625140]
      %4445 = vst [vmem:[#allocation1] ss:$4 sm:$0xff] %v4404
      %v4446 = vld.sshfl [vmem:[#allocation1] sm:$0xff pattern:$0x73625140]
      %v4447 = vld.sshfl [vmem:[#allocation1 + $0x8] sm:$0xff pattern:$0x73625140]
      %4448 = vst [vmem:[%s4417] ss:$4 sm:$0xff] %v4406
      %v4449 = vld.sshfl [vmem:[#allocation1 + $0x20] sm:$0xff pattern:$0x73625140]
      %v4450 = vld.sshfl [vmem:[#allocation1 + $0x28] sm:$0xff pattern:$0x73625140]
      %4451 = vst [vmem:[#allocation1] ss:$4 sm:$0xff] %v4407
      %v4452 = vld.sshfl [vmem:[#allocation1] sm:$0xff pattern:$0x73625140]
      %v4453 = vld.sshfl [vmem:[#allocation1 + $0x8] sm:$0xff pattern:$0x73625140]
      %4454 = vst [vmem:[%s4417] ss:$4 sm:$0xff] %v4409
      %v4455 = vld.sshfl [vmem:[#allocation1 + $0x20] sm:$0xff pattern:$0x73625140]
      %v4456 = vld.sshfl [vmem:[#allocation1 + $0x28] sm:$0xff pattern:$0x73625140]
      %4457 = vst [vmem:[#allocation1] ss:$4 sm:$0xff] %v4411
      %v4458 = vld.sshfl [vmem:[#allocation1] sm:$0xff pattern:$0x73625140]
      %v4459 = vld.sshfl [vmem:[#allocation1 + $0x8] sm:$0xff pattern:$0x73625140]
      %4460 = vst [vmem:[%s4417] ss:$4 sm:$0xff] %v4413
      %v4461 = vld.sshfl [vmem:[#allocation1 + $0x20] sm:$0xff pattern:$0x73625140]
      %v4462 = vld.sshfl [vmem:[#allocation1 + $0x28] sm:$0xff pattern:$0x73625140]
      %v4495 = vsel %vm3422, %v4415, -inf
      %v4496 = vrot.slane %v4495, 4
      %v4497 = vmax.f32 %v4495, %v4496
      %v4498 = vrot.slane %v4497, 2
      %v4499 = vmax.f32 %v4497, %v4498
      %v4500 = vrot.slane %v4499, 1
      %v4501 = vmax.f32 %v4499, %v4500
      %v4502 = vsel %vm3422, %v4416, -inf
      %v4503 = vrot.slane %v4502, 4
      %v4504 = vmax.f32 %v4502, %v4503
      %v4505 = vrot.slane %v4504, 2
      %v4506 = vmax.f32 %v4504, %v4505
      %v4507 = vrot.slane %v4506, 1
      %v4508 = vmax.f32 %v4506, %v4507
      %v4509 = vsel %vm3422, %v4419, -inf
      %v4510 = vrot.slane %v4509, 4
      %v4511 = vmax.f32 %v4509, %v4510
      %v4512 = vrot.slane %v4511, 2
      %v4513 = vmax.f32 %v4511, %v4512
      %v4514 = vrot.slane %v4513, 1
      %v4515 = vmax.f32 %v4513, %v4514
      %v4516 = vsel %vm3422, %v4420, -inf
      %v4517 = vrot.slane %v4516, 4
      %v4518 = vmax.f32 %v4516, %v4517
      %v4519 = vrot.slane %v4518, 2
      %v4520 = vmax.f32 %v4518, %v4519
      %v4521 = vrot.slane %v4520, 1
      %v4522 = vmax.f32 %v4520, %v4521
      %v4523 = vsel %vm3422, %v4422, -inf
      %v4524 = vrot.slane %v4523, 4
      %v4525 = vmax.f32 %v4523, %v4524
      %v4526 = vrot.slane %v4525, 2
      %v4527 = vmax.f32 %v4525, %v4526
      %v4528 = vrot.slane %v4527, 1
      %v4529 = vmax.f32 %v4527, %v4528
      %v4530 = vsel %vm3422, %v4423, -inf
      %v4531 = vrot.slane %v4530, 4
      %v4532 = vmax.f32 %v4530, %v4531
      %v4533 = vrot.slane %v4532, 2
      %v4534 = vmax.f32 %v4532, %v4533
      %v4535 = vrot.slane %v4534, 1
      %v4536 = vmax.f32 %v4534, %v4535
      %v4537 = vsel %vm3422, %v4425, -inf
      %v4538 = vrot.slane %v4537, 4
      %v4539 = vmax.f32 %v4537, %v4538
      %v4540 = vrot.slane %v4539, 2
      %v4541 = vmax.f32 %v4539, %v4540
      %v4542 = vrot.slane %v4541, 1
      %v4543 = vmax.f32 %v4541, %v4542
      %v4544 = vsel %vm3422, %v4426, -inf
      %v4545 = vrot.slane %v4544, 4
      %v4546 = vmax.f32 %v4544, %v4545
      %v4547 = vrot.slane %v4546, 2
      %v4548 = vmax.f32 %v4546, %v4547
      %v4549 = vrot.slane %v4548, 1
      %v4550 = vmax.f32 %v4548, %v4549
      %v4551 = vsel %vm3422, %v4428, -inf
      %v4552 = vrot.slane %v4551, 4
      %v4553 = vmax.f32 %v4551, %v4552
      %v4554 = vrot.slane %v4553, 2
      %v4555 = vmax.f32 %v4553, %v4554
      %v4556 = vrot.slane %v4555, 1
      %v4557 = vmax.f32 %v4555, %v4556
      %v4558 = vsel %vm3422, %v4429, -inf
      %v4559 = vrot.slane %v4558, 4
      %v4560 = vmax.f32 %v4558, %v4559
      %v4561 = vrot.slane %v4560, 2
      %v4562 = vmax.f32 %v4560, %v4561
      %v4563 = vrot.slane %v4562, 1
      %v4564 = vmax.f32 %v4562, %v4563
      %v4565 = vsel %vm3422, %v4431, -inf
      %v4566 = vrot.slane %v4565, 4
      %v4567 = vmax.f32 %v4565, %v4566
      %v4568 = vrot.slane %v4567, 2
      %v4569 = vmax.f32 %v4567, %v4568
      %v4570 = vrot.slane %v4569, 1
      %v4571 = vmax.f32 %v4569, %v4570
      %v4572 = vsel %vm3422, %v4432, -inf
      %v4573 = vrot.slane %v4572, 4
      %v4574 = vmax.f32 %v4572, %v4573
      %v4575 = vrot.slane %v4574, 2
      %v4576 = vmax.f32 %v4574, %v4575
      %v4577 = vrot.slane %v4576, 1
      %v4578 = vmax.f32 %v4576, %v4577
      %v4579 = vsel %vm3422, %v4434, -inf
      %v4580 = vrot.slane %v4579, 4
      %v4581 = vmax.f32 %v4579, %v4580
      %v4582 = vrot.slane %v4581, 2
      %v4583 = vmax.f32 %v4581, %v4582
      %v4584 = vrot.slane %v4583, 1
      %v4585 = vmax.f32 %v4583, %v4584
      %v4586 = vsel %vm3422, %v4435, -inf
      %v4587 = vrot.slane %v4586, 4
      %v4588 = vmax.f32 %v4586, %v4587
      %v4589 = vrot.slane %v4588, 2
      %v4590 = vmax.f32 %v4588, %v4589
      %v4591 = vrot.slane %v4590, 1
      %v4592 = vmax.f32 %v4590, %v4591
      %v4593 = vsel %vm3422, %v4437, -inf
      %v4594 = vrot.slane %v4593, 4
      %v4595 = vmax.f32 %v4593, %v4594
      %v4596 = vrot.slane %v4595, 2
      %v4597 = vmax.f32 %v4595, %v4596
      %v4598 = vrot.slane %v4597, 1
      %v4599 = vmax.f32 %v4597, %v4598
      %v4600 = vsel %vm3422, %v4438, -inf
      %v4601 = vrot.slane %v4600, 4
      %v4602 = vmax.f32 %v4600, %v4601
      %v4603 = vrot.slane %v4602, 2
      %v4604 = vmax.f32 %v4602, %v4603
      %v4605 = vrot.slane %v4604, 1
      %v4606 = vmax.f32 %v4604, %v4605
      %v4607 = vsel %vm3422, %v4440, -inf
      %v4608 = vrot.slane %v4607, 4
      %v4609 = vmax.f32 %v4607, %v4608
      %v4610 = vrot.slane %v4609, 2
      %v4611 = vmax.f32 %v4609, %v4610
      %v4612 = vrot.slane %v4611, 1
      %v4613 = vmax.f32 %v4611, %v4612
      %v4614 = vsel %vm3422, %v4441, -inf
      %v4615 = vrot.slane %v4614, 4
      %v4616 = vmax.f32 %v4614, %v4615
      %v4617 = vrot.slane %v4616, 2
      %v4618 = vmax.f32 %v4616, %v4617
      %v4619 = vrot.slane %v4618, 1
      %v4620 = vmax.f32 %v4618, %v4619
      %v4621 = vsel %vm3422, %v4443, -inf
      %v4622 = vrot.slane %v4621, 4
      %v4623 = vmax.f32 %v4621, %v4622
      %v4624 = vrot.slane %v4623, 2
      %v4625 = vmax.f32 %v4623, %v4624
      %v4626 = vrot.slane %v4625, 1
      %v4627 = vmax.f32 %v4625, %v4626
      %v4628 = vsel %vm3422, %v4444, -inf
      %v4629 = vrot.slane %v4628, 4
      %v4630 = vmax.f32 %v4628, %v4629
      %v4631 = vrot.slane %v4630, 2
      %v4632 = vmax.f32 %v4630, %v4631
      %v4633 = vrot.slane %v4632, 1
      %v4634 = vmax.f32 %v4632, %v4633
      %v4635 = vsel %vm3422, %v4446, -inf
      %v4636 = vrot.slane %v4635, 4
      %v4637 = vmax.f32 %v4635, %v4636
      %v4638 = vrot.slane %v4637, 2
      %v4639 = vmax.f32 %v4637, %v4638
      %v4640 = vrot.slane %v4639, 1
      %v4641 = vmax.f32 %v4639, %v4640
      %v4642 = vsel %vm3422, %v4447, -inf
      %v4643 = vrot.slane %v4642, 4
      %v4644 = vmax.f32 %v4642, %v4643
      %v4645 = vrot.slane %v4644, 2
      %v4646 = vmax.f32 %v4644, %v4645
      %v4647 = vrot.slane %v4646, 1
      %v4648 = vmax.f32 %v4646, %v4647
      %v4649 = vsel %vm3422, %v4449, -inf
      %v4650 = vrot.slane %v4649, 4
      %v4651 = vmax.f32 %v4649, %v4650
      %v4652 = vrot.slane %v4651, 2
      %v4653 = vmax.f32 %v4651, %v4652
      %v4654 = vrot.slane %v4653, 1
      %v4655 = vmax.f32 %v4653, %v4654
      %v4656 = vsel %vm3422, %v4450, -inf
      %v4657 = vrot.slane %v4656, 4
      %v4658 = vmax.f32 %v4656, %v4657
      %v4659 = vrot.slane %v4658, 2
      %v4660 = vmax.f32 %v4658, %v4659
      %v4661 = vrot.slane %v4660, 1
      %v4662 = vmax.f32 %v4660, %v4661
      %v4663 = vsel %vm3422, %v4452, -inf
      %v4664 = vrot.slane %v4663, 4
      %v4665 = vmax.f32 %v4663, %v4664
      %v4666 = vrot.slane %v4665, 2
      %v4667 = vmax.f32 %v4665, %v4666
      %v4668 = vrot.slane %v4667, 1
      %v4669 = vmax.f32 %v4667, %v4668
      %v4670 = vsel %vm3422, %v4453, -inf
      %v4671 = vrot.slane %v4670, 4
      %v4672 = vmax.f32 %v4670, %v4671
      %v4673 = vrot.slane %v4672, 2
      %v4674 = vmax.f32 %v4672, %v4673
      %v4675 = vrot.slane %v4674, 1
      %v4676 = vmax.f32 %v4674, %v4675
      %v4677 = vsel %vm3422, %v4455, -inf
      %v4678 = vrot.slane %v4677, 4
      %v4679 = vmax.f32 %v4677, %v4678
      %v4680 = vrot.slane %v4679, 2
      %v4681 = vmax.f32 %v4679, %v4680
      %v4682 = vrot.slane %v4681, 1
      %v4683 = vmax.f32 %v4681, %v4682
      %v4684 = vsel %vm3422, %v4456, -inf
      %v4685 = vrot.slane %v4684, 4
      %v4686 = vmax.f32 %v4684, %v4685
      %v4687 = vrot.slane %v4686, 2
      %v4688 = vmax.f32 %v4686, %v4687
      %v4689 = vrot.slane %v4688, 1
      %v4690 = vmax.f32 %v4688, %v4689
      %v4691 = vsel %vm3422, %v4458, -inf
      %v4692 = vrot.slane %v4691, 4
      %v4693 = vmax.f32 %v4691, %v4692
      %v4694 = vrot.slane %v4693, 2
      %v4695 = vmax.f32 %v4693, %v4694
      %v4696 = vrot.slane %v4695, 1
      %v4697 = vmax.f32 %v4695, %v4696
      %v4698 = vsel %vm3422, %v4459, -inf
      %v4699 = vrot.slane %v4698, 4
      %v4700 = vmax.f32 %v4698, %v4699
      %v4701 = vrot.slane %v4700, 2
      %v4702 = vmax.f32 %v4700, %v4701
      %v4703 = vrot.slane %v4702, 1
      %v4704 = vmax.f32 %v4702, %v4703
      %v4705 = vsel %vm3422, %v4461, -inf
      %v4706 = vrot.slane %v4705, 4
      %v4707 = vmax.f32 %v4705, %v4706
      %v4708 = vrot.slane %v4707, 2
      %v4709 = vmax.f32 %v4707, %v4708
      %v4710 = vrot.slane %v4709, 1
      %v4711 = vmax.f32 %v4709, %v4710
      %v4712 = vsel %vm3422, %v4462, -inf
      %v4713 = vrot.slane %v4712, 4
      %v4714 = vmax.f32 %v4712, %v4713
      %v4715 = vrot.slane %v4714, 2
      %v4716 = vmax.f32 %v4714, %v4715
      %v4717 = vrot.slane %v4716, 1
      %v4718 = vmax.f32 %v4716, %v4717
      %v4751 = vsel %vm2596, %v4515, %v4501
      %v4752 = vsel %vm2598, %v4529, %v4751
      %v4753 = vsel %vm2600, %v4543, %v4752
      %v4754 = vsel %vm2602, %v4557, %v4753
      %v4755 = vsel %vm2604, %v4571, %v4754
      %v4756 = vsel %vm2606, %v4585, %v4755
      %v4757 = vsel %vm2608, %v4599, %v4756
      %v4758 = vsel %vm2596, %v4522, %v4508
      %v4759 = vsel %vm2598, %v4536, %v4758
      %v4760 = vsel %vm2600, %v4550, %v4759
      %v4761 = vsel %vm2602, %v4564, %v4760
      %v4762 = vsel %vm2604, %v4578, %v4761
      %v4763 = vsel %vm2606, %v4592, %v4762
      %v4764 = vsel %vm2608, %v4606, %v4763
      %v4765 = vsel %vm2596, %v4627, %v4613
      %v4766 = vsel %vm2598, %v4641, %v4765
      %v4767 = vsel %vm2600, %v4655, %v4766
      %v4768 = vsel %vm2602, %v4669, %v4767
      %v4769 = vsel %vm2604, %v4683, %v4768
      %v4770 = vsel %vm2606, %v4697, %v4769
      %v4771 = vsel %vm2608, %v4711, %v4770
      %v4772 = vsel %vm2596, %v4634, %v4620
      %v4773 = vsel %vm2598, %v4648, %v4772
      %v4774 = vsel %vm2600, %v4662, %v4773
      %v4775 = vsel %vm2602, %v4676, %v4774
      %v4776 = vsel %vm2604, %v4690, %v4775
      %v4777 = vsel %vm2606, %v4704, %v4776
      %v4778 = vsel %vm2608, %v4718, %v4777
      %v4783 = vrot.slane %v4757, 7
      %v4784 = vrot.slane %v4764, 7
      %v4785 = vrot.slane %v4771, 7
      %v4786 = vrot.slane %v4778, 7
      %v4787 = vsel %vm754, %v4783, %v4785
      %v4788 = vsel %vm754, %v4784, %v4786
      %v4789 = vsel %vm754, %v4785, %v4783
      %v4790 = vsel %vm754, %v4786, %v4784
      %v4791 = vrot.slane %v4757, 1
      %v4792 = vrot.slane %v4764, 1
      %v4793 = vrot.slane %v4771, 1
      %v4794 = vrot.slane %v4778, 1
      %v4795 = vsel %vm787, %v4791, %v4793
      %v4796 = vsel %vm787, %v4792, %v4794
      %v4797 = vsel %vm787, %v4793, %v4791
      %v4798 = vsel %vm787, %v4794, %v4792
      %vm4799 = vcmp.lt.s32.totalorder %v753, 0
      %v4800 = vsub.s32 0, %v753
      %v4801 = vsel %vm4799, %v4800, %v753
      %v4802 = vshrl.u32 %v4801, 3
      %v4803 = vand.u32 %v4801, 7
      %v4804 = vsub.s32 0, %v4803
      %v4805 = vsel %vm4799, %v4804, %v4803
      %vm4806 = vcmp.lt.s32.totalorder %v804, 0
      %v4807 = vsub.s32 0, %v804
      %v4808 = vsel %vm4806, %v4807, %v804
      %v4809 = vshrl.u32 %v4808, 3
      %v4810 = vand.u32 %v4808, 7
      %v4811 = vsub.s32 0, %v4810
      %v4812 = vsel %vm4806, %v4811, %v4810
      %vm4813 = vcmp.ne.s32.totalorder %v4805, 0
      %vm4814 = vcmp.ne.s32.totalorder %v4812, 0
      %vm4815 = vcmp.lt.s32.totalorder %v4805, 0
      %vm4816 = vcmp.lt.s32.totalorder %v4812, 0
      %vm4817 = vmand %vm4815, %vm4813
      %vm4818 = vmand %vm4816, %vm4814
      %v4819 = vadd.s32 %v4805, 8
      %v4820 = vadd.s32 %v4812, 8
      %v4821 = vsel %vm4817, %v4819, %v4805
      %v4822 = vsel %vm4818, %v4820, %v4812
      %vm4823 = vcmp.eq.s32.totalorder %v4821, 0
      %vm4824 = vcmp.eq.s32.totalorder %v4822, 0
      %v4825 = vsel %vm4823, 1, 0
      %v4826 = vsel %vm4824, 1, 0
      %vm4827 = vcmp.eq.s32.totalorder %v4825, 1
      %vm4828 = vcmp.eq.s32.totalorder %v4826, 1
      %v4829 = vsel %vm4827, 0.0, %v4789
      %v4830 = vsel %vm4827, 0.0, %v4790
      %v4831 = vsel %vm4828, 0.0, %v4787
      %v4832 = vsel %vm4828, 0.0, %v4788
      %vm4833 = vcmp.eq.s32.totalorder %v4821, 7
      %vm4834 = vcmp.eq.s32.totalorder %v4822, 7
      %v4835 = vsel %vm4833, 1, 0
      %v4836 = vsel %vm4834, 1, 0
      %vm4837 = vcmp.eq.s32.totalorder %v4835, 1
      %vm4838 = vcmp.eq.s32.totalorder %v4836, 1
      %v4839 = vsel %vm4837, 0.0, %v4795
      %v4840 = vsel %vm4837, 0.0, %v4796
      %v4841 = vsel %vm4838, 0.0, %v4797
      %v4842 = vsel %vm4838, 0.0, %v4798
      %v4843 = vpack.c.bf16 %v4831, %v4829
      %v4844 = vpack.c.bf16 %v4832, %v4830
      %v4845 = vpack.c.bf16 %v4501, %v4501
      %v4846 = vpack.c.bf16 %v4508, %v4508
      %v4847 = vpack.c.bf16 %v4515, %v4515
      %v4848 = vpack.c.bf16 %v4522, %v4522
      %v4849 = vpack.c.bf16 %v4529, %v4529
      %v4850 = vpack.c.bf16 %v4536, %v4536
      %v4851 = vpack.c.bf16 %v4543, %v4543
      %v4852 = vpack.c.bf16 %v4550, %v4550
      %v4853 = vpack.c.bf16 %v4557, %v4557
      %v4854 = vpack.c.bf16 %v4564, %v4564
      %v4855 = vpack.c.bf16 %v4571, %v4571
      %v4856 = vpack.c.bf16 %v4578, %v4578
      %v4857 = vpack.c.bf16 %v4585, %v4585
      %v4858 = vpack.c.bf16 %v4592, %v4592
      %v4859 = vpack.c.bf16 %v4599, %v4599
      %v4860 = vpack.c.bf16 %v4606, %v4606
      %v4861 = vpack.c.bf16 %v4613, %v4613
      %v4862 = vpack.c.bf16 %v4620, %v4620
      %v4863 = vpack.c.bf16 %v4627, %v4627
      %v4864 = vpack.c.bf16 %v4634, %v4634
      %v4865 = vpack.c.bf16 %v4641, %v4641
      %v4866 = vpack.c.bf16 %v4648, %v4648
      %v4867 = vpack.c.bf16 %v4655, %v4655
      %v4868 = vpack.c.bf16 %v4662, %v4662
      %v4869 = vpack.c.bf16 %v4669, %v4669
      %v4870 = vpack.c.bf16 %v4676, %v4676
      %v4871 = vpack.c.bf16 %v4683, %v4683
      %v4872 = vpack.c.bf16 %v4690, %v4690
      %v4873 = vpack.c.bf16 %v4697, %v4697
      %v4874 = vpack.c.bf16 %v4704, %v4704
      %v4875 = vpack.c.bf16 %v4711, %v4711
      %v4876 = vpack.c.bf16 %v4718, %v4718
      %v4877 = vpack.c.bf16 %v4841, %v4839
      %v4878 = vpack.c.bf16 %v4842, %v4840
      %v4879 = vld [vmem:[%s16] sm:$0xff]
      %v4880 = vld [vmem:[%s16 + $0x8] sm:$0xff]
      %v4881 = vld [vmem:[%s16 + $0x10] sm:$0xff]
      %v4882 = vld [vmem:[%s16 + $0x18] sm:$0xff]
      %v4883 = vld [vmem:[%s16 + $0x20] sm:$0xff]
      %v4884 = vld [vmem:[%s16 + $0x28] sm:$0xff]
      %v4885 = vld [vmem:[%s16 + $0x30] sm:$0xff]
      %v4886 = vld [vmem:[%s16 + $0x38] sm:$0xff]
      %v4887 = vld [vmem:[%s16 + $0x40] sm:$0xff]
      %v4888 = vld [vmem:[%s16 + $0x48] sm:$0xff]
      %v4889 = vld [vmem:[%s16 + $0x50] sm:$0xff]
      %v4890 = vld [vmem:[%s16 + $0x58] sm:$0xff]
      %v4891 = vld [vmem:[%s16 + $0x60] sm:$0xff]
      %v4892 = vld [vmem:[%s16 + $0x68] sm:$0xff]
      %v4893 = vld [vmem:[%s16 + $0x70] sm:$0xff]
      %v4894 = vld [vmem:[%s16 + $0x78] sm:$0xff]
      %v4895 = vld [vmem:[%s16 + $0x80] sm:$0xff]
      %v4896 = vld [vmem:[%s16 + $0x88] sm:$0xff]
      %v4897 = vld [vmem:[%s16 + $0x90] sm:$0xff]
      %v4898 = vld [vmem:[%s16 + $0x98] sm:$0xff]
      %v4899 = vld [vmem:[%s16 + $0xa0] sm:$0xff]
      %v4900 = vld [vmem:[%s16 + $0xa8] sm:$0xff]
      %v4901 = vld [vmem:[%s16 + $0xb0] sm:$0xff]
      %v4902 = vld [vmem:[%s16 + $0xb8] sm:$0xff]
      %v4903 = vld [vmem:[%s16 + $0xc0] sm:$0xff]
      %v4904 = vld [vmem:[%s16 + $0xc8] sm:$0xff]
      %v4905 = vld [vmem:[%s16 + $0xd0] sm:$0xff]
      %v4906 = vld [vmem:[%s16 + $0xd8] sm:$0xff]
      %v4907 = vld [vmem:[%s16 + $0xe0] sm:$0xff]
      %v4908 = vld [vmem:[%s16 + $0xe8] sm:$0xff]
      %v4909 = vld [vmem:[%s16 + $0xf0] sm:$0xff]
      %v4910 = vld [vmem:[%s16 + $0xf8] sm:$0xff]
      %v4911 = vld [vmem:[%s16 + $0x100] sm:$0xff]
      %v4912 = vld [vmem:[%s16 + $0x108] sm:$0xff]
      %v4913 = vld [vmem:[%s16 + $0x110] sm:$0xff]
      %v4914 = vld [vmem:[%s16 + $0x118] sm:$0xff]
      %v4915 = vld [vmem:[%s16 + $0x120] sm:$0xff]
      %v4916 = vld [vmem:[%s16 + $0x128] sm:$0xff]
      %v4917 = vld [vmem:[%s16 + $0x130] sm:$0xff]
      %v4918 = vld [vmem:[%s16 + $0x138] sm:$0xff]
      %v4919 = vld [vmem:[%s16 + $0x140] sm:$0xff]
      %v4920 = vld [vmem:[%s16 + $0x148] sm:$0xff]
      %v4921 = vld [vmem:[%s16 + $0x150] sm:$0xff]
      %v4922 = vld [vmem:[%s16 + $0x158] sm:$0xff]
      %v4923 = vld [vmem:[%s16 + $0x160] sm:$0xff]
      %v4924 = vld [vmem:[%s16 + $0x168] sm:$0xff]
      %v4925 = vld [vmem:[%s16 + $0x170] sm:$0xff]
      %v4926 = vld [vmem:[%s16 + $0x178] sm:$0xff]
      %v4927 = vld [vmem:[%s16 + $0x180] sm:$0xff]
      %v4928 = vld [vmem:[%s16 + $0x188] sm:$0xff]
      %v4929 = vld [vmem:[%s16 + $0x190] sm:$0xff]
      %v4930 = vld [vmem:[%s16 + $0x198] sm:$0xff]
      %v4931 = vld [vmem:[%s16 + $0x1a0] sm:$0xff]
      %v4932 = vld [vmem:[%s16 + $0x1a8] sm:$0xff]
      %v4933 = vld [vmem:[%s16 + $0x1b0] sm:$0xff]
      %v4934 = vld [vmem:[%s16 + $0x1b8] sm:$0xff]
      %v4935 = vld [vmem:[%s16 + $0x1c0] sm:$0xff]
      %v4936 = vld [vmem:[%s16 + $0x1c8] sm:$0xff]
      %v4937 = vld [vmem:[%s16 + $0x1d0] sm:$0xff]
      %v4938 = vld [vmem:[%s16 + $0x1d8] sm:$0xff]
      %v4939 = vld [vmem:[%s16 + $0x1e0] sm:$0xff]
      %v4940 = vld [vmem:[%s16 + $0x1e8] sm:$0xff]
      %v4941 = vld [vmem:[%s16 + $0x1f0] sm:$0xff]
      %v4942 = vld [vmem:[%s16 + $0x1f8] sm:$0xff]
      %v4943 = vld [vmem:[%s15] sm:$0xff]
      %v4944 = vld [vmem:[%s15 + $0x8] sm:$0xff]
      %v4945 = vld [vmem:[%s15 + $0x10] sm:$0xff]
      %v4946 = vld [vmem:[%s15 + $0x18] sm:$0xff]
      %v4947 = vld [vmem:[%s15 + $0x20] sm:$0xff]
      %v4948 = vld [vmem:[%s15 + $0x28] sm:$0xff]
      %v4949 = vld [vmem:[%s15 + $0x30] sm:$0xff]
      %v4950 = vld [vmem:[%s15 + $0x38] sm:$0xff]
      %v4951 = vld [vmem:[%s15 + $0x40] sm:$0xff]
      %v4952 = vld [vmem:[%s15 + $0x48] sm:$0xff]
      %v4953 = vld [vmem:[%s15 + $0x50] sm:$0xff]
      %v4954 = vld [vmem:[%s15 + $0x58] sm:$0xff]
      %v4955 = vld [vmem:[%s15 + $0x60] sm:$0xff]
      %v4956 = vld [vmem:[%s15 + $0x68] sm:$0xff]
      %v4957 = vld [vmem:[%s15 + $0x70] sm:$0xff]
      %v4958 = vld [vmem:[%s15 + $0x78] sm:$0xff]
      %v4959 = vld [vmem:[%s15 + $0x80] sm:$0xff]
      %v4960 = vld [vmem:[%s15 + $0x88] sm:$0xff]
      %v4961 = vld [vmem:[%s15 + $0x90] sm:$0xff]
      %v4962 = vld [vmem:[%s15 + $0x98] sm:$0xff]
      %v4963 = vld [vmem:[%s15 + $0xa0] sm:$0xff]
      %v4964 = vld [vmem:[%s15 + $0xa8] sm:$0xff]
      %v4965 = vld [vmem:[%s15 + $0xb0] sm:$0xff]
      %v4966 = vld [vmem:[%s15 + $0xb8] sm:$0xff]
      %v4967 = vld [vmem:[%s15 + $0xc0] sm:$0xff]
      %v4968 = vld [vmem:[%s15 + $0xc8] sm:$0xff]
      %v4969 = vld [vmem:[%s15 + $0xd0] sm:$0xff]
      %v4970 = vld [vmem:[%s15 + $0xd8] sm:$0xff]
      %v4971 = vld [vmem:[%s15 + $0xe0] sm:$0xff]
      %v4972 = vld [vmem:[%s15 + $0xe8] sm:$0xff]
      %v4973 = vld [vmem:[%s15 + $0xf0] sm:$0xff]
      %v4974 = vld [vmem:[%s15 + $0xf8] sm:$0xff]
      %v4975 = vld [vmem:[%s15 + $0x100] sm:$0xff]
      %v4976 = vld [vmem:[%s15 + $0x108] sm:$0xff]
      %v4977 = vld [vmem:[%s15 + $0x110] sm:$0xff]
      %v4978 = vld [vmem:[%s15 + $0x118] sm:$0xff]
      %v4979 = vld [vmem:[%s15 + $0x120] sm:$0xff]
      %v4980 = vld [vmem:[%s15 + $0x128] sm:$0xff]
      %v4981 = vld [vmem:[%s15 + $0x130] sm:$0xff]
      %v4982 = vld [vmem:[%s15 + $0x138] sm:$0xff]
      %v4983 = vld [vmem:[%s15 + $0x140] sm:$0xff]
      %v4984 = vld [vmem:[%s15 + $0x148] sm:$0xff]
      %v4985 = vld [vmem:[%s15 + $0x150] sm:$0xff]
      %v4986 = vld [vmem:[%s15 + $0x158] sm:$0xff]
      %v4987 = vld [vmem:[%s15 + $0x160] sm:$0xff]
      %v4988 = vld [vmem:[%s15 + $0x168] sm:$0xff]
      %v4989 = vld [vmem:[%s15 + $0x170] sm:$0xff]
      %v4990 = vld [vmem:[%s15 + $0x178] sm:$0xff]
      %v4991 = vld [vmem:[%s15 + $0x180] sm:$0xff]
      %v4992 = vld [vmem:[%s15 + $0x188] sm:$0xff]
      %v4993 = vld [vmem:[%s15 + $0x190] sm:$0xff]
      %v4994 = vld [vmem:[%s15 + $0x198] sm:$0xff]
      %v4995 = vld [vmem:[%s15 + $0x1a0] sm:$0xff]
      %v4996 = vld [vmem:[%s15 + $0x1a8] sm:$0xff]
      %v4997 = vld [vmem:[%s15 + $0x1b0] sm:$0xff]
      %v4998 = vld [vmem:[%s15 + $0x1b8] sm:$0xff]
      %v4999 = vld [vmem:[%s15 + $0x1c0] sm:$0xff]
      %v5000 = vld [vmem:[%s15 + $0x1c8] sm:$0xff]
      %v5001 = vld [vmem:[%s15 + $0x1d0] sm:$0xff]
      %v5002 = vld [vmem:[%s15 + $0x1d8] sm:$0xff]
      %v5003 = vld [vmem:[%s15 + $0x1e0] sm:$0xff]
      %v5004 = vld [vmem:[%s15 + $0x1e8] sm:$0xff]
      %v5005 = vld [vmem:[%s15 + $0x1f0] sm:$0xff]
      %v5006 = vld [vmem:[%s15 + $0x1f8] sm:$0xff]
      %v5071 = vunpack.c.l.b16 %v4943
      %v5072 = vunpack.c.h.b16 %v4943
      %v5073 = vunpack.c.l.b16 %v4944
      %v5074 = vunpack.c.h.b16 %v4944
      %v5075 = vunpack.c.l.b16 %v4945
      %v5076 = vunpack.c.h.b16 %v4945
      %v5077 = vunpack.c.l.b16 %v4946
      %v5078 = vunpack.c.h.b16 %v4946
      %v5079 = vunpack.c.l.b16 %v4947
      %v5080 = vunpack.c.h.b16 %v4947
      %v5081 = vunpack.c.l.b16 %v4948
      %v5082 = vunpack.c.h.b16 %v4948
      %v5083 = vunpack.c.l.b16 %v4949
      %v5084 = vunpack.c.h.b16 %v4949
      %v5085 = vunpack.c.l.b16 %v4950
      %v5086 = vunpack.c.h.b16 %v4950
      %v5087 = vunpack.c.l.b16 %v4951
      %v5088 = vunpack.c.h.b16 %v4951
      %v5089 = vunpack.c.l.b16 %v4952
      %v5090 = vunpack.c.h.b16 %v4952
      %v5091 = vunpack.c.l.b16 %v4953
      %v5092 = vunpack.c.h.b16 %v4953
      %v5093 = vunpack.c.l.b16 %v4954
      %v5094 = vunpack.c.h.b16 %v4954
      %v5095 = vunpack.c.l.b16 %v4955
      %v5096 = vunpack.c.h.b16 %v4955
      %v5097 = vunpack.c.l.b16 %v4956
      %v5098 = vunpack.c.h.b16 %v4956
      %v5099 = vunpack.c.l.b16 %v4957
      %v5100 = vunpack.c.h.b16 %v4957
      %v5101 = vunpack.c.l.b16 %v4958
      %v5102 = vunpack.c.h.b16 %v4958
      %v5103 = vunpack.c.l.b16 %v4959
      %v5104 = vunpack.c.h.b16 %v4959
      %v5105 = vunpack.c.l.b16 %v4960
      %v5106 = vunpack.c.h.b16 %v4960
      %v5107 = vunpack.c.l.b16 %v4961
      %v5108 = vunpack.c.h.b16 %v4961
      %v5109 = vunpack.c.l.b16 %v4962
      %v5110 = vunpack.c.h.b16 %v4962
      %v5111 = vunpack.c.l.b16 %v4963
      %v5112 = vunpack.c.h.b16 %v4963
      %v5113 = vunpack.c.l.b16 %v4964
      %v5114 = vunpack.c.h.b16 %v4964
      %v5115 = vunpack.c.l.b16 %v4965
      %v5116 = vunpack.c.h.b16 %v4965
      %v5117 = vunpack.c.l.b16 %v4966
      %v5118 = vunpack.c.h.b16 %v4966
      %v5119 = vunpack.c.l.b16 %v4967
      %v5120 = vunpack.c.h.b16 %v4967
      %v5121 = vunpack.c.l.b16 %v4968
      %v5122 = vunpack.c.h.b16 %v4968
      %v5123 = vunpack.c.l.b16 %v4969
      %v5124 = vunpack.c.h.b16 %v4969
      %v5125 = vunpack.c.l.b16 %v4970
      %v5126 = vunpack.c.h.b16 %v4970
      %v5127 = vunpack.c.l.b16 %v4971
      %v5128 = vunpack.c.h.b16 %v4971
      %v5129 = vunpack.c.l.b16 %v4972
      %v5130 = vunpack.c.h.b16 %v4972
      %v5131 = vunpack.c.l.b16 %v4973
      %v5132 = vunpack.c.h.b16 %v4973
      %v5133 = vunpack.c.l.b16 %v4974
      %v5134 = vunpack.c.h.b16 %v4974
      %v5135 = vunpack.c.l.b16 %v4975
      %v5136 = vunpack.c.h.b16 %v4975
      %v5137 = vunpack.c.l.b16 %v4976
      %v5138 = vunpack.c.h.b16 %v4976
      %v5139 = vunpack.c.l.b16 %v4977
      %v5140 = vunpack.c.h.b16 %v4977
      %v5141 = vunpack.c.l.b16 %v4978
      %v5142 = vunpack.c.h.b16 %v4978
      %v5143 = vunpack.c.l.b16 %v4979
      %v5144 = vunpack.c.h.b16 %v4979
      %v5145 = vunpack.c.l.b16 %v4980
      %v5146 = vunpack.c.h.b16 %v4980
      %v5147 = vunpack.c.l.b16 %v4981
      %v5148 = vunpack.c.h.b16 %v4981
      %v5149 = vunpack.c.l.b16 %v4982
      %v5150 = vunpack.c.h.b16 %v4982
      %v5151 = vunpack.c.l.b16 %v4983
      %v5152 = vunpack.c.h.b16 %v4983
      %v5153 = vunpack.c.l.b16 %v4984
      %v5154 = vunpack.c.h.b16 %v4984
      %v5155 = vunpack.c.l.b16 %v4985
      %v5156 = vunpack.c.h.b16 %v4985
      %v5157 = vunpack.c.l.b16 %v4986
      %v5158 = vunpack.c.h.b16 %v4986
      %v5159 = vunpack.c.l.b16 %v4987
      %v5160 = vunpack.c.h.b16 %v4987
      %v5161 = vunpack.c.l.b16 %v4988
      %v5162 = vunpack.c.h.b16 %v4988
      %v5163 = vunpack.c.l.b16 %v4989
      %v5164 = vunpack.c.h.b16 %v4989
      %v5165 = vunpack.c.l.b16 %v4990
      %v5166 = vunpack.c.h.b16 %v4990
      %v5167 = vunpack.c.l.b16 %v4991
      %v5168 = vunpack.c.h.b16 %v4991
      %v5169 = vunpack.c.l.b16 %v4992
      %v5170 = vunpack.c.h.b16 %v4992
      %v5171 = vunpack.c.l.b16 %v4993
      %v5172 = vunpack.c.h.b16 %v4993
      %v5173 = vunpack.c.l.b16 %v4994
      %v5174 = vunpack.c.h.b16 %v4994
      %v5175 = vunpack.c.l.b16 %v4995
      %v5176 = vunpack.c.h.b16 %v4995
      %v5177 = vunpack.c.l.b16 %v4996
      %v5178 = vunpack.c.h.b16 %v4996
      %v5179 = vunpack.c.l.b16 %v4997
      %v5180 = vunpack.c.h.b16 %v4997
      %v5181 = vunpack.c.l.b16 %v4998
      %v5182 = vunpack.c.h.b16 %v4998
      %v5183 = vunpack.c.l.b16 %v4999
      %v5184 = vunpack.c.h.b16 %v4999
      %v5185 = vunpack.c.l.b16 %v5000
      %v5186 = vunpack.c.h.b16 %v5000
      %v5187 = vunpack.c.l.b16 %v5001
      %v5188 = vunpack.c.h.b16 %v5001
      %v5189 = vunpack.c.l.b16 %v5002
      %v5190 = vunpack.c.h.b16 %v5002
      %v5191 = vunpack.c.l.b16 %v5003
      %v5192 = vunpack.c.h.b16 %v5003
      %v5193 = vunpack.c.l.b16 %v5004
      %v5194 = vunpack.c.h.b16 %v5004
      %v5195 = vunpack.c.l.b16 %v5005
      %v5196 = vunpack.c.h.b16 %v5005
      %v5197 = vunpack.c.l.b16 %v5006
      %v5198 = vunpack.c.h.b16 %v5006
      %v5199 = vpack.c.b16 %v5075, %v5071
      %v5200 = vpack.c.b16 %v5076, %v5072
      %v5201 = vpack.c.b16 %v5077, %v5073
      %v5202 = vpack.c.b16 %v5078, %v5074
      %v5203 = vpack.c.b16 %v5083, %v5079
      %v5204 = vpack.c.b16 %v5084, %v5080
      %v5205 = vpack.c.b16 %v5085, %v5081
      %v5206 = vpack.c.b16 %v5086, %v5082
      %v5207 = vpack.c.b16 %v5091, %v5087
      %v5208 = vpack.c.b16 %v5092, %v5088
      %v5209 = vpack.c.b16 %v5093, %v5089
      %v5210 = vpack.c.b16 %v5094, %v5090
      %v5211 = vpack.c.b16 %v5099, %v5095
      %v5212 = vpack.c.b16 %v5100, %v5096
      %v5213 = vpack.c.b16 %v5101, %v5097
      %v5214 = vpack.c.b16 %v5102, %v5098
      %v5215 = vpack.c.b16 %v5107, %v5103
      %v5216 = vpack.c.b16 %v5108, %v5104
      %v5217 = vpack.c.b16 %v5109, %v5105
      %v5218 = vpack.c.b16 %v5110, %v5106
      %v5219 = vpack.c.b16 %v5115, %v5111
      %v5220 = vpack.c.b16 %v5116, %v5112
      %v5221 = vpack.c.b16 %v5117, %v5113
      %v5222 = vpack.c.b16 %v5118, %v5114
      %v5223 = vpack.c.b16 %v5123, %v5119
      %v5224 = vpack.c.b16 %v5124, %v5120
      %v5225 = vpack.c.b16 %v5125, %v5121
      %v5226 = vpack.c.b16 %v5126, %v5122
      %v5227 = vpack.c.b16 %v5131, %v5127
      %v5228 = vpack.c.b16 %v5132, %v5128
      %v5229 = vpack.c.b16 %v5133, %v5129
      %v5230 = vpack.c.b16 %v5134, %v5130
      %v5231 = vpack.c.b16 %v5139, %v5135
      %v5232 = vpack.c.b16 %v5140, %v5136
      %v5233 = vpack.c.b16 %v5141, %v5137
      %v5234 = vpack.c.b16 %v5142, %v5138
      %v5235 = vpack.c.b16 %v5147, %v5143
      %v5236 = vpack.c.b16 %v5148, %v5144
      %v5237 = vpack.c.b16 %v5149, %v5145
      %v5238 = vpack.c.b16 %v5150, %v5146
      %v5239 = vpack.c.b16 %v5155, %v5151
      %v5240 = vpack.c.b16 %v5156, %v5152
      %v5241 = vpack.c.b16 %v5157, %v5153
      %v5242 = vpack.c.b16 %v5158, %v5154
      %v5243 = vpack.c.b16 %v5163, %v5159
      %v5244 = vpack.c.b16 %v5164, %v5160
      %v5245 = vpack.c.b16 %v5165, %v5161
      %v5246 = vpack.c.b16 %v5166, %v5162
      %v5247 = vpack.c.b16 %v5171, %v5167
      %v5248 = vpack.c.b16 %v5172, %v5168
      %v5249 = vpack.c.b16 %v5173, %v5169
      %v5250 = vpack.c.b16 %v5174, %v5170
      %v5251 = vpack.c.b16 %v5179, %v5175
      %v5252 = vpack.c.b16 %v5180, %v5176
      %v5253 = vpack.c.b16 %v5181, %v5177
      %v5254 = vpack.c.b16 %v5182, %v5178
      %v5255 = vpack.c.b16 %v5187, %v5183
      %v5256 = vpack.c.b16 %v5188, %v5184
      %v5257 = vpack.c.b16 %v5189, %v5185
      %v5258 = vpack.c.b16 %v5190, %v5186
      %v5259 = vpack.c.b16 %v5195, %v5191
      %v5260 = vpack.c.b16 %v5196, %v5192
      %v5261 = vpack.c.b16 %v5197, %v5193
      %v5262 = vpack.c.b16 %v5198, %v5194
      %5327 = vmatpush.bf16.msra.mxu0 %v5227
      %5328 = vmatpush.bf16.msra.mxu0 %v5223
      %5329 = vmatpush.bf16.msra.mxu0 %v5219
      %5330 = vmatpush.bf16.msra.mxu0 %v5215
      %5331 = vmatpush.bf16.msra.mxu0 %v5211
      %5332 = vmatpush.bf16.msra.mxu0 %v5207
      %5333 = vmatpush.bf16.msra.mxu0 %v5203
      %5334 = vmatpush.bf16.msra.mxu0 %v5199
      %5335 = vmatmul.bf16.gmra.mxu0 %v4843
      %v5336 = vpop.f32.mrf.mxu0
      %v5337 = vadd.f32 0.0, %v5336
      %v5338 = vpop.f32.mrf.mxu0
      %v5339 = vadd.f32 0.0, %v5338
      %5340 = vdwg.mxu0
      %5341 = vmatpush.bf16.msra.mxu0 %v5259
      %5342 = vmatpush.bf16.msra.mxu0 %v5255
      %5343 = vmatpush.bf16.msra.mxu0 %v5251
      %5344 = vmatpush.bf16.msra.mxu0 %v5247
      %5345 = vmatpush.bf16.msra.mxu0 %v5243
      %5346 = vmatpush.bf16.msra.mxu0 %v5239
      %5347 = vmatpush.bf16.msra.mxu0 %v5235
      %5348 = vmatpush.bf16.msra.mxu0 %v5231
      %5349 = vmatmul.bf16.gmra.mxu0 %v4844
      %v5350 = vpop.f32.mrf.mxu0
      %v5351 = vadd.f32 %v5337, %v5350
      %v5352 = vpop.f32.mrf.mxu0
      %v5353 = vadd.f32 %v5339, %v5352
      %5354 = vdwg.mxu0
      %5355 = vmatpush.bf16.msra.mxu0 %v5228
      %5356 = vmatpush.bf16.msra.mxu0 %v5224
      %5357 = vmatpush.bf16.msra.mxu0 %v5220
      %5358 = vmatpush.bf16.msra.mxu0 %v5216
      %5359 = vmatpush.bf16.msra.mxu0 %v5212
      %5360 = vmatpush.bf16.msra.mxu0 %v5208
      %5361 = vmatpush.bf16.msra.mxu0 %v5204
      %5362 = vmatpush.bf16.msra.mxu0 %v5200
      %5363 = vmatmul.bf16.gmra.mxu0 %v4843
      %v5364 = vpop.f32.mrf.mxu0
      %v5365 = vadd.f32 0.0, %v5364
      %v5366 = vpop.f32.mrf.mxu0
      %v5367 = vadd.f32 0.0, %v5366
      %5368 = vdwg.mxu0
      %5369 = vmatpush.bf16.msra.mxu0 %v5260
      %5370 = vmatpush.bf16.msra.mxu0 %v5256
      %5371 = vmatpush.bf16.msra.mxu0 %v5252
      %5372 = vmatpush.bf16.msra.mxu0 %v5248
      %5373 = vmatpush.bf16.msra.mxu0 %v5244
      %5374 = vmatpush.bf16.msra.mxu0 %v5240
      %5375 = vmatpush.bf16.msra.mxu0 %v5236
      %5376 = vmatpush.bf16.msra.mxu0 %v5232
      %5377 = vmatmul.bf16.gmra.mxu0 %v4844
      %v5378 = vpop.f32.mrf.mxu0
      %v5379 = vadd.f32 %v5365, %v5378
      %v5380 = vpop.f32.mrf.mxu0
      %v5381 = vadd.f32 %v5367, %v5380
      %5382 = vdwg.mxu0
      %5383 = vmatpush.bf16.msra.mxu0 %v5229
      %5384 = vmatpush.bf16.msra.mxu0 %v5225
      %5385 = vmatpush.bf16.msra.mxu0 %v5221
      %5386 = vmatpush.bf16.msra.mxu0 %v5217
      %5387 = vmatpush.bf16.msra.mxu0 %v5213
      %5388 = vmatpush.bf16.msra.mxu0 %v5209
      %5389 = vmatpush.bf16.msra.mxu0 %v5205
      %5390 = vmatpush.bf16.msra.mxu0 %v5201
      %5391 = vmatmul.bf16.gmra.mxu0 %v4843
      %v5392 = vpop.f32.mrf.mxu0
      %v5393 = vadd.f32 0.0, %v5392
      %v5394 = vpop.f32.mrf.mxu0
      %v5395 = vadd.f32 0.0, %v5394
      %5396 = vdwg.mxu0
      %5397 = vmatpush.bf16.msra.mxu0 %v5261
      %5398 = vmatpush.bf16.msra.mxu0 %v5257
      %5399 = vmatpush.bf16.msra.mxu0 %v5253
      %5400 = vmatpush.bf16.msra.mxu0 %v5249
      %5401 = vmatpush.bf16.msra.mxu0 %v5245
      %5402 = vmatpush.bf16.msra.mxu0 %v5241
      %5403 = vmatpush.bf16.msra.mxu0 %v5237
      %5404 = vmatpush.bf16.msra.mxu0 %v5233
      %5405 = vmatmul.bf16.gmra.mxu0 %v4844
      %v5406 = vpop.f32.mrf.mxu0
      %v5407 = vadd.f32 %v5393, %v5406
      %v5408 = vpop.f32.mrf.mxu0
      %v5409 = vadd.f32 %v5395, %v5408
      %5410 = vdwg.mxu0
      %5411 = vmatpush.bf16.msra.mxu0 %v5230
      %5412 = vmatpush.bf16.msra.mxu0 %v5226
      %5413 = vmatpush.bf16.msra.mxu0 %v5222
      %5414 = vmatpush.bf16.msra.mxu0 %v5218
      %5415 = vmatpush.bf16.msra.mxu0 %v5214
      %5416 = vmatpush.bf16.msra.mxu0 %v5210
      %5417 = vmatpush.bf16.msra.mxu0 %v5206
      %5418 = vmatpush.bf16.msra.mxu0 %v5202
      %5419 = vmatmul.bf16.gmra.mxu0 %v4843
      %v5420 = vpop.f32.mrf.mxu0
      %v5421 = vadd.f32 0.0, %v5420
      %v5422 = vpop.f32.mrf.mxu0
      %v5423 = vadd.f32 0.0, %v5422
      %5424 = vdwg.mxu0
      %5425 = vmatpush.bf16.msra.mxu0 %v5262
      %5426 = vmatpush.bf16.msra.mxu0 %v5258
      %5427 = vmatpush.bf16.msra.mxu0 %v5254
      %5428 = vmatpush.bf16.msra.mxu0 %v5250
      %5429 = vmatpush.bf16.msra.mxu0 %v5246
      %5430 = vmatpush.bf16.msra.mxu0 %v5242
      %5431 = vmatpush.bf16.msra.mxu0 %v5238
      %5432 = vmatpush.bf16.msra.mxu0 %v5234
      %5433 = vmatmul.bf16.gmra.mxu0 %v4844
      %v5434 = vpop.f32.mrf.mxu0
      %v5435 = vadd.f32 %v5421, %v5434
      %v5436 = vpop.f32.mrf.mxu0
      %v5437 = vadd.f32 %v5423, %v5436
      %5438 = vdwg.mxu0
      %v5471 = vunpack.c.l.b16 %v4845
      %v5472 = vunpack.c.l.b16 %v4846
      %v5473 = vunpack.c.l.b16 %v4847
      %v5474 = vunpack.c.l.b16 %v4848
      %v5475 = vunpack.c.l.b16 %v4849
      %v5476 = vunpack.c.l.b16 %v4850
      %v5477 = vunpack.c.l.b16 %v4851
      %v5478 = vunpack.c.l.b16 %v4852
      %v5479 = vunpack.c.l.b16 %v4853
      %v5480 = vunpack.c.l.b16 %v4854
      %v5481 = vunpack.c.l.b16 %v4855
      %v5482 = vunpack.c.l.b16 %v4856
      %v5483 = vunpack.c.l.b16 %v4857
      %v5484 = vunpack.c.l.b16 %v4858
      %v5485 = vunpack.c.l.b16 %v4859
      %v5486 = vunpack.c.l.b16 %v4860
      %v5487 = vunpack.c.l.b16 %v4861
      %v5488 = vunpack.c.l.b16 %v4862
      %v5489 = vunpack.c.l.b16 %v4863
      %v5490 = vunpack.c.l.b16 %v4864
      %v5491 = vunpack.c.l.b16 %v4865
      %v5492 = vunpack.c.l.b16 %v4866
      %v5493 = vunpack.c.l.b16 %v4867
      %v5494 = vunpack.c.l.b16 %v4868
      %v5495 = vunpack.c.l.b16 %v4869
      %v5496 = vunpack.c.l.b16 %v4870
      %v5497 = vunpack.c.l.b16 %v4871
      %v5498 = vunpack.c.l.b16 %v4872
      %v5499 = vunpack.c.l.b16 %v4873
      %v5500 = vunpack.c.l.b16 %v4874
      %v5501 = vunpack.c.l.b16 %v4875
      %v5502 = vunpack.c.l.b16 %v4876
      %v5503 = vsel %vm2596, %v5473, %v5471
      %v5504 = vsel %vm2598, %v5475, %v5503
      %v5505 = vsel %vm2600, %v5477, %v5504
      %v5506 = vsel %vm2602, %v5479, %v5505
      %v5507 = vsel %vm2604, %v5481, %v5506
      %v5508 = vsel %vm2606, %v5483, %v5507
      %v5509 = vsel %vm2608, %v5485, %v5508
      %v5510 = vsel %vm2596, %v5474, %v5472
      %v5511 = vsel %vm2598, %v5476, %v5510
      %v5512 = vsel %vm2600, %v5478, %v5511
      %v5513 = vsel %vm2602, %v5480, %v5512
      %v5514 = vsel %vm2604, %v5482, %v5513
      %v5515 = vsel %vm2606, %v5484, %v5514
      %v5516 = vsel %vm2608, %v5486, %v5515
      %v5517 = vsel %vm2596, %v5489, %v5487
      %v5518 = vsel %vm2598, %v5491, %v5517
      %v5519 = vsel %vm2600, %v5493, %v5518
      %v5520 = vsel %vm2602, %v5495, %v5519
      %v5521 = vsel %vm2604, %v5497, %v5520
      %v5522 = vsel %vm2606, %v5499, %v5521
      %v5523 = vsel %vm2608, %v5501, %v5522
      %v5524 = vsel %vm2596, %v5490, %v5488
      %v5525 = vsel %vm2598, %v5492, %v5524
      %v5526 = vsel %vm2600, %v5494, %v5525
      %v5527 = vsel %vm2602, %v5496, %v5526
      %v5528 = vsel %vm2604, %v5498, %v5527
      %v5529 = vsel %vm2606, %v5500, %v5528
      %v5530 = vsel %vm2608, %v5502, %v5529
      %v5531 = vpack.c.b16 %v5523, %v5509
      %v5532 = vpack.c.b16 %v5530, %v5516
      %v5599 = vunpack.c.l.b16 %v4879
      %v5600 = vunpack.c.h.b16 %v4879
      %v5601 = vunpack.c.l.b16 %v4880
      %v5602 = vunpack.c.h.b16 %v4880
      %v5603 = vunpack.c.l.b16 %v4881
      %v5604 = vunpack.c.h.b16 %v4881
      %v5605 = vunpack.c.l.b16 %v4882
      %v5606 = vunpack.c.h.b16 %v4882
      %v5607 = vunpack.c.l.b16 %v4883
      %v5608 = vunpack.c.h.b16 %v4883
      %v5609 = vunpack.c.l.b16 %v4884
      %v5610 = vunpack.c.h.b16 %v4884
      %v5611 = vunpack.c.l.b16 %v4885
      %v5612 = vunpack.c.h.b16 %v4885
      %v5613 = vunpack.c.l.b16 %v4886
      %v5614 = vunpack.c.h.b16 %v4886
      %v5615 = vunpack.c.l.b16 %v4887
      %v5616 = vunpack.c.h.b16 %v4887
      %v5617 = vunpack.c.l.b16 %v4888
      %v5618 = vunpack.c.h.b16 %v4888
      %v5619 = vunpack.c.l.b16 %v4889
      %v5620 = vunpack.c.h.b16 %v4889
      %v5621 = vunpack.c.l.b16 %v4890
      %v5622 = vunpack.c.h.b16 %v4890
      %v5623 = vunpack.c.l.b16 %v4891
      %v5624 = vunpack.c.h.b16 %v4891
      %v5625 = vunpack.c.l.b16 %v4892
      %v5626 = vunpack.c.h.b16 %v4892
      %v5627 = vunpack.c.l.b16 %v4893
      %v5628 = vunpack.c.h.b16 %v4893
      %v5629 = vunpack.c.l.b16 %v4894
      %v5630 = vunpack.c.h.b16 %v4894
      %v5631 = vunpack.c.l.b16 %v4895
      %v5632 = vunpack.c.h.b16 %v4895
      %v5633 = vunpack.c.l.b16 %v4896
      %v5634 = vunpack.c.h.b16 %v4896
      %v5635 = vunpack.c.l.b16 %v4897
      %v5636 = vunpack.c.h.b16 %v4897
      %v5637 = vunpack.c.l.b16 %v4898
      %v5638 = vunpack.c.h.b16 %v4898
      %v5639 = vunpack.c.l.b16 %v4899
      %v5640 = vunpack.c.h.b16 %v4899
      %v5641 = vunpack.c.l.b16 %v4900
      %v5642 = vunpack.c.h.b16 %v4900
      %v5643 = vunpack.c.l.b16 %v4901
      %v5644 = vunpack.c.h.b16 %v4901
      %v5645 = vunpack.c.l.b16 %v4902
      %v5646 = vunpack.c.h.b16 %v4902
      %v5647 = vunpack.c.l.b16 %v4903
      %v5648 = vunpack.c.h.b16 %v4903
      %v5649 = vunpack.c.l.b16 %v4904
      %v5650 = vunpack.c.h.b16 %v4904
      %v5651 = vunpack.c.l.b16 %v4905
      %v5652 = vunpack.c.h.b16 %v4905
      %v5653 = vunpack.c.l.b16 %v4906
      %v5654 = vunpack.c.h.b16 %v4906
      %v5655 = vunpack.c.l.b16 %v4907
      %v5656 = vunpack.c.h.b16 %v4907
      %v5657 = vunpack.c.l.b16 %v4908
      %v5658 = vunpack.c.h.b16 %v4908
      %v5659 = vunpack.c.l.b16 %v4909
      %v5660 = vunpack.c.h.b16 %v4909
      %v5661 = vunpack.c.l.b16 %v4910
      %v5662 = vunpack.c.h.b16 %v4910
      %v5663 = vunpack.c.l.b16 %v4911
      %v5664 = vunpack.c.h.b16 %v4911
      %v5665 = vunpack.c.l.b16 %v4912
      %v5666 = vunpack.c.h.b16 %v4912
      %v5667 = vunpack.c.l.b16 %v4913
      %v5668 = vunpack.c.h.b16 %v4913
      %v5669 = vunpack.c.l.b16 %v4914
      %v5670 = vunpack.c.h.b16 %v4914
      %v5671 = vunpack.c.l.b16 %v4915
      %v5672 = vunpack.c.h.b16 %v4915
      %v5673 = vunpack.c.l.b16 %v4916
      %v5674 = vunpack.c.h.b16 %v4916
      %v5675 = vunpack.c.l.b16 %v4917
      %v5676 = vunpack.c.h.b16 %v4917
      %v5677 = vunpack.c.l.b16 %v4918
      %v5678 = vunpack.c.h.b16 %v4918
      %v5679 = vunpack.c.l.b16 %v4919
      %v5680 = vunpack.c.h.b16 %v4919
      %v5681 = vunpack.c.l.b16 %v4920
      %v5682 = vunpack.c.h.b16 %v4920
      %v5683 = vunpack.c.l.b16 %v4921
      %v5684 = vunpack.c.h.b16 %v4921
      %v5685 = vunpack.c.l.b16 %v4922
      %v5686 = vunpack.c.h.b16 %v4922
      %v5687 = vunpack.c.l.b16 %v4923
      %v5688 = vunpack.c.h.b16 %v4923
      %v5689 = vunpack.c.l.b16 %v4924
      %v5690 = vunpack.c.h.b16 %v4924
      %v5691 = vunpack.c.l.b16 %v4925
      %v5692 = vunpack.c.h.b16 %v4925
      %v5693 = vunpack.c.l.b16 %v4926
      %v5694 = vunpack.c.h.b16 %v4926
      %v5695 = vunpack.c.l.b16 %v4927
      %v5696 = vunpack.c.h.b16 %v4927
      %v5697 = vunpack.c.l.b16 %v4928
      %v5698 = vunpack.c.h.b16 %v4928
      %v5699 = vunpack.c.l.b16 %v4929
      %v5700 = vunpack.c.h.b16 %v4929
      %v5701 = vunpack.c.l.b16 %v4930
      %v5702 = vunpack.c.h.b16 %v4930
      %v5703 = vunpack.c.l.b16 %v4931
      %v5704 = vunpack.c.h.b16 %v4931
      %v5705 = vunpack.c.l.b16 %v4932
      %v5706 = vunpack.c.h.b16 %v4932
      %v5707 = vunpack.c.l.b16 %v4933
      %v5708 = vunpack.c.h.b16 %v4933
      %v5709 = vunpack.c.l.b16 %v4934
      %v5710 = vunpack.c.h.b16 %v4934
      %v5711 = vunpack.c.l.b16 %v4935
      %v5712 = vunpack.c.h.b16 %v4935
      %v5713 = vunpack.c.l.b16 %v4936
      %v5714 = vunpack.c.h.b16 %v4936
      %v5715 = vunpack.c.l.b16 %v4937
      %v5716 = vunpack.c.h.b16 %v4937
      %v5717 = vunpack.c.l.b16 %v4938
      %v5718 = vunpack.c.h.b16 %v4938
      %v5719 = vunpack.c.l.b16 %v4939
      %v5720 = vunpack.c.h.b16 %v4939
      %v5721 = vunpack.c.l.b16 %v4940
      %v5722 = vunpack.c.h.b16 %v4940
      %v5723 = vunpack.c.l.b16 %v4941
      %v5724 = vunpack.c.h.b16 %v4941
      %v5725 = vunpack.c.l.b16 %v4942
      %v5726 = vunpack.c.h.b16 %v4942
      %v5727 = vpack.c.b16 %v5603, %v5599
      %v5728 = vpack.c.b16 %v5604, %v5600
      %v5729 = vpack.c.b16 %v5605, %v5601
      %v5730 = vpack.c.b16 %v5606, %v5602
      %v5731 = vpack.c.b16 %v5611, %v5607
      %v5732 = vpack.c.b16 %v5612, %v5608
      %v5733 = vpack.c.b16 %v5613, %v5609
      %v5734 = vpack.c.b16 %v5614, %v5610
      %v5735 = vpack.c.b16 %v5619, %v5615
      %v5736 = vpack.c.b16 %v5620, %v5616
      %v5737 = vpack.c.b16 %v5621, %v5617
      %v5738 = vpack.c.b16 %v5622, %v5618
      %v5739 = vpack.c.b16 %v5627, %v5623
      %v5740 = vpack.c.b16 %v5628, %v5624
      %v5741 = vpack.c.b16 %v5629, %v5625
      %v5742 = vpack.c.b16 %v5630, %v5626
      %v5743 = vpack.c.b16 %v5635, %v5631
      %v5744 = vpack.c.b16 %v5636, %v5632
      %v5745 = vpack.c.b16 %v5637, %v5633
      %v5746 = vpack.c.b16 %v5638, %v5634
      %v5747 = vpack.c.b16 %v5643, %v5639
      %v5748 = vpack.c.b16 %v5644, %v5640
      %v5749 = vpack.c.b16 %v5645, %v5641
      %v5750 = vpack.c.b16 %v5646, %v5642
      %v5751 = vpack.c.b16 %v5651, %v5647
      %v5752 = vpack.c.b16 %v5652, %v5648
      %v5753 = vpack.c.b16 %v5653, %v5649
      %v5754 = vpack.c.b16 %v5654, %v5650
      %v5755 = vpack.c.b16 %v5659, %v5655
      %v5756 = vpack.c.b16 %v5660, %v5656
      %v5757 = vpack.c.b16 %v5661, %v5657
      %v5758 = vpack.c.b16 %v5662, %v5658
      %v5759 = vpack.c.b16 %v5667, %v5663
      %v5760 = vpack.c.b16 %v5668, %v5664
      %v5761 = vpack.c.b16 %v5669, %v5665
      %v5762 = vpack.c.b16 %v5670, %v5666
      %v5763 = vpack.c.b16 %v5675, %v5671
      %v5764 = vpack.c.b16 %v5676, %v5672
      %v5765 = vpack.c.b16 %v5677, %v5673
      %v5766 = vpack.c.b16 %v5678, %v5674
      %v5767 = vpack.c.b16 %v5683, %v5679
      %v5768 = vpack.c.b16 %v5684, %v5680
      %v5769 = vpack.c.b16 %v5685, %v5681
      %v5770 = vpack.c.b16 %v5686, %v5682
      %v5771 = vpack.c.b16 %v5691, %v5687
      %v5772 = vpack.c.b16 %v5692, %v5688
      %v5773 = vpack.c.b16 %v5693, %v5689
      %v5774 = vpack.c.b16 %v5694, %v5690
      %v5775 = vpack.c.b16 %v5699, %v5695
      %v5776 = vpack.c.b16 %v5700, %v5696
      %v5777 = vpack.c.b16 %v5701, %v5697
      %v5778 = vpack.c.b16 %v5702, %v5698
      %v5779 = vpack.c.b16 %v5707, %v5703
      %v5780 = vpack.c.b16 %v5708, %v5704
      %v5781 = vpack.c.b16 %v5709, %v5705
      %v5782 = vpack.c.b16 %v5710, %v5706
      %v5783 = vpack.c.b16 %v5715, %v5711
      %v5784 = vpack.c.b16 %v5716, %v5712
      %v5785 = vpack.c.b16 %v5717, %v5713
      %v5786 = vpack.c.b16 %v5718, %v5714
      %v5787 = vpack.c.b16 %v5723, %v5719
      %v5788 = vpack.c.b16 %v5724, %v5720
      %v5789 = vpack.c.b16 %v5725, %v5721
      %v5790 = vpack.c.b16 %v5726, %v5722
      %5855 = vmatpush.bf16.msra.mxu0 %v5755
      %5856 = vmatpush.bf16.msra.mxu0 %v5751
      %5857 = vmatpush.bf16.msra.mxu0 %v5747
      %5858 = vmatpush.bf16.msra.mxu0 %v5743
      %5859 = vmatpush.bf16.msra.mxu0 %v5739
      %5860 = vmatpush.bf16.msra.mxu0 %v5735
      %5861 = vmatpush.bf16.msra.mxu0 %v5731
      %5862 = vmatpush.bf16.msra.mxu0 %v5727
      %5863 = vmatmul.bf16.gmra.mxu0 %v5531
      %v5864 = vpop.f32.mrf.mxu0
      %v5865 = vadd.f32 %v5351, %v5864
      %v5866 = vpop.f32.mrf.mxu0
      %v5867 = vadd.f32 %v5353, %v5866
      %5868 = vdwg.mxu0
      %5869 = vmatpush.bf16.msra.mxu0 %v5787
      %5870 = vmatpush.bf16.msra.mxu0 %v5783
      %5871 = vmatpush.bf16.msra.mxu0 %v5779
      %5872 = vmatpush.bf16.msra.mxu0 %v5775
      %5873 = vmatpush.bf16.msra.mxu0 %v5771
      %5874 = vmatpush.bf16.msra.mxu0 %v5767
      %5875 = vmatpush.bf16.msra.mxu0 %v5763
      %5876 = vmatpush.bf16.msra.mxu0 %v5759
      %5877 = vmatmul.bf16.gmra.mxu0 %v5532
      %v5878 = vpop.f32.mrf.mxu0
      %v5879 = vadd.f32 %v5865, %v5878
      %v5880 = vpop.f32.mrf.mxu0
      %v5881 = vadd.f32 %v5867, %v5880
      %5882 = vdwg.mxu0
      %5883 = vmatpush.bf16.msra.mxu0 %v5756
      %5884 = vmatpush.bf16.msra.mxu0 %v5752
      %5885 = vmatpush.bf16.msra.mxu0 %v5748
      %5886 = vmatpush.bf16.msra.mxu0 %v5744
      %5887 = vmatpush.bf16.msra.mxu0 %v5740
      %5888 = vmatpush.bf16.msra.mxu0 %v5736
      %5889 = vmatpush.bf16.msra.mxu0 %v5732
      %5890 = vmatpush.bf16.msra.mxu0 %v5728
      %5891 = vmatmul.bf16.gmra.mxu0 %v5531
      %v5892 = vpop.f32.mrf.mxu0
      %v5893 = vadd.f32 %v5379, %v5892
      %v5894 = vpop.f32.mrf.mxu0
      %v5895 = vadd.f32 %v5381, %v5894
      %5896 = vdwg.mxu0
      %5897 = vmatpush.bf16.msra.mxu0 %v5788
      %5898 = vmatpush.bf16.msra.mxu0 %v5784
      %5899 = vmatpush.bf16.msra.mxu0 %v5780
      %5900 = vmatpush.bf16.msra.mxu0 %v5776
      %5901 = vmatpush.bf16.msra.mxu0 %v5772
      %5902 = vmatpush.bf16.msra.mxu0 %v5768
      %5903 = vmatpush.bf16.msra.mxu0 %v5764
      %5904 = vmatpush.bf16.msra.mxu0 %v5760
      %5905 = vmatmul.bf16.gmra.mxu0 %v5532
      %v5906 = vpop.f32.mrf.mxu0
      %v5907 = vadd.f32 %v5893, %v5906
      %v5908 = vpop.f32.mrf.mxu0
      %v5909 = vadd.f32 %v5895, %v5908
      %5910 = vdwg.mxu0
      %5911 = vmatpush.bf16.msra.mxu0 %v5757
      %5912 = vmatpush.bf16.msra.mxu0 %v5753
      %5913 = vmatpush.bf16.msra.mxu0 %v5749
      %5914 = vmatpush.bf16.msra.mxu0 %v5745
      %5915 = vmatpush.bf16.msra.mxu0 %v5741
      %5916 = vmatpush.bf16.msra.mxu0 %v5737
      %5917 = vmatpush.bf16.msra.mxu0 %v5733
      %5918 = vmatpush.bf16.msra.mxu0 %v5729
      %5919 = vmatmul.bf16.gmra.mxu0 %v5531
      %v5920 = vpop.f32.mrf.mxu0
      %v5921 = vadd.f32 %v5407, %v5920
      %v5922 = vpop.f32.mrf.mxu0
      %v5923 = vadd.f32 %v5409, %v5922
      %5924 = vdwg.mxu0
      %5925 = vmatpush.bf16.msra.mxu0 %v5789
      %5926 = vmatpush.bf16.msra.mxu0 %v5785
      %5927 = vmatpush.bf16.msra.mxu0 %v5781
      %5928 = vmatpush.bf16.msra.mxu0 %v5777
      %5929 = vmatpush.bf16.msra.mxu0 %v5773
      %5930 = vmatpush.bf16.msra.mxu0 %v5769
      %5931 = vmatpush.bf16.msra.mxu0 %v5765
      %5932 = vmatpush.bf16.msra.mxu0 %v5761
      %5933 = vmatmul.bf16.gmra.mxu0 %v5532
      %v5934 = vpop.f32.mrf.mxu0
      %v5935 = vadd.f32 %v5921, %v5934
      %v5936 = vpop.f32.mrf.mxu0
      %v5937 = vadd.f32 %v5923, %v5936
      %5938 = vdwg.mxu0
      %5939 = vmatpush.bf16.msra.mxu0 %v5758
      %5940 = vmatpush.bf16.msra.mxu0 %v5754
      %5941 = vmatpush.bf16.msra.mxu0 %v5750
      %5942 = vmatpush.bf16.msra.mxu0 %v5746
      %5943 = vmatpush.bf16.msra.mxu0 %v5742
      %5944 = vmatpush.bf16.msra.mxu0 %v5738
      %5945 = vmatpush.bf16.msra.mxu0 %v5734
      %5946 = vmatpush.bf16.msra.mxu0 %v5730
      %5947 = vmatmul.bf16.gmra.mxu0 %v5531
      %v5948 = vpop.f32.mrf.mxu0
      %v5949 = vadd.f32 %v5435, %v5948
      %v5950 = vpop.f32.mrf.mxu0
      %v5951 = vadd.f32 %v5437, %v5950
      %5952 = vdwg.mxu0
      %5953 = vmatpush.bf16.msra.mxu0 %v5790
      %5954 = vmatpush.bf16.msra.mxu0 %v5786
      %5955 = vmatpush.bf16.msra.mxu0 %v5782
      %5956 = vmatpush.bf16.msra.mxu0 %v5778
      %5957 = vmatpush.bf16.msra.mxu0 %v5774
      %5958 = vmatpush.bf16.msra.mxu0 %v5770
      %5959 = vmatpush.bf16.msra.mxu0 %v5766
      %5960 = vmatpush.bf16.msra.mxu0 %v5762
      %5961 = vmatmul.bf16.gmra.mxu0 %v5532
      %v5962 = vpop.f32.mrf.mxu0
      %v5963 = vadd.f32 %v5949, %v5962
      %v5964 = vpop.f32.mrf.mxu0
      %v5965 = vadd.f32 %v5951, %v5964
      %5966 = vdwg.mxu0
      %v5967 = vld [vmem:[%s17] sm:$0xff]
      %v5968 = vld [vmem:[%s17 + $0x8] sm:$0xff]
      %v5969 = vld [vmem:[%s17 + $0x10] sm:$0xff]
      %v5970 = vld [vmem:[%s17 + $0x18] sm:$0xff]
      %v5971 = vld [vmem:[%s17 + $0x20] sm:$0xff]
      %v5972 = vld [vmem:[%s17 + $0x28] sm:$0xff]
      %v5973 = vld [vmem:[%s17 + $0x30] sm:$0xff]
      %v5974 = vld [vmem:[%s17 + $0x38] sm:$0xff]
      %v5975 = vld [vmem:[%s17 + $0x40] sm:$0xff]
      %v5976 = vld [vmem:[%s17 + $0x48] sm:$0xff]
      %v5977 = vld [vmem:[%s17 + $0x50] sm:$0xff]
      %v5978 = vld [vmem:[%s17 + $0x58] sm:$0xff]
      %v5979 = vld [vmem:[%s17 + $0x60] sm:$0xff]
      %v5980 = vld [vmem:[%s17 + $0x68] sm:$0xff]
      %v5981 = vld [vmem:[%s17 + $0x70] sm:$0xff]
      %v5982 = vld [vmem:[%s17 + $0x78] sm:$0xff]
      %v5983 = vld [vmem:[%s17 + $0x80] sm:$0xff]
      %v5984 = vld [vmem:[%s17 + $0x88] sm:$0xff]
      %v5985 = vld [vmem:[%s17 + $0x90] sm:$0xff]
      %v5986 = vld [vmem:[%s17 + $0x98] sm:$0xff]
      %v5987 = vld [vmem:[%s17 + $0xa0] sm:$0xff]
      %v5988 = vld [vmem:[%s17 + $0xa8] sm:$0xff]
      %v5989 = vld [vmem:[%s17 + $0xb0] sm:$0xff]
      %v5990 = vld [vmem:[%s17 + $0xb8] sm:$0xff]
      %v5991 = vld [vmem:[%s17 + $0xc0] sm:$0xff]
      %v5992 = vld [vmem:[%s17 + $0xc8] sm:$0xff]
      %v5993 = vld [vmem:[%s17 + $0xd0] sm:$0xff]
      %v5994 = vld [vmem:[%s17 + $0xd8] sm:$0xff]
      %v5995 = vld [vmem:[%s17 + $0xe0] sm:$0xff]
      %v5996 = vld [vmem:[%s17 + $0xe8] sm:$0xff]
      %v5997 = vld [vmem:[%s17 + $0xf0] sm:$0xff]
      %v5998 = vld [vmem:[%s17 + $0xf8] sm:$0xff]
      %v5999 = vld [vmem:[%s17 + $0x100] sm:$0xff]
      %v6000 = vld [vmem:[%s17 + $0x108] sm:$0xff]
      %v6001 = vld [vmem:[%s17 + $0x110] sm:$0xff]
      %v6002 = vld [vmem:[%s17 + $0x118] sm:$0xff]
      %v6003 = vld [vmem:[%s17 + $0x120] sm:$0xff]
      %v6004 = vld [vmem:[%s17 + $0x128] sm:$0xff]
      %v6005 = vld [vmem:[%s17 + $0x130] sm:$0xff]
      %v6006 = vld [vmem:[%s17 + $0x138] sm:$0xff]
      %v6007 = vld [vmem:[%s17 + $0x140] sm:$0xff]
      %v6008 = vld [vmem:[%s17 + $0x148] sm:$0xff]
      %v6009 = vld [vmem:[%s17 + $0x150] sm:$0xff]
      %v6010 = vld [vmem:[%s17 + $0x158] sm:$0xff]
      %v6011 = vld [vmem:[%s17 + $0x160] sm:$0xff]
      %v6012 = vld [vmem:[%s17 + $0x168] sm:$0xff]
      %v6013 = vld [vmem:[%s17 + $0x170] sm:$0xff]
      %v6014 = vld [vmem:[%s17 + $0x178] sm:$0xff]
      %v6015 = vld [vmem:[%s17 + $0x180] sm:$0xff]
      %v6016 = vld [vmem:[%s17 + $0x188] sm:$0xff]
      %v6017 = vld [vmem:[%s17 + $0x190] sm:$0xff]
      %v6018 = vld [vmem:[%s17 + $0x198] sm:$0xff]
      %v6019 = vld [vmem:[%s17 + $0x1a0] sm:$0xff]
      %v6020 = vld [vmem:[%s17 + $0x1a8] sm:$0xff]
      %v6021 = vld [vmem:[%s17 + $0x1b0] sm:$0xff]
      %v6022 = vld [vmem:[%s17 + $0x1b8] sm:$0xff]
      %v6023 = vld [vmem:[%s17 + $0x1c0] sm:$0xff]
      %v6024 = vld [vmem:[%s17 + $0x1c8] sm:$0xff]
      %v6025 = vld [vmem:[%s17 + $0x1d0] sm:$0xff]
      %v6026 = vld [vmem:[%s17 + $0x1d8] sm:$0xff]
      %v6027 = vld [vmem:[%s17 + $0x1e0] sm:$0xff]
      %v6028 = vld [vmem:[%s17 + $0x1e8] sm:$0xff]
      %v6029 = vld [vmem:[%s17 + $0x1f0] sm:$0xff]
      %v6030 = vld [vmem:[%s17 + $0x1f8] sm:$0xff]
      %v6095 = vunpack.c.l.b16 %v5967
      %v6096 = vunpack.c.h.b16 %v5967
      %v6097 = vunpack.c.l.b16 %v5968
      %v6098 = vunpack.c.h.b16 %v5968
      %v6099 = vunpack.c.l.b16 %v5969
      %v6100 = vunpack.c.h.b16 %v5969
      %v6101 = vunpack.c.l.b16 %v5970
      %v6102 = vunpack.c.h.b16 %v5970
      %v6103 = vunpack.c.l.b16 %v5971
      %v6104 = vunpack.c.h.b16 %v5971
      %v6105 = vunpack.c.l.b16 %v5972
      %v6106 = vunpack.c.h.b16 %v5972
      %v6107 = vunpack.c.l.b16 %v5973
      %v6108 = vunpack.c.h.b16 %v5973
      %v6109 = vunpack.c.l.b16 %v5974
      %v6110 = vunpack.c.h.b16 %v5974
      %v6111 = vunpack.c.l.b16 %v5975
      %v6112 = vunpack.c.h.b16 %v5975
      %v6113 = vunpack.c.l.b16 %v5976
      %v6114 = vunpack.c.h.b16 %v5976
      %v6115 = vunpack.c.l.b16 %v5977
      %v6116 = vunpack.c.h.b16 %v5977
      %v6117 = vunpack.c.l.b16 %v5978
      %v6118 = vunpack.c.h.b16 %v5978
      %v6119 = vunpack.c.l.b16 %v5979
      %v6120 = vunpack.c.h.b16 %v5979
      %v6121 = vunpack.c.l.b16 %v5980
      %v6122 = vunpack.c.h.b16 %v5980
      %v6123 = vunpack.c.l.b16 %v5981
      %v6124 = vunpack.c.h.b16 %v5981
      %v6125 = vunpack.c.l.b16 %v5982
      %v6126 = vunpack.c.h.b16 %v5982
      %v6127 = vunpack.c.l.b16 %v5983
      %v6128 = vunpack.c.h.b16 %v5983
      %v6129 = vunpack.c.l.b16 %v5984
      %v6130 = vunpack.c.h.b16 %v5984
      %v6131 = vunpack.c.l.b16 %v5985
      %v6132 = vunpack.c.h.b16 %v5985
      %v6133 = vunpack.c.l.b16 %v5986
      %v6134 = vunpack.c.h.b16 %v5986
      %v6135 = vunpack.c.l.b16 %v5987
      %v6136 = vunpack.c.h.b16 %v5987
      %v6137 = vunpack.c.l.b16 %v5988
      %v6138 = vunpack.c.h.b16 %v5988
      %v6139 = vunpack.c.l.b16 %v5989
      %v6140 = vunpack.c.h.b16 %v5989
      %v6141 = vunpack.c.l.b16 %v5990
      %v6142 = vunpack.c.h.b16 %v5990
      %v6143 = vunpack.c.l.b16 %v5991
      %v6144 = vunpack.c.h.b16 %v5991
      %v6145 = vunpack.c.l.b16 %v5992
      %v6146 = vunpack.c.h.b16 %v5992
      %v6147 = vunpack.c.l.b16 %v5993
      %v6148 = vunpack.c.h.b16 %v5993
      %v6149 = vunpack.c.l.b16 %v5994
      %v6150 = vunpack.c.h.b16 %v5994
      %v6151 = vunpack.c.l.b16 %v5995
      %v6152 = vunpack.c.h.b16 %v5995
      %v6153 = vunpack.c.l.b16 %v5996
      %v6154 = vunpack.c.h.b16 %v5996
      %v6155 = vunpack.c.l.b16 %v5997
      %v6156 = vunpack.c.h.b16 %v5997
      %v6157 = vunpack.c.l.b16 %v5998
      %v6158 = vunpack.c.h.b16 %v5998
      %v6159 = vunpack.c.l.b16 %v5999
      %v6160 = vunpack.c.h.b16 %v5999
      %v6161 = vunpack.c.l.b16 %v6000
      %v6162 = vunpack.c.h.b16 %v6000
      %v6163 = vunpack.c.l.b16 %v6001
      %v6164 = vunpack.c.h.b16 %v6001
      %v6165 = vunpack.c.l.b16 %v6002
      %v6166 = vunpack.c.h.b16 %v6002
      %v6167 = vunpack.c.l.b16 %v6003
      %v6168 = vunpack.c.h.b16 %v6003
      %v6169 = vunpack.c.l.b16 %v6004
      %v6170 = vunpack.c.h.b16 %v6004
      %v6171 = vunpack.c.l.b16 %v6005
      %v6172 = vunpack.c.h.b16 %v6005
      %v6173 = vunpack.c.l.b16 %v6006
      %v6174 = vunpack.c.h.b16 %v6006
      %v6175 = vunpack.c.l.b16 %v6007
      %v6176 = vunpack.c.h.b16 %v6007
      %v6177 = vunpack.c.l.b16 %v6008
      %v6178 = vunpack.c.h.b16 %v6008
      %v6179 = vunpack.c.l.b16 %v6009
      %v6180 = vunpack.c.h.b16 %v6009
      %v6181 = vunpack.c.l.b16 %v6010
      %v6182 = vunpack.c.h.b16 %v6010
      %v6183 = vunpack.c.l.b16 %v6011
      %v6184 = vunpack.c.h.b16 %v6011
      %v6185 = vunpack.c.l.b16 %v6012
      %v6186 = vunpack.c.h.b16 %v6012
      %v6187 = vunpack.c.l.b16 %v6013
      %v6188 = vunpack.c.h.b16 %v6013
      %v6189 = vunpack.c.l.b16 %v6014
      %v6190 = vunpack.c.h.b16 %v6014
      %v6191 = vunpack.c.l.b16 %v6015
      %v6192 = vunpack.c.h.b16 %v6015
      %v6193 = vunpack.c.l.b16 %v6016
      %v6194 = vunpack.c.h.b16 %v6016
      %v6195 = vunpack.c.l.b16 %v6017
      %v6196 = vunpack.c.h.b16 %v6017
      %v6197 = vunpack.c.l.b16 %v6018
      %v6198 = vunpack.c.h.b16 %v6018
      %v6199 = vunpack.c.l.b16 %v6019
      %v6200 = vunpack.c.h.b16 %v6019
      %v6201 = vunpack.c.l.b16 %v6020
      %v6202 = vunpack.c.h.b16 %v6020
      %v6203 = vunpack.c.l.b16 %v6021
      %v6204 = vunpack.c.h.b16 %v6021
      %v6205 = vunpack.c.l.b16 %v6022
      %v6206 = vunpack.c.h.b16 %v6022
      %v6207 = vunpack.c.l.b16 %v6023
      %v6208 = vunpack.c.h.b16 %v6023
      %v6209 = vunpack.c.l.b16 %v6024
      %v6210 = vunpack.c.h.b16 %v6024
      %v6211 = vunpack.c.l.b16 %v6025
      %v6212 = vunpack.c.h.b16 %v6025
      %v6213 = vunpack.c.l.b16 %v6026
      %v6214 = vunpack.c.h.b16 %v6026
      %v6215 = vunpack.c.l.b16 %v6027
      %v6216 = vunpack.c.h.b16 %v6027
      %v6217 = vunpack.c.l.b16 %v6028
      %v6218 = vunpack.c.h.b16 %v6028
      %v6219 = vunpack.c.l.b16 %v6029
      %v6220 = vunpack.c.h.b16 %v6029
      %v6221 = vunpack.c.l.b16 %v6030
      %v6222 = vunpack.c.h.b16 %v6030
      %v6223 = vpack.c.b16 %v6099, %v6095
      %v6224 = vpack.c.b16 %v6100, %v6096
      %v6225 = vpack.c.b16 %v6101, %v6097
      %v6226 = vpack.c.b16 %v6102, %v6098
      %v6227 = vpack.c.b16 %v6107, %v6103
      %v6228 = vpack.c.b16 %v6108, %v6104
      %v6229 = vpack.c.b16 %v6109, %v6105
      %v6230 = vpack.c.b16 %v6110, %v6106
      %v6231 = vpack.c.b16 %v6115, %v6111
      %v6232 = vpack.c.b16 %v6116, %v6112
      %v6233 = vpack.c.b16 %v6117, %v6113
      %v6234 = vpack.c.b16 %v6118, %v6114
      %v6235 = vpack.c.b16 %v6123, %v6119
      %v6236 = vpack.c.b16 %v6124, %v6120
      %v6237 = vpack.c.b16 %v6125, %v6121
      %v6238 = vpack.c.b16 %v6126, %v6122
      %v6239 = vpack.c.b16 %v6131, %v6127
      %v6240 = vpack.c.b16 %v6132, %v6128
      %v6241 = vpack.c.b16 %v6133, %v6129
      %v6242 = vpack.c.b16 %v6134, %v6130
      %v6243 = vpack.c.b16 %v6139, %v6135
      %v6244 = vpack.c.b16 %v6140, %v6136
      %v6245 = vpack.c.b16 %v6141, %v6137
      %v6246 = vpack.c.b16 %v6142, %v6138
      %v6247 = vpack.c.b16 %v6147, %v6143
      %v6248 = vpack.c.b16 %v6148, %v6144
      %v6249 = vpack.c.b16 %v6149, %v6145
      %v6250 = vpack.c.b16 %v6150, %v6146
      %v6251 = vpack.c.b16 %v6155, %v6151
      %v6252 = vpack.c.b16 %v6156, %v6152
      %v6253 = vpack.c.b16 %v6157, %v6153
      %v6254 = vpack.c.b16 %v6158, %v6154
      %v6255 = vpack.c.b16 %v6163, %v6159
      %v6256 = vpack.c.b16 %v6164, %v6160
      %v6257 = vpack.c.b16 %v6165, %v6161
      %v6258 = vpack.c.b16 %v6166, %v6162
      %v6259 = vpack.c.b16 %v6171, %v6167
      %v6260 = vpack.c.b16 %v6172, %v6168
      %v6261 = vpack.c.b16 %v6173, %v6169
      %v6262 = vpack.c.b16 %v6174, %v6170
      %v6263 = vpack.c.b16 %v6179, %v6175
      %v6264 = vpack.c.b16 %v6180, %v6176
      %v6265 = vpack.c.b16 %v6181, %v6177
      %v6266 = vpack.c.b16 %v6182, %v6178
      %v6267 = vpack.c.b16 %v6187, %v6183
      %v6268 = vpack.c.b16 %v6188, %v6184
      %v6269 = vpack.c.b16 %v6189, %v6185
      %v6270 = vpack.c.b16 %v6190, %v6186
      %v6271 = vpack.c.b16 %v6195, %v6191
      %v6272 = vpack.c.b16 %v6196, %v6192
      %v6273 = vpack.c.b16 %v6197, %v6193
      %v6274 = vpack.c.b16 %v6198, %v6194
      %v6275 = vpack.c.b16 %v6203, %v6199
      %v6276 = vpack.c.b16 %v6204, %v6200
      %v6277 = vpack.c.b16 %v6205, %v6201
      %v6278 = vpack.c.b16 %v6206, %v6202
      %v6279 = vpack.c.b16 %v6211, %v6207
      %v6280 = vpack.c.b16 %v6212, %v6208
      %v6281 = vpack.c.b16 %v6213, %v6209
      %v6282 = vpack.c.b16 %v6214, %v6210
      %v6283 = vpack.c.b16 %v6219, %v6215
      %v6284 = vpack.c.b16 %v6220, %v6216
      %v6285 = vpack.c.b16 %v6221, %v6217
      %v6286 = vpack.c.b16 %v6222, %v6218
      %6351 = vmatpush.bf16.msra.mxu0 %v6251
      %6352 = vmatpush.bf16.msra.mxu0 %v6247
      %6353 = vmatpush.bf16.msra.mxu0 %v6243
      %6354 = vmatpush.bf16.msra.mxu0 %v6239
      %6355 = vmatpush.bf16.msra.mxu0 %v6235
      %6356 = vmatpush.bf16.msra.mxu0 %v6231
      %6357 = vmatpush.bf16.msra.mxu0 %v6227
      %6358 = vmatpush.bf16.msra.mxu0 %v6223
      %6359 = vmatmul.bf16.gmra.mxu0 %v4877
      %v6360 = vpop.f32.mrf.mxu0
      %v6361 = vadd.f32 0.0, %v6360
      %v6362 = vpop.f32.mrf.mxu0
      %v6363 = vadd.f32 0.0, %v6362
      %6364 = vdwg.mxu0
      %6365 = vmatpush.bf16.msra.mxu0 %v6283
      %6366 = vmatpush.bf16.msra.mxu0 %v6279
      %6367 = vmatpush.bf16.msra.mxu0 %v6275
      %6368 = vmatpush.bf16.msra.mxu0 %v6271
      %6369 = vmatpush.bf16.msra.mxu0 %v6267
      %6370 = vmatpush.bf16.msra.mxu0 %v6263
      %6371 = vmatpush.bf16.msra.mxu0 %v6259
      %6372 = vmatpush.bf16.msra.mxu0 %v6255
      %6373 = vmatmul.bf16.gmra.mxu0 %v4878
      %v6374 = vpop.f32.mrf.mxu0
      %v6375 = vadd.f32 %v6361, %v6374
      %v6376 = vpop.f32.mrf.mxu0
      %v6377 = vadd.f32 %v6363, %v6376
      %6378 = vdwg.mxu0
      %6379 = vmatpush.bf16.msra.mxu0 %v6252
      %6380 = vmatpush.bf16.msra.mxu0 %v6248
      %6381 = vmatpush.bf16.msra.mxu0 %v6244
      %6382 = vmatpush.bf16.msra.mxu0 %v6240
      %6383 = vmatpush.bf16.msra.mxu0 %v6236
      %6384 = vmatpush.bf16.msra.mxu0 %v6232
      %6385 = vmatpush.bf16.msra.mxu0 %v6228
      %6386 = vmatpush.bf16.msra.mxu0 %v6224
      %6387 = vmatmul.bf16.gmra.mxu0 %v4877
      %v6388 = vpop.f32.mrf.mxu0
      %v6389 = vadd.f32 0.0, %v6388
      %v6390 = vpop.f32.mrf.mxu0
      %v6391 = vadd.f32 0.0, %v6390
      %6392 = vdwg.mxu0
      %6393 = vmatpush.bf16.msra.mxu0 %v6284
      %6394 = vmatpush.bf16.msra.mxu0 %v6280
      %6395 = vmatpush.bf16.msra.mxu0 %v6276
      %6396 = vmatpush.bf16.msra.mxu0 %v6272
      %6397 = vmatpush.bf16.msra.mxu0 %v6268
      %6398 = vmatpush.bf16.msra.mxu0 %v6264
      %6399 = vmatpush.bf16.msra.mxu0 %v6260
      %6400 = vmatpush.bf16.msra.mxu0 %v6256
      %6401 = vmatmul.bf16.gmra.mxu0 %v4878
      %v6402 = vpop.f32.mrf.mxu0
      %v6403 = vadd.f32 %v6389, %v6402
      %v6404 = vpop.f32.mrf.mxu0
      %v6405 = vadd.f32 %v6391, %v6404
      %6406 = vdwg.mxu0
      %6407 = vmatpush.bf16.msra.mxu0 %v6253
      %6408 = vmatpush.bf16.msra.mxu0 %v6249
      %6409 = vmatpush.bf16.msra.mxu0 %v6245
      %6410 = vmatpush.bf16.msra.mxu0 %v6241
      %6411 = vmatpush.bf16.msra.mxu0 %v6237
      %6412 = vmatpush.bf16.msra.mxu0 %v6233
      %6413 = vmatpush.bf16.msra.mxu0 %v6229
      %6414 = vmatpush.bf16.msra.mxu0 %v6225
      %6415 = vmatmul.bf16.gmra.mxu0 %v4877
      %v6416 = vpop.f32.mrf.mxu0
      %v6417 = vadd.f32 0.0, %v6416
      %v6418 = vpop.f32.mrf.mxu0
      %v6419 = vadd.f32 0.0, %v6418
      %6420 = vdwg.mxu0
      %6421 = vmatpush.bf16.msra.mxu0 %v6285
      %6422 = vmatpush.bf16.msra.mxu0 %v6281
      %6423 = vmatpush.bf16.msra.mxu0 %v6277
      %6424 = vmatpush.bf16.msra.mxu0 %v6273
      %6425 = vmatpush.bf16.msra.mxu0 %v6269
      %6426 = vmatpush.bf16.msra.mxu0 %v6265
      %6427 = vmatpush.bf16.msra.mxu0 %v6261
      %6428 = vmatpush.bf16.msra.mxu0 %v6257
      %6429 = vmatmul.bf16.gmra.mxu0 %v4878
      %v6430 = vpop.f32.mrf.mxu0
      %v6431 = vadd.f32 %v6417, %v6430
      %v6432 = vpop.f32.mrf.mxu0
      %v6433 = vadd.f32 %v6419, %v6432
      %6434 = vdwg.mxu0
      %6435 = vmatpush.bf16.msra.mxu0 %v6254
      %6436 = vmatpush.bf16.msra.mxu0 %v6250
      %6437 = vmatpush.bf16.msra.mxu0 %v6246
      %6438 = vmatpush.bf16.msra.mxu0 %v6242
      %6439 = vmatpush.bf16.msra.mxu0 %v6238
      %6440 = vmatpush.bf16.msra.mxu0 %v6234
      %6441 = vmatpush.bf16.msra.mxu0 %v6230
      %6442 = vmatpush.bf16.msra.mxu0 %v6226
      %6443 = vmatmul.bf16.gmra.mxu0 %v4877
      %v6444 = vpop.f32.mrf.mxu0
      %v6445 = vadd.f32 0.0, %v6444
      %v6446 = vpop.f32.mrf.mxu0
      %v6447 = vadd.f32 0.0, %v6446
      %6448 = vdwg.mxu0
      %6449 = vmatpush.bf16.msra.mxu0 %v6286
      %6450 = vmatpush.bf16.msra.mxu0 %v6282
      %6451 = vmatpush.bf16.msra.mxu0 %v6278
      %6452 = vmatpush.bf16.msra.mxu0 %v6274
      %6453 = vmatpush.bf16.msra.mxu0 %v6270
      %6454 = vmatpush.bf16.msra.mxu0 %v6266
      %6455 = vmatpush.bf16.msra.mxu0 %v6262
      %6456 = vmatpush.bf16.msra.mxu0 %v6258
      %6457 = vmatmul.bf16.gmra.mxu0 %v4878
      %v6458 = vpop.f32.mrf.mxu0
      %v6459 = vadd.f32 %v6445, %v6458
      %v6460 = vpop.f32.mrf.mxu0
      %v6461 = vadd.f32 %v6447, %v6460
      %6462 = vdwg.mxu0
      %v6463 = vadd.f32 %v5879, %v6375
      %v6464 = vadd.f32 %v5907, %v6403
      %v6465 = vadd.f32 %v5935, %v6431
      %v6466 = vadd.f32 %v5963, %v6459
      %v6467 = vadd.f32 %v5881, %v6377
      %v6468 = vadd.f32 %v5909, %v6405
      %v6469 = vadd.f32 %v5937, %v6433
      %v6470 = vadd.f32 %v5965, %v6461
      %v6471 = vld [vmem:[%s18] sm:$0xf]
      %v6473 = vperm.slane %v6471, 0
      %v6474 = vperm.slane %v6471, 1
      %v6475 = vperm.slane %v6471, 2
      %v6476 = vperm.slane %v6471, 3
      %v6481 = vadd.f32 %v6463, %v6473
      %v6482 = vadd.f32 %v6464, %v6474
      %v6483 = vadd.f32 %v6465, %v6475
      %v6484 = vadd.f32 %v6466, %v6476
      %v6485 = vadd.f32 %v6467, %v6473
      %v6486 = vadd.f32 %v6468, %v6474
      %v6487 = vadd.f32 %v6469, %v6475
      %v6488 = vadd.f32 %v6470, %v6476
      %v6489 = vmax.f32 %v6481, 0.0
      %v6490 = vmax.f32 %v6482, 0.0
      %v6491 = vmax.f32 %v6483, 0.0
      %v6492 = vmax.f32 %v6484, 0.0
      %v6493 = vmax.f32 %v6485, 0.0
      %v6494 = vmax.f32 %v6486, 0.0
      %v6495 = vmax.f32 %v6487, 0.0
      %v6496 = vmax.f32 %v6488, 0.0
      %v6505 = vrot.slane %v6490, 6
      %v6506 = vrot.slane %v6491, 4
      %v6507 = vrot.slane %v6492, 2
      %v6508 = vrot.slane %v6494, 6
      %v6509 = vrot.slane %v6495, 4
      %v6510 = vrot.slane %v6496, 2
      %v6511 = vsel %vm3422, %v6489, %v6505
      %v6512 = vsel %vm4387, %v6506, %v6507
      %v6513 = vsel %vm1414, %v6511, %v6512
      %v6514 = vsel %vm4384, %v6489, %v6505
      %v6515 = vsel %vm4390, %v6507, %v6506
      %vm6516 = vcmask 1045506
      %v6517 = vsel %vm6516, %v6514, %v6515
      %v6518 = vrot.slane %v6517, 2
      %v6519 = vsel %vm4387, %v6489, %v6505
      %v6520 = vsel %vm3422, %v6506, %v6507
      %v6521 = vsel %vm1414, %v6520, %v6519
      %v6522 = vrot.slane %v6521, 4
      %v6523 = vsel %vm4390, %v6505, %v6489
      %v6524 = vsel %vm4384, %v6506, %v6507
      %v6525 = vsel %vm6516, %v6524, %v6523
      %v6526 = vrot.slane %v6525, 6
      %v6527 = vsel %vm3422, %v6493, %v6508
      %v6528 = vsel %vm4387, %v6509, %v6510
      %v6529 = vsel %vm1414, %v6527, %v6528
      %v6530 = vsel %vm4384, %v6493, %v6508
      %v6531 = vsel %vm4390, %v6510, %v6509
      %v6532 = vsel %vm6516, %v6530, %v6531
      %v6533 = vrot.slane %v6532, 2
      %v6534 = vsel %vm4387, %v6493, %v6508
      %v6535 = vsel %vm3422, %v6509, %v6510
      %v6536 = vsel %vm1414, %v6535, %v6534
      %v6537 = vrot.slane %v6536, 4
      %v6538 = vsel %vm4390, %v6508, %v6493
      %v6539 = vsel %vm4384, %v6509, %v6510
      %v6540 = vsel %vm6516, %v6539, %v6538
      %v6541 = vrot.slane %v6540, 6
      %6542 = vst [vmem:[#allocation1] ss:$4 sm:$0xff] %v6513
      %v6543 = vld.sshfl [vmem:[#allocation1] sm:$0xff pattern:$0x73625140]
      %v6544 = vld.sshfl [vmem:[#allocation1 + $0x8] sm:$0xff pattern:$0x73625140]
      %v6545 = vld.sshfl [vmem:[#allocation1 + $0x10] sm:$0xff pattern:$0x73625140]
      %v6546 = vld.sshfl [vmem:[#allocation1 + $0x18] sm:$0xff pattern:$0x73625140]
      %s6547 = scalar_lea.vmem [#allocation1], 32
      %6548 = vst [vmem:[%s6547] ss:$4 sm:$0xff] %v6518
      %v6549 = vld.sshfl [vmem:[#allocation1 + $0x20] sm:$0xff pattern:$0x73625140]
      %v6550 = vld.sshfl [vmem:[#allocation1 + $0x28] sm:$0xff pattern:$0x73625140]
      %v6551 = vld.sshfl [vmem:[#allocation1 + $0x30] sm:$0xff pattern:$0x73625140]
      %v6552 = vld.sshfl [vmem:[#allocation1 + $0x38] sm:$0xff pattern:$0x73625140]
      %6553 = vst [vmem:[#allocation1] ss:$4 sm:$0xff] %v6522
      %v6554 = vld.sshfl [vmem:[#allocation1] sm:$0xff pattern:$0x73625140]
      %v6555 = vld.sshfl [vmem:[#allocation1 + $0x8] sm:$0xff pattern:$0x73625140]
      %v6556 = vld.sshfl [vmem:[#allocation1 + $0x10] sm:$0xff pattern:$0x73625140]
      %v6557 = vld.sshfl [vmem:[#allocation1 + $0x18] sm:$0xff pattern:$0x73625140]
      %6558 = vst [vmem:[%s6547] ss:$4 sm:$0xff] %v6526
      %v6559 = vld.sshfl [vmem:[#allocation1 + $0x20] sm:$0xff pattern:$0x73625140]
      %v6560 = vld.sshfl [vmem:[#allocation1 + $0x28] sm:$0xff pattern:$0x73625140]
      %v6561 = vld.sshfl [vmem:[#allocation1 + $0x30] sm:$0xff pattern:$0x73625140]
      %v6562 = vld.sshfl [vmem:[#allocation1 + $0x38] sm:$0xff pattern:$0x73625140]
      %6563 = vst [vmem:[#allocation1] ss:$4 sm:$0xff] %v6529
      %v6564 = vld.sshfl [vmem:[#allocation1] sm:$0xff pattern:$0x73625140]
      %v6565 = vld.sshfl [vmem:[#allocation1 + $0x8] sm:$0xff pattern:$0x73625140]
      %v6566 = vld.sshfl [vmem:[#allocation1 + $0x10] sm:$0xff pattern:$0x73625140]
      %v6567 = vld.sshfl [vmem:[#allocation1 + $0x18] sm:$0xff pattern:$0x73625140]
      %6568 = vst [vmem:[%s6547] ss:$4 sm:$0xff] %v6533
      %v6569 = vld.sshfl [vmem:[#allocation1 + $0x20] sm:$0xff pattern:$0x73625140]
      %v6570 = vld.sshfl [vmem:[#allocation1 + $0x28] sm:$0xff pattern:$0x73625140]
      %v6571 = vld.sshfl [vmem:[#allocation1 + $0x30] sm:$0xff pattern:$0x73625140]
      %v6572 = vld.sshfl [vmem:[#allocation1 + $0x38] sm:$0xff pattern:$0x73625140]
      %6573 = vst [vmem:[#allocation1] ss:$4 sm:$0xff] %v6537
      %v6574 = vld.sshfl [vmem:[#allocation1] sm:$0xff pattern:$0x73625140]
      %v6575 = vld.sshfl [vmem:[#allocation1 + $0x8] sm:$0xff pattern:$0x73625140]
      %v6576 = vld.sshfl [vmem:[#allocation1 + $0x10] sm:$0xff pattern:$0x73625140]
      %v6577 = vld.sshfl [vmem:[#allocation1 + $0x18] sm:$0xff pattern:$0x73625140]
      %6578 = vst [vmem:[%s6547] ss:$4 sm:$0xff] %v6541
      %v6579 = vld.sshfl [vmem:[#allocation1 + $0x20] sm:$0xff pattern:$0x73625140]
      %v6580 = vld.sshfl [vmem:[#allocation1 + $0x28] sm:$0xff pattern:$0x73625140]
      %v6581 = vld.sshfl [vmem:[#allocation1 + $0x30] sm:$0xff pattern:$0x73625140]
      %v6582 = vld.sshfl [vmem:[#allocation1 + $0x38] sm:$0xff pattern:$0x73625140]
      %v6615 = vsel %vm3422, %v6543, -inf
      %v6616 = vrot.slane %v6615, 4
      %v6617 = vmax.f32 %v6615, %v6616
      %v6618 = vrot.slane %v6617, 2
      %v6619 = vmax.f32 %v6617, %v6618
      %v6620 = vrot.slane %v6619, 1
      %v6621 = vmax.f32 %v6619, %v6620
      %v6622 = vsel %vm3422, %v6544, -inf
      %v6623 = vrot.slane %v6622, 4
      %v6624 = vmax.f32 %v6622, %v6623
      %v6625 = vrot.slane %v6624, 2
      %v6626 = vmax.f32 %v6624, %v6625
      %v6627 = vrot.slane %v6626, 1
      %v6628 = vmax.f32 %v6626, %v6627
      %v6629 = vsel %vm3422, %v6545, -inf
      %v6630 = vrot.slane %v6629, 4
      %v6631 = vmax.f32 %v6629, %v6630
      %v6632 = vrot.slane %v6631, 2
      %v6633 = vmax.f32 %v6631, %v6632
      %v6634 = vrot.slane %v6633, 1
      %v6635 = vmax.f32 %v6633, %v6634
      %v6636 = vsel %vm3422, %v6546, -inf
      %v6637 = vrot.slane %v6636, 4
      %v6638 = vmax.f32 %v6636, %v6637
      %v6639 = vrot.slane %v6638, 2
      %v6640 = vmax.f32 %v6638, %v6639
      %v6641 = vrot.slane %v6640, 1
      %v6642 = vmax.f32 %v6640, %v6641
      %v6643 = vsel %vm3422, %v6549, -inf
      %v6644 = vrot.slane %v6643, 4
      %v6645 = vmax.f32 %v6643, %v6644
      %v6646 = vrot.slane %v6645, 2
      %v6647 = vmax.f32 %v6645, %v6646
      %v6648 = vrot.slane %v6647, 1
      %v6649 = vmax.f32 %v6647, %v6648
      %v6650 = vsel %vm3422, %v6550, -inf
      %v6651 = vrot.slane %v6650, 4
      %v6652 = vmax.f32 %v6650, %v6651
      %v6653 = vrot.slane %v6652, 2
      %v6654 = vmax.f32 %v6652, %v6653
      %v6655 = vrot.slane %v6654, 1
      %v6656 = vmax.f32 %v6654, %v6655
      %v6657 = vsel %vm3422, %v6551, -inf
      %v6658 = vrot.slane %v6657, 4
      %v6659 = vmax.f32 %v6657, %v6658
      %v6660 = vrot.slane %v6659, 2
      %v6661 = vmax.f32 %v6659, %v6660
      %v6662 = vrot.slane %v6661, 1
      %v6663 = vmax.f32 %v6661, %v6662
      %v6664 = vsel %vm3422, %v6552, -inf
      %v6665 = vrot.slane %v6664, 4
      %v6666 = vmax.f32 %v6664, %v6665
      %v6667 = vrot.slane %v6666, 2
      %v6668 = vmax.f32 %v6666, %v6667
      %v6669 = vrot.slane %v6668, 1
      %v6670 = vmax.f32 %v6668, %v6669
      %v6671 = vsel %vm3422, %v6554, -inf
      %v6672 = vrot.slane %v6671, 4
      %v6673 = vmax.f32 %v6671, %v6672
      %v6674 = vrot.slane %v6673, 2
      %v6675 = vmax.f32 %v6673, %v6674
      %v6676 = vrot.slane %v6675, 1
      %v6677 = vmax.f32 %v6675, %v6676
      %v6678 = vsel %vm3422, %v6555, -inf
      %v6679 = vrot.slane %v6678, 4
      %v6680 = vmax.f32 %v6678, %v6679
      %v6681 = vrot.slane %v6680, 2
      %v6682 = vmax.f32 %v6680, %v6681
      %v6683 = vrot.slane %v6682, 1
      %v6684 = vmax.f32 %v6682, %v6683
      %v6685 = vsel %vm3422, %v6556, -inf
      %v6686 = vrot.slane %v6685, 4
      %v6687 = vmax.f32 %v6685, %v6686
      %v6688 = vrot.slane %v6687, 2
      %v6689 = vmax.f32 %v6687, %v6688
      %v6690 = vrot.slane %v6689, 1
      %v6691 = vmax.f32 %v6689, %v6690
      %v6692 = vsel %vm3422, %v6557, -inf
      %v6693 = vrot.slane %v6692, 4
      %v6694 = vmax.f32 %v6692, %v6693
      %v6695 = vrot.slane %v6694, 2
      %v6696 = vmax.f32 %v6694, %v6695
      %v6697 = vrot.slane %v6696, 1
      %v6698 = vmax.f32 %v6696, %v6697
      %v6699 = vsel %vm3422, %v6559, -inf
      %v6700 = vrot.slane %v6699, 4
      %v6701 = vmax.f32 %v6699, %v6700
      %v6702 = vrot.slane %v6701, 2
      %v6703 = vmax.f32 %v6701, %v6702
      %v6704 = vrot.slane %v6703, 1
      %v6705 = vmax.f32 %v6703, %v6704
      %v6706 = vsel %vm3422, %v6560, -inf
      %v6707 = vrot.slane %v6706, 4
      %v6708 = vmax.f32 %v6706, %v6707
      %v6709 = vrot.slane %v6708, 2
      %v6710 = vmax.f32 %v6708, %v6709
      %v6711 = vrot.slane %v6710, 1
      %v6712 = vmax.f32 %v6710, %v6711
      %v6713 = vsel %vm3422, %v6561, -inf
      %v6714 = vrot.slane %v6713, 4
      %v6715 = vmax.f32 %v6713, %v6714
      %v6716 = vrot.slane %v6715, 2
      %v6717 = vmax.f32 %v6715, %v6716
      %v6718 = vrot.slane %v6717, 1
      %v6719 = vmax.f32 %v6717, %v6718
      %v6720 = vsel %vm3422, %v6562, -inf
      %v6721 = vrot.slane %v6720, 4
      %v6722 = vmax.f32 %v6720, %v6721
      %v6723 = vrot.slane %v6722, 2
      %v6724 = vmax.f32 %v6722, %v6723
      %v6725 = vrot.slane %v6724, 1
      %v6726 = vmax.f32 %v6724, %v6725
      %v6727 = vsel %vm3422, %v6564, -inf
      %v6728 = vrot.slane %v6727, 4
      %v6729 = vmax.f32 %v6727, %v6728
      %v6730 = vrot.slane %v6729, 2
      %v6731 = vmax.f32 %v6729, %v6730
      %v6732 = vrot.slane %v6731, 1
      %v6733 = vmax.f32 %v6731, %v6732
      %v6734 = vsel %vm3422, %v6565, -inf
      %v6735 = vrot.slane %v6734, 4
      %v6736 = vmax.f32 %v6734, %v6735
      %v6737 = vrot.slane %v6736, 2
      %v6738 = vmax.f32 %v6736, %v6737
      %v6739 = vrot.slane %v6738, 1
      %v6740 = vmax.f32 %v6738, %v6739
      %v6741 = vsel %vm3422, %v6566, -inf
      %v6742 = vrot.slane %v6741, 4
      %v6743 = vmax.f32 %v6741, %v6742
      %v6744 = vrot.slane %v6743, 2
      %v6745 = vmax.f32 %v6743, %v6744
      %v6746 = vrot.slane %v6745, 1
      %v6747 = vmax.f32 %v6745, %v6746
      %v6748 = vsel %vm3422, %v6567, -inf
      %v6749 = vrot.slane %v6748, 4
      %v6750 = vmax.f32 %v6748, %v6749
      %v6751 = vrot.slane %v6750, 2
      %v6752 = vmax.f32 %v6750, %v6751
      %v6753 = vrot.slane %v6752, 1
      %v6754 = vmax.f32 %v6752, %v6753
      %v6755 = vsel %vm3422, %v6569, -inf
      %v6756 = vrot.slane %v6755, 4
      %v6757 = vmax.f32 %v6755, %v6756
      %v6758 = vrot.slane %v6757, 2
      %v6759 = vmax.f32 %v6757, %v6758
      %v6760 = vrot.slane %v6759, 1
      %v6761 = vmax.f32 %v6759, %v6760
      %v6762 = vsel %vm3422, %v6570, -inf
      %v6763 = vrot.slane %v6762, 4
      %v6764 = vmax.f32 %v6762, %v6763
      %v6765 = vrot.slane %v6764, 2
      %v6766 = vmax.f32 %v6764, %v6765
      %v6767 = vrot.slane %v6766, 1
      %v6768 = vmax.f32 %v6766, %v6767
      %v6769 = vsel %vm3422, %v6571, -inf
      %v6770 = vrot.slane %v6769, 4
      %v6771 = vmax.f32 %v6769, %v6770
      %v6772 = vrot.slane %v6771, 2
      %v6773 = vmax.f32 %v6771, %v6772
      %v6774 = vrot.slane %v6773, 1
      %v6775 = vmax.f32 %v6773, %v6774
      %v6776 = vsel %vm3422, %v6572, -inf
      %v6777 = vrot.slane %v6776, 4
      %v6778 = vmax.f32 %v6776, %v6777
      %v6779 = vrot.slane %v6778, 2
      %v6780 = vmax.f32 %v6778, %v6779
      %v6781 = vrot.slane %v6780, 1
      %v6782 = vmax.f32 %v6780, %v6781
      %v6783 = vsel %vm3422, %v6574, -inf
      %v6784 = vrot.slane %v6783, 4
      %v6785 = vmax.f32 %v6783, %v6784
      %v6786 = vrot.slane %v6785, 2
      %v6787 = vmax.f32 %v6785, %v6786
      %v6788 = vrot.slane %v6787, 1
      %v6789 = vmax.f32 %v6787, %v6788
      %v6790 = vsel %vm3422, %v6575, -inf
      %v6791 = vrot.slane %v6790, 4
      %v6792 = vmax.f32 %v6790, %v6791
      %v6793 = vrot.slane %v6792, 2
      %v6794 = vmax.f32 %v6792, %v6793
      %v6795 = vrot.slane %v6794, 1
      %v6796 = vmax.f32 %v6794, %v6795
      %v6797 = vsel %vm3422, %v6576, -inf
      %v6798 = vrot.slane %v6797, 4
      %v6799 = vmax.f32 %v6797, %v6798
      %v6800 = vrot.slane %v6799, 2
      %v6801 = vmax.f32 %v6799, %v6800
      %v6802 = vrot.slane %v6801, 1
      %v6803 = vmax.f32 %v6801, %v6802
      %v6804 = vsel %vm3422, %v6577, -inf
      %v6805 = vrot.slane %v6804, 4
      %v6806 = vmax.f32 %v6804, %v6805
      %v6807 = vrot.slane %v6806, 2
      %v6808 = vmax.f32 %v6806, %v6807
      %v6809 = vrot.slane %v6808, 1
      %v6810 = vmax.f32 %v6808, %v6809
      %v6811 = vsel %vm3422, %v6579, -inf
      %v6812 = vrot.slane %v6811, 4
      %v6813 = vmax.f32 %v6811, %v6812
      %v6814 = vrot.slane %v6813, 2
      %v6815 = vmax.f32 %v6813, %v6814
      %v6816 = vrot.slane %v6815, 1
      %v6817 = vmax.f32 %v6815, %v6816
      %v6818 = vsel %vm3422, %v6580, -inf
      %v6819 = vrot.slane %v6818, 4
      %v6820 = vmax.f32 %v6818, %v6819
      %v6821 = vrot.slane %v6820, 2
      %v6822 = vmax.f32 %v6820, %v6821
      %v6823 = vrot.slane %v6822, 1
      %v6824 = vmax.f32 %v6822, %v6823
      %v6825 = vsel %vm3422, %v6581, -inf
      %v6826 = vrot.slane %v6825, 4
      %v6827 = vmax.f32 %v6825, %v6826
      %v6828 = vrot.slane %v6827, 2
      %v6829 = vmax.f32 %v6827, %v6828
      %v6830 = vrot.slane %v6829, 1
      %v6831 = vmax.f32 %v6829, %v6830
      %v6832 = vsel %vm3422, %v6582, -inf
      %v6833 = vrot.slane %v6832, 4
      %v6834 = vmax.f32 %v6832, %v6833
      %v6835 = vrot.slane %v6834, 2
      %v6836 = vmax.f32 %v6834, %v6835
      %v6837 = vrot.slane %v6836, 1
      %v6838 = vmax.f32 %v6836, %v6837
      %v6871 = vsel %vm2596, %v6649, %v6621
      %v6872 = vsel %vm2598, %v6677, %v6871
      %v6873 = vsel %vm2600, %v6705, %v6872
      %v6874 = vsel %vm2602, %v6733, %v6873
      %v6875 = vsel %vm2604, %v6761, %v6874
      %v6876 = vsel %vm2606, %v6789, %v6875
      %v6877 = vsel %vm2608, %v6817, %v6876
      %v6878 = vsel %vm2596, %v6656, %v6628
      %v6879 = vsel %vm2598, %v6684, %v6878
      %v6880 = vsel %vm2600, %v6712, %v6879
      %v6881 = vsel %vm2602, %v6740, %v6880
      %v6882 = vsel %vm2604, %v6768, %v6881
      %v6883 = vsel %vm2606, %v6796, %v6882
      %v6884 = vsel %vm2608, %v6824, %v6883
      %v6885 = vsel %vm2596, %v6663, %v6635
      %v6886 = vsel %vm2598, %v6691, %v6885
      %v6887 = vsel %vm2600, %v6719, %v6886
      %v6888 = vsel %vm2602, %v6747, %v6887
      %v6889 = vsel %vm2604, %v6775, %v6888
      %v6890 = vsel %vm2606, %v6803, %v6889
      %v6891 = vsel %vm2608, %v6831, %v6890
      %v6892 = vsel %vm2596, %v6670, %v6642
      %v6893 = vsel %vm2598, %v6698, %v6892
      %v6894 = vsel %vm2600, %v6726, %v6893
      %v6895 = vsel %vm2602, %v6754, %v6894
      %v6896 = vsel %vm2604, %v6782, %v6895
      %v6897 = vsel %vm2606, %v6810, %v6896
      %v6898 = vsel %vm2608, %v6838, %v6897
      %v6903 = vrot.slane %v6877, 7
      %v6904 = vrot.slane %v6884, 7
      %v6905 = vrot.slane %v6891, 7
      %v6906 = vrot.slane %v6898, 7
      %v6907 = vrot.slane %v6877, 1
      %v6908 = vrot.slane %v6884, 1
      %v6909 = vrot.slane %v6891, 1
      %v6910 = vrot.slane %v6898, 1
      %vm6911 = vcmp.lt.s32.totalorder %v753, 0
      %v6912 = vsub.s32 0, %v753
      %v6913 = vsel %vm6911, %v6912, %v753
      %v6914 = vshrl.u32 %v6913, 2
      %v6915 = vand.u32 %v6913, 3
      %v6916 = vsub.s32 0, %v6915
      %v6917 = vsel %vm6911, %v6916, %v6915
      %vm6918 = vcmp.ne.s32.totalorder %v6917, 0
      %vm6919 = vcmp.lt.s32.totalorder %v6917, 0
      %vm6920 = vmand %vm6919, %vm6918
      %v6921 = vadd.s32 %v6917, 4
      %v6922 = vsel %vm6920, %v6921, %v6917
      %vm6923 = vcmp.eq.s32.totalorder %v6922, 0
      %v6924 = vsel %vm6923, 1, 0
      %vm6925 = vcmp.eq.s32.totalorder %v6924, 1
      %v6926 = vsel %vm6925, 0.0, %v6903
      %v6927 = vsel %vm6925, 0.0, %v6904
      %v6928 = vsel %vm6925, 0.0, %v6905
      %v6929 = vsel %vm6925, 0.0, %v6906
      %vm6930 = vcmp.eq.s32.totalorder %v6922, 3
      %v6931 = vsel %vm6930, 1, 0
      %vm6932 = vcmp.eq.s32.totalorder %v6931, 1
      %v6933 = vsel %vm6932, 0.0, %v6907
      %v6934 = vsel %vm6932, 0.0, %v6908
      %v6935 = vsel %vm6932, 0.0, %v6909
      %v6936 = vsel %vm6932, 0.0, %v6910
      %v6937 = vpack.c.bf16 %v6926, %v6926
      %v6938 = vpack.c.bf16 %v6927, %v6927
      %v6939 = vpack.c.bf16 %v6928, %v6928
      %v6940 = vpack.c.bf16 %v6929, %v6929
      %v6941 = vpack.c.bf16 %v6621, %v6621
      %v6942 = vpack.c.bf16 %v6628, %v6628
      %v6943 = vpack.c.bf16 %v6635, %v6635
      %v6944 = vpack.c.bf16 %v6642, %v6642
      %v6945 = vpack.c.bf16 %v6649, %v6649
      %v6946 = vpack.c.bf16 %v6656, %v6656
      %v6947 = vpack.c.bf16 %v6663, %v6663
      %v6948 = vpack.c.bf16 %v6670, %v6670
      %v6949 = vpack.c.bf16 %v6677, %v6677
      %v6950 = vpack.c.bf16 %v6684, %v6684
      %v6951 = vpack.c.bf16 %v6691, %v6691
      %v6952 = vpack.c.bf16 %v6698, %v6698
      %v6953 = vpack.c.bf16 %v6705, %v6705
      %v6954 = vpack.c.bf16 %v6712, %v6712
      %v6955 = vpack.c.bf16 %v6719, %v6719
      %v6956 = vpack.c.bf16 %v6726, %v6726
      %v6957 = vpack.c.bf16 %v6733, %v6733
      %v6958 = vpack.c.bf16 %v6740, %v6740
      %v6959 = vpack.c.bf16 %v6747, %v6747
      %v6960 = vpack.c.bf16 %v6754, %v6754
      %v6961 = vpack.c.bf16 %v6761, %v6761
      %v6962 = vpack.c.bf16 %v6768, %v6768
      %v6963 = vpack.c.bf16 %v6775, %v6775
      %v6964 = vpack.c.bf16 %v6782, %v6782
      %v6965 = vpack.c.bf16 %v6789, %v6789
      %v6966 = vpack.c.bf16 %v6796, %v6796
      %v6967 = vpack.c.bf16 %v6803, %v6803
      %v6968 = vpack.c.bf16 %v6810, %v6810
      %v6969 = vpack.c.bf16 %v6817, %v6817
      %v6970 = vpack.c.bf16 %v6824, %v6824
      %v6971 = vpack.c.bf16 %v6831, %v6831
      %v6972 = vpack.c.bf16 %v6838, %v6838
      %v6973 = vpack.c.bf16 %v6933, %v6933
      %v6974 = vpack.c.bf16 %v6934, %v6934
      %v6975 = vpack.c.bf16 %v6935, %v6935
      %v6976 = vpack.c.bf16 %v6936, %v6936
      %v6977 = vld [vmem:[%s20] sm:$0xff]
      %v6978 = vld [vmem:[%s20 + $0x8] sm:$0xff]
      %v6979 = vld [vmem:[%s20 + $0x10] sm:$0xff]
      %v6980 = vld [vmem:[%s20 + $0x18] sm:$0xff]
      %v6981 = vld [vmem:[%s20 + $0x20] sm:$0xff]
      %v6982 = vld [vmem:[%s20 + $0x28] sm:$0xff]
      %v6983 = vld [vmem:[%s20 + $0x30] sm:$0xff]
      %v6984 = vld [vmem:[%s20 + $0x38] sm:$0xff]
      %v6985 = vld [vmem:[%s20 + $0x40] sm:$0xff]
      %v6986 = vld [vmem:[%s20 + $0x48] sm:$0xff]
      %v6987 = vld [vmem:[%s20 + $0x50] sm:$0xff]
      %v6988 = vld [vmem:[%s20 + $0x58] sm:$0xff]
      %v6989 = vld [vmem:[%s20 + $0x60] sm:$0xff]
      %v6990 = vld [vmem:[%s20 + $0x68] sm:$0xff]
      %v6991 = vld [vmem:[%s20 + $0x70] sm:$0xff]
      %v6992 = vld [vmem:[%s20 + $0x78] sm:$0xff]
      %v6993 = vld [vmem:[%s20 + $0x80] sm:$0xff]
      %v6994 = vld [vmem:[%s20 + $0x88] sm:$0xff]
      %v6995 = vld [vmem:[%s20 + $0x90] sm:$0xff]
      %v6996 = vld [vmem:[%s20 + $0x98] sm:$0xff]
      %v6997 = vld [vmem:[%s20 + $0xa0] sm:$0xff]
      %v6998 = vld [vmem:[%s20 + $0xa8] sm:$0xff]
      %v6999 = vld [vmem:[%s20 + $0xb0] sm:$0xff]
      %v7000 = vld [vmem:[%s20 + $0xb8] sm:$0xff]
      %v7001 = vld [vmem:[%s20 + $0xc0] sm:$0xff]
      %v7002 = vld [vmem:[%s20 + $0xc8] sm:$0xff]
      %v7003 = vld [vmem:[%s20 + $0xd0] sm:$0xff]
      %v7004 = vld [vmem:[%s20 + $0xd8] sm:$0xff]
      %v7005 = vld [vmem:[%s20 + $0xe0] sm:$0xff]
      %v7006 = vld [vmem:[%s20 + $0xe8] sm:$0xff]
      %v7007 = vld [vmem:[%s20 + $0xf0] sm:$0xff]
      %v7008 = vld [vmem:[%s20 + $0xf8] sm:$0xff]
      %v7009 = vld [vmem:[%s20 + $0x100] sm:$0xff]
      %v7010 = vld [vmem:[%s20 + $0x108] sm:$0xff]
      %v7011 = vld [vmem:[%s20 + $0x110] sm:$0xff]
      %v7012 = vld [vmem:[%s20 + $0x118] sm:$0xff]
      %v7013 = vld [vmem:[%s20 + $0x120] sm:$0xff]
      %v7014 = vld [vmem:[%s20 + $0x128] sm:$0xff]
      %v7015 = vld [vmem:[%s20 + $0x130] sm:$0xff]
      %v7016 = vld [vmem:[%s20 + $0x138] sm:$0xff]
      %v7017 = vld [vmem:[%s20 + $0x140] sm:$0xff]
      %v7018 = vld [vmem:[%s20 + $0x148] sm:$0xff]
      %v7019 = vld [vmem:[%s20 + $0x150] sm:$0xff]
      %v7020 = vld [vmem:[%s20 + $0x158] sm:$0xff]
      %v7021 = vld [vmem:[%s20 + $0x160] sm:$0xff]
      %v7022 = vld [vmem:[%s20 + $0x168] sm:$0xff]
      %v7023 = vld [vmem:[%s20 + $0x170] sm:$0xff]
      %v7024 = vld [vmem:[%s20 + $0x178] sm:$0xff]
      %v7025 = vld [vmem:[%s20 + $0x180] sm:$0xff]
      %v7026 = vld [vmem:[%s20 + $0x188] sm:$0xff]
      %v7027 = vld [vmem:[%s20 + $0x190] sm:$0xff]
      %v7028 = vld [vmem:[%s20 + $0x198] sm:$0xff]
      %v7029 = vld [vmem:[%s20 + $0x1a0] sm:$0xff]
      %v7030 = vld [vmem:[%s20 + $0x1a8] sm:$0xff]
      %v7031 = vld [vmem:[%s20 + $0x1b0] sm:$0xff]
      %v7032 = vld [vmem:[%s20 + $0x1b8] sm:$0xff]
      %v7033 = vld [vmem:[%s20 + $0x1c0] sm:$0xff]
      %v7034 = vld [vmem:[%s20 + $0x1c8] sm:$0xff]
      %v7035 = vld [vmem:[%s20 + $0x1d0] sm:$0xff]
      %v7036 = vld [vmem:[%s20 + $0x1d8] sm:$0xff]
      %v7037 = vld [vmem:[%s20 + $0x1e0] sm:$0xff]
      %v7038 = vld [vmem:[%s20 + $0x1e8] sm:$0xff]
      %v7039 = vld [vmem:[%s20 + $0x1f0] sm:$0xff]
      %v7040 = vld [vmem:[%s20 + $0x1f8] sm:$0xff]
      %v7041 = vld [vmem:[%s19] sm:$0xff]
      %v7042 = vld [vmem:[%s19 + $0x8] sm:$0xff]
      %v7043 = vld [vmem:[%s19 + $0x10] sm:$0xff]
      %v7044 = vld [vmem:[%s19 + $0x18] sm:$0xff]
      %v7045 = vld [vmem:[%s19 + $0x20] sm:$0xff]
      %v7046 = vld [vmem:[%s19 + $0x28] sm:$0xff]
      %v7047 = vld [vmem:[%s19 + $0x30] sm:$0xff]
      %v7048 = vld [vmem:[%s19 + $0x38] sm:$0xff]
      %v7049 = vld [vmem:[%s19 + $0x40] sm:$0xff]
      %v7050 = vld [vmem:[%s19 + $0x48] sm:$0xff]
      %v7051 = vld [vmem:[%s19 + $0x50] sm:$0xff]
      %v7052 = vld [vmem:[%s19 + $0x58] sm:$0xff]
      %v7053 = vld [vmem:[%s19 + $0x60] sm:$0xff]
      %v7054 = vld [vmem:[%s19 + $0x68] sm:$0xff]
      %v7055 = vld [vmem:[%s19 + $0x70] sm:$0xff]
      %v7056 = vld [vmem:[%s19 + $0x78] sm:$0xff]
      %v7057 = vld [vmem:[%s19 + $0x80] sm:$0xff]
      %v7058 = vld [vmem:[%s19 + $0x88] sm:$0xff]
      %v7059 = vld [vmem:[%s19 + $0x90] sm:$0xff]
      %v7060 = vld [vmem:[%s19 + $0x98] sm:$0xff]
      %v7061 = vld [vmem:[%s19 + $0xa0] sm:$0xff]
      %v7062 = vld [vmem:[%s19 + $0xa8] sm:$0xff]
      %v7063 = vld [vmem:[%s19 + $0xb0] sm:$0xff]
      %v7064 = vld [vmem:[%s19 + $0xb8] sm:$0xff]
      %v7065 = vld [vmem:[%s19 + $0xc0] sm:$0xff]
      %v7066 = vld [vmem:[%s19 + $0xc8] sm:$0xff]
      %v7067 = vld [vmem:[%s19 + $0xd0] sm:$0xff]
      %v7068 = vld [vmem:[%s19 + $0xd8] sm:$0xff]
      %v7069 = vld [vmem:[%s19 + $0xe0] sm:$0xff]
      %v7070 = vld [vmem:[%s19 + $0xe8] sm:$0xff]
      %v7071 = vld [vmem:[%s19 + $0xf0] sm:$0xff]
      %v7072 = vld [vmem:[%s19 + $0xf8] sm:$0xff]
      %v7073 = vld [vmem:[%s19 + $0x100] sm:$0xff]
      %v7074 = vld [vmem:[%s19 + $0x108] sm:$0xff]
      %v7075 = vld [vmem:[%s19 + $0x110] sm:$0xff]
      %v7076 = vld [vmem:[%s19 + $0x118] sm:$0xff]
      %v7077 = vld [vmem:[%s19 + $0x120] sm:$0xff]
      %v7078 = vld [vmem:[%s19 + $0x128] sm:$0xff]
      %v7079 = vld [vmem:[%s19 + $0x130] sm:$0xff]
      %v7080 = vld [vmem:[%s19 + $0x138] sm:$0xff]
      %v7081 = vld [vmem:[%s19 + $0x140] sm:$0xff]
      %v7082 = vld [vmem:[%s19 + $0x148] sm:$0xff]
      %v7083 = vld [vmem:[%s19 + $0x150] sm:$0xff]
      %v7084 = vld [vmem:[%s19 + $0x158] sm:$0xff]
      %v7085 = vld [vmem:[%s19 + $0x160] sm:$0xff]
      %v7086 = vld [vmem:[%s19 + $0x168] sm:$0xff]
      %v7087 = vld [vmem:[%s19 + $0x170] sm:$0xff]
      %v7088 = vld [vmem:[%s19 + $0x178] sm:$0xff]
      %v7089 = vld [vmem:[%s19 + $0x180] sm:$0xff]
      %v7090 = vld [vmem:[%s19 + $0x188] sm:$0xff]
      %v7091 = vld [vmem:[%s19 + $0x190] sm:$0xff]
      %v7092 = vld [vmem:[%s19 + $0x198] sm:$0xff]
      %v7093 = vld [vmem:[%s19 + $0x1a0] sm:$0xff]
      %v7094 = vld [vmem:[%s19 + $0x1a8] sm:$0xff]
      %v7095 = vld [vmem:[%s19 + $0x1b0] sm:$0xff]
      %v7096 = vld [vmem:[%s19 + $0x1b8] sm:$0xff]
      %v7097 = vld [vmem:[%s19 + $0x1c0] sm:$0xff]
      %v7098 = vld [vmem:[%s19 + $0x1c8] sm:$0xff]
      %v7099 = vld [vmem:[%s19 + $0x1d0] sm:$0xff]
      %v7100 = vld [vmem:[%s19 + $0x1d8] sm:$0xff]
      %v7101 = vld [vmem:[%s19 + $0x1e0] sm:$0xff]
      %v7102 = vld [vmem:[%s19 + $0x1e8] sm:$0xff]
      %v7103 = vld [vmem:[%s19 + $0x1f0] sm:$0xff]
      %v7104 = vld [vmem:[%s19 + $0x1f8] sm:$0xff]
      %v7169 = vunpack.c.l.b16 %v7041
      %v7170 = vunpack.c.h.b16 %v7041
      %v7171 = vunpack.c.l.b16 %v7042
      %v7172 = vunpack.c.h.b16 %v7042
      %v7173 = vunpack.c.l.b16 %v7043
      %v7174 = vunpack.c.h.b16 %v7043
      %v7175 = vunpack.c.l.b16 %v7044
      %v7176 = vunpack.c.h.b16 %v7044
      %v7177 = vunpack.c.l.b16 %v7045
      %v7178 = vunpack.c.h.b16 %v7045
      %v7179 = vunpack.c.l.b16 %v7046
      %v7180 = vunpack.c.h.b16 %v7046
      %v7181 = vunpack.c.l.b16 %v7047
      %v7182 = vunpack.c.h.b16 %v7047
      %v7183 = vunpack.c.l.b16 %v7048
      %v7184 = vunpack.c.h.b16 %v7048
      %v7185 = vunpack.c.l.b16 %v7049
      %v7186 = vunpack.c.h.b16 %v7049
      %v7187 = vunpack.c.l.b16 %v7050
      %v7188 = vunpack.c.h.b16 %v7050
      %v7189 = vunpack.c.l.b16 %v7051
      %v7190 = vunpack.c.h.b16 %v7051
      %v7191 = vunpack.c.l.b16 %v7052
      %v7192 = vunpack.c.h.b16 %v7052
      %v7193 = vunpack.c.l.b16 %v7053
      %v7194 = vunpack.c.h.b16 %v7053
      %v7195 = vunpack.c.l.b16 %v7054
      %v7196 = vunpack.c.h.b16 %v7054
      %v7197 = vunpack.c.l.b16 %v7055
      %v7198 = vunpack.c.h.b16 %v7055
      %v7199 = vunpack.c.l.b16 %v7056
      %v7200 = vunpack.c.h.b16 %v7056
      %v7201 = vunpack.c.l.b16 %v7057
      %v7202 = vunpack.c.h.b16 %v7057
      %v7203 = vunpack.c.l.b16 %v7058
      %v7204 = vunpack.c.h.b16 %v7058
      %v7205 = vunpack.c.l.b16 %v7059
      %v7206 = vunpack.c.h.b16 %v7059
      %v7207 = vunpack.c.l.b16 %v7060
      %v7208 = vunpack.c.h.b16 %v7060
      %v7209 = vunpack.c.l.b16 %v7061
      %v7210 = vunpack.c.h.b16 %v7061
      %v7211 = vunpack.c.l.b16 %v7062
      %v7212 = vunpack.c.h.b16 %v7062
      %v7213 = vunpack.c.l.b16 %v7063
      %v7214 = vunpack.c.h.b16 %v7063
      %v7215 = vunpack.c.l.b16 %v7064
      %v7216 = vunpack.c.h.b16 %v7064
      %v7217 = vunpack.c.l.b16 %v7065
      %v7218 = vunpack.c.h.b16 %v7065
      %v7219 = vunpack.c.l.b16 %v7066
      %v7220 = vunpack.c.h.b16 %v7066
      %v7221 = vunpack.c.l.b16 %v7067
      %v7222 = vunpack.c.h.b16 %v7067
      %v7223 = vunpack.c.l.b16 %v7068
      %v7224 = vunpack.c.h.b16 %v7068
      %v7225 = vunpack.c.l.b16 %v7069
      %v7226 = vunpack.c.h.b16 %v7069
      %v7227 = vunpack.c.l.b16 %v7070
      %v7228 = vunpack.c.h.b16 %v7070
      %v7229 = vunpack.c.l.b16 %v7071
      %v7230 = vunpack.c.h.b16 %v7071
      %v7231 = vunpack.c.l.b16 %v7072
      %v7232 = vunpack.c.h.b16 %v7072
      %v7233 = vunpack.c.l.b16 %v7073
      %v7234 = vunpack.c.h.b16 %v7073
      %v7235 = vunpack.c.l.b16 %v7074
      %v7236 = vunpack.c.h.b16 %v7074
      %v7237 = vunpack.c.l.b16 %v7075
      %v7238 = vunpack.c.h.b16 %v7075
      %v7239 = vunpack.c.l.b16 %v7076
      %v7240 = vunpack.c.h.b16 %v7076
      %v7241 = vunpack.c.l.b16 %v7077
      %v7242 = vunpack.c.h.b16 %v7077
      %v7243 = vunpack.c.l.b16 %v7078
      %v7244 = vunpack.c.h.b16 %v7078
      %v7245 = vunpack.c.l.b16 %v7079
      %v7246 = vunpack.c.h.b16 %v7079
      %v7247 = vunpack.c.l.b16 %v7080
      %v7248 = vunpack.c.h.b16 %v7080
      %v7249 = vunpack.c.l.b16 %v7081
      %v7250 = vunpack.c.h.b16 %v7081
      %v7251 = vunpack.c.l.b16 %v7082
      %v7252 = vunpack.c.h.b16 %v7082
      %v7253 = vunpack.c.l.b16 %v7083
      %v7254 = vunpack.c.h.b16 %v7083
      %v7255 = vunpack.c.l.b16 %v7084
      %v7256 = vunpack.c.h.b16 %v7084
      %v7257 = vunpack.c.l.b16 %v7085
      %v7258 = vunpack.c.h.b16 %v7085
      %v7259 = vunpack.c.l.b16 %v7086
      %v7260 = vunpack.c.h.b16 %v7086
      %v7261 = vunpack.c.l.b16 %v7087
      %v7262 = vunpack.c.h.b16 %v7087
      %v7263 = vunpack.c.l.b16 %v7088
      %v7264 = vunpack.c.h.b16 %v7088
      %v7265 = vunpack.c.l.b16 %v7089
      %v7266 = vunpack.c.h.b16 %v7089
      %v7267 = vunpack.c.l.b16 %v7090
      %v7268 = vunpack.c.h.b16 %v7090
      %v7269 = vunpack.c.l.b16 %v7091
      %v7270 = vunpack.c.h.b16 %v7091
      %v7271 = vunpack.c.l.b16 %v7092
      %v7272 = vunpack.c.h.b16 %v7092
      %v7273 = vunpack.c.l.b16 %v7093
      %v7274 = vunpack.c.h.b16 %v7093
      %v7275 = vunpack.c.l.b16 %v7094
      %v7276 = vunpack.c.h.b16 %v7094
      %v7277 = vunpack.c.l.b16 %v7095
      %v7278 = vunpack.c.h.b16 %v7095
      %v7279 = vunpack.c.l.b16 %v7096
      %v7280 = vunpack.c.h.b16 %v7096
      %v7281 = vunpack.c.l.b16 %v7097
      %v7282 = vunpack.c.h.b16 %v7097
      %v7283 = vunpack.c.l.b16 %v7098
      %v7284 = vunpack.c.h.b16 %v7098
      %v7285 = vunpack.c.l.b16 %v7099
      %v7286 = vunpack.c.h.b16 %v7099
      %v7287 = vunpack.c.l.b16 %v7100
      %v7288 = vunpack.c.h.b16 %v7100
      %v7289 = vunpack.c.l.b16 %v7101
      %v7290 = vunpack.c.h.b16 %v7101
      %v7291 = vunpack.c.l.b16 %v7102
      %v7292 = vunpack.c.h.b16 %v7102
      %v7293 = vunpack.c.l.b16 %v7103
      %v7294 = vunpack.c.h.b16 %v7103
      %v7295 = vunpack.c.l.b16 %v7104
      %v7296 = vunpack.c.h.b16 %v7104
      %v7297 = vpack.c.b16 %v7171, %v7169
      %v7298 = vpack.c.b16 %v7172, %v7170
      %v7299 = vpack.c.b16 %v7175, %v7173
      %v7300 = vpack.c.b16 %v7176, %v7174
      %v7301 = vpack.c.b16 %v7179, %v7177
      %v7302 = vpack.c.b16 %v7180, %v7178
      %v7303 = vpack.c.b16 %v7183, %v7181
      %v7304 = vpack.c.b16 %v7184, %v7182
      %v7305 = vpack.c.b16 %v7187, %v7185
      %v7306 = vpack.c.b16 %v7188, %v7186
      %v7307 = vpack.c.b16 %v7191, %v7189
      %v7308 = vpack.c.b16 %v7192, %v7190
      %v7309 = vpack.c.b16 %v7195, %v7193
      %v7310 = vpack.c.b16 %v7196, %v7194
      %v7311 = vpack.c.b16 %v7199, %v7197
      %v7312 = vpack.c.b16 %v7200, %v7198
      %v7313 = vpack.c.b16 %v7203, %v7201
      %v7314 = vpack.c.b16 %v7204, %v7202
      %v7315 = vpack.c.b16 %v7207, %v7205
      %v7316 = vpack.c.b16 %v7208, %v7206
      %v7317 = vpack.c.b16 %v7211, %v7209
      %v7318 = vpack.c.b16 %v7212, %v7210
      %v7319 = vpack.c.b16 %v7215, %v7213
      %v7320 = vpack.c.b16 %v7216, %v7214
      %v7321 = vpack.c.b16 %v7219, %v7217
      %v7322 = vpack.c.b16 %v7220, %v7218
      %v7323 = vpack.c.b16 %v7223, %v7221
      %v7324 = vpack.c.b16 %v7224, %v7222
      %v7325 = vpack.c.b16 %v7227, %v7225
      %v7326 = vpack.c.b16 %v7228, %v7226
      %v7327 = vpack.c.b16 %v7231, %v7229
      %v7328 = vpack.c.b16 %v7232, %v7230
      %v7329 = vpack.c.b16 %v7235, %v7233
      %v7330 = vpack.c.b16 %v7236, %v7234
      %v7331 = vpack.c.b16 %v7239, %v7237
      %v7332 = vpack.c.b16 %v7240, %v7238
      %v7333 = vpack.c.b16 %v7243, %v7241
      %v7334 = vpack.c.b16 %v7244, %v7242
      %v7335 = vpack.c.b16 %v7247, %v7245
      %v7336 = vpack.c.b16 %v7248, %v7246
      %v7337 = vpack.c.b16 %v7251, %v7249
      %v7338 = vpack.c.b16 %v7252, %v7250
      %v7339 = vpack.c.b16 %v7255, %v7253
      %v7340 = vpack.c.b16 %v7256, %v7254
      %v7341 = vpack.c.b16 %v7259, %v7257
      %v7342 = vpack.c.b16 %v7260, %v7258
      %v7343 = vpack.c.b16 %v7263, %v7261
      %v7344 = vpack.c.b16 %v7264, %v7262
      %v7345 = vpack.c.b16 %v7267, %v7265
      %v7346 = vpack.c.b16 %v7268, %v7266
      %v7347 = vpack.c.b16 %v7271, %v7269
      %v7348 = vpack.c.b16 %v7272, %v7270
      %v7349 = vpack.c.b16 %v7275, %v7273
      %v7350 = vpack.c.b16 %v7276, %v7274
      %v7351 = vpack.c.b16 %v7279, %v7277
      %v7352 = vpack.c.b16 %v7280, %v7278
      %v7353 = vpack.c.b16 %v7283, %v7281
      %v7354 = vpack.c.b16 %v7284, %v7282
      %v7355 = vpack.c.b16 %v7287, %v7285
      %v7356 = vpack.c.b16 %v7288, %v7286
      %v7357 = vpack.c.b16 %v7291, %v7289
      %v7358 = vpack.c.b16 %v7292, %v7290
      %v7359 = vpack.c.b16 %v7295, %v7293
      %v7360 = vpack.c.b16 %v7296, %v7294
      %7425 = vmatpush.bf16.msra.mxu0 %v7311
      %7426 = vmatpush.bf16.msra.mxu0 %v7309
      %7427 = vmatpush.bf16.msra.mxu0 %v7307
      %7428 = vmatpush.bf16.msra.mxu0 %v7305
      %7429 = vmatpush.bf16.msra.mxu0 %v7303
      %7430 = vmatpush.bf16.msra.mxu0 %v7301
      %7431 = vmatpush.bf16.msra.mxu0 %v7299
      %7432 = vmatpush.bf16.msra.mxu0 %v7297
      %7433 = vmatmul.bf16.gmra.mxu0 %v6937
      %v7434 = vpop.f32.mrf.mxu0
      %v7435 = vadd.f32 0.0, %v7434
      %v7436 = vpop.f32.mrf.mxu0
      %7437 = vdwg.mxu0
      %7438 = vmatpush.bf16.msra.mxu0 %v7327
      %7439 = vmatpush.bf16.msra.mxu0 %v7325
      %7440 = vmatpush.bf16.msra.mxu0 %v7323
      %7441 = vmatpush.bf16.msra.mxu0 %v7321
      %7442 = vmatpush.bf16.msra.mxu0 %v7319
      %7443 = vmatpush.bf16.msra.mxu0 %v7317
      %7444 = vmatpush.bf16.msra.mxu0 %v7315
      %7445 = vmatpush.bf16.msra.mxu0 %v7313
      %7446 = vmatmul.bf16.gmra.mxu0 %v6938
      %v7447 = vpop.f32.mrf.mxu0
      %v7448 = vadd.f32 %v7435, %v7447
      %v7449 = vpop.f32.mrf.mxu0
      %7450 = vdwg.mxu0
      %7451 = vmatpush.bf16.msra.mxu0 %v7343
      %7452 = vmatpush.bf16.msra.mxu0 %v7341
      %7453 = vmatpush.bf16.msra.mxu0 %v7339
      %7454 = vmatpush.bf16.msra.mxu0 %v7337
      %7455 = vmatpush.bf16.msra.mxu0 %v7335
      %7456 = vmatpush.bf16.msra.mxu0 %v7333
      %7457 = vmatpush.bf16.msra.mxu0 %v7331
      %7458 = vmatpush.bf16.msra.mxu0 %v7329
      %7459 = vmatmul.bf16.gmra.mxu0 %v6939
      %v7460 = vpop.f32.mrf.mxu0
      %v7461 = vadd.f32 %v7448, %v7460
      %v7462 = vpop.f32.mrf.mxu0
      %7463 = vdwg.mxu0
      %7464 = vmatpush.bf16.msra.mxu0 %v7359
      %7465 = vmatpush.bf16.msra.mxu0 %v7357
      %7466 = vmatpush.bf16.msra.mxu0 %v7355
      %7467 = vmatpush.bf16.msra.mxu0 %v7353
      %7468 = vmatpush.bf16.msra.mxu0 %v7351
      %7469 = vmatpush.bf16.msra.mxu0 %v7349
      %7470 = vmatpush.bf16.msra.mxu0 %v7347
      %7471 = vmatpush.bf16.msra.mxu0 %v7345
      %7472 = vmatmul.bf16.gmra.mxu0 %v6940
      %v7473 = vpop.f32.mrf.mxu0
      %v7474 = vadd.f32 %v7461, %v7473
      %v7475 = vpop.f32.mrf.mxu0
      %7476 = vdwg.mxu0
      %7477 = vmatpush.bf16.msra.mxu0 %v7312
      %7478 = vmatpush.bf16.msra.mxu0 %v7310
      %7479 = vmatpush.bf16.msra.mxu0 %v7308
      %7480 = vmatpush.bf16.msra.mxu0 %v7306
      %7481 = vmatpush.bf16.msra.mxu0 %v7304
      %7482 = vmatpush.bf16.msra.mxu0 %v7302
      %7483 = vmatpush.bf16.msra.mxu0 %v7300
      %7484 = vmatpush.bf16.msra.mxu0 %v7298
      %7485 = vmatmul.bf16.gmra.mxu0 %v6937
      %v7486 = vpop.f32.mrf.mxu0
      %v7487 = vadd.f32 0.0, %v7486
      %v7488 = vpop.f32.mrf.mxu0
      %7489 = vdwg.mxu0
      %7490 = vmatpush.bf16.msra.mxu0 %v7328
      %7491 = vmatpush.bf16.msra.mxu0 %v7326
      %7492 = vmatpush.bf16.msra.mxu0 %v7324
      %7493 = vmatpush.bf16.msra.mxu0 %v7322
      %7494 = vmatpush.bf16.msra.mxu0 %v7320
      %7495 = vmatpush.bf16.msra.mxu0 %v7318
      %7496 = vmatpush.bf16.msra.mxu0 %v7316
      %7497 = vmatpush.bf16.msra.mxu0 %v7314
      %7498 = vmatmul.bf16.gmra.mxu0 %v6938
      %v7499 = vpop.f32.mrf.mxu0
      %v7500 = vadd.f32 %v7487, %v7499
      %v7501 = vpop.f32.mrf.mxu0
      %7502 = vdwg.mxu0
      %7503 = vmatpush.bf16.msra.mxu0 %v7344
      %7504 = vmatpush.bf16.msra.mxu0 %v7342
      %7505 = vmatpush.bf16.msra.mxu0 %v7340
      %7506 = vmatpush.bf16.msra.mxu0 %v7338
      %7507 = vmatpush.bf16.msra.mxu0 %v7336
      %7508 = vmatpush.bf16.msra.mxu0 %v7334
      %7509 = vmatpush.bf16.msra.mxu0 %v7332
      %7510 = vmatpush.bf16.msra.mxu0 %v7330
      %7511 = vmatmul.bf16.gmra.mxu0 %v6939
      %v7512 = vpop.f32.mrf.mxu0
      %v7513 = vadd.f32 %v7500, %v7512
      %v7514 = vpop.f32.mrf.mxu0
      %7515 = vdwg.mxu0
      %7516 = vmatpush.bf16.msra.mxu0 %v7360
      %7517 = vmatpush.bf16.msra.mxu0 %v7358
      %7518 = vmatpush.bf16.msra.mxu0 %v7356
      %7519 = vmatpush.bf16.msra.mxu0 %v7354
      %7520 = vmatpush.bf16.msra.mxu0 %v7352
      %7521 = vmatpush.bf16.msra.mxu0 %v7350
      %7522 = vmatpush.bf16.msra.mxu0 %v7348
      %7523 = vmatpush.bf16.msra.mxu0 %v7346
      %7524 = vmatmul.bf16.gmra.mxu0 %v6940
      %v7525 = vpop.f32.mrf.mxu0
      %v7526 = vadd.f32 %v7513, %v7525
      %v7527 = vpop.f32.mrf.mxu0
      %7528 = vdwg.mxu0
      %v7561 = vunpack.c.l.b16 %v6941
      %v7562 = vunpack.c.l.b16 %v6942
      %v7563 = vunpack.c.l.b16 %v6943
      %v7564 = vunpack.c.l.b16 %v6944
      %v7565 = vunpack.c.l.b16 %v6945
      %v7566 = vunpack.c.l.b16 %v6946
      %v7567 = vunpack.c.l.b16 %v6947
      %v7568 = vunpack.c.l.b16 %v6948
      %v7569 = vunpack.c.l.b16 %v6949
      %v7570 = vunpack.c.l.b16 %v6950
      %v7571 = vunpack.c.l.b16 %v6951
      %v7572 = vunpack.c.l.b16 %v6952
      %v7573 = vunpack.c.l.b16 %v6953
      %v7574 = vunpack.c.l.b16 %v6954
      %v7575 = vunpack.c.l.b16 %v6955
      %v7576 = vunpack.c.l.b16 %v6956
      %v7577 = vunpack.c.l.b16 %v6957
      %v7578 = vunpack.c.l.b16 %v6958
      %v7579 = vunpack.c.l.b16 %v6959
      %v7580 = vunpack.c.l.b16 %v6960
      %v7581 = vunpack.c.l.b16 %v6961
      %v7582 = vunpack.c.l.b16 %v6962
      %v7583 = vunpack.c.l.b16 %v6963
      %v7584 = vunpack.c.l.b16 %v6964
      %v7585 = vunpack.c.l.b16 %v6965
      %v7586 = vunpack.c.l.b16 %v6966
      %v7587 = vunpack.c.l.b16 %v6967
      %v7588 = vunpack.c.l.b16 %v6968
      %v7589 = vunpack.c.l.b16 %v6969
      %v7590 = vunpack.c.l.b16 %v6970
      %v7591 = vunpack.c.l.b16 %v6971
      %v7592 = vunpack.c.l.b16 %v6972
      %v7593 = vsel %vm2596, %v7565, %v7561
      %v7594 = vsel %vm2598, %v7569, %v7593
      %v7595 = vsel %vm2600, %v7573, %v7594
      %v7596 = vsel %vm2602, %v7577, %v7595
      %v7597 = vsel %vm2604, %v7581, %v7596
      %v7598 = vsel %vm2606, %v7585, %v7597
      %v7599 = vsel %vm2608, %v7589, %v7598
      %v7600 = vsel %vm2596, %v7566, %v7562
      %v7601 = vsel %vm2598, %v7570, %v7600
      %v7602 = vsel %vm2600, %v7574, %v7601
      %v7603 = vsel %vm2602, %v7578, %v7602
      %v7604 = vsel %vm2604, %v7582, %v7603
      %v7605 = vsel %vm2606, %v7586, %v7604
      %v7606 = vsel %vm2608, %v7590, %v7605
      %v7607 = vsel %vm2596, %v7567, %v7563
      %v7608 = vsel %vm2598, %v7571, %v7607
      %v7609 = vsel %vm2600, %v7575, %v7608
      %v7610 = vsel %vm2602, %v7579, %v7609
      %v7611 = vsel %vm2604, %v7583, %v7610
      %v7612 = vsel %vm2606, %v7587, %v7611
      %v7613 = vsel %vm2608, %v7591, %v7612
      %v7614 = vsel %vm2596, %v7568, %v7564
      %v7615 = vsel %vm2598, %v7572, %v7614
      %v7616 = vsel %vm2600, %v7576, %v7615
      %v7617 = vsel %vm2602, %v7580, %v7616
      %v7618 = vsel %vm2604, %v7584, %v7617
      %v7619 = vsel %vm2606, %v7588, %v7618
      %v7620 = vsel %vm2608, %v7592, %v7619
      %v7621 = vpack.c.b16 %v7599, %v7599
      %v7622 = vpack.c.b16 %v7606, %v7606
      %v7623 = vpack.c.b16 %v7613, %v7613
      %v7624 = vpack.c.b16 %v7620, %v7620
      %v7693 = vunpack.c.l.b16 %v6977
      %v7694 = vunpack.c.h.b16 %v6977
      %v7695 = vunpack.c.l.b16 %v6978
      %v7696 = vunpack.c.h.b16 %v6978
      %v7697 = vunpack.c.l.b16 %v6979
      %v7698 = vunpack.c.h.b16 %v6979
      %v7699 = vunpack.c.l.b16 %v6980
      %v7700 = vunpack.c.h.b16 %v6980
      %v7701 = vunpack.c.l.b16 %v6981
      %v7702 = vunpack.c.h.b16 %v6981
      %v7703 = vunpack.c.l.b16 %v6982
      %v7704 = vunpack.c.h.b16 %v6982
      %v7705 = vunpack.c.l.b16 %v6983
      %v7706 = vunpack.c.h.b16 %v6983
      %v7707 = vunpack.c.l.b16 %v6984
      %v7708 = vunpack.c.h.b16 %v6984
      %v7709 = vunpack.c.l.b16 %v6985
      %v7710 = vunpack.c.h.b16 %v6985
      %v7711 = vunpack.c.l.b16 %v6986
      %v7712 = vunpack.c.h.b16 %v6986
      %v7713 = vunpack.c.l.b16 %v6987
      %v7714 = vunpack.c.h.b16 %v6987
      %v7715 = vunpack.c.l.b16 %v6988
      %v7716 = vunpack.c.h.b16 %v6988
      %v7717 = vunpack.c.l.b16 %v6989
      %v7718 = vunpack.c.h.b16 %v6989
      %v7719 = vunpack.c.l.b16 %v6990
      %v7720 = vunpack.c.h.b16 %v6990
      %v7721 = vunpack.c.l.b16 %v6991
      %v7722 = vunpack.c.h.b16 %v6991
      %v7723 = vunpack.c.l.b16 %v6992
      %v7724 = vunpack.c.h.b16 %v6992
      %v7725 = vunpack.c.l.b16 %v6993
      %v7726 = vunpack.c.h.b16 %v6993
      %v7727 = vunpack.c.l.b16 %v6994
      %v7728 = vunpack.c.h.b16 %v6994
      %v7729 = vunpack.c.l.b16 %v6995
      %v7730 = vunpack.c.h.b16 %v6995
      %v7731 = vunpack.c.l.b16 %v6996
      %v7732 = vunpack.c.h.b16 %v6996
      %v7733 = vunpack.c.l.b16 %v6997
      %v7734 = vunpack.c.h.b16 %v6997
      %v7735 = vunpack.c.l.b16 %v6998
      %v7736 = vunpack.c.h.b16 %v6998
      %v7737 = vunpack.c.l.b16 %v6999
      %v7738 = vunpack.c.h.b16 %v6999
      %v7739 = vunpack.c.l.b16 %v7000
      %v7740 = vunpack.c.h.b16 %v7000
      %v7741 = vunpack.c.l.b16 %v7001
      %v7742 = vunpack.c.h.b16 %v7001
      %v7743 = vunpack.c.l.b16 %v7002
      %v7744 = vunpack.c.h.b16 %v7002
      %v7745 = vunpack.c.l.b16 %v7003
      %v7746 = vunpack.c.h.b16 %v7003
      %v7747 = vunpack.c.l.b16 %v7004
      %v7748 = vunpack.c.h.b16 %v7004
      %v7749 = vunpack.c.l.b16 %v7005
      %v7750 = vunpack.c.h.b16 %v7005
      %v7751 = vunpack.c.l.b16 %v7006
      %v7752 = vunpack.c.h.b16 %v7006
      %v7753 = vunpack.c.l.b16 %v7007
      %v7754 = vunpack.c.h.b16 %v7007
      %v7755 = vunpack.c.l.b16 %v7008
      %v7756 = vunpack.c.h.b16 %v7008
      %v7757 = vunpack.c.l.b16 %v7009
      %v7758 = vunpack.c.h.b16 %v7009
      %v7759 = vunpack.c.l.b16 %v7010
      %v7760 = vunpack.c.h.b16 %v7010
      %v7761 = vunpack.c.l.b16 %v7011
      %v7762 = vunpack.c.h.b16 %v7011
      %v7763 = vunpack.c.l.b16 %v7012
      %v7764 = vunpack.c.h.b16 %v7012
      %v7765 = vunpack.c.l.b16 %v7013
      %v7766 = vunpack.c.h.b16 %v7013
      %v7767 = vunpack.c.l.b16 %v7014
      %v7768 = vunpack.c.h.b16 %v7014
      %v7769 = vunpack.c.l.b16 %v7015
      %v7770 = vunpack.c.h.b16 %v7015
      %v7771 = vunpack.c.l.b16 %v7016
      %v7772 = vunpack.c.h.b16 %v7016
      %v7773 = vunpack.c.l.b16 %v7017
      %v7774 = vunpack.c.h.b16 %v7017
      %v7775 = vunpack.c.l.b16 %v7018
      %v7776 = vunpack.c.h.b16 %v7018
      %v7777 = vunpack.c.l.b16 %v7019
      %v7778 = vunpack.c.h.b16 %v7019
      %v7779 = vunpack.c.l.b16 %v7020
      %v7780 = vunpack.c.h.b16 %v7020
      %v7781 = vunpack.c.l.b16 %v7021
      %v7782 = vunpack.c.h.b16 %v7021
      %v7783 = vunpack.c.l.b16 %v7022
      %v7784 = vunpack.c.h.b16 %v7022
      %v7785 = vunpack.c.l.b16 %v7023
      %v7786 = vunpack.c.h.b16 %v7023
      %v7787 = vunpack.c.l.b16 %v7024
      %v7788 = vunpack.c.h.b16 %v7024
      %v7789 = vunpack.c.l.b16 %v7025
      %v7790 = vunpack.c.h.b16 %v7025
      %v7791 = vunpack.c.l.b16 %v7026
      %v7792 = vunpack.c.h.b16 %v7026
      %v7793 = vunpack.c.l.b16 %v7027
      %v7794 = vunpack.c.h.b16 %v7027
      %v7795 = vunpack.c.l.b16 %v7028
      %v7796 = vunpack.c.h.b16 %v7028
      %v7797 = vunpack.c.l.b16 %v7029
      %v7798 = vunpack.c.h.b16 %v7029
      %v7799 = vunpack.c.l.b16 %v7030
      %v7800 = vunpack.c.h.b16 %v7030
      %v7801 = vunpack.c.l.b16 %v7031
      %v7802 = vunpack.c.h.b16 %v7031
      %v7803 = vunpack.c.l.b16 %v7032
      %v7804 = vunpack.c.h.b16 %v7032
      %v7805 = vunpack.c.l.b16 %v7033
      %v7806 = vunpack.c.h.b16 %v7033
      %v7807 = vunpack.c.l.b16 %v7034
      %v7808 = vunpack.c.h.b16 %v7034
      %v7809 = vunpack.c.l.b16 %v7035
      %v7810 = vunpack.c.h.b16 %v7035
      %v7811 = vunpack.c.l.b16 %v7036
      %v7812 = vunpack.c.h.b16 %v7036
      %v7813 = vunpack.c.l.b16 %v7037
      %v7814 = vunpack.c.h.b16 %v7037
      %v7815 = vunpack.c.l.b16 %v7038
      %v7816 = vunpack.c.h.b16 %v7038
      %v7817 = vunpack.c.l.b16 %v7039
      %v7818 = vunpack.c.h.b16 %v7039
      %v7819 = vunpack.c.l.b16 %v7040
      %v7820 = vunpack.c.h.b16 %v7040
      %v7821 = vpack.c.b16 %v7695, %v7693
      %v7822 = vpack.c.b16 %v7696, %v7694
      %v7823 = vpack.c.b16 %v7699, %v7697
      %v7824 = vpack.c.b16 %v7700, %v7698
      %v7825 = vpack.c.b16 %v7703, %v7701
      %v7826 = vpack.c.b16 %v7704, %v7702
      %v7827 = vpack.c.b16 %v7707, %v7705
      %v7828 = vpack.c.b16 %v7708, %v7706
      %v7829 = vpack.c.b16 %v7711, %v7709
      %v7830 = vpack.c.b16 %v7712, %v7710
      %v7831 = vpack.c.b16 %v7715, %v7713
      %v7832 = vpack.c.b16 %v7716, %v7714
      %v7833 = vpack.c.b16 %v7719, %v7717
      %v7834 = vpack.c.b16 %v7720, %v7718
      %v7835 = vpack.c.b16 %v7723, %v7721
      %v7836 = vpack.c.b16 %v7724, %v7722
      %v7837 = vpack.c.b16 %v7727, %v7725
      %v7838 = vpack.c.b16 %v7728, %v7726
      %v7839 = vpack.c.b16 %v7731, %v7729
      %v7840 = vpack.c.b16 %v7732, %v7730
      %v7841 = vpack.c.b16 %v7735, %v7733
      %v7842 = vpack.c.b16 %v7736, %v7734
      %v7843 = vpack.c.b16 %v7739, %v7737
      %v7844 = vpack.c.b16 %v7740, %v7738
      %v7845 = vpack.c.b16 %v7743, %v7741
      %v7846 = vpack.c.b16 %v7744, %v7742
      %v7847 = vpack.c.b16 %v7747, %v7745
      %v7848 = vpack.c.b16 %v7748, %v7746
      %v7849 = vpack.c.b16 %v7751, %v7749
      %v7850 = vpack.c.b16 %v7752, %v7750
      %v7851 = vpack.c.b16 %v7755, %v7753
      %v7852 = vpack.c.b16 %v7756, %v7754
      %v7853 = vpack.c.b16 %v7759, %v7757
      %v7854 = vpack.c.b16 %v7760, %v7758
      %v7855 = vpack.c.b16 %v7763, %v7761
      %v7856 = vpack.c.b16 %v7764, %v7762
      %v7857 = vpack.c.b16 %v7767, %v7765
      %v7858 = vpack.c.b16 %v7768, %v7766
      %v7859 = vpack.c.b16 %v7771, %v7769
      %v7860 = vpack.c.b16 %v7772, %v7770
      %v7861 = vpack.c.b16 %v7775, %v7773
      %v7862 = vpack.c.b16 %v7776, %v7774
      %v7863 = vpack.c.b16 %v7779, %v7777
      %v7864 = vpack.c.b16 %v7780, %v7778
      %v7865 = vpack.c.b16 %v7783, %v7781
      %v7866 = vpack.c.b16 %v7784, %v7782
      %v7867 = vpack.c.b16 %v7787, %v7785
      %v7868 = vpack.c.b16 %v7788, %v7786
      %v7869 = vpack.c.b16 %v7791, %v7789
      %v7870 = vpack.c.b16 %v7792, %v7790
      %v7871 = vpack.c.b16 %v7795, %v7793
      %v7872 = vpack.c.b16 %v7796, %v7794
      %v7873 = vpack.c.b16 %v7799, %v7797
      %v7874 = vpack.c.b16 %v7800, %v7798
      %v7875 = vpack.c.b16 %v7803, %v7801
      %v7876 = vpack.c.b16 %v7804, %v7802
      %v7877 = vpack.c.b16 %v7807, %v7805
      %v7878 = vpack.c.b16 %v7808, %v7806
      %v7879 = vpack.c.b16 %v7811, %v7809
      %v7880 = vpack.c.b16 %v7812, %v7810
      %v7881 = vpack.c.b16 %v7815, %v7813
      %v7882 = vpack.c.b16 %v7816, %v7814
      %v7883 = vpack.c.b16 %v7819, %v7817
      %v7884 = vpack.c.b16 %v7820, %v7818
      %7949 = vmatpush.bf16.msra.mxu0 %v7835
      %7950 = vmatpush.bf16.msra.mxu0 %v7833
      %7951 = vmatpush.bf16.msra.mxu0 %v7831
      %7952 = vmatpush.bf16.msra.mxu0 %v7829
      %7953 = vmatpush.bf16.msra.mxu0 %v7827
      %7954 = vmatpush.bf16.msra.mxu0 %v7825
      %7955 = vmatpush.bf16.msra.mxu0 %v7823
      %7956 = vmatpush.bf16.msra.mxu0 %v7821
      %7957 = vmatmul.bf16.gmra.mxu0 %v7621
      %v7958 = vpop.f32.mrf.mxu0
      %v7959 = vadd.f32 %v7474, %v7958
      %v7960 = vpop.f32.mrf.mxu0
      %7961 = vdwg.mxu0
      %7962 = vmatpush.bf16.msra.mxu0 %v7851
      %7963 = vmatpush.bf16.msra.mxu0 %v7849
      %7964 = vmatpush.bf16.msra.mxu0 %v7847
      %7965 = vmatpush.bf16.msra.mxu0 %v7845
      %7966 = vmatpush.bf16.msra.mxu0 %v7843
      %7967 = vmatpush.bf16.msra.mxu0 %v7841
      %7968 = vmatpush.bf16.msra.mxu0 %v7839
      %7969 = vmatpush.bf16.msra.mxu0 %v7837
      %7970 = vmatmul.bf16.gmra.mxu0 %v7622
      %v7971 = vpop.f32.mrf.mxu0
      %v7972 = vadd.f32 %v7959, %v7971
      %v7973 = vpop.f32.mrf.mxu0
      %7974 = vdwg.mxu0
      %7975 = vmatpush.bf16.msra.mxu0 %v7867
      %7976 = vmatpush.bf16.msra.mxu0 %v7865
      %7977 = vmatpush.bf16.msra.mxu0 %v7863
      %7978 = vmatpush.bf16.msra.mxu0 %v7861
      %7979 = vmatpush.bf16.msra.mxu0 %v7859
      %7980 = vmatpush.bf16.msra.mxu0 %v7857
      %7981 = vmatpush.bf16.msra.mxu0 %v7855
      %7982 = vmatpush.bf16.msra.mxu0 %v7853
      %7983 = vmatmul.bf16.gmra.mxu0 %v7623
      %v7984 = vpop.f32.mrf.mxu0
      %v7985 = vadd.f32 %v7972, %v7984
      %v7986 = vpop.f32.mrf.mxu0
      %7987 = vdwg.mxu0
      %7988 = vmatpush.bf16.msra.mxu0 %v7883
      %7989 = vmatpush.bf16.msra.mxu0 %v7881
      %7990 = vmatpush.bf16.msra.mxu0 %v7879
      %7991 = vmatpush.bf16.msra.mxu0 %v7877
      %7992 = vmatpush.bf16.msra.mxu0 %v7875
      %7993 = vmatpush.bf16.msra.mxu0 %v7873
      %7994 = vmatpush.bf16.msra.mxu0 %v7871
      %7995 = vmatpush.bf16.msra.mxu0 %v7869
      %7996 = vmatmul.bf16.gmra.mxu0 %v7624
      %v7997 = vpop.f32.mrf.mxu0
      %v7998 = vadd.f32 %v7985, %v7997
      %v7999 = vpop.f32.mrf.mxu0
      %8000 = vdwg.mxu0
      %8001 = vmatpush.bf16.msra.mxu0 %v7836
      %8002 = vmatpush.bf16.msra.mxu0 %v7834
      %8003 = vmatpush.bf16.msra.mxu0 %v7832
      %8004 = vmatpush.bf16.msra.mxu0 %v7830
      %8005 = vmatpush.bf16.msra.mxu0 %v7828
      %8006 = vmatpush.bf16.msra.mxu0 %v7826
      %8007 = vmatpush.bf16.msra.mxu0 %v7824
      %8008 = vmatpush.bf16.msra.mxu0 %v7822
      %8009 = vmatmul.bf16.gmra.mxu0 %v7621
      %v8010 = vpop.f32.mrf.mxu0
      %v8011 = vadd.f32 %v7526, %v8010
      %v8012 = vpop.f32.mrf.mxu0
      %8013 = vdwg.mxu0
      %8014 = vmatpush.bf16.msra.mxu0 %v7852
      %8015 = vmatpush.bf16.msra.mxu0 %v7850
      %8016 = vmatpush.bf16.msra.mxu0 %v7848
      %8017 = vmatpush.bf16.msra.mxu0 %v7846
      %8018 = vmatpush.bf16.msra.mxu0 %v7844
      %8019 = vmatpush.bf16.msra.mxu0 %v7842
      %8020 = vmatpush.bf16.msra.mxu0 %v7840
      %8021 = vmatpush.bf16.msra.mxu0 %v7838
      %8022 = vmatmul.bf16.gmra.mxu0 %v7622
      %v8023 = vpop.f32.mrf.mxu0
      %v8024 = vadd.f32 %v8011, %v8023
      %v8025 = vpop.f32.mrf.mxu0
      %8026 = vdwg.mxu0
      %8027 = vmatpush.bf16.msra.mxu0 %v7868
      %8028 = vmatpush.bf16.msra.mxu0 %v7866
      %8029 = vmatpush.bf16.msra.mxu0 %v7864
      %8030 = vmatpush.bf16.msra.mxu0 %v7862
      %8031 = vmatpush.bf16.msra.mxu0 %v7860
      %8032 = vmatpush.bf16.msra.mxu0 %v7858
      %8033 = vmatpush.bf16.msra.mxu0 %v7856
      %8034 = vmatpush.bf16.msra.mxu0 %v7854
      %8035 = vmatmul.bf16.gmra.mxu0 %v7623
      %v8036 = vpop.f32.mrf.mxu0
      %v8037 = vadd.f32 %v8024, %v8036
      %v8038 = vpop.f32.mrf.mxu0
      %8039 = vdwg.mxu0
      %8040 = vmatpush.bf16.msra.mxu0 %v7884
      %8041 = vmatpush.bf16.msra.mxu0 %v7882
      %8042 = vmatpush.bf16.msra.mxu0 %v7880
      %8043 = vmatpush.bf16.msra.mxu0 %v7878
      %8044 = vmatpush.bf16.msra.mxu0 %v7876
      %8045 = vmatpush.bf16.msra.mxu0 %v7874
      %8046 = vmatpush.bf16.msra.mxu0 %v7872
      %8047 = vmatpush.bf16.msra.mxu0 %v7870
      %8048 = vmatmul.bf16.gmra.mxu0 %v7624
      %v8049 = vpop.f32.mrf.mxu0
      %v8050 = vadd.f32 %v8037, %v8049
      %v8051 = vpop.f32.mrf.mxu0
      %8052 = vdwg.mxu0
      %v8053 = vld [vmem:[%s21] sm:$0xff]
      %v8054 = vld [vmem:[%s21 + $0x8] sm:$0xff]
      %v8055 = vld [vmem:[%s21 + $0x10] sm:$0xff]
      %v8056 = vld [vmem:[%s21 + $0x18] sm:$0xff]
      %v8057 = vld [vmem:[%s21 + $0x20] sm:$0xff]
      %v8058 = vld [vmem:[%s21 + $0x28] sm:$0xff]
      %v8059 = vld [vmem:[%s21 + $0x30] sm:$0xff]
      %v8060 = vld [vmem:[%s21 + $0x38] sm:$0xff]
      %v8061 = vld [vmem:[%s21 + $0x40] sm:$0xff]
      %v8062 = vld [vmem:[%s21 + $0x48] sm:$0xff]
      %v8063 = vld [vmem:[%s21 + $0x50] sm:$0xff]
      %v8064 = vld [vmem:[%s21 + $0x58] sm:$0xff]
      %v8065 = vld [vmem:[%s21 + $0x60] sm:$0xff]
      %v8066 = vld [vmem:[%s21 + $0x68] sm:$0xff]
      %v8067 = vld [vmem:[%s21 + $0x70] sm:$0xff]
      %v8068 = vld [vmem:[%s21 + $0x78] sm:$0xff]
      %v8069 = vld [vmem:[%s21 + $0x80] sm:$0xff]
      %v8070 = vld [vmem:[%s21 + $0x88] sm:$0xff]
      %v8071 = vld [vmem:[%s21 + $0x90] sm:$0xff]
      %v8072 = vld [vmem:[%s21 + $0x98] sm:$0xff]
      %v8073 = vld [vmem:[%s21 + $0xa0] sm:$0xff]
      %v8074 = vld [vmem:[%s21 + $0xa8] sm:$0xff]
      %v8075 = vld [vmem:[%s21 + $0xb0] sm:$0xff]
      %v8076 = vld [vmem:[%s21 + $0xb8] sm:$0xff]
      %v8077 = vld [vmem:[%s21 + $0xc0] sm:$0xff]
      %v8078 = vld [vmem:[%s21 + $0xc8] sm:$0xff]
      %v8079 = vld [vmem:[%s21 + $0xd0] sm:$0xff]
      %v8080 = vld [vmem:[%s21 + $0xd8] sm:$0xff]
      %v8081 = vld [vmem:[%s21 + $0xe0] sm:$0xff]
      %v8082 = vld [vmem:[%s21 + $0xe8] sm:$0xff]
      %v8083 = vld [vmem:[%s21 + $0xf0] sm:$0xff]
      %v8084 = vld [vmem:[%s21 + $0xf8] sm:$0xff]
      %v8085 = vld [vmem:[%s21 + $0x100] sm:$0xff]
      %v8086 = vld [vmem:[%s21 + $0x108] sm:$0xff]
      %v8087 = vld [vmem:[%s21 + $0x110] sm:$0xff]
      %v8088 = vld [vmem:[%s21 + $0x118] sm:$0xff]
      %v8089 = vld [vmem:[%s21 + $0x120] sm:$0xff]
      %v8090 = vld [vmem:[%s21 + $0x128] sm:$0xff]
      %v8091 = vld [vmem:[%s21 + $0x130] sm:$0xff]
      %v8092 = vld [vmem:[%s21 + $0x138] sm:$0xff]
      %v8093 = vld [vmem:[%s21 + $0x140] sm:$0xff]
      %v8094 = vld [vmem:[%s21 + $0x148] sm:$0xff]
      %v8095 = vld [vmem:[%s21 + $0x150] sm:$0xff]
      %v8096 = vld [vmem:[%s21 + $0x158] sm:$0xff]
      %v8097 = vld [vmem:[%s21 + $0x160] sm:$0xff]
      %v8098 = vld [vmem:[%s21 + $0x168] sm:$0xff]
      %v8099 = vld [vmem:[%s21 + $0x170] sm:$0xff]
      %v8100 = vld [vmem:[%s21 + $0x178] sm:$0xff]
      %v8101 = vld [vmem:[%s21 + $0x180] sm:$0xff]
      %v8102 = vld [vmem:[%s21 + $0x188] sm:$0xff]
      %v8103 = vld [vmem:[%s21 + $0x190] sm:$0xff]
      %v8104 = vld [vmem:[%s21 + $0x198] sm:$0xff]
      %v8105 = vld [vmem:[%s21 + $0x1a0] sm:$0xff]
      %v8106 = vld [vmem:[%s21 + $0x1a8] sm:$0xff]
      %v8107 = vld [vmem:[%s21 + $0x1b0] sm:$0xff]
      %v8108 = vld [vmem:[%s21 + $0x1b8] sm:$0xff]
      %v8109 = vld [vmem:[%s21 + $0x1c0] sm:$0xff]
      %v8110 = vld [vmem:[%s21 + $0x1c8] sm:$0xff]
      %v8111 = vld [vmem:[%s21 + $0x1d0] sm:$0xff]
      %v8112 = vld [vmem:[%s21 + $0x1d8] sm:$0xff]
      %v8113 = vld [vmem:[%s21 + $0x1e0] sm:$0xff]
      %v8114 = vld [vmem:[%s21 + $0x1e8] sm:$0xff]
      %v8115 = vld [vmem:[%s21 + $0x1f0] sm:$0xff]
      %v8116 = vld [vmem:[%s21 + $0x1f8] sm:$0xff]
      %v8181 = vunpack.c.l.b16 %v8053
      %v8182 = vunpack.c.h.b16 %v8053
      %v8183 = vunpack.c.l.b16 %v8054
      %v8184 = vunpack.c.h.b16 %v8054
      %v8185 = vunpack.c.l.b16 %v8055
      %v8186 = vunpack.c.h.b16 %v8055
      %v8187 = vunpack.c.l.b16 %v8056
      %v8188 = vunpack.c.h.b16 %v8056
      %v8189 = vunpack.c.l.b16 %v8057
      %v8190 = vunpack.c.h.b16 %v8057
      %v8191 = vunpack.c.l.b16 %v8058
      %v8192 = vunpack.c.h.b16 %v8058
      %v8193 = vunpack.c.l.b16 %v8059
      %v8194 = vunpack.c.h.b16 %v8059
      %v8195 = vunpack.c.l.b16 %v8060
      %v8196 = vunpack.c.h.b16 %v8060
      %v8197 = vunpack.c.l.b16 %v8061
      %v8198 = vunpack.c.h.b16 %v8061
      %v8199 = vunpack.c.l.b16 %v8062
      %v8200 = vunpack.c.h.b16 %v8062
      %v8201 = vunpack.c.l.b16 %v8063
      %v8202 = vunpack.c.h.b16 %v8063
      %v8203 = vunpack.c.l.b16 %v8064
      %v8204 = vunpack.c.h.b16 %v8064
      %v8205 = vunpack.c.l.b16 %v8065
      %v8206 = vunpack.c.h.b16 %v8065
      %v8207 = vunpack.c.l.b16 %v8066
      %v8208 = vunpack.c.h.b16 %v8066
      %v8209 = vunpack.c.l.b16 %v8067
      %v8210 = vunpack.c.h.b16 %v8067
      %v8211 = vunpack.c.l.b16 %v8068
      %v8212 = vunpack.c.h.b16 %v8068
      %v8213 = vunpack.c.l.b16 %v8069
      %v8214 = vunpack.c.h.b16 %v8069
      %v8215 = vunpack.c.l.b16 %v8070
      %v8216 = vunpack.c.h.b16 %v8070
      %v8217 = vunpack.c.l.b16 %v8071
      %v8218 = vunpack.c.h.b16 %v8071
      %v8219 = vunpack.c.l.b16 %v8072
      %v8220 = vunpack.c.h.b16 %v8072
      %v8221 = vunpack.c.l.b16 %v8073
      %v8222 = vunpack.c.h.b16 %v8073
      %v8223 = vunpack.c.l.b16 %v8074
      %v8224 = vunpack.c.h.b16 %v8074
      %v8225 = vunpack.c.l.b16 %v8075
      %v8226 = vunpack.c.h.b16 %v8075
      %v8227 = vunpack.c.l.b16 %v8076
      %v8228 = vunpack.c.h.b16 %v8076
      %v8229 = vunpack.c.l.b16 %v8077
      %v8230 = vunpack.c.h.b16 %v8077
      %v8231 = vunpack.c.l.b16 %v8078
      %v8232 = vunpack.c.h.b16 %v8078
      %v8233 = vunpack.c.l.b16 %v8079
      %v8234 = vunpack.c.h.b16 %v8079
      %v8235 = vunpack.c.l.b16 %v8080
      %v8236 = vunpack.c.h.b16 %v8080
      %v8237 = vunpack.c.l.b16 %v8081
      %v8238 = vunpack.c.h.b16 %v8081
      %v8239 = vunpack.c.l.b16 %v8082
      %v8240 = vunpack.c.h.b16 %v8082
      %v8241 = vunpack.c.l.b16 %v8083
      %v8242 = vunpack.c.h.b16 %v8083
      %v8243 = vunpack.c.l.b16 %v8084
      %v8244 = vunpack.c.h.b16 %v8084
      %v8245 = vunpack.c.l.b16 %v8085
      %v8246 = vunpack.c.h.b16 %v8085
      %v8247 = vunpack.c.l.b16 %v8086
      %v8248 = vunpack.c.h.b16 %v8086
      %v8249 = vunpack.c.l.b16 %v8087
      %v8250 = vunpack.c.h.b16 %v8087
      %v8251 = vunpack.c.l.b16 %v8088
      %v8252 = vunpack.c.h.b16 %v8088
      %v8253 = vunpack.c.l.b16 %v8089
      %v8254 = vunpack.c.h.b16 %v8089
      %v8255 = vunpack.c.l.b16 %v8090
      %v8256 = vunpack.c.h.b16 %v8090
      %v8257 = vunpack.c.l.b16 %v8091
      %v8258 = vunpack.c.h.b16 %v8091
      %v8259 = vunpack.c.l.b16 %v8092
      %v8260 = vunpack.c.h.b16 %v8092
      %v8261 = vunpack.c.l.b16 %v8093
      %v8262 = vunpack.c.h.b16 %v8093
      %v8263 = vunpack.c.l.b16 %v8094
      %v8264 = vunpack.c.h.b16 %v8094
      %v8265 = vunpack.c.l.b16 %v8095
      %v8266 = vunpack.c.h.b16 %v8095
      %v8267 = vunpack.c.l.b16 %v8096
      %v8268 = vunpack.c.h.b16 %v8096
      %v8269 = vunpack.c.l.b16 %v8097
      %v8270 = vunpack.c.h.b16 %v8097
      %v8271 = vunpack.c.l.b16 %v8098
      %v8272 = vunpack.c.h.b16 %v8098
      %v8273 = vunpack.c.l.b16 %v8099
      %v8274 = vunpack.c.h.b16 %v8099
      %v8275 = vunpack.c.l.b16 %v8100
      %v8276 = vunpack.c.h.b16 %v8100
      %v8277 = vunpack.c.l.b16 %v8101
      %v8278 = vunpack.c.h.b16 %v8101
      %v8279 = vunpack.c.l.b16 %v8102
      %v8280 = vunpack.c.h.b16 %v8102
      %v8281 = vunpack.c.l.b16 %v8103
      %v8282 = vunpack.c.h.b16 %v8103
      %v8283 = vunpack.c.l.b16 %v8104
      %v8284 = vunpack.c.h.b16 %v8104
      %v8285 = vunpack.c.l.b16 %v8105
      %v8286 = vunpack.c.h.b16 %v8105
      %v8287 = vunpack.c.l.b16 %v8106
      %v8288 = vunpack.c.h.b16 %v8106
      %v8289 = vunpack.c.l.b16 %v8107
      %v8290 = vunpack.c.h.b16 %v8107
      %v8291 = vunpack.c.l.b16 %v8108
      %v8292 = vunpack.c.h.b16 %v8108
      %v8293 = vunpack.c.l.b16 %v8109
      %v8294 = vunpack.c.h.b16 %v8109
      %v8295 = vunpack.c.l.b16 %v8110
      %v8296 = vunpack.c.h.b16 %v8110
      %v8297 = vunpack.c.l.b16 %v8111
      %v8298 = vunpack.c.h.b16 %v8111
      %v8299 = vunpack.c.l.b16 %v8112
      %v8300 = vunpack.c.h.b16 %v8112
      %v8301 = vunpack.c.l.b16 %v8113
      %v8302 = vunpack.c.h.b16 %v8113
      %v8303 = vunpack.c.l.b16 %v8114
      %v8304 = vunpack.c.h.b16 %v8114
      %v8305 = vunpack.c.l.b16 %v8115
      %v8306 = vunpack.c.h.b16 %v8115
      %v8307 = vunpack.c.l.b16 %v8116
      %v8308 = vunpack.c.h.b16 %v8116
      %v8309 = vpack.c.b16 %v8183, %v8181
      %v8310 = vpack.c.b16 %v8184, %v8182
      %v8311 = vpack.c.b16 %v8187, %v8185
      %v8312 = vpack.c.b16 %v8188, %v8186
      %v8313 = vpack.c.b16 %v8191, %v8189
      %v8314 = vpack.c.b16 %v8192, %v8190
      %v8315 = vpack.c.b16 %v8195, %v8193
      %v8316 = vpack.c.b16 %v8196, %v8194
      %v8317 = vpack.c.b16 %v8199, %v8197
      %v8318 = vpack.c.b16 %v8200, %v8198
      %v8319 = vpack.c.b16 %v8203, %v8201
      %v8320 = vpack.c.b16 %v8204, %v8202
      %v8321 = vpack.c.b16 %v8207, %v8205
      %v8322 = vpack.c.b16 %v8208, %v8206
      %v8323 = vpack.c.b16 %v8211, %v8209
      %v8324 = vpack.c.b16 %v8212, %v8210
      %v8325 = vpack.c.b16 %v8215, %v8213
      %v8326 = vpack.c.b16 %v8216, %v8214
      %v8327 = vpack.c.b16 %v8219, %v8217
      %v8328 = vpack.c.b16 %v8220, %v8218
      %v8329 = vpack.c.b16 %v8223, %v8221
      %v8330 = vpack.c.b16 %v8224, %v8222
      %v8331 = vpack.c.b16 %v8227, %v8225
      %v8332 = vpack.c.b16 %v8228, %v8226
      %v8333 = vpack.c.b16 %v8231, %v8229
      %v8334 = vpack.c.b16 %v8232, %v8230
      %v8335 = vpack.c.b16 %v8235, %v8233
      %v8336 = vpack.c.b16 %v8236, %v8234
      %v8337 = vpack.c.b16 %v8239, %v8237
      %v8338 = vpack.c.b16 %v8240, %v8238
      %v8339 = vpack.c.b16 %v8243, %v8241
      %v8340 = vpack.c.b16 %v8244, %v8242
      %v8341 = vpack.c.b16 %v8247, %v8245
      %v8342 = vpack.c.b16 %v8248, %v8246
      %v8343 = vpack.c.b16 %v8251, %v8249
      %v8344 = vpack.c.b16 %v8252, %v8250
      %v8345 = vpack.c.b16 %v8255, %v8253
      %v8346 = vpack.c.b16 %v8256, %v8254
      %v8347 = vpack.c.b16 %v8259, %v8257
      %v8348 = vpack.c.b16 %v8260, %v8258
      %v8349 = vpack.c.b16 %v8263, %v8261
      %v8350 = vpack.c.b16 %v8264, %v8262
      %v8351 = vpack.c.b16 %v8267, %v8265
      %v8352 = vpack.c.b16 %v8268, %v8266
      %v8353 = vpack.c.b16 %v8271, %v8269
      %v8354 = vpack.c.b16 %v8272, %v8270
      %v8355 = vpack.c.b16 %v8275, %v8273
      %v8356 = vpack.c.b16 %v8276, %v8274
      %v8357 = vpack.c.b16 %v8279, %v8277
      %v8358 = vpack.c.b16 %v8280, %v8278
      %v8359 = vpack.c.b16 %v8283, %v8281
      %v8360 = vpack.c.b16 %v8284, %v8282
      %v8361 = vpack.c.b16 %v8287, %v8285
      %v8362 = vpack.c.b16 %v8288, %v8286
      %v8363 = vpack.c.b16 %v8291, %v8289
      %v8364 = vpack.c.b16 %v8292, %v8290
      %v8365 = vpack.c.b16 %v8295, %v8293
      %v8366 = vpack.c.b16 %v8296, %v8294
      %v8367 = vpack.c.b16 %v8299, %v8297
      %v8368 = vpack.c.b16 %v8300, %v8298
      %v8369 = vpack.c.b16 %v8303, %v8301
      %v8370 = vpack.c.b16 %v8304, %v8302
      %v8371 = vpack.c.b16 %v8307, %v8305
      %v8372 = vpack.c.b16 %v8308, %v8306
      %8437 = vmatpush.bf16.msra.mxu0 %v8323
      %8438 = vmatpush.bf16.msra.mxu0 %v8321
      %8439 = vmatpush.bf16.msra.mxu0 %v8319
      %8440 = vmatpush.bf16.msra.mxu0 %v8317
      %8441 = vmatpush.bf16.msra.mxu0 %v8315
      %8442 = vmatpush.bf16.msra.mxu0 %v8313
      %8443 = vmatpush.bf16.msra.mxu0 %v8311
      %8444 = vmatpush.bf16.msra.mxu0 %v8309
      %8445 = vmatmul.bf16.gmra.mxu0 %v6973
      %v8446 = vpop.f32.mrf.mxu0
      %v8447 = vadd.f32 0.0, %v8446
      %v8448 = vpop.f32.mrf.mxu0
      %8449 = vdwg.mxu0
      %8450 = vmatpush.bf16.msra.mxu0 %v8339
      %8451 = vmatpush.bf16.msra.mxu0 %v8337
      %8452 = vmatpush.bf16.msra.mxu0 %v8335
      %8453 = vmatpush.bf16.msra.mxu0 %v8333
      %8454 = vmatpush.bf16.msra.mxu0 %v8331
      %8455 = vmatpush.bf16.msra.mxu0 %v8329
      %8456 = vmatpush.bf16.msra.mxu0 %v8327
      %8457 = vmatpush.bf16.msra.mxu0 %v8325
      %8458 = vmatmul.bf16.gmra.mxu0 %v6974
      %v8459 = vpop.f32.mrf.mxu0
      %v8460 = vadd.f32 %v8447, %v8459
      %v8461 = vpop.f32.mrf.mxu0
      %8462 = vdwg.mxu0
      %8463 = vmatpush.bf16.msra.mxu0 %v8355
      %8464 = vmatpush.bf16.msra.mxu0 %v8353
      %8465 = vmatpush.bf16.msra.mxu0 %v8351
      %8466 = vmatpush.bf16.msra.mxu0 %v8349
      %8467 = vmatpush.bf16.msra.mxu0 %v8347
      %8468 = vmatpush.bf16.msra.mxu0 %v8345
      %8469 = vmatpush.bf16.msra.mxu0 %v8343
      %8470 = vmatpush.bf16.msra.mxu0 %v8341
      %8471 = vmatmul.bf16.gmra.mxu0 %v6975
      %v8472 = vpop.f32.mrf.mxu0
      %v8473 = vadd.f32 %v8460, %v8472
      %v8474 = vpop.f32.mrf.mxu0
      %8475 = vdwg.mxu0
      %8476 = vmatpush.bf16.msra.mxu0 %v8371
      %8477 = vmatpush.bf16.msra.mxu0 %v8369
      %8478 = vmatpush.bf16.msra.mxu0 %v8367
      %8479 = vmatpush.bf16.msra.mxu0 %v8365
      %8480 = vmatpush.bf16.msra.mxu0 %v8363
      %8481 = vmatpush.bf16.msra.mxu0 %v8361
      %8482 = vmatpush.bf16.msra.mxu0 %v8359
      %8483 = vmatpush.bf16.msra.mxu0 %v8357
      %8484 = vmatmul.bf16.gmra.mxu0 %v6976
      %v8485 = vpop.f32.mrf.mxu0
      %v8486 = vadd.f32 %v8473, %v8485
      %v8487 = vpop.f32.mrf.mxu0
      %8488 = vdwg.mxu0
      %8489 = vmatpush.bf16.msra.mxu0 %v8324
      %8490 = vmatpush.bf16.msra.mxu0 %v8322
      %8491 = vmatpush.bf16.msra.mxu0 %v8320
      %8492 = vmatpush.bf16.msra.mxu0 %v8318
      %8493 = vmatpush.bf16.msra.mxu0 %v8316
      %8494 = vmatpush.bf16.msra.mxu0 %v8314
      %8495 = vmatpush.bf16.msra.mxu0 %v8312
      %8496 = vmatpush.bf16.msra.mxu0 %v8310
      %8497 = vmatmul.bf16.gmra.mxu0 %v6973
      %v8498 = vpop.f32.mrf.mxu0
      %v8499 = vadd.f32 0.0, %v8498
      %v8500 = vpop.f32.mrf.mxu0
      %8501 = vdwg.mxu0
      %8502 = vmatpush.bf16.msra.mxu0 %v8340
      %8503 = vmatpush.bf16.msra.mxu0 %v8338
      %8504 = vmatpush.bf16.msra.mxu0 %v8336
      %8505 = vmatpush.bf16.msra.mxu0 %v8334
      %8506 = vmatpush.bf16.msra.mxu0 %v8332
      %8507 = vmatpush.bf16.msra.mxu0 %v8330
      %8508 = vmatpush.bf16.msra.mxu0 %v8328
      %8509 = vmatpush.bf16.msra.mxu0 %v8326
      %8510 = vmatmul.bf16.gmra.mxu0 %v6974
      %v8511 = vpop.f32.mrf.mxu0
      %v8512 = vadd.f32 %v8499, %v8511
      %v8513 = vpop.f32.mrf.mxu0
      %8514 = vdwg.mxu0
      %8515 = vmatpush.bf16.msra.mxu0 %v8356
      %8516 = vmatpush.bf16.msra.mxu0 %v8354
      %8517 = vmatpush.bf16.msra.mxu0 %v8352
      %8518 = vmatpush.bf16.msra.mxu0 %v8350
      %8519 = vmatpush.bf16.msra.mxu0 %v8348
      %8520 = vmatpush.bf16.msra.mxu0 %v8346
      %8521 = vmatpush.bf16.msra.mxu0 %v8344
      %8522 = vmatpush.bf16.msra.mxu0 %v8342
      %8523 = vmatmul.bf16.gmra.mxu0 %v6975
      %v8524 = vpop.f32.mrf.mxu0
      %v8525 = vadd.f32 %v8512, %v8524
      %v8526 = vpop.f32.mrf.mxu0
      %8527 = vdwg.mxu0
      %8528 = vmatpush.bf16.msra.mxu0 %v8372
      %8529 = vmatpush.bf16.msra.mxu0 %v8370
      %8530 = vmatpush.bf16.msra.mxu0 %v8368
      %8531 = vmatpush.bf16.msra.mxu0 %v8366
      %8532 = vmatpush.bf16.msra.mxu0 %v8364
      %8533 = vmatpush.bf16.msra.mxu0 %v8362
      %8534 = vmatpush.bf16.msra.mxu0 %v8360
      %8535 = vmatpush.bf16.msra.mxu0 %v8358
      %8536 = vmatmul.bf16.gmra.mxu0 %v6976
      %v8537 = vpop.f32.mrf.mxu0
      %v8538 = vadd.f32 %v8525, %v8537
      %v8539 = vpop.f32.mrf.mxu0
      %8540 = vdwg.mxu0
      %v8541 = vadd.f32 %v7998, %v8486
      %v8542 = vadd.f32 %v8050, %v8538
      %v8543 = vld [vmem:[%s22] sm:$0x3]
      %v8545 = vperm.slane %v8543, 0
      %v8546 = vperm.slane %v8543, 1
      %v8549 = vadd.f32 %v8541, %v8545
      %v8550 = vadd.f32 %v8542, %v8546
      %v8551 = vmax.f32 %v8549, 0.0
      %v8552 = vmax.f32 %v8550, 0.0
      %v8555 = vrot.slane %v8552, 6
      %v8556 = vsel %vm3422, %v8551, %v8555
      %v8557 = vsel %vm4384, %v8551, %v8555
      %v8558 = vrot.slane %v8557, 2
      %v8559 = vsel %vm4387, %v8551, %v8555
      %v8560 = vrot.slane %v8559, 4
      %v8561 = vsel %vm4390, %v8555, %v8551
      %v8562 = vrot.slane %v8561, 6
      %8563 = vst [vmem:[#allocation1] ss:$4 sm:$0xff] %v8556
      %v8564 = vld.sshfl [vmem:[#allocation1] sm:$0xff pattern:$0x73625140]
      %v8565 = vld.sshfl [vmem:[#allocation1 + $0x8] sm:$0xff pattern:$0x73625140]
      %s8566 = scalar_lea.vmem [#allocation1], 32
      %8567 = vst [vmem:[%s8566] ss:$4 sm:$0xff] %v8558
      %v8568 = vld.sshfl [vmem:[#allocation1 + $0x20] sm:$0xff pattern:$0x73625140]
      %v8569 = vld.sshfl [vmem:[#allocation1 + $0x28] sm:$0xff pattern:$0x73625140]
      %8570 = vst [vmem:[#allocation1] ss:$4 sm:$0xff] %v8560
      %v8571 = vld.sshfl [vmem:[#allocation1] sm:$0xff pattern:$0x73625140]
      %v8572 = vld.sshfl [vmem:[#allocation1 + $0x8] sm:$0xff pattern:$0x73625140]
      %8573 = vst [vmem:[%s8566] ss:$4 sm:$0xff] %v8562
      %v8574 = vld.sshfl [vmem:[#allocation1 + $0x20] sm:$0xff pattern:$0x73625140]
      %v8575 = vld.sshfl [vmem:[#allocation1 + $0x28] sm:$0xff pattern:$0x73625140]
      %v8584 = vsel %vm3422, %v8564, -inf
      %v8585 = vrot.slane %v8584, 4
      %v8586 = vmax.f32 %v8584, %v8585
      %v8587 = vrot.slane %v8586, 2
      %v8588 = vmax.f32 %v8586, %v8587
      %v8589 = vrot.slane %v8588, 1
      %v8590 = vmax.f32 %v8588, %v8589
      %v8591 = vsel %vm3422, %v8565, -inf
      %v8592 = vrot.slane %v8591, 4
      %v8593 = vmax.f32 %v8591, %v8592
      %v8594 = vrot.slane %v8593, 2
      %v8595 = vmax.f32 %v8593, %v8594
      %v8596 = vrot.slane %v8595, 1
      %v8597 = vmax.f32 %v8595, %v8596
      %v8598 = vsel %vm3422, %v8568, -inf
      %v8599 = vrot.slane %v8598, 4
      %v8600 = vmax.f32 %v8598, %v8599
      %v8601 = vrot.slane %v8600, 2
      %v8602 = vmax.f32 %v8600, %v8601
      %v8603 = vrot.slane %v8602, 1
      %v8604 = vmax.f32 %v8602, %v8603
      %v8605 = vsel %vm3422, %v8569, -inf
      %v8606 = vrot.slane %v8605, 4
      %v8607 = vmax.f32 %v8605, %v8606
      %v8608 = vrot.slane %v8607, 2
      %v8609 = vmax.f32 %v8607, %v8608
      %v8610 = vrot.slane %v8609, 1
      %v8611 = vmax.f32 %v8609, %v8610
      %v8612 = vsel %vm3422, %v8571, -inf
      %v8613 = vrot.slane %v8612, 4
      %v8614 = vmax.f32 %v8612, %v8613
      %v8615 = vrot.slane %v8614, 2
      %v8616 = vmax.f32 %v8614, %v8615
      %v8617 = vrot.slane %v8616, 1
      %v8618 = vmax.f32 %v8616, %v8617
      %v8619 = vsel %vm3422, %v8572, -inf
      %v8620 = vrot.slane %v8619, 4
      %v8621 = vmax.f32 %v8619, %v8620
      %v8622 = vrot.slane %v8621, 2
      %v8623 = vmax.f32 %v8621, %v8622
      %v8624 = vrot.slane %v8623, 1
      %v8625 = vmax.f32 %v8623, %v8624
      %v8626 = vsel %vm3422, %v8574, -inf
      %v8627 = vrot.slane %v8626, 4
      %v8628 = vmax.f32 %v8626, %v8627
      %v8629 = vrot.slane %v8628, 2
      %v8630 = vmax.f32 %v8628, %v8629
      %v8631 = vrot.slane %v8630, 1
      %v8632 = vmax.f32 %v8630, %v8631
      %v8633 = vsel %vm3422, %v8575, -inf
      %v8634 = vrot.slane %v8633, 4
      %v8635 = vmax.f32 %v8633, %v8634
      %v8636 = vrot.slane %v8635, 2
      %v8637 = vmax.f32 %v8635, %v8636
      %v8638 = vrot.slane %v8637, 1
      %v8639 = vmax.f32 %v8637, %v8638
      %v8648 = vrot.slane %v8597, 6
      %v8649 = vrot.slane %v8611, 6
      %v8650 = vrot.slane %v8625, 6
      %v8651 = vrot.slane %v8639, 6
      %v8652 = vsel %vm3422, %v8590, %v8648
      %v8653 = vsel %vm3422, %v8604, %v8649
      %v8654 = vsel %vm3422, %v8618, %v8650
      %v8655 = vsel %vm3422, %v8632, %v8651
      %v8656 = vsel %vm2602, %v8652, %v8652
      %v8657 = vsel %vm2606, %v8652, %v8656
      %v8658 = vrot.slane %v8653, 7
      %v8659 = vsel %vm2596, %v8658, %v8657
      %v8660 = vsel %vm2600, %v8658, %v8659
      %v8661 = vsel %vm2604, %v8658, %v8660
      %v8662 = vsel %vm2608, %v8658, %v8661
      %v8663 = vsel %vm2602, %v8654, %v8654
      %v8664 = vsel %vm2606, %v8654, %v8663
      %v8665 = vrot.slane %v8655, 7
      %v8666 = vsel %vm2596, %v8665, %v8664
      %v8667 = vsel %vm2600, %v8665, %v8666
      %v8668 = vsel %vm2604, %v8665, %v8667
      %v8669 = vsel %vm2608, %v8665, %v8668
      %8672 = vst [vmem:[%s717] sm:$0xf] %v8662
      %8673 = vst [vmem:[%s717 + $0x4] sm:$0xf] %v8669
      %s8674 = smul.u32 2, %s34
      %p8675 = scmp.lt.s32.totalorder %s8674, 3
      %s8676 = scalar_select %p8675, %s8674, 3
      %s8677 = smul.addr %s8676, 2
      %s8678 = smul.addr %s8677, 2
      %s8679 = scalar_lea.vmem %s23, %s8678
      // Predicated region
      $region113: #{backbone_forward.1} parent=111 // pred_check
        %p8680 = pneg %p540
      $region114: #{backbone_forward.1} parent=111 // pred_check_branch
        %8682 = sbr.rel (%p8680) target = $region116
      $region115: #{backbone_forward.1} parent=111 // pred_region
        %s8683 = smul.u32 2, %s34
      $region116: #{backbone_forward.1} parent=111 // pred_fallthru
        _
    $region112: #{backbone_forward.1} parent=5 // pred_fallthru
      _
    %p8684 = scmp.le.s32.totalorder 2, %s29
    // Predicated region
    $region117: #{backbone_forward.1} parent=5 // pred_check
      %p8685 = pneg %p8684
    $region118: #{backbone_forward.1} parent=5 // pred_check_branch
      %8687 = sbr.rel (%p8685) target = $region120
    $region119: #{backbone_forward.1} parent=5 // pred_region
      %s8688 = ssub.s32 %s29, 2
      // Predicated region
      $region121: #{backbone_forward.1} parent=119 // pred_check
        %p8689 = pneg %p546
      $region122: #{backbone_forward.1} parent=119 // pred_check_branch
        %8691 = sbr.rel (%p8689) target = $region124
      $region123: #{backbone_forward.1} parent=119 // pred_region
        %s8692 = smul.u32 2, %s35
        %p8693 = scmp.lt.s32.totalorder %s8692, 3
        %s8694 = scalar_select %p8693, %s8692, 3
        %s8695 = smul.addr %s8694, 2
        %s8696 = smul.addr %s8695, 2
        %s8697 = scalar_lea.vmem %s23, %s8696
      $region124: #{backbone_forward.1} parent=119 // pred_fallthru
        _
    $region120: #{backbone_forward.1} parent=5 // pred_fallthru
      _
  $region6: #{backbone_forward.1} parent=0 // loop_footer
    %s33 = sadd.s32 1, %s29
  $region7: #{backbone_forward.1} parent=0 // loop_footer_branch
    %28 = sbr.rel target = $region3
  $region8: #{backbone_forward.1} parent=0 // loop_exit
    _

</llo_original>
